<compile_context>
chip_gen: v7x
topology: tpu7x:2x2x1
jax: 0.10.0
libtpu: 0.0.40
codegen_flags: <defaults>
</compile_context>

<pallas_src>
import functools

import jax
import jax.numpy as jnp
from jax import lax
from jax.experimental import pallas as pl
from jax.experimental.pallas import tpu as pltpu


def _round_up(x, m):
    return -(-x // m) * m


# --------------------------------------------------------------------------- kernel

def _pkt_gram_kernel(s_ref, t_ref, gs_ref, gt_ref, *,
                     steps_per_core, total_steps,
                     steps_s, steps_t, rem_s, rem_t):
    """Accumulate per-core partial Gram matrices G = F @ F^T over D tiles."""
    c = pl.program_id(0)          # core (parallel) axis
    k = pl.program_id(1)          # D-reduction (arbitrary) axis, per core
    gstep = c * steps_per_core + k

    @pl.when(k == 0)
    def _init():
        gs_ref[...] = jnp.zeros_like(gs_ref)
        gt_ref[...] = jnp.zeros_like(gt_ref)

    dn = (((1,), (1,)), ((), ()))   # contract feature axis of both operands: F @ F^T

    def _gram(x):
        # f32 slabs: HIGHEST precision (multi-pass MXU) — free, kernel is HBM-bound.
        # bf16 slabs: native single-pass MXU, f32 accumulation.
        prec = lax.Precision.HIGHEST if x.dtype == jnp.float32 else None
        return lax.dot_general(x, x, dn, precision=prec,
                               preferred_element_type=jnp.float32)

    # TODO(synk): on v5e, if profiling shows the MXU weight-load path saturating for
    # B <= 128, fuse the two Grams into one (2B, block_d) contraction.
    def _accumulate(x_ref, acc_ref, steps_x, rem_x):
        if rem_x == 0:
            # Every tile of this tensor is full-width.
            if steps_x == total_steps:
                acc_ref[...] += _gram(x_ref[...])
            else:
                @pl.when(gstep < steps_x)
                def _():
                    acc_ref[...] += _gram(x_ref[...])
        else:
            if steps_x > 1:
                @pl.when(gstep < steps_x - 1)
                def _():
                    acc_ref[...] += _gram(x_ref[...])

            @pl.when(gstep == steps_x - 1)
            def _():
                # Ragged last tile: zero the out-of-range lanes (the block window may
                # overhang the array; the overhang contents are unspecified).
                lane = lax.broadcasted_iota(jnp.int32, x_ref.shape, 1)
                x = jnp.where(lane < rem_x, x_ref[...], jnp.zeros((), x_ref.dtype))
                acc_ref[...] += _gram(x)

    _accumulate(s_ref, gs_ref, steps_s, rem_s)
    _accumulate(t_ref, gt_ref, steps_t, rem_t)


# --------------------------------------------------------------------------- sizing

def _vmem_budgets(batch, kind):
    """(vmem_limit_bytes, input_budget_bytes) by TPU generation."""
    out_bytes = 2 * 2 * batch * batch * 4          # two (B,B) f32 outputs, double-buffered
    if "v7" in kind:                               # 64 MiB physical VMEM per TensorCore
        vmem_limit = 48 * 1024 * 1024
        input_budget = vmem_limit - out_bytes - 4 * 1024 * 1024
    else:                                          # v5e / v6e: 128 MiB physical VMEM
        vmem_limit = 100 * 1024 * 1024
        input_budget = min(64 * 1024 * 1024,
                           vmem_limit - out_bytes - 8 * 1024 * 1024)
    return int(vmem_limit), int(max(input_budget, 2 * 1024 * 1024))


def _auto_block_d(batch, d_max, itemsize, input_budget, n_buffers):
    """Widest 128-multiple D tile fitting the budget, with a 4 KiB-per-row burst floor."""
    per_lane = 2 * n_buffers * batch * itemsize          # two inputs, n_buffers each
    bd_budget = (max(input_budget // per_lane, 128) // 128) * 128
    floor = max(512, 4096 // itemsize)                   # 1024 lanes f32 / 2048 lanes bf16
    d_lanes = _round_up(d_max, 128)                      # whole D in one step when it fits
    bd = max(min(bd_budget, d_lanes), min(floor, d_lanes))
    return int(max(bd, 128))


def _input_spec(batch, block_d, index_map, buffers):
    if buffers is not None and int(buffers) != 2:
        try:
            return pl.BlockSpec((batch, block_d), index_map,
                                pipeline_mode=pl.Buffered(int(buffers)))
        except Exception:
            pass  # older API without pipeline_mode: fall back to default double-buffer
    return pl.BlockSpec((batch, block_d), index_map)


# --------------------------------------------------------------------------- epilogue

def _pkt_epilogue(gs, gt, eps):
    """O(B^2) epilogue on the (B, B) f32 Grams (plain JAX; negligible cost)."""
    def _cond_prob(g):
        inv = 1.0 / (jnp.sqrt(jnp.diagonal(g)) + eps)      # 1 / (||f_i|| + eps)
        cos = (g * inv[:, None] * inv[None, :] + 1.0) * 0.5
        return cos / jnp.sum(cos, axis=1, keepdims=True)
    s_p = _cond_prob(gs)
    t_p = _cond_prob(gt)
    return jnp.mean(t_p * jnp.log((t_p + eps) / (s_p + eps)))


# --------------------------------------------------------------------------- wrapper

def pkt_cos_sim_loss(feat_s, feat_t, eps=1e-6, *, block_d=None,
                     num_cores=None, input_buffers=None):
    """Pallas implementation of PKTCosSim.forward.  Accepts (B, ...) tensors."""
    if feat_s.shape[0] != feat_t.shape[0]:
        raise ValueError("feat_s and feat_t must share the batch dimension")
    B = feat_s.shape[0]
    fs = feat_s.reshape(B, -1)
    ft = feat_t.reshape(B, -1)
    ds, dt = fs.shape[1], ft.shape[1]

    try:
        kind = jax.devices()[0].device_kind.lower()
    except Exception:  # pragma: no cover
        kind = ""
    vmem_limit, input_budget = _vmem_budgets(B, kind)
    if num_cores is None:
        num_cores = 2 if "v7" in kind else 1      # v7x: 2 TensorCores per chip
    num_cores = max(1, int(num_cores))

    n_buffers = 2 if input_buffers is None else max(2, int(input_buffers))
    itemsize = max(jnp.dtype(fs.dtype).itemsize, jnp.dtype(ft.dtype).itemsize)
    if block_d is None:
        block_d = _auto_block_d(B, max(ds, dt), itemsize, input_budget, n_buffers)
    block_d = max(128, (int(block_d) // 128) * 128)

    steps_s = -(-ds // block_d)
    steps_t = -(-dt // block_d)
    total_steps = max(steps_s, steps_t)
    steps_per_core = -(-total_steps // num_cores)
    grid = (num_cores, steps_per_core)

    rem_s = ds - (steps_s - 1) * block_d
    rem_s = 0 if rem_s == block_d else rem_s
    rem_t = dt - (steps_t - 1) * block_d
    rem_t = 0 if rem_t == block_d else rem_t

    # Clamp block indices for the narrower tensor: repeated indices incur no re-DMA,
    # and the matching accumulate is skipped inside the kernel.
    def s_map(c, k):
        return (0, jnp.minimum(c * steps_per_core + k, steps_s - 1))

    def t_map(c, k):
        return (0, jnp.minimum(c * steps_per_core + k, steps_t - 1))

    kernel = functools.partial(
        _pkt_gram_kernel,
        steps_per_core=steps_per_core,
        total_steps=num_cores * steps_per_core,
        steps_s=steps_s, steps_t=steps_t, rem_s=rem_s, rem_t=rem_t)

    out_spec = pl.BlockSpec((None, B, B), lambda c, k: (c, 0, 0))
    gs_parts, gt_parts = pl.pallas_call(
        kernel,
        out_shape=(jax.ShapeDtypeStruct((num_cores, B, B), jnp.float32),
                   jax.ShapeDtypeStruct((num_cores, B, B), jnp.float32)),
        grid=grid,
        in_specs=[_input_spec(B, block_d, s_map, input_buffers),
                  _input_spec(B, block_d, t_map, input_buffers)],
        out_specs=(out_spec, out_spec),
        compiler_params=pltpu.CompilerParams(
            dimension_semantics=("parallel", "arbitrary"),
            vmem_limit_bytes=int(vmem_limit)),
    )(fs, ft)

    gs = jnp.sum(gs_parts, axis=0)
    gt = jnp.sum(gt_parts, axis=0)
    return _pkt_epilogue(gs, gt, float(eps))


# --------------------------------------------------------------------------- reference

def _pkt_reference(feat_s, feat_t, eps=1e-6):
    """Pure-JAX reference mirroring the PyTorch module (HIGHEST-precision matmuls)."""
    B = feat_s.shape[0]
    fs = feat_s.reshape(B, -1).astype(jnp.float32)
    ft = feat_t.reshape(B, -1).astype(jnp.float32)
    fs = fs / (jnp.sqrt(jnp.sum(fs ** 2, axis=1, keepdims=True)) + eps)
    fs = jnp.where(jnp.isnan(fs), 0.0, fs)
    ft = ft / (jnp.sqrt(jnp.sum(ft ** 2, axis=1, keepdims=True)) + eps)
    ft = jnp.where(jnp.isnan(ft), 0.0, ft)
    hp = jax.lax.Precision.HIGHEST
    s_cos = (jnp.matmul(fs, fs.T, precision=hp) + 1.0) / 2.0
    t_cos = (jnp.matmul(ft, ft.T, precision=hp) + 1.0) / 2.0
    s_p = s_cos / jnp.sum(s_cos, axis=1, keepdims=True)
    t_p = t_cos / jnp.sum(t_cos, axis=1, keepdims=True)
    return jnp.mean(t_p * jnp.log((t_p + eps) / (s_p + eps)))


if __name__ == "__main__":
    key = jax.random.PRNGKey(0)
    k1, k2, k3, k4 = jax.random.split(key, 4)

    B, C, H, W = 8, 8, 16, 16          # D = C*H*W = 2048
    D = C * H * W
    rank = 4
    # Low-rank structured feature maps -> similarity matrices with real structure, so
    # the KL-style loss is O(0.1) and the numerical comparison is meaningful.
    feat_s = (jax.random.normal(k1, (B, rank), jnp.float32)
              @ jax.random.normal(k2, (rank, D), jnp.float32)).reshape(B, C, H, W)
    feat_t = (jax.random.normal(k3, (B, rank), jnp.float32)
              @ jax.random.normal(k4, (rank, D), jnp.float32)).reshape(B, C, H, W)

    ref = _pkt_reference(feat_s, feat_t)

    # 1) auto-sized wide D tile (single step at this toy size), generation-aware VMEM.
    out1 = pkt_cos_sim_loss(feat_s, feat_t)
    # 2) forced multi-step D reduction + triple-buffered input pipeline.
    out2 = pkt_cos_sim_loss(feat_s, feat_t, block_d=256, input_buffers=3)
    # 3) bf16 slabs straight to the MXU, D reduction split across 2 "cores"
    #    (the v7x dual-TensorCore path; runs fine — just sequentially — on 1-TC chips).
    fs_bf = feat_s.astype(jnp.bfloat16)
    ft_bf = feat_t.astype(jnp.bfloat16)
    out3 = pkt_cos_sim_loss(fs_bf, ft_bf, block_d=512, num_cores=2)
    ref3 = _pkt_reference(fs_bf, ft_bf)
    # 4) mismatched student/teacher widths, non-128-multiple D, non-default eps:
    #    exercises ragged-tile masking + clamped index_map + skipped steps (no jnp.pad).
    fs_odd = feat_s[:, :3, :10, :10]   # D = 300
    ft_odd = feat_t[:, :5, :10, :10]   # D = 500
    out4 = pkt_cos_sim_loss(fs_odd, ft_odd, eps=1e-5, block_d=128)
    ref4 = _pkt_reference(fs_odd, ft_odd, eps=1e-5)

    jax.block_until_ready((out1, out2, out3, out4, ref, ref3, ref4))

    assert jnp.allclose(out1, ref, rtol=5e-3, atol=1e-6), (out1, ref)
    assert jnp.allclose(out2, ref, rtol=5e-3, atol=1e-6), (out2, ref)
    assert jnp.allclose(out3, ref3, rtol=1e-2, atol=1e-6), (out3, ref3)
    assert jnp.allclose(out4, ref4, rtol=5e-3, atol=1e-6), (out4, ref4)

    print("KERNEL_OK")
</pallas_src>

<mosaic_0001>
module attributes {stable_mosaic.version = 11 : i64} {
  func.func @_pkt_gram_kernel(%arg0: i32, %arg1: i32, %arg2: memref<8x2048xf32, #tpu.memory_space<vmem>>, %arg3: memref<8x2048xf32, #tpu.memory_space<vmem>>, %arg4: memref<1x8x8xf32, #tpu.memory_space<vmem>>, %arg5: memref<1x8x8xf32, #tpu.memory_space<vmem>>) attributes {dimension_semantics = [#tpu.dimension_semantics<parallel>, #tpu.dimension_semantics<arbitrary>], iteration_bounds = array<i64: 1, 1>, scalar_prefetch = 0 : i64, scratch_operands = 0 : i64, tpu.core_type = #tpu.core_type<tc>, window_params = [{transform_indices = @transform_0, window_bounds = array<i64: 8, 2048>}, {transform_indices = @transform_1, window_bounds = array<i64: 8, 2048>}, {transform_indices = @transform_2, window_bounds = array<i64: 1, 8, 8>}, {transform_indices = @transform_3, window_bounds = array<i64: 1, 8, 8>}]} {
    %c0_i32 = arith.constant 0 : i32
    %0 = arith.cmpi eq, %arg1, %c0_i32 : i32
    %1 = arith.extui %0 : i1 to i32
    %c0_i32_0 = arith.constant 0 : i32
    %2 = arith.cmpi ne, %1, %c0_i32_0 : i32
    scf.if %2 {
      %cst_17 = arith.constant 0.000000e+00 : f32
      %19 = vector.broadcast %cst_17 : f32 to vector<8x8xf32>
      %c0_18 = arith.constant 0 : index
      %c0_19 = arith.constant 0 : index
      %c0_20 = arith.constant 0 : index
      %20 = vector.load %arg4[%c0_18, %c0_19, %c0_20] : memref<1x8x8xf32, #tpu.memory_space<vmem>>, vector<1x8x8xf32>
      %21 = vector.shape_cast %20 : vector<1x8x8xf32> to vector<8x8xf32>
      %22 = vector.shape_cast %19 : vector<8x8xf32> to vector<1x8x8xf32>
      tpu.vector_store %arg4[%c0_18, %c0_19, %c0_20], %22 {strides = array<i32>} : memref<1x8x8xf32, #tpu.memory_space<vmem>>, vector<1x8x8xf32>,
      %cst_21 = arith.constant 0.000000e+00 : f32
      %23 = vector.broadcast %cst_21 : f32 to vector<8x8xf32>
      %c0_22 = arith.constant 0 : index
      %c0_23 = arith.constant 0 : index
      %c0_24 = arith.constant 0 : index
      %24 = vector.load %arg5[%c0_22, %c0_23, %c0_24] : memref<1x8x8xf32, #tpu.memory_space<vmem>>, vector<1x8x8xf32>
      %25 = vector.shape_cast %24 : vector<1x8x8xf32> to vector<8x8xf32>
      %26 = vector.shape_cast %23 : vector<8x8xf32> to vector<1x8x8xf32>
      tpu.vector_store %arg5[%c0_22, %c0_23, %c0_24], %26 {strides = array<i32>} : memref<1x8x8xf32, #tpu.memory_space<vmem>>, vector<1x8x8xf32>,
    } else {
    }
    %c0 = arith.constant 0 : index
    %c0_1 = arith.constant 0 : index
    %c0_2 = arith.constant 0 : index
    %3 = vector.load %arg4[%c0, %c0_1, %c0_2] : memref<1x8x8xf32, #tpu.memory_space<vmem>>, vector<1x8x8xf32>
    %4 = vector.shape_cast %3 : vector<1x8x8xf32> to vector<8x8xf32>
    %c0_3 = arith.constant 0 : index
    %c0_4 = arith.constant 0 : index
    %5 = vector.load %arg2[%c0_3, %c0_4] : memref<8x2048xf32, #tpu.memory_space<vmem>>, vector<8x2048xf32>
    %cst = arith.constant dense<0.000000e+00> : vector<8x8xf32>
    %6 = tpu.matmul %5, %5, %cst {dimension_numbers = #tpu.dot_dimension_numbers<[1], [1], [0], [0], [0, 0, 1, 0], [], []>, precision = #tpu.contract_precision<fp32>} : vector<8x2048xf32>, vector<8x2048xf32>, vector<8x8xf32> -> vector<8x8xf32>
    %7 = arith.addf %4, %6 : vector<8x8xf32>
    %c0_5 = arith.constant 0 : index
    %c0_6 = arith.constant 0 : index
    %c0_7 = arith.constant 0 : index
    %8 = vector.load %arg4[%c0_5, %c0_6, %c0_7] : memref<1x8x8xf32, #tpu.memory_space<vmem>>, vector<1x8x8xf32>
    %9 = vector.shape_cast %8 : vector<1x8x8xf32> to vector<8x8xf32>
    %10 = vector.shape_cast %7 : vector<8x8xf32> to vector<1x8x8xf32>
    tpu.vector_store %arg4[%c0_5, %c0_6, %c0_7], %10 {strides = array<i32>} : memref<1x8x8xf32, #tpu.memory_space<vmem>>, vector<1x8x8xf32>,
    %c0_8 = arith.constant 0 : index
    %c0_9 = arith.constant 0 : index
    %c0_10 = arith.constant 0 : index
    %11 = vector.load %arg5[%c0_8, %c0_9, %c0_10] : memref<1x8x8xf32, #tpu.memory_space<vmem>>, vector<1x8x8xf32>
    %12 = vector.shape_cast %11 : vector<1x8x8xf32> to vector<8x8xf32>
    %c0_11 = arith.constant 0 : index
    %c0_12 = arith.constant 0 : index
    %13 = vector.load %arg3[%c0_11, %c0_12] : memref<8x2048xf32, #tpu.memory_space<vmem>>, vector<8x2048xf32>
    %cst_13 = arith.constant dense<0.000000e+00> : vector<8x8xf32>
    %14 = tpu.matmul %13, %13, %cst_13 {dimension_numbers = #tpu.dot_dimension_numbers<[1], [1], [0], [0], [0, 0, 1, 0], [], []>, precision = #tpu.contract_precision<fp32>} : vector<8x2048xf32>, vector<8x2048xf32>, vector<8x8xf32> -> vector<8x8xf32>
    %15 = arith.addf %12, %14 : vector<8x8xf32>
    %c0_14 = arith.constant 0 : index
    %c0_15 = arith.constant 0 : index
    %c0_16 = arith.constant 0 : index
    %16 = vector.load %arg5[%c0_14, %c0_15, %c0_16] : memref<1x8x8xf32, #tpu.memory_space<vmem>>, vector<1x8x8xf32>
    %17 = vector.shape_cast %16 : vector<1x8x8xf32> to vector<8x8xf32>
    %18 = vector.shape_cast %15 : vector<8x8xf32> to vector<1x8x8xf32>
    tpu.vector_store %arg5[%c0_14, %c0_15, %c0_16], %18 {strides = array<i32>} : memref<1x8x8xf32, #tpu.memory_space<vmem>>, vector<1x8x8xf32>,
    return
  }
  func.func @transform_0(%arg0: i32, %arg1: i32) -> (i32, i32) {
    %c1_i32 = arith.constant 1 : i32
    %0 = arith.muli %arg0, %c1_i32 : i32
    %1 = arith.addi %0, %arg1 : i32
    %c0_i32 = arith.constant 0 : i32
    %2 = arith.minsi %1, %c0_i32 : i32
    %c0_i32_0 = arith.constant 0 : i32
    %c0_i32_1 = arith.constant 0 : i32
    return %c0_i32_0, %2 : i32, i32
  }
  func.func @transform_1(%arg0: i32, %arg1: i32) -> (i32, i32) {
    %c1_i32 = arith.constant 1 : i32
    %0 = arith.muli %arg0, %c1_i32 : i32
    %1 = arith.addi %0, %arg1 : i32
    %c0_i32 = arith.constant 0 : i32
    %2 = arith.minsi %1, %c0_i32 : i32
    %c0_i32_0 = arith.constant 0 : i32
    %c0_i32_1 = arith.constant 0 : i32
    return %c0_i32_0, %2 : i32, i32
  }
  func.func @transform_2(%arg0: i32, %arg1: i32) -> (i32, i32, i32) {
    %c0_i32 = arith.constant 0 : i32
    %c0_i32_0 = arith.constant 0 : i32
    %c0_i32_1 = arith.constant 0 : i32
    return %arg0, %c0_i32, %c0_i32_0 : i32, i32, i32
  }
  func.func @transform_3(%arg0: i32, %arg1: i32) -> (i32, i32, i32) {
    %c0_i32 = arith.constant 0 : i32
    %c0_i32_0 = arith.constant 0 : i32
    %c0_i32_1 = arith.constant 0 : i32
    return %arg0, %c0_i32, %c0_i32_0 : i32, i32, i32
  }
}

</mosaic_0001>

<llo_original>
// kernel: tpu_custom_call.1
$region0: #{tpu_custom_call.1}
  #allocation0 [shape = 'u32[]', space=smem, size = 0x4, offset = 0x4, fixed_abs, tag = 'smem constant byte address 0x4 - core index']
  #allocation1 [shape = 'u32[144,128]{1,0:T(1,128)}', space=vmem, size = 0x12000, scoped, tag = 'internal scratch']
  %s0 = inlined_call_operand.hbm [shape: f32[8,2048], index: 0, kind: input, shape index: {}]
  %s1 = inlined_call_operand.hbm [shape: f32[8,2048], index: 1, kind: input, shape index: {}]
  %s2 = inlined_call_operand.hbm [shape: f32[1,8,8], index: 2, kind: output, shape index: {0}]
  %s3 = inlined_call_operand.hbm [shape: f32[1,8,8], index: 3, kind: output, shape index: {1}]
  %4 = xla_tuple %s2, %s3
  %s5 = sld [smem:[#allocation0]]
  $region38: #{tpu_custom_call.1} parent=0
    _
  %s7 = ssub.s32 1, %s5
  %s8 = scalar_select 0, %s7, %s5
  $region1: #{tpu_custom_call.1} parent=0
    #allocation2 [shape = 'u8[65536]{0}', space=vmem, size = 0x10000, scoped, tag = 'input window, operand 0, single buffered']
    #allocation3 [shape = 's32[1]{0}', space=sflag, size = 0x4, scoped, tag = 'scoped memory for tpu_custom_call.1']
    #allocation4 [shape = 's32[1]{0}', space=sflag, size = 0x4, scoped, tag = 'scoped memory for tpu_custom_call.1']
    #allocation5 [shape = 'u8[65536]{0}', space=vmem, size = 0x10000, scoped, tag = 'input window, operand 1, single buffered']
    #allocation6 [shape = 's32[1]{0}', space=sflag, size = 0x4, scoped, tag = 'scoped memory for tpu_custom_call.1']
    #allocation7 [shape = 'u8[4096]{0}', space=vmem, size = 0x1000, scoped, tag = 'output window, operand 0, single buffered']
    #allocation8 [shape = 'u8[4096]{0}', space=vmem, size = 0x1000, scoped, tag = 'output window, operand 1, single buffered']
    #allocation9 [shape = 's32[1]{0}', space=sflag, size = 0x4, scoped, tag = 'scoped memory for tpu_custom_call.1']
    %9 = vsyncpa [#allocation3], 0
    %10 = vsyncpa [#allocation6], 0
    %11 = vsyncpa [#allocation4], 0
    %12 = vsyncpa [#allocation9], 0
    // Predicated region
    $region2: #{tpu_custom_call.1} parent=1 // pred_check
      _
    $region3: #{tpu_custom_call.1} parent=1 // pred_check_branch
      %14 = sbr.rel (0) target = $region5
    $region4: #{tpu_custom_call.1} parent=1 // pred_region
      %s15 = sadd.s32 0, 0
      %p16 = scmp.lt.s32.totalorder %s15, 0
      %s17 = scalar_select %p16, %s15, 0
      %s18 = smul.u32 16, %s17
      %s20 = ssub.s32 2048, 2048
      %21 = vsyncadd [#allocation3], %s20
      %s22 = smul.addr %s18, 128
      %s23 = scalar_lea.hbm %s0, %s22
      %s25 = sshll.u32 [#allocation2], 4
      %s26 = int_to_ptr.vmem [resolvable:$true] %s25
      %28 = dma.hbm_to_vmem [thread:$0]  %s23, 2048, %s26, [#allocation3]
    $region5: #{tpu_custom_call.1} parent=1 // pred_fallthru
      _
    // Predicated region
    $region6: #{tpu_custom_call.1} parent=1 // pred_check
      _
    $region7: #{tpu_custom_call.1} parent=1 // pred_check_branch
      %30 = sbr.rel (0) target = $region9
    $region8: #{tpu_custom_call.1} parent=1 // pred_region
      %s31 = sadd.s32 0, 0
      %p32 = scmp.lt.s32.totalorder %s31, 0
      %s33 = scalar_select %p32, %s31, 0
      %s34 = smul.u32 16, %s33
      %s36 = ssub.s32 2048, 2048
      %37 = vsyncadd [#allocation6], %s36
      %s38 = smul.addr %s34, 128
      %s39 = scalar_lea.hbm %s1, %s38
      %s41 = sshll.u32 [#allocation5], 4
      %s42 = int_to_ptr.vmem [resolvable:$true] %s41
      %44 = dma.hbm_to_vmem [thread:$0]  %s39, 2048, %s42, [#allocation6]
    $region9: #{tpu_custom_call.1} parent=1 // pred_fallthru
      _
    // Predicated region
    $region10: #{tpu_custom_call.1} parent=1 // pred_check
      _
    $region11: #{tpu_custom_call.1} parent=1 // pred_check_branch
      %46 = sbr.rel (0) target = $region13
    $region12: #{tpu_custom_call.1} parent=1 // pred_region
      %47 = dma.done [#allocation3], 2048
    $region13: #{tpu_custom_call.1} parent=1 // pred_fallthru
      _
    // Predicated region
    $region14: #{tpu_custom_call.1} parent=1 // pred_check
      _
    $region15: #{tpu_custom_call.1} parent=1 // pred_check_branch
      %49 = sbr.rel (0) target = $region17
    $region16: #{tpu_custom_call.1} parent=1 // pred_region
      %50 = dma.done [#allocation6], 2048
    $region17: #{tpu_custom_call.1} parent=1 // pred_fallthru
      _
    %s51 = sadd.s32 0, 0
    %p52 = scmp.lt.s32.totalorder %s51, 0
    %s53 = scalar_select %p52, %s51, 0
    %s54 = smul.u32 16, %s53
    %s55 = sadd.s32 0, 0
    %p56 = scmp.lt.s32.totalorder %s55, 0
    %s57 = scalar_select %p56, %s55, 0
    %s58 = smul.u32 16, %s57
    %p59 = scmp.eq.s32.totalorder 0, 0
    // Predicated region
    $region18: #{tpu_custom_call.1} parent=1 // pred_check
      %p60 = pneg %p59
    $region19: #{tpu_custom_call.1} parent=1 // pred_check_branch
      %62 = sbr.rel (%p60) target = $region21
    $region20: #{tpu_custom_call.1} parent=1 // pred_region
      %vm63 = vcmask 64512
      %64 = vst.msk [vmem:[#allocation7] sm:$0xff] %vm63, 0.0
      %65 = vst.msk [vmem:[#allocation8] sm:$0xff] %vm63, 0.0
    $region21: #{tpu_custom_call.1} parent=1 // pred_fallthru
      _
    %v66 = vld [vmem:[#allocation7] sm:$0xff]
    %v67 = vld [vmem:[#allocation2] sm:$0xff]
    %v68 = vld [vmem:[#allocation2 + $0x8] sm:$0xff]
    %v69 = vld [vmem:[#allocation2 + $0x10] sm:$0xff]
    %v70 = vld [vmem:[#allocation2 + $0x18] sm:$0xff]
    %v71 = vld [vmem:[#allocation2 + $0x20] sm:$0xff]
    %v72 = vld [vmem:[#allocation2 + $0x28] sm:$0xff]
    %v73 = vld [vmem:[#allocation2 + $0x30] sm:$0xff]
    %v74 = vld [vmem:[#allocation2 + $0x38] sm:$0xff]
    %v75 = vld [vmem:[#allocation2 + $0x40] sm:$0xff]
    %v76 = vld [vmem:[#allocation2 + $0x48] sm:$0xff]
    %v77 = vld [vmem:[#allocation2 + $0x50] sm:$0xff]
    %v78 = vld [vmem:[#allocation2 + $0x58] sm:$0xff]
    %v79 = vld [vmem:[#allocation2 + $0x60] sm:$0xff]
    %v80 = vld [vmem:[#allocation2 + $0x68] sm:$0xff]
    %v81 = vld [vmem:[#allocation2 + $0x70] sm:$0xff]
    %v82 = vld [vmem:[#allocation2 + $0x78] sm:$0xff]
    %v83 = vand.u32 %v68, 4294901760
    %84 = vmatprep.subr.mxu0 %v83
    %v85 = vand.u32 %v67, 4294901760
    %86 = vmatpush1.xpose.msra.mxu0 %v85
    %87 = vmatprep.subr.mxu0 0.0
    %88 = vmatpush1.xpose.msra.mxu0 0.0
    %89 = vmatprep.subr.mxu0 0.0
    %90 = vmatpush1.xpose.msra.mxu0 0.0
    %91 = vmatprep.subr.mxu0 0.0
    %92 = vmatpush1.xpose.msra.mxu0 0.0
    %93 = vmatprep.subr.mxu0 0.0
    %94 = vmatpush1.xpose.msra.mxu0 0.0
    %95 = vmatprep.subr.mxu0 0.0
    %96 = vmatpush1.xpose.msra.mxu0 0.0
    %97 = vmatprep.subr.mxu0 0.0
    %98 = vmatpush1.xpose.msra.mxu0 0.0
    %99 = vmatprep.subr.mxu0 0.0
    %100 = vmatpush1.xpose.msra.mxu0 0.0
    %101 = vmatprep.subr.mxu0 0.0
    %102 = vmatpush1.xpose.msra.mxu0 0.0
    %103 = vmatprep.subr.mxu0 0.0
    %104 = vmatpush1.xpose.msra.mxu0 0.0
    %105 = vmatprep.subr.mxu0 0.0
    %106 = vmatpush1.xpose.msra.mxu0 0.0
    %107 = vmatprep.subr.mxu0 0.0
    %108 = vmatpush1.xpose.msra.mxu0 0.0
    %109 = vmatprep.subr.mxu0 0.0
    %110 = vmatpush1.xpose.msra.mxu0 0.0
    %111 = vmatprep.subr.mxu0 0.0
    %112 = vmatpush1.xpose.msra.mxu0 0.0
    %113 = vmatprep.subr.mxu0 0.0
    %114 = vmatpush1.xpose.msra.mxu0 0.0
    %115 = vmatprep.subr.mxu0 0.0
    %116 = vmatpush1.xpose.msra.mxu0 0.0
    %117 = vmatprep.subr.mxu0 0.0
    %118 = vmatpush1.xpose.msra.mxu0 0.0
    %119 = vmatprep.subr.mxu0 0.0
    %120 = vmatpush1.xpose.msra.mxu0 0.0
    %121 = vmatprep.subr.mxu0 0.0
    %122 = vmatpush1.xpose.msra.mxu0 0.0
    %123 = vmatprep.subr.mxu0 0.0
    %124 = vmatpush1.xpose.msra.mxu0 0.0
    %125 = vmatprep.subr.mxu0 0.0
    %126 = vmatpush1.xpose.msra.mxu0 0.0
    %127 = vmatprep.subr.mxu0 0.0
    %128 = vmatpush1.xpose.msra.mxu0 0.0
    %129 = vmatprep.subr.mxu0 0.0
    %130 = vmatpush1.xpose.msra.mxu0 0.0
    %131 = vmatprep.subr.mxu0 0.0
    %132 = vmatpush1.xpose.msra.mxu0 0.0
    %133 = vmatprep.subr.mxu0 0.0
    %134 = vmatpush1.xpose.msra.mxu0 0.0
    %135 = vmatprep.subr.mxu0 0.0
    %136 = vmatpush1.xpose.msra.mxu0 0.0
    %137 = vmatprep.subr.mxu0 0.0
    %138 = vmatpush1.xpose.msra.mxu0 0.0
    %139 = vmatprep.subr.mxu0 0.0
    %140 = vmatpush1.xpose.msra.mxu0 0.0
    %141 = vmatprep.subr.mxu0 0.0
    %142 = vmatpush1.xpose.msra.mxu0 0.0
    %143 = vmatprep.subr.mxu0 0.0
    %144 = vmatpush1.xpose.msra.mxu0 0.0
    %145 = vmatprep.subr.mxu0 0.0
    %146 = vmatpush1.xpose.msra.mxu0 0.0
    %147 = vmatprep.subr.mxu0 0.0
    %148 = vmatpush1.xpose.msra.mxu0 0.0
    %v149 = vand.u32 %v68, 4294901760
    %v150 = vsub.f32 %v68, %v149
    %v151 = vand.u32 %v150, 4294901760
    %v152 = vsub.f32 %v150, %v151
    %v153 = vand.u32 %v152, 4294901760
    %154 = vmatprep.mubr.f32.mxu0 %v153
    %v155 = vand.u32 %v67, 4294901760
    %v156 = vsub.f32 %v67, %v155
    %v157 = vand.u32 %v156, 4294901760
    %v158 = vsub.f32 %v156, %v157
    %v159 = vand.u32 %v158, 4294901760
    %160 = vmatmul.mubr.f32.gmra.mrb[0].mxu0 %v159
    %v161 = vpop.f32.mrb[0].mxu0
    %v162 = vadd.f32 0.0, %v161
    %v163 = vpop.f32.mrb[0].mxu0
    %164 = vdwg.mxu0
    %v165 = vand.u32 %v68, 4294901760
    %v166 = vsub.f32 %v68, %v165
    %v167 = vand.u32 %v166, 4294901760
    %v168 = vsub.f32 %v166, %v167
    %v169 = vand.u32 %v168, 4294901760
    %170 = vmatprep.subr.mxu0 %v169
    %v171 = vand.u32 %v67, 4294901760
    %v172 = vsub.f32 %v67, %v171
    %v173 = vand.u32 %v172, 4294901760
    %v174 = vsub.f32 %v172, %v173
    %v175 = vand.u32 %v174, 4294901760
    %176 = vmatpush1.xpose.msra.mxu0 %v175
    %177 = vmatprep.subr.mxu0 0.0
    %178 = vmatpush1.xpose.msra.mxu0 0.0
    %179 = vmatprep.subr.mxu0 0.0
    %180 = vmatpush1.xpose.msra.mxu0 0.0
    %181 = vmatprep.subr.mxu0 0.0
    %182 = vmatpush1.xpose.msra.mxu0 0.0
    %183 = vmatprep.subr.mxu0 0.0
    %184 = vmatpush1.xpose.msra.mxu0 0.0
    %185 = vmatprep.subr.mxu0 0.0
    %186 = vmatpush1.xpose.msra.mxu0 0.0
    %187 = vmatprep.subr.mxu0 0.0
    %188 = vmatpush1.xpose.msra.mxu0 0.0
    %189 = vmatprep.subr.mxu0 0.0
    %190 = vmatpush1.xpose.msra.mxu0 0.0
    %191 = vmatprep.subr.mxu0 0.0
    %192 = vmatpush1.xpose.msra.mxu0 0.0
    %193 = vmatprep.subr.mxu0 0.0
    %194 = vmatpush1.xpose.msra.mxu0 0.0
    %195 = vmatprep.subr.mxu0 0.0
    %196 = vmatpush1.xpose.msra.mxu0 0.0
    %197 = vmatprep.subr.mxu0 0.0
    %198 = vmatpush1.xpose.msra.mxu0 0.0
    %199 = vmatprep.subr.mxu0 0.0
    %200 = vmatpush1.xpose.msra.mxu0 0.0
    %201 = vmatprep.subr.mxu0 0.0
    %202 = vmatpush1.xpose.msra.mxu0 0.0
    %203 = vmatprep.subr.mxu0 0.0
    %204 = vmatpush1.xpose.msra.mxu0 0.0
    %205 = vmatprep.subr.mxu0 0.0
    %206 = vmatpush1.xpose.msra.mxu0 0.0
    %207 = vmatprep.subr.mxu0 0.0
    %208 = vmatpush1.xpose.msra.mxu0 0.0
    %209 = vmatprep.subr.mxu0 0.0
    %210 = vmatpush1.xpose.msra.mxu0 0.0
    %211 = vmatprep.subr.mxu0 0.0
    %212 = vmatpush1.xpose.msra.mxu0 0.0
    %213 = vmatprep.subr.mxu0 0.0
    %214 = vmatpush1.xpose.msra.mxu0 0.0
    %215 = vmatprep.subr.mxu0 0.0
    %216 = vmatpush1.xpose.msra.mxu0 0.0
    %217 = vmatprep.subr.mxu0 0.0
    %218 = vmatpush1.xpose.msra.mxu0 0.0
    %219 = vmatprep.subr.mxu0 0.0
    %220 = vmatpush1.xpose.msra.mxu0 0.0
    %221 = vmatprep.subr.mxu0 0.0
    %222 = vmatpush1.xpose.msra.mxu0 0.0
    %223 = vmatprep.subr.mxu0 0.0
    %224 = vmatpush1.xpose.msra.mxu0 0.0
    %225 = vmatprep.subr.mxu0 0.0
    %226 = vmatpush1.xpose.msra.mxu0 0.0
    %227 = vmatprep.subr.mxu0 0.0
    %228 = vmatpush1.xpose.msra.mxu0 0.0
    %229 = vmatprep.subr.mxu0 0.0
    %230 = vmatpush1.xpose.msra.mxu0 0.0
    %231 = vmatprep.subr.mxu0 0.0
    %232 = vmatpush1.xpose.msra.mxu0 0.0
    %233 = vmatprep.subr.mxu0 0.0
    %234 = vmatpush1.xpose.msra.mxu0 0.0
    %235 = vmatprep.subr.mxu0 0.0
    %236 = vmatpush1.xpose.msra.mxu0 0.0
    %237 = vmatprep.subr.mxu0 0.0
    %238 = vmatpush1.xpose.msra.mxu0 0.0
    %v239 = vand.u32 %v68, 4294901760
    %240 = vmatprep.mubr.f32.mxu0 %v239
    %v241 = vand.u32 %v67, 4294901760
    %242 = vmatmul.mubr.f32.gmra.mrb[0].mxu0 %v241
    %v243 = vpop.f32.mrb[0].mxu0
    %v244 = vadd.f32 %v162, %v243
    %v245 = vpop.f32.mrb[0].mxu0
    %246 = vdwg.mxu0
    %v247 = vand.u32 %v68, 4294901760
    %v248 = vsub.f32 %v68, %v247
    %249 = vmatprep.subr.mxu0 %v248
    %v250 = vand.u32 %v67, 4294901760
    %v251 = vsub.f32 %v67, %v250
    %252 = vmatpush1.xpose.msra.mxu0 %v251
    %253 = vmatprep.subr.mxu0 0.0
    %254 = vmatpush1.xpose.msra.mxu0 0.0
    %255 = vmatprep.subr.mxu0 0.0
    %256 = vmatpush1.xpose.msra.mxu0 0.0
    %257 = vmatprep.subr.mxu0 0.0
    %258 = vmatpush1.xpose.msra.mxu0 0.0
    %259 = vmatprep.subr.mxu0 0.0
    %260 = vmatpush1.xpose.msra.mxu0 0.0
    %261 = vmatprep.subr.mxu0 0.0
    %262 = vmatpush1.xpose.msra.mxu0 0.0
    %263 = vmatprep.subr.mxu0 0.0
    %264 = vmatpush1.xpose.msra.mxu0 0.0
    %265 = vmatprep.subr.mxu0 0.0
    %266 = vmatpush1.xpose.msra.mxu0 0.0
    %267 = vmatprep.subr.mxu0 0.0
    %268 = vmatpush1.xpose.msra.mxu0 0.0
    %269 = vmatprep.subr.mxu0 0.0
    %270 = vmatpush1.xpose.msra.mxu0 0.0
    %271 = vmatprep.subr.mxu0 0.0
    %272 = vmatpush1.xpose.msra.mxu0 0.0
    %273 = vmatprep.subr.mxu0 0.0
    %274 = vmatpush1.xpose.msra.mxu0 0.0
    %275 = vmatprep.subr.mxu0 0.0
    %276 = vmatpush1.xpose.msra.mxu0 0.0
    %277 = vmatprep.subr.mxu0 0.0
    %278 = vmatpush1.xpose.msra.mxu0 0.0
    %279 = vmatprep.subr.mxu0 0.0
    %280 = vmatpush1.xpose.msra.mxu0 0.0
    %281 = vmatprep.subr.mxu0 0.0
    %282 = vmatpush1.xpose.msra.mxu0 0.0
    %283 = vmatprep.subr.mxu0 0.0
    %284 = vmatpush1.xpose.msra.mxu0 0.0
    %285 = vmatprep.subr.mxu0 0.0
    %286 = vmatpush1.xpose.msra.mxu0 0.0
    %287 = vmatprep.subr.mxu0 0.0
    %288 = vmatpush1.xpose.msra.mxu0 0.0
    %289 = vmatprep.subr.mxu0 0.0
    %290 = vmatpush1.xpose.msra.mxu0 0.0
    %291 = vmatprep.subr.mxu0 0.0
    %292 = vmatpush1.xpose.msra.mxu0 0.0
    %293 = vmatprep.subr.mxu0 0.0
    %294 = vmatpush1.xpose.msra.mxu0 0.0
    %295 = vmatprep.subr.mxu0 0.0
    %296 = vmatpush1.xpose.msra.mxu0 0.0
    %297 = vmatprep.subr.mxu0 0.0
    %298 = vmatpush1.xpose.msra.mxu0 0.0
    %299 = vmatprep.subr.mxu0 0.0
    %300 = vmatpush1.xpose.msra.mxu0 0.0
    %301 = vmatprep.subr.mxu0 0.0
    %302 = vmatpush1.xpose.msra.mxu0 0.0
    %303 = vmatprep.subr.mxu0 0.0
    %304 = vmatpush1.xpose.msra.mxu0 0.0
    %305 = vmatprep.subr.mxu0 0.0
    %306 = vmatpush1.xpose.msra.mxu0 0.0
    %307 = vmatprep.subr.mxu0 0.0
    %308 = vmatpush1.xpose.msra.mxu0 0.0
    %309 = vmatprep.subr.mxu0 0.0
    %310 = vmatpush1.xpose.msra.mxu0 0.0
    %311 = vmatprep.subr.mxu0 0.0
    %312 = vmatpush1.xpose.msra.mxu0 0.0
    %313 = vmatprep.subr.mxu0 0.0
    %314 = vmatpush1.xpose.msra.mxu0 0.0
    %v315 = vand.u32 %v68, 4294901760
    %v316 = vsub.f32 %v68, %v315
    %317 = vmatprep.mubr.f32.mxu0 %v316
    %v318 = vand.u32 %v67, 4294901760
    %v319 = vsub.f32 %v67, %v318
    %320 = vmatmul.mubr.f32.gmra.mrb[0].mxu0 %v319
    %v321 = vpop.f32.mrb[0].mxu0
    %v322 = vadd.f32 %v244, %v321
    %v323 = vpop.f32.mrb[0].mxu0
    %324 = vdwg.mxu0
    %v325 = vand.u32 %v68, 4294901760
    %326 = vmatprep.subr.mxu0 %v325
    %v327 = vand.u32 %v67, 4294901760
    %328 = vmatpush1.xpose.msra.mxu0 %v327
    %329 = vmatprep.subr.mxu0 0.0
    %330 = vmatpush1.xpose.msra.mxu0 0.0
    %331 = vmatprep.subr.mxu0 0.0
    %332 = vmatpush1.xpose.msra.mxu0 0.0
    %333 = vmatprep.subr.mxu0 0.0
    %334 = vmatpush1.xpose.msra.mxu0 0.0
    %335 = vmatprep.subr.mxu0 0.0
    %336 = vmatpush1.xpose.msra.mxu0 0.0
    %337 = vmatprep.subr.mxu0 0.0
    %338 = vmatpush1.xpose.msra.mxu0 0.0
    %339 = vmatprep.subr.mxu0 0.0
    %340 = vmatpush1.xpose.msra.mxu0 0.0
    %341 = vmatprep.subr.mxu0 0.0
    %342 = vmatpush1.xpose.msra.mxu0 0.0
    %343 = vmatprep.subr.mxu0 0.0
    %344 = vmatpush1.xpose.msra.mxu0 0.0
    %345 = vmatprep.subr.mxu0 0.0
    %346 = vmatpush1.xpose.msra.mxu0 0.0
    %347 = vmatprep.subr.mxu0 0.0
    %348 = vmatpush1.xpose.msra.mxu0 0.0
    %349 = vmatprep.subr.mxu0 0.0
    %350 = vmatpush1.xpose.msra.mxu0 0.0
    %351 = vmatprep.subr.mxu0 0.0
    %352 = vmatpush1.xpose.msra.mxu0 0.0
    %353 = vmatprep.subr.mxu0 0.0
    %354 = vmatpush1.xpose.msra.mxu0 0.0
    %355 = vmatprep.subr.mxu0 0.0
    %356 = vmatpush1.xpose.msra.mxu0 0.0
    %357 = vmatprep.subr.mxu0 0.0
    %358 = vmatpush1.xpose.msra.mxu0 0.0
    %359 = vmatprep.subr.mxu0 0.0
    %360 = vmatpush1.xpose.msra.mxu0 0.0
    %361 = vmatprep.subr.mxu0 0.0
    %362 = vmatpush1.xpose.msra.mxu0 0.0
    %363 = vmatprep.subr.mxu0 0.0
    %364 = vmatpush1.xpose.msra.mxu0 0.0
    %365 = vmatprep.subr.mxu0 0.0
    %366 = vmatpush1.xpose.msra.mxu0 0.0
    %367 = vmatprep.subr.mxu0 0.0
    %368 = vmatpush1.xpose.msra.mxu0 0.0
    %369 = vmatprep.subr.mxu0 0.0
    %370 = vmatpush1.xpose.msra.mxu0 0.0
    %371 = vmatprep.subr.mxu0 0.0
    %372 = vmatpush1.xpose.msra.mxu0 0.0
    %373 = vmatprep.subr.mxu0 0.0
    %374 = vmatpush1.xpose.msra.mxu0 0.0
    %375 = vmatprep.subr.mxu0 0.0
    %376 = vmatpush1.xpose.msra.mxu0 0.0
    %377 = vmatprep.subr.mxu0 0.0
    %378 = vmatpush1.xpose.msra.mxu0 0.0
    %379 = vmatprep.subr.mxu0 0.0
    %380 = vmatpush1.xpose.msra.mxu0 0.0
    %381 = vmatprep.subr.mxu0 0.0
    %382 = vmatpush1.xpose.msra.mxu0 0.0
    %383 = vmatprep.subr.mxu0 0.0
    %384 = vmatpush1.xpose.msra.mxu0 0.0
    %385 = vmatprep.subr.mxu0 0.0
    %386 = vmatpush1.xpose.msra.mxu0 0.0
    %387 = vmatprep.subr.mxu0 0.0
    %388 = vmatpush1.xpose.msra.mxu0 0.0
    %389 = vmatprep.subr.mxu0 0.0
    %390 = vmatpush1.xpose.msra.mxu0 0.0
    %v391 = vand.u32 %v68, 4294901760
    %v392 = vsub.f32 %v68, %v391
    %v393 = vand.u32 %v392, 4294901760
    %394 = vmatprep.mubr.f32.mxu0 %v393
    %v395 = vand.u32 %v67, 4294901760
    %v396 = vsub.f32 %v67, %v395
    %v397 = vand.u32 %v396, 4294901760
    %398 = vmatmul.mubr.f32.gmra.mrb[0].mxu0 %v397
    %v399 = vpop.f32.mrb[0].mxu0
    %v400 = vadd.f32 %v322, %v399
    %v401 = vpop.f32.mrb[0].mxu0
    %402 = vdwg.mxu0
    %v403 = vand.u32 %v68, 4294901760
    %v404 = vsub.f32 %v68, %v403
    %v405 = vand.u32 %v404, 4294901760
    %406 = vmatprep.subr.mxu0 %v405
    %v407 = vand.u32 %v67, 4294901760
    %v408 = vsub.f32 %v67, %v407
    %v409 = vand.u32 %v408, 4294901760
    %410 = vmatpush1.xpose.msra.mxu0 %v409
    %411 = vmatprep.subr.mxu0 0.0
    %412 = vmatpush1.xpose.msra.mxu0 0.0
    %413 = vmatprep.subr.mxu0 0.0
    %414 = vmatpush1.xpose.msra.mxu0 0.0
    %415 = vmatprep.subr.mxu0 0.0
    %416 = vmatpush1.xpose.msra.mxu0 0.0
    %417 = vmatprep.subr.mxu0 0.0
    %418 = vmatpush1.xpose.msra.mxu0 0.0
    %419 = vmatprep.subr.mxu0 0.0
    %420 = vmatpush1.xpose.msra.mxu0 0.0
    %421 = vmatprep.subr.mxu0 0.0
    %422 = vmatpush1.xpose.msra.mxu0 0.0
    %423 = vmatprep.subr.mxu0 0.0
    %424 = vmatpush1.xpose.msra.mxu0 0.0
    %425 = vmatprep.subr.mxu0 0.0
    %426 = vmatpush1.xpose.msra.mxu0 0.0
    %427 = vmatprep.subr.mxu0 0.0
    %428 = vmatpush1.xpose.msra.mxu0 0.0
    %429 = vmatprep.subr.mxu0 0.0
    %430 = vmatpush1.xpose.msra.mxu0 0.0
    %431 = vmatprep.subr.mxu0 0.0
    %432 = vmatpush1.xpose.msra.mxu0 0.0
    %433 = vmatprep.subr.mxu0 0.0
    %434 = vmatpush1.xpose.msra.mxu0 0.0
    %435 = vmatprep.subr.mxu0 0.0
    %436 = vmatpush1.xpose.msra.mxu0 0.0
    %437 = vmatprep.subr.mxu0 0.0
    %438 = vmatpush1.xpose.msra.mxu0 0.0
    %439 = vmatprep.subr.mxu0 0.0
    %440 = vmatpush1.xpose.msra.mxu0 0.0
    %441 = vmatprep.subr.mxu0 0.0
    %442 = vmatpush1.xpose.msra.mxu0 0.0
    %443 = vmatprep.subr.mxu0 0.0
    %444 = vmatpush1.xpose.msra.mxu0 0.0
    %445 = vmatprep.subr.mxu0 0.0
    %446 = vmatpush1.xpose.msra.mxu0 0.0
    %447 = vmatprep.subr.mxu0 0.0
    %448 = vmatpush1.xpose.msra.mxu0 0.0
    %449 = vmatprep.subr.mxu0 0.0
    %450 = vmatpush1.xpose.msra.mxu0 0.0
    %451 = vmatprep.subr.mxu0 0.0
    %452 = vmatpush1.xpose.msra.mxu0 0.0
    %453 = vmatprep.subr.mxu0 0.0
    %454 = vmatpush1.xpose.msra.mxu0 0.0
    %455 = vmatprep.subr.mxu0 0.0
    %456 = vmatpush1.xpose.msra.mxu0 0.0
    %457 = vmatprep.subr.mxu0 0.0
    %458 = vmatpush1.xpose.msra.mxu0 0.0
    %459 = vmatprep.subr.mxu0 0.0
    %460 = vmatpush1.xpose.msra.mxu0 0.0
    %461 = vmatprep.subr.mxu0 0.0
    %462 = vmatpush1.xpose.msra.mxu0 0.0
    %463 = vmatprep.subr.mxu0 0.0
    %464 = vmatpush1.xpose.msra.mxu0 0.0
    %465 = vmatprep.subr.mxu0 0.0
    %466 = vmatpush1.xpose.msra.mxu0 0.0
    %467 = vmatprep.subr.mxu0 0.0
    %468 = vmatpush1.xpose.msra.mxu0 0.0
    %469 = vmatprep.subr.mxu0 0.0
    %470 = vmatpush1.xpose.msra.mxu0 0.0
    %471 = vmatprep.subr.mxu0 0.0
    %472 = vmatpush1.xpose.msra.mxu0 0.0
    %v473 = vand.u32 %v68, 4294901760
    %474 = vmatprep.mubr.f32.mxu0 %v473
    %v475 = vand.u32 %v67, 4294901760
    %476 = vmatmul.mubr.f32.gmra.mrb[0].mxu0 %v475
    %v477 = vpop.f32.mrb[0].mxu0
    %v478 = vadd.f32 %v400, %v477
    %v479 = vpop.f32.mrb[0].mxu0
    %480 = vdwg.mxu0
    %v481 = vand.u32 %v68, 4294901760
    %482 = vmatprep.subr.mxu0 %v481
    %v483 = vand.u32 %v67, 4294901760
    %484 = vmatpush1.xpose.msra.mxu0 %v483
    %485 = vmatprep.subr.mxu0 0.0
    %486 = vmatpush1.xpose.msra.mxu0 0.0
    %487 = vmatprep.subr.mxu0 0.0
    %488 = vmatpush1.xpose.msra.mxu0 0.0
    %489 = vmatprep.subr.mxu0 0.0
    %490 = vmatpush1.xpose.msra.mxu0 0.0
    %491 = vmatprep.subr.mxu0 0.0
    %492 = vmatpush1.xpose.msra.mxu0 0.0
    %493 = vmatprep.subr.mxu0 0.0
    %494 = vmatpush1.xpose.msra.mxu0 0.0
    %495 = vmatprep.subr.mxu0 0.0
    %496 = vmatpush1.xpose.msra.mxu0 0.0
    %497 = vmatprep.subr.mxu0 0.0
    %498 = vmatpush1.xpose.msra.mxu0 0.0
    %499 = vmatprep.subr.mxu0 0.0
    %500 = vmatpush1.xpose.msra.mxu0 0.0
    %501 = vmatprep.subr.mxu0 0.0
    %502 = vmatpush1.xpose.msra.mxu0 0.0
    %503 = vmatprep.subr.mxu0 0.0
    %504 = vmatpush1.xpose.msra.mxu0 0.0
    %505 = vmatprep.subr.mxu0 0.0
    %506 = vmatpush1.xpose.msra.mxu0 0.0
    %507 = vmatprep.subr.mxu0 0.0
    %508 = vmatpush1.xpose.msra.mxu0 0.0
    %509 = vmatprep.subr.mxu0 0.0
    %510 = vmatpush1.xpose.msra.mxu0 0.0
    %511 = vmatprep.subr.mxu0 0.0
    %512 = vmatpush1.xpose.msra.mxu0 0.0
    %513 = vmatprep.subr.mxu0 0.0
    %514 = vmatpush1.xpose.msra.mxu0 0.0
    %515 = vmatprep.subr.mxu0 0.0
    %516 = vmatpush1.xpose.msra.mxu0 0.0
    %517 = vmatprep.subr.mxu0 0.0
    %518 = vmatpush1.xpose.msra.mxu0 0.0
    %519 = vmatprep.subr.mxu0 0.0
    %520 = vmatpush1.xpose.msra.mxu0 0.0
    %521 = vmatprep.subr.mxu0 0.0
    %522 = vmatpush1.xpose.msra.mxu0 0.0
    %523 = vmatprep.subr.mxu0 0.0
    %524 = vmatpush1.xpose.msra.mxu0 0.0
    %525 = vmatprep.subr.mxu0 0.0
    %526 = vmatpush1.xpose.msra.mxu0 0.0
    %527 = vmatprep.subr.mxu0 0.0
    %528 = vmatpush1.xpose.msra.mxu0 0.0
    %529 = vmatprep.subr.mxu0 0.0
    %530 = vmatpush1.xpose.msra.mxu0 0.0
    %531 = vmatprep.subr.mxu0 0.0
    %532 = vmatpush1.xpose.msra.mxu0 0.0
    %533 = vmatprep.subr.mxu0 0.0
    %534 = vmatpush1.xpose.msra.mxu0 0.0
    %535 = vmatprep.subr.mxu0 0.0
    %536 = vmatpush1.xpose.msra.mxu0 0.0
    %537 = vmatprep.subr.mxu0 0.0
    %538 = vmatpush1.xpose.msra.mxu0 0.0
    %539 = vmatprep.subr.mxu0 0.0
    %540 = vmatpush1.xpose.msra.mxu0 0.0
    %541 = vmatprep.subr.mxu0 0.0
    %542 = vmatpush1.xpose.msra.mxu0 0.0
    %543 = vmatprep.subr.mxu0 0.0
    %544 = vmatpush1.xpose.msra.mxu0 0.0
    %545 = vmatprep.subr.mxu0 0.0
    %546 = vmatpush1.xpose.msra.mxu0 0.0
    %v547 = vand.u32 %v68, 4294901760
    %548 = vmatprep.mubr.f32.mxu0 %v547
    %v549 = vand.u32 %v67, 4294901760
    %550 = vmatmul.mubr.f32.gmra.mrb[0].mxu0 %v549
    %v551 = vpop.f32.mrb[0].mxu0
    %v552 = vadd.f32 %v478, %v551
    %v553 = vpop.f32.mrb[0].mxu0
    %554 = vdwg.mxu0
    %v555 = vand.u32 %v70, 4294901760
    %556 = vmatprep.subr.mxu0 %v555
    %v557 = vand.u32 %v69, 4294901760
    %558 = vmatpush1.xpose.msra.mxu0 %v557
    %559 = vmatprep.subr.mxu0 0.0
    %560 = vmatpush1.xpose.msra.mxu0 0.0
    %561 = vmatprep.subr.mxu0 0.0
    %562 = vmatpush1.xpose.msra.mxu0 0.0
    %563 = vmatprep.subr.mxu0 0.0
    %564 = vmatpush1.xpose.msra.mxu0 0.0
    %565 = vmatprep.subr.mxu0 0.0
    %566 = vmatpush1.xpose.msra.mxu0 0.0
    %567 = vmatprep.subr.mxu0 0.0
    %568 = vmatpush1.xpose.msra.mxu0 0.0
    %569 = vmatprep.subr.mxu0 0.0
    %570 = vmatpush1.xpose.msra.mxu0 0.0
    %571 = vmatprep.subr.mxu0 0.0
    %572 = vmatpush1.xpose.msra.mxu0 0.0
    %573 = vmatprep.subr.mxu0 0.0
    %574 = vmatpush1.xpose.msra.mxu0 0.0
    %575 = vmatprep.subr.mxu0 0.0
    %576 = vmatpush1.xpose.msra.mxu0 0.0
    %577 = vmatprep.subr.mxu0 0.0
    %578 = vmatpush1.xpose.msra.mxu0 0.0
    %579 = vmatprep.subr.mxu0 0.0
    %580 = vmatpush1.xpose.msra.mxu0 0.0
    %581 = vmatprep.subr.mxu0 0.0
    %582 = vmatpush1.xpose.msra.mxu0 0.0
    %583 = vmatprep.subr.mxu0 0.0
    %584 = vmatpush1.xpose.msra.mxu0 0.0
    %585 = vmatprep.subr.mxu0 0.0
    %586 = vmatpush1.xpose.msra.mxu0 0.0
    %587 = vmatprep.subr.mxu0 0.0
    %588 = vmatpush1.xpose.msra.mxu0 0.0
    %589 = vmatprep.subr.mxu0 0.0
    %590 = vmatpush1.xpose.msra.mxu0 0.0
    %591 = vmatprep.subr.mxu0 0.0
    %592 = vmatpush1.xpose.msra.mxu0 0.0
    %593 = vmatprep.subr.mxu0 0.0
    %594 = vmatpush1.xpose.msra.mxu0 0.0
    %595 = vmatprep.subr.mxu0 0.0
    %596 = vmatpush1.xpose.msra.mxu0 0.0
    %597 = vmatprep.subr.mxu0 0.0
    %598 = vmatpush1.xpose.msra.mxu0 0.0
    %599 = vmatprep.subr.mxu0 0.0
    %600 = vmatpush1.xpose.msra.mxu0 0.0
    %601 = vmatprep.subr.mxu0 0.0
    %602 = vmatpush1.xpose.msra.mxu0 0.0
    %603 = vmatprep.subr.mxu0 0.0
    %604 = vmatpush1.xpose.msra.mxu0 0.0
    %605 = vmatprep.subr.mxu0 0.0
    %606 = vmatpush1.xpose.msra.mxu0 0.0
    %607 = vmatprep.subr.mxu0 0.0
    %608 = vmatpush1.xpose.msra.mxu0 0.0
    %609 = vmatprep.subr.mxu0 0.0
    %610 = vmatpush1.xpose.msra.mxu0 0.0
    %611 = vmatprep.subr.mxu0 0.0
    %612 = vmatpush1.xpose.msra.mxu0 0.0
    %613 = vmatprep.subr.mxu0 0.0
    %614 = vmatpush1.xpose.msra.mxu0 0.0
    %615 = vmatprep.subr.mxu0 0.0
    %616 = vmatpush1.xpose.msra.mxu0 0.0
    %617 = vmatprep.subr.mxu0 0.0
    %618 = vmatpush1.xpose.msra.mxu0 0.0
    %619 = vmatprep.subr.mxu0 0.0
    %620 = vmatpush1.xpose.msra.mxu0 0.0
    %v621 = vand.u32 %v70, 4294901760
    %v622 = vsub.f32 %v70, %v621
    %v623 = vand.u32 %v622, 4294901760
    %v624 = vsub.f32 %v622, %v623
    %v625 = vand.u32 %v624, 4294901760
    %626 = vmatprep.mubr.f32.mxu0 %v625
    %v627 = vand.u32 %v69, 4294901760
    %v628 = vsub.f32 %v69, %v627
    %v629 = vand.u32 %v628, 4294901760
    %v630 = vsub.f32 %v628, %v629
    %v631 = vand.u32 %v630, 4294901760
    %632 = vmatmul.mubr.f32.gmra.mrb[0].mxu0 %v631
    %v633 = vpop.f32.mrb[0].mxu0
    %v634 = vadd.f32 %v552, %v633
    %v635 = vpop.f32.mrb[0].mxu0
    %636 = vdwg.mxu0
    %v637 = vand.u32 %v70, 4294901760
    %v638 = vsub.f32 %v70, %v637
    %v639 = vand.u32 %v638, 4294901760
    %v640 = vsub.f32 %v638, %v639
    %v641 = vand.u32 %v640, 4294901760
    %642 = vmatprep.subr.mxu0 %v641
    %v643 = vand.u32 %v69, 4294901760
    %v644 = vsub.f32 %v69, %v643
    %v645 = vand.u32 %v644, 4294901760
    %v646 = vsub.f32 %v644, %v645
    %v647 = vand.u32 %v646, 4294901760
    %648 = vmatpush1.xpose.msra.mxu0 %v647
    %649 = vmatprep.subr.mxu0 0.0
    %650 = vmatpush1.xpose.msra.mxu0 0.0
    %651 = vmatprep.subr.mxu0 0.0
    %652 = vmatpush1.xpose.msra.mxu0 0.0
    %653 = vmatprep.subr.mxu0 0.0
    %654 = vmatpush1.xpose.msra.mxu0 0.0
    %655 = vmatprep.subr.mxu0 0.0
    %656 = vmatpush1.xpose.msra.mxu0 0.0
    %657 = vmatprep.subr.mxu0 0.0
    %658 = vmatpush1.xpose.msra.mxu0 0.0
    %659 = vmatprep.subr.mxu0 0.0
    %660 = vmatpush1.xpose.msra.mxu0 0.0
    %661 = vmatprep.subr.mxu0 0.0
    %662 = vmatpush1.xpose.msra.mxu0 0.0
    %663 = vmatprep.subr.mxu0 0.0
    %664 = vmatpush1.xpose.msra.mxu0 0.0
    %665 = vmatprep.subr.mxu0 0.0
    %666 = vmatpush1.xpose.msra.mxu0 0.0
    %667 = vmatprep.subr.mxu0 0.0
    %668 = vmatpush1.xpose.msra.mxu0 0.0
    %669 = vmatprep.subr.mxu0 0.0
    %670 = vmatpush1.xpose.msra.mxu0 0.0
    %671 = vmatprep.subr.mxu0 0.0
    %672 = vmatpush1.xpose.msra.mxu0 0.0
    %673 = vmatprep.subr.mxu0 0.0
    %674 = vmatpush1.xpose.msra.mxu0 0.0
    %675 = vmatprep.subr.mxu0 0.0
    %676 = vmatpush1.xpose.msra.mxu0 0.0
    %677 = vmatprep.subr.mxu0 0.0
    %678 = vmatpush1.xpose.msra.mxu0 0.0
    %679 = vmatprep.subr.mxu0 0.0
    %680 = vmatpush1.xpose.msra.mxu0 0.0
    %681 = vmatprep.subr.mxu0 0.0
    %682 = vmatpush1.xpose.msra.mxu0 0.0
    %683 = vmatprep.subr.mxu0 0.0
    %684 = vmatpush1.xpose.msra.mxu0 0.0
    %685 = vmatprep.subr.mxu0 0.0
    %686 = vmatpush1.xpose.msra.mxu0 0.0
    %687 = vmatprep.subr.mxu0 0.0
    %688 = vmatpush1.xpose.msra.mxu0 0.0
    %689 = vmatprep.subr.mxu0 0.0
    %690 = vmatpush1.xpose.msra.mxu0 0.0
    %691 = vmatprep.subr.mxu0 0.0
    %692 = vmatpush1.xpose.msra.mxu0 0.0
    %693 = vmatprep.subr.mxu0 0.0
    %694 = vmatpush1.xpose.msra.mxu0 0.0
    %695 = vmatprep.subr.mxu0 0.0
    %696 = vmatpush1.xpose.msra.mxu0 0.0
    %697 = vmatprep.subr.mxu0 0.0
    %698 = vmatpush1.xpose.msra.mxu0 0.0
    %699 = vmatprep.subr.mxu0 0.0
    %700 = vmatpush1.xpose.msra.mxu0 0.0
    %701 = vmatprep.subr.mxu0 0.0
    %702 = vmatpush1.xpose.msra.mxu0 0.0
    %703 = vmatprep.subr.mxu0 0.0
    %704 = vmatpush1.xpose.msra.mxu0 0.0
    %705 = vmatprep.subr.mxu0 0.0
    %706 = vmatpush1.xpose.msra.mxu0 0.0
    %707 = vmatprep.subr.mxu0 0.0
    %708 = vmatpush1.xpose.msra.mxu0 0.0
    %709 = vmatprep.subr.mxu0 0.0
    %710 = vmatpush1.xpose.msra.mxu0 0.0
    %v711 = vand.u32 %v70, 4294901760
    %712 = vmatprep.mubr.f32.mxu0 %v711
    %v713 = vand.u32 %v69, 4294901760
    %714 = vmatmul.mubr.f32.gmra.mrb[0].mxu0 %v713
    %v715 = vpop.f32.mrb[0].mxu0
    %v716 = vadd.f32 %v634, %v715
    %v717 = vpop.f32.mrb[0].mxu0
    %718 = vdwg.mxu0
    %v719 = vand.u32 %v70, 4294901760
    %v720 = vsub.f32 %v70, %v719
    %721 = vmatprep.subr.mxu0 %v720
    %v722 = vand.u32 %v69, 4294901760
    %v723 = vsub.f32 %v69, %v722
    %724 = vmatpush1.xpose.msra.mxu0 %v723
    %725 = vmatprep.subr.mxu0 0.0
    %726 = vmatpush1.xpose.msra.mxu0 0.0
    %727 = vmatprep.subr.mxu0 0.0
    %728 = vmatpush1.xpose.msra.mxu0 0.0
    %729 = vmatprep.subr.mxu0 0.0
    %730 = vmatpush1.xpose.msra.mxu0 0.0
    %731 = vmatprep.subr.mxu0 0.0
    %732 = vmatpush1.xpose.msra.mxu0 0.0
    %733 = vmatprep.subr.mxu0 0.0
    %734 = vmatpush1.xpose.msra.mxu0 0.0
    %735 = vmatprep.subr.mxu0 0.0
    %736 = vmatpush1.xpose.msra.mxu0 0.0
    %737 = vmatprep.subr.mxu0 0.0
    %738 = vmatpush1.xpose.msra.mxu0 0.0
    %739 = vmatprep.subr.mxu0 0.0
    %740 = vmatpush1.xpose.msra.mxu0 0.0
    %741 = vmatprep.subr.mxu0 0.0
    %742 = vmatpush1.xpose.msra.mxu0 0.0
    %743 = vmatprep.subr.mxu0 0.0
    %744 = vmatpush1.xpose.msra.mxu0 0.0
    %745 = vmatprep.subr.mxu0 0.0
    %746 = vmatpush1.xpose.msra.mxu0 0.0
    %747 = vmatprep.subr.mxu0 0.0
    %748 = vmatpush1.xpose.msra.mxu0 0.0
    %749 = vmatprep.subr.mxu0 0.0
    %750 = vmatpush1.xpose.msra.mxu0 0.0
    %751 = vmatprep.subr.mxu0 0.0
    %752 = vmatpush1.xpose.msra.mxu0 0.0
    %753 = vmatprep.subr.mxu0 0.0
    %754 = vmatpush1.xpose.msra.mxu0 0.0
    %755 = vmatprep.subr.mxu0 0.0
    %756 = vmatpush1.xpose.msra.mxu0 0.0
    %757 = vmatprep.subr.mxu0 0.0
    %758 = vmatpush1.xpose.msra.mxu0 0.0
    %759 = vmatprep.subr.mxu0 0.0
    %760 = vmatpush1.xpose.msra.mxu0 0.0
    %761 = vmatprep.subr.mxu0 0.0
    %762 = vmatpush1.xpose.msra.mxu0 0.0
    %763 = vmatprep.subr.mxu0 0.0
    %764 = vmatpush1.xpose.msra.mxu0 0.0
    %765 = vmatprep.subr.mxu0 0.0
    %766 = vmatpush1.xpose.msra.mxu0 0.0
    %767 = vmatprep.subr.mxu0 0.0
    %768 = vmatpush1.xpose.msra.mxu0 0.0
    %769 = vmatprep.subr.mxu0 0.0
    %770 = vmatpush1.xpose.msra.mxu0 0.0
    %771 = vmatprep.subr.mxu0 0.0
    %772 = vmatpush1.xpose.msra.mxu0 0.0
    %773 = vmatprep.subr.mxu0 0.0
    %774 = vmatpush1.xpose.msra.mxu0 0.0
    %775 = vmatprep.subr.mxu0 0.0
    %776 = vmatpush1.xpose.msra.mxu0 0.0
    %777 = vmatprep.subr.mxu0 0.0
    %778 = vmatpush1.xpose.msra.mxu0 0.0
    %779 = vmatprep.subr.mxu0 0.0
    %780 = vmatpush1.xpose.msra.mxu0 0.0
    %781 = vmatprep.subr.mxu0 0.0
    %782 = vmatpush1.xpose.msra.mxu0 0.0
    %783 = vmatprep.subr.mxu0 0.0
    %784 = vmatpush1.xpose.msra.mxu0 0.0
    %785 = vmatprep.subr.mxu0 0.0
    %786 = vmatpush1.xpose.msra.mxu0 0.0
    %v787 = vand.u32 %v70, 4294901760
    %v788 = vsub.f32 %v70, %v787
    %789 = vmatprep.mubr.f32.mxu0 %v788
    %v790 = vand.u32 %v69, 4294901760
    %v791 = vsub.f32 %v69, %v790
    %792 = vmatmul.mubr.f32.gmra.mrb[0].mxu0 %v791
    %v793 = vpop.f32.mrb[0].mxu0
    %v794 = vadd.f32 %v716, %v793
    %v795 = vpop.f32.mrb[0].mxu0
    %796 = vdwg.mxu0
    %v797 = vand.u32 %v70, 4294901760
    %798 = vmatprep.subr.mxu0 %v797
    %v799 = vand.u32 %v69, 4294901760
    %800 = vmatpush1.xpose.msra.mxu0 %v799
    %801 = vmatprep.subr.mxu0 0.0
    %802 = vmatpush1.xpose.msra.mxu0 0.0
    %803 = vmatprep.subr.mxu0 0.0
    %804 = vmatpush1.xpose.msra.mxu0 0.0
    %805 = vmatprep.subr.mxu0 0.0
    %806 = vmatpush1.xpose.msra.mxu0 0.0
    %807 = vmatprep.subr.mxu0 0.0
    %808 = vmatpush1.xpose.msra.mxu0 0.0
    %809 = vmatprep.subr.mxu0 0.0
    %810 = vmatpush1.xpose.msra.mxu0 0.0
    %811 = vmatprep.subr.mxu0 0.0
    %812 = vmatpush1.xpose.msra.mxu0 0.0
    %813 = vmatprep.subr.mxu0 0.0
    %814 = vmatpush1.xpose.msra.mxu0 0.0
    %815 = vmatprep.subr.mxu0 0.0
    %816 = vmatpush1.xpose.msra.mxu0 0.0
    %817 = vmatprep.subr.mxu0 0.0
    %818 = vmatpush1.xpose.msra.mxu0 0.0
    %819 = vmatprep.subr.mxu0 0.0
    %820 = vmatpush1.xpose.msra.mxu0 0.0
    %821 = vmatprep.subr.mxu0 0.0
    %822 = vmatpush1.xpose.msra.mxu0 0.0
    %823 = vmatprep.subr.mxu0 0.0
    %824 = vmatpush1.xpose.msra.mxu0 0.0
    %825 = vmatprep.subr.mxu0 0.0
    %826 = vmatpush1.xpose.msra.mxu0 0.0
    %827 = vmatprep.subr.mxu0 0.0
    %828 = vmatpush1.xpose.msra.mxu0 0.0
    %829 = vmatprep.subr.mxu0 0.0
    %830 = vmatpush1.xpose.msra.mxu0 0.0
    %831 = vmatprep.subr.mxu0 0.0
    %832 = vmatpush1.xpose.msra.mxu0 0.0
    %833 = vmatprep.subr.mxu0 0.0
    %834 = vmatpush1.xpose.msra.mxu0 0.0
    %835 = vmatprep.subr.mxu0 0.0
    %836 = vmatpush1.xpose.msra.mxu0 0.0
    %837 = vmatprep.subr.mxu0 0.0
    %838 = vmatpush1.xpose.msra.mxu0 0.0
    %839 = vmatprep.subr.mxu0 0.0
    %840 = vmatpush1.xpose.msra.mxu0 0.0
    %841 = vmatprep.subr.mxu0 0.0
    %842 = vmatpush1.xpose.msra.mxu0 0.0
    %843 = vmatprep.subr.mxu0 0.0
    %844 = vmatpush1.xpose.msra.mxu0 0.0
    %845 = vmatprep.subr.mxu0 0.0
    %846 = vmatpush1.xpose.msra.mxu0 0.0
    %847 = vmatprep.subr.mxu0 0.0
    %848 = vmatpush1.xpose.msra.mxu0 0.0
    %849 = vmatprep.subr.mxu0 0.0
    %850 = vmatpush1.xpose.msra.mxu0 0.0
    %851 = vmatprep.subr.mxu0 0.0
    %852 = vmatpush1.xpose.msra.mxu0 0.0
    %853 = vmatprep.subr.mxu0 0.0
    %854 = vmatpush1.xpose.msra.mxu0 0.0
    %855 = vmatprep.subr.mxu0 0.0
    %856 = vmatpush1.xpose.msra.mxu0 0.0
    %857 = vmatprep.subr.mxu0 0.0
    %858 = vmatpush1.xpose.msra.mxu0 0.0
    %859 = vmatprep.subr.mxu0 0.0
    %860 = vmatpush1.xpose.msra.mxu0 0.0
    %861 = vmatprep.subr.mxu0 0.0
    %862 = vmatpush1.xpose.msra.mxu0 0.0
    %v863 = vand.u32 %v70, 4294901760
    %v864 = vsub.f32 %v70, %v863
    %v865 = vand.u32 %v864, 4294901760
    %866 = vmatprep.mubr.f32.mxu0 %v865
    %v867 = vand.u32 %v69, 4294901760
    %v868 = vsub.f32 %v69, %v867
    %v869 = vand.u32 %v868, 4294901760
    %870 = vmatmul.mubr.f32.gmra.mrb[0].mxu0 %v869
    %v871 = vpop.f32.mrb[0].mxu0
    %v872 = vadd.f32 %v794, %v871
    %v873 = vpop.f32.mrb[0].mxu0
    %874 = vdwg.mxu0
    %v875 = vand.u32 %v70, 4294901760
    %v876 = vsub.f32 %v70, %v875
    %v877 = vand.u32 %v876, 4294901760
    %878 = vmatprep.subr.mxu0 %v877
    %v879 = vand.u32 %v69, 4294901760
    %v880 = vsub.f32 %v69, %v879
    %v881 = vand.u32 %v880, 4294901760
    %882 = vmatpush1.xpose.msra.mxu0 %v881
    %883 = vmatprep.subr.mxu0 0.0
    %884 = vmatpush1.xpose.msra.mxu0 0.0
    %885 = vmatprep.subr.mxu0 0.0
    %886 = vmatpush1.xpose.msra.mxu0 0.0
    %887 = vmatprep.subr.mxu0 0.0
    %888 = vmatpush1.xpose.msra.mxu0 0.0
    %889 = vmatprep.subr.mxu0 0.0
    %890 = vmatpush1.xpose.msra.mxu0 0.0
    %891 = vmatprep.subr.mxu0 0.0
    %892 = vmatpush1.xpose.msra.mxu0 0.0
    %893 = vmatprep.subr.mxu0 0.0
    %894 = vmatpush1.xpose.msra.mxu0 0.0
    %895 = vmatprep.subr.mxu0 0.0
    %896 = vmatpush1.xpose.msra.mxu0 0.0
    %897 = vmatprep.subr.mxu0 0.0
    %898 = vmatpush1.xpose.msra.mxu0 0.0
    %899 = vmatprep.subr.mxu0 0.0
    %900 = vmatpush1.xpose.msra.mxu0 0.0
    %901 = vmatprep.subr.mxu0 0.0
    %902 = vmatpush1.xpose.msra.mxu0 0.0
    %903 = vmatprep.subr.mxu0 0.0
    %904 = vmatpush1.xpose.msra.mxu0 0.0
    %905 = vmatprep.subr.mxu0 0.0
    %906 = vmatpush1.xpose.msra.mxu0 0.0
    %907 = vmatprep.subr.mxu0 0.0
    %908 = vmatpush1.xpose.msra.mxu0 0.0
    %909 = vmatprep.subr.mxu0 0.0
    %910 = vmatpush1.xpose.msra.mxu0 0.0
    %911 = vmatprep.subr.mxu0 0.0
    %912 = vmatpush1.xpose.msra.mxu0 0.0
    %913 = vmatprep.subr.mxu0 0.0
    %914 = vmatpush1.xpose.msra.mxu0 0.0
    %915 = vmatprep.subr.mxu0 0.0
    %916 = vmatpush1.xpose.msra.mxu0 0.0
    %917 = vmatprep.subr.mxu0 0.0
    %918 = vmatpush1.xpose.msra.mxu0 0.0
    %919 = vmatprep.subr.mxu0 0.0
    %920 = vmatpush1.xpose.msra.mxu0 0.0
    %921 = vmatprep.subr.mxu0 0.0
    %922 = vmatpush1.xpose.msra.mxu0 0.0
    %923 = vmatprep.subr.mxu0 0.0
    %924 = vmatpush1.xpose.msra.mxu0 0.0
    %925 = vmatprep.subr.mxu0 0.0
    %926 = vmatpush1.xpose.msra.mxu0 0.0
    %927 = vmatprep.subr.mxu0 0.0
    %928 = vmatpush1.xpose.msra.mxu0 0.0
    %929 = vmatprep.subr.mxu0 0.0
    %930 = vmatpush1.xpose.msra.mxu0 0.0
    %931 = vmatprep.subr.mxu0 0.0
    %932 = vmatpush1.xpose.msra.mxu0 0.0
    %933 = vmatprep.subr.mxu0 0.0
    %934 = vmatpush1.xpose.msra.mxu0 0.0
    %935 = vmatprep.subr.mxu0 0.0
    %936 = vmatpush1.xpose.msra.mxu0 0.0
    %937 = vmatprep.subr.mxu0 0.0
    %938 = vmatpush1.xpose.msra.mxu0 0.0
    %939 = vmatprep.subr.mxu0 0.0
    %940 = vmatpush1.xpose.msra.mxu0 0.0
    %941 = vmatprep.subr.mxu0 0.0
    %942 = vmatpush1.xpose.msra.mxu0 0.0
    %943 = vmatprep.subr.mxu0 0.0
    %944 = vmatpush1.xpose.msra.mxu0 0.0
    %v945 = vand.u32 %v70, 4294901760
    %946 = vmatprep.mubr.f32.mxu0 %v945
    %v947 = vand.u32 %v69, 4294901760
    %948 = vmatmul.mubr.f32.gmra.mrb[0].mxu0 %v947
    %v949 = vpop.f32.mrb[0].mxu0
    %v950 = vadd.f32 %v872, %v949
    %v951 = vpop.f32.mrb[0].mxu0
    %952 = vdwg.mxu0
    %v953 = vand.u32 %v70, 4294901760
    %954 = vmatprep.subr.mxu0 %v953
    %v955 = vand.u32 %v69, 4294901760
    %956 = vmatpush1.xpose.msra.mxu0 %v955
    %957 = vmatprep.subr.mxu0 0.0
    %958 = vmatpush1.xpose.msra.mxu0 0.0
    %959 = vmatprep.subr.mxu0 0.0
    %960 = vmatpush1.xpose.msra.mxu0 0.0
    %961 = vmatprep.subr.mxu0 0.0
    %962 = vmatpush1.xpose.msra.mxu0 0.0
    %963 = vmatprep.subr.mxu0 0.0
    %964 = vmatpush1.xpose.msra.mxu0 0.0
    %965 = vmatprep.subr.mxu0 0.0
    %966 = vmatpush1.xpose.msra.mxu0 0.0
    %967 = vmatprep.subr.mxu0 0.0
    %968 = vmatpush1.xpose.msra.mxu0 0.0
    %969 = vmatprep.subr.mxu0 0.0
    %970 = vmatpush1.xpose.msra.mxu0 0.0
    %971 = vmatprep.subr.mxu0 0.0
    %972 = vmatpush1.xpose.msra.mxu0 0.0
    %973 = vmatprep.subr.mxu0 0.0
    %974 = vmatpush1.xpose.msra.mxu0 0.0
    %975 = vmatprep.subr.mxu0 0.0
    %976 = vmatpush1.xpose.msra.mxu0 0.0
    %977 = vmatprep.subr.mxu0 0.0
    %978 = vmatpush1.xpose.msra.mxu0 0.0
    %979 = vmatprep.subr.mxu0 0.0
    %980 = vmatpush1.xpose.msra.mxu0 0.0
    %981 = vmatprep.subr.mxu0 0.0
    %982 = vmatpush1.xpose.msra.mxu0 0.0
    %983 = vmatprep.subr.mxu0 0.0
    %984 = vmatpush1.xpose.msra.mxu0 0.0
    %985 = vmatprep.subr.mxu0 0.0
    %986 = vmatpush1.xpose.msra.mxu0 0.0
    %987 = vmatprep.subr.mxu0 0.0
    %988 = vmatpush1.xpose.msra.mxu0 0.0
    %989 = vmatprep.subr.mxu0 0.0
    %990 = vmatpush1.xpose.msra.mxu0 0.0
    %991 = vmatprep.subr.mxu0 0.0
    %992 = vmatpush1.xpose.msra.mxu0 0.0
    %993 = vmatprep.subr.mxu0 0.0
    %994 = vmatpush1.xpose.msra.mxu0 0.0
    %995 = vmatprep.subr.mxu0 0.0
    %996 = vmatpush1.xpose.msra.mxu0 0.0
    %997 = vmatprep.subr.mxu0 0.0
    %998 = vmatpush1.xpose.msra.mxu0 0.0
    %999 = vmatprep.subr.mxu0 0.0
    %1000 = vmatpush1.xpose.msra.mxu0 0.0
    %1001 = vmatprep.subr.mxu0 0.0
    %1002 = vmatpush1.xpose.msra.mxu0 0.0
    %1003 = vmatprep.subr.mxu0 0.0
    %1004 = vmatpush1.xpose.msra.mxu0 0.0
    %1005 = vmatprep.subr.mxu0 0.0
    %1006 = vmatpush1.xpose.msra.mxu0 0.0
    %1007 = vmatprep.subr.mxu0 0.0
    %1008 = vmatpush1.xpose.msra.mxu0 0.0
    %1009 = vmatprep.subr.mxu0 0.0
    %1010 = vmatpush1.xpose.msra.mxu0 0.0
    %1011 = vmatprep.subr.mxu0 0.0
    %1012 = vmatpush1.xpose.msra.mxu0 0.0
    %1013 = vmatprep.subr.mxu0 0.0
    %1014 = vmatpush1.xpose.msra.mxu0 0.0
    %1015 = vmatprep.subr.mxu0 0.0
    %1016 = vmatpush1.xpose.msra.mxu0 0.0
    %1017 = vmatprep.subr.mxu0 0.0
    %1018 = vmatpush1.xpose.msra.mxu0 0.0
    %v1019 = vand.u32 %v70, 4294901760
    %1020 = vmatprep.mubr.f32.mxu0 %v1019
    %v1021 = vand.u32 %v69, 4294901760
    %1022 = vmatmul.mubr.f32.gmra.mrb[0].mxu0 %v1021
    %v1023 = vpop.f32.mrb[0].mxu0
    %v1024 = vadd.f32 %v950, %v1023
    %v1025 = vpop.f32.mrb[0].mxu0
    %1026 = vdwg.mxu0
    %v1027 = vand.u32 %v72, 4294901760
    %1028 = vmatprep.subr.mxu0 %v1027
    %v1029 = vand.u32 %v71, 4294901760
    %1030 = vmatpush1.xpose.msra.mxu0 %v1029
    %1031 = vmatprep.subr.mxu0 0.0
    %1032 = vmatpush1.xpose.msra.mxu0 0.0
    %1033 = vmatprep.subr.mxu0 0.0
    %1034 = vmatpush1.xpose.msra.mxu0 0.0
    %1035 = vmatprep.subr.mxu0 0.0
    %1036 = vmatpush1.xpose.msra.mxu0 0.0
    %1037 = vmatprep.subr.mxu0 0.0
    %1038 = vmatpush1.xpose.msra.mxu0 0.0
    %1039 = vmatprep.subr.mxu0 0.0
    %1040 = vmatpush1.xpose.msra.mxu0 0.0
    %1041 = vmatprep.subr.mxu0 0.0
    %1042 = vmatpush1.xpose.msra.mxu0 0.0
    %1043 = vmatprep.subr.mxu0 0.0
    %1044 = vmatpush1.xpose.msra.mxu0 0.0
    %1045 = vmatprep.subr.mxu0 0.0
    %1046 = vmatpush1.xpose.msra.mxu0 0.0
    %1047 = vmatprep.subr.mxu0 0.0
    %1048 = vmatpush1.xpose.msra.mxu0 0.0
    %1049 = vmatprep.subr.mxu0 0.0
    %1050 = vmatpush1.xpose.msra.mxu0 0.0
    %1051 = vmatprep.subr.mxu0 0.0
    %1052 = vmatpush1.xpose.msra.mxu0 0.0
    %1053 = vmatprep.subr.mxu0 0.0
    %1054 = vmatpush1.xpose.msra.mxu0 0.0
    %1055 = vmatprep.subr.mxu0 0.0
    %1056 = vmatpush1.xpose.msra.mxu0 0.0
    %1057 = vmatprep.subr.mxu0 0.0
    %1058 = vmatpush1.xpose.msra.mxu0 0.0
    %1059 = vmatprep.subr.mxu0 0.0
    %1060 = vmatpush1.xpose.msra.mxu0 0.0
    %1061 = vmatprep.subr.mxu0 0.0
    %1062 = vmatpush1.xpose.msra.mxu0 0.0
    %1063 = vmatprep.subr.mxu0 0.0
    %1064 = vmatpush1.xpose.msra.mxu0 0.0
    %1065 = vmatprep.subr.mxu0 0.0
    %1066 = vmatpush1.xpose.msra.mxu0 0.0
    %1067 = vmatprep.subr.mxu0 0.0
    %1068 = vmatpush1.xpose.msra.mxu0 0.0
    %1069 = vmatprep.subr.mxu0 0.0
    %1070 = vmatpush1.xpose.msra.mxu0 0.0
    %1071 = vmatprep.subr.mxu0 0.0
    %1072 = vmatpush1.xpose.msra.mxu0 0.0
    %1073 = vmatprep.subr.mxu0 0.0
    %1074 = vmatpush1.xpose.msra.mxu0 0.0
    %1075 = vmatprep.subr.mxu0 0.0
    %1076 = vmatpush1.xpose.msra.mxu0 0.0
    %1077 = vmatprep.subr.mxu0 0.0
    %1078 = vmatpush1.xpose.msra.mxu0 0.0
    %1079 = vmatprep.subr.mxu0 0.0
    %1080 = vmatpush1.xpose.msra.mxu0 0.0
    %1081 = vmatprep.subr.mxu0 0.0
    %1082 = vmatpush1.xpose.msra.mxu0 0.0
    %1083 = vmatprep.subr.mxu0 0.0
    %1084 = vmatpush1.xpose.msra.mxu0 0.0
    %1085 = vmatprep.subr.mxu0 0.0
    %1086 = vmatpush1.xpose.msra.mxu0 0.0
    %1087 = vmatprep.subr.mxu0 0.0
    %1088 = vmatpush1.xpose.msra.mxu0 0.0
    %1089 = vmatprep.subr.mxu0 0.0
    %1090 = vmatpush1.xpose.msra.mxu0 0.0
    %1091 = vmatprep.subr.mxu0 0.0
    %1092 = vmatpush1.xpose.msra.mxu0 0.0
    %v1093 = vand.u32 %v72, 4294901760
    %v1094 = vsub.f32 %v72, %v1093
    %v1095 = vand.u32 %v1094, 4294901760
    %v1096 = vsub.f32 %v1094, %v1095
    %v1097 = vand.u32 %v1096, 4294901760
    %1098 = vmatprep.mubr.f32.mxu0 %v1097
    %v1099 = vand.u32 %v71, 4294901760
    %v1100 = vsub.f32 %v71, %v1099
    %v1101 = vand.u32 %v1100, 4294901760
    %v1102 = vsub.f32 %v1100, %v1101
    %v1103 = vand.u32 %v1102, 4294901760
    %1104 = vmatmul.mubr.f32.gmra.mrb[0].mxu0 %v1103
    %v1105 = vpop.f32.mrb[0].mxu0
    %v1106 = vadd.f32 %v1024, %v1105
    %v1107 = vpop.f32.mrb[0].mxu0
    %1108 = vdwg.mxu0
    %v1109 = vand.u32 %v72, 4294901760
    %v1110 = vsub.f32 %v72, %v1109
    %v1111 = vand.u32 %v1110, 4294901760
    %v1112 = vsub.f32 %v1110, %v1111
    %v1113 = vand.u32 %v1112, 4294901760
    %1114 = vmatprep.subr.mxu0 %v1113
    %v1115 = vand.u32 %v71, 4294901760
    %v1116 = vsub.f32 %v71, %v1115
    %v1117 = vand.u32 %v1116, 4294901760
    %v1118 = vsub.f32 %v1116, %v1117
    %v1119 = vand.u32 %v1118, 4294901760
    %1120 = vmatpush1.xpose.msra.mxu0 %v1119
    %1121 = vmatprep.subr.mxu0 0.0
    %1122 = vmatpush1.xpose.msra.mxu0 0.0
    %1123 = vmatprep.subr.mxu0 0.0
    %1124 = vmatpush1.xpose.msra.mxu0 0.0
    %1125 = vmatprep.subr.mxu0 0.0
    %1126 = vmatpush1.xpose.msra.mxu0 0.0
    %1127 = vmatprep.subr.mxu0 0.0
    %1128 = vmatpush1.xpose.msra.mxu0 0.0
    %1129 = vmatprep.subr.mxu0 0.0
    %1130 = vmatpush1.xpose.msra.mxu0 0.0
    %1131 = vmatprep.subr.mxu0 0.0
    %1132 = vmatpush1.xpose.msra.mxu0 0.0
    %1133 = vmatprep.subr.mxu0 0.0
    %1134 = vmatpush1.xpose.msra.mxu0 0.0
    %1135 = vmatprep.subr.mxu0 0.0
    %1136 = vmatpush1.xpose.msra.mxu0 0.0
    %1137 = vmatprep.subr.mxu0 0.0
    %1138 = vmatpush1.xpose.msra.mxu0 0.0
    %1139 = vmatprep.subr.mxu0 0.0
    %1140 = vmatpush1.xpose.msra.mxu0 0.0
    %1141 = vmatprep.subr.mxu0 0.0
    %1142 = vmatpush1.xpose.msra.mxu0 0.0
    %1143 = vmatprep.subr.mxu0 0.0
    %1144 = vmatpush1.xpose.msra.mxu0 0.0
    %1145 = vmatprep.subr.mxu0 0.0
    %1146 = vmatpush1.xpose.msra.mxu0 0.0
    %1147 = vmatprep.subr.mxu0 0.0
    %1148 = vmatpush1.xpose.msra.mxu0 0.0
    %1149 = vmatprep.subr.mxu0 0.0
    %1150 = vmatpush1.xpose.msra.mxu0 0.0
    %1151 = vmatprep.subr.mxu0 0.0
    %1152 = vmatpush1.xpose.msra.mxu0 0.0
    %1153 = vmatprep.subr.mxu0 0.0
    %1154 = vmatpush1.xpose.msra.mxu0 0.0
    %1155 = vmatprep.subr.mxu0 0.0
    %1156 = vmatpush1.xpose.msra.mxu0 0.0
    %1157 = vmatprep.subr.mxu0 0.0
    %1158 = vmatpush1.xpose.msra.mxu0 0.0
    %1159 = vmatprep.subr.mxu0 0.0
    %1160 = vmatpush1.xpose.msra.mxu0 0.0
    %1161 = vmatprep.subr.mxu0 0.0
    %1162 = vmatpush1.xpose.msra.mxu0 0.0
    %1163 = vmatprep.subr.mxu0 0.0
    %1164 = vmatpush1.xpose.msra.mxu0 0.0
    %1165 = vmatprep.subr.mxu0 0.0
    %1166 = vmatpush1.xpose.msra.mxu0 0.0
    %1167 = vmatprep.subr.mxu0 0.0
    %1168 = vmatpush1.xpose.msra.mxu0 0.0
    %1169 = vmatprep.subr.mxu0 0.0
    %1170 = vmatpush1.xpose.msra.mxu0 0.0
    %1171 = vmatprep.subr.mxu0 0.0
    %1172 = vmatpush1.xpose.msra.mxu0 0.0
    %1173 = vmatprep.subr.mxu0 0.0
    %1174 = vmatpush1.xpose.msra.mxu0 0.0
    %1175 = vmatprep.subr.mxu0 0.0
    %1176 = vmatpush1.xpose.msra.mxu0 0.0
    %1177 = vmatprep.subr.mxu0 0.0
    %1178 = vmatpush1.xpose.msra.mxu0 0.0
    %1179 = vmatprep.subr.mxu0 0.0
    %1180 = vmatpush1.xpose.msra.mxu0 0.0
    %1181 = vmatprep.subr.mxu0 0.0
    %1182 = vmatpush1.xpose.msra.mxu0 0.0
    %v1183 = vand.u32 %v72, 4294901760
    %1184 = vmatprep.mubr.f32.mxu0 %v1183
    %v1185 = vand.u32 %v71, 4294901760
    %1186 = vmatmul.mubr.f32.gmra.mrb[0].mxu0 %v1185
    %v1187 = vpop.f32.mrb[0].mxu0
    %v1188 = vadd.f32 %v1106, %v1187
    %v1189 = vpop.f32.mrb[0].mxu0
    %1190 = vdwg.mxu0
    %v1191 = vand.u32 %v72, 4294901760
    %v1192 = vsub.f32 %v72, %v1191
    %1193 = vmatprep.subr.mxu0 %v1192
    %v1194 = vand.u32 %v71, 4294901760
    %v1195 = vsub.f32 %v71, %v1194
    %1196 = vmatpush1.xpose.msra.mxu0 %v1195
    %1197 = vmatprep.subr.mxu0 0.0
    %1198 = vmatpush1.xpose.msra.mxu0 0.0
    %1199 = vmatprep.subr.mxu0 0.0
    %1200 = vmatpush1.xpose.msra.mxu0 0.0
    %1201 = vmatprep.subr.mxu0 0.0
    %1202 = vmatpush1.xpose.msra.mxu0 0.0
    %1203 = vmatprep.subr.mxu0 0.0
    %1204 = vmatpush1.xpose.msra.mxu0 0.0
    %1205 = vmatprep.subr.mxu0 0.0
    %1206 = vmatpush1.xpose.msra.mxu0 0.0
    %1207 = vmatprep.subr.mxu0 0.0
    %1208 = vmatpush1.xpose.msra.mxu0 0.0
    %1209 = vmatprep.subr.mxu0 0.0
    %1210 = vmatpush1.xpose.msra.mxu0 0.0
    %1211 = vmatprep.subr.mxu0 0.0
    %1212 = vmatpush1.xpose.msra.mxu0 0.0
    %1213 = vmatprep.subr.mxu0 0.0
    %1214 = vmatpush1.xpose.msra.mxu0 0.0
    %1215 = vmatprep.subr.mxu0 0.0
    %1216 = vmatpush1.xpose.msra.mxu0 0.0
    %1217 = vmatprep.subr.mxu0 0.0
    %1218 = vmatpush1.xpose.msra.mxu0 0.0
    %1219 = vmatprep.subr.mxu0 0.0
    %1220 = vmatpush1.xpose.msra.mxu0 0.0
    %1221 = vmatprep.subr.mxu0 0.0
    %1222 = vmatpush1.xpose.msra.mxu0 0.0
    %1223 = vmatprep.subr.mxu0 0.0
    %1224 = vmatpush1.xpose.msra.mxu0 0.0
    %1225 = vmatprep.subr.mxu0 0.0
    %1226 = vmatpush1.xpose.msra.mxu0 0.0
    %1227 = vmatprep.subr.mxu0 0.0
    %1228 = vmatpush1.xpose.msra.mxu0 0.0
    %1229 = vmatprep.subr.mxu0 0.0
    %1230 = vmatpush1.xpose.msra.mxu0 0.0
    %1231 = vmatprep.subr.mxu0 0.0
    %1232 = vmatpush1.xpose.msra.mxu0 0.0
    %1233 = vmatprep.subr.mxu0 0.0
    %1234 = vmatpush1.xpose.msra.mxu0 0.0
    %1235 = vmatprep.subr.mxu0 0.0
    %1236 = vmatpush1.xpose.msra.mxu0 0.0
    %1237 = vmatprep.subr.mxu0 0.0
    %1238 = vmatpush1.xpose.msra.mxu0 0.0
    %1239 = vmatprep.subr.mxu0 0.0
    %1240 = vmatpush1.xpose.msra.mxu0 0.0
    %1241 = vmatprep.subr.mxu0 0.0
    %1242 = vmatpush1.xpose.msra.mxu0 0.0
    %1243 = vmatprep.subr.mxu0 0.0
    %1244 = vmatpush1.xpose.msra.mxu0 0.0
    %1245 = vmatprep.subr.mxu0 0.0
    %1246 = vmatpush1.xpose.msra.mxu0 0.0
    %1247 = vmatprep.subr.mxu0 0.0
    %1248 = vmatpush1.xpose.msra.mxu0 0.0
    %1249 = vmatprep.subr.mxu0 0.0
    %1250 = vmatpush1.xpose.msra.mxu0 0.0
    %1251 = vmatprep.subr.mxu0 0.0
    %1252 = vmatpush1.xpose.msra.mxu0 0.0
    %1253 = vmatprep.subr.mxu0 0.0
    %1254 = vmatpush1.xpose.msra.mxu0 0.0
    %1255 = vmatprep.subr.mxu0 0.0
    %1256 = vmatpush1.xpose.msra.mxu0 0.0
    %1257 = vmatprep.subr.mxu0 0.0
    %1258 = vmatpush1.xpose.msra.mxu0 0.0
    %v1259 = vand.u32 %v72, 4294901760
    %v1260 = vsub.f32 %v72, %v1259
    %1261 = vmatprep.mubr.f32.mxu0 %v1260
    %v1262 = vand.u32 %v71, 4294901760
    %v1263 = vsub.f32 %v71, %v1262
    %1264 = vmatmul.mubr.f32.gmra.mrb[0].mxu0 %v1263
    %v1265 = vpop.f32.mrb[0].mxu0
    %v1266 = vadd.f32 %v1188, %v1265
    %v1267 = vpop.f32.mrb[0].mxu0
    %1268 = vdwg.mxu0
    %v1269 = vand.u32 %v72, 4294901760
    %1270 = vmatprep.subr.mxu0 %v1269
    %v1271 = vand.u32 %v71, 4294901760
    %1272 = vmatpush1.xpose.msra.mxu0 %v1271
    %1273 = vmatprep.subr.mxu0 0.0
    %1274 = vmatpush1.xpose.msra.mxu0 0.0
    %1275 = vmatprep.subr.mxu0 0.0
    %1276 = vmatpush1.xpose.msra.mxu0 0.0
    %1277 = vmatprep.subr.mxu0 0.0
    %1278 = vmatpush1.xpose.msra.mxu0 0.0
    %1279 = vmatprep.subr.mxu0 0.0
    %1280 = vmatpush1.xpose.msra.mxu0 0.0
    %1281 = vmatprep.subr.mxu0 0.0
    %1282 = vmatpush1.xpose.msra.mxu0 0.0
    %1283 = vmatprep.subr.mxu0 0.0
    %1284 = vmatpush1.xpose.msra.mxu0 0.0
    %1285 = vmatprep.subr.mxu0 0.0
    %1286 = vmatpush1.xpose.msra.mxu0 0.0
    %1287 = vmatprep.subr.mxu0 0.0
    %1288 = vmatpush1.xpose.msra.mxu0 0.0
    %1289 = vmatprep.subr.mxu0 0.0
    %1290 = vmatpush1.xpose.msra.mxu0 0.0
    %1291 = vmatprep.subr.mxu0 0.0
    %1292 = vmatpush1.xpose.msra.mxu0 0.0
    %1293 = vmatprep.subr.mxu0 0.0
    %1294 = vmatpush1.xpose.msra.mxu0 0.0
    %1295 = vmatprep.subr.mxu0 0.0
    %1296 = vmatpush1.xpose.msra.mxu0 0.0
    %1297 = vmatprep.subr.mxu0 0.0
    %1298 = vmatpush1.xpose.msra.mxu0 0.0
    %1299 = vmatprep.subr.mxu0 0.0
    %1300 = vmatpush1.xpose.msra.mxu0 0.0
    %1301 = vmatprep.subr.mxu0 0.0
    %1302 = vmatpush1.xpose.msra.mxu0 0.0
    %1303 = vmatprep.subr.mxu0 0.0
    %1304 = vmatpush1.xpose.msra.mxu0 0.0
    %1305 = vmatprep.subr.mxu0 0.0
    %1306 = vmatpush1.xpose.msra.mxu0 0.0
    %1307 = vmatprep.subr.mxu0 0.0
    %1308 = vmatpush1.xpose.msra.mxu0 0.0
    %1309 = vmatprep.subr.mxu0 0.0
    %1310 = vmatpush1.xpose.msra.mxu0 0.0
    %1311 = vmatprep.subr.mxu0 0.0
    %1312 = vmatpush1.xpose.msra.mxu0 0.0
    %1313 = vmatprep.subr.mxu0 0.0
    %1314 = vmatpush1.xpose.msra.mxu0 0.0
    %1315 = vmatprep.subr.mxu0 0.0
    %1316 = vmatpush1.xpose.msra.mxu0 0.0
    %1317 = vmatprep.subr.mxu0 0.0
    %1318 = vmatpush1.xpose.msra.mxu0 0.0
    %1319 = vmatprep.subr.mxu0 0.0
    %1320 = vmatpush1.xpose.msra.mxu0 0.0
    %1321 = vmatprep.subr.mxu0 0.0
    %1322 = vmatpush1.xpose.msra.mxu0 0.0
    %1323 = vmatprep.subr.mxu0 0.0
    %1324 = vmatpush1.xpose.msra.mxu0 0.0
    %1325 = vmatprep.subr.mxu0 0.0
    %1326 = vmatpush1.xpose.msra.mxu0 0.0
    %1327 = vmatprep.subr.mxu0 0.0
    %1328 = vmatpush1.xpose.msra.mxu0 0.0
    %1329 = vmatprep.subr.mxu0 0.0
    %1330 = vmatpush1.xpose.msra.mxu0 0.0
    %1331 = vmatprep.subr.mxu0 0.0
    %1332 = vmatpush1.xpose.msra.mxu0 0.0
    %1333 = vmatprep.subr.mxu0 0.0
    %1334 = vmatpush1.xpose.msra.mxu0 0.0
    %v1335 = vand.u32 %v72, 4294901760
    %v1336 = vsub.f32 %v72, %v1335
    %v1337 = vand.u32 %v1336, 4294901760
    %1338 = vmatprep.mubr.f32.mxu0 %v1337
    %v1339 = vand.u32 %v71, 4294901760
    %v1340 = vsub.f32 %v71, %v1339
    %v1341 = vand.u32 %v1340, 4294901760
    %1342 = vmatmul.mubr.f32.gmra.mrb[0].mxu0 %v1341
    %v1343 = vpop.f32.mrb[0].mxu0
    %v1344 = vadd.f32 %v1266, %v1343
    %v1345 = vpop.f32.mrb[0].mxu0
    %1346 = vdwg.mxu0
    %v1347 = vand.u32 %v72, 4294901760
    %v1348 = vsub.f32 %v72, %v1347
    %v1349 = vand.u32 %v1348, 4294901760
    %1350 = vmatprep.subr.mxu0 %v1349
    %v1351 = vand.u32 %v71, 4294901760
    %v1352 = vsub.f32 %v71, %v1351
    %v1353 = vand.u32 %v1352, 4294901760
    %1354 = vmatpush1.xpose.msra.mxu0 %v1353
    %1355 = vmatprep.subr.mxu0 0.0
    %1356 = vmatpush1.xpose.msra.mxu0 0.0
    %1357 = vmatprep.subr.mxu0 0.0
    %1358 = vmatpush1.xpose.msra.mxu0 0.0
    %1359 = vmatprep.subr.mxu0 0.0
    %1360 = vmatpush1.xpose.msra.mxu0 0.0
    %1361 = vmatprep.subr.mxu0 0.0
    %1362 = vmatpush1.xpose.msra.mxu0 0.0
    %1363 = vmatprep.subr.mxu0 0.0
    %1364 = vmatpush1.xpose.msra.mxu0 0.0
    %1365 = vmatprep.subr.mxu0 0.0
    %1366 = vmatpush1.xpose.msra.mxu0 0.0
    %1367 = vmatprep.subr.mxu0 0.0
    %1368 = vmatpush1.xpose.msra.mxu0 0.0
    %1369 = vmatprep.subr.mxu0 0.0
    %1370 = vmatpush1.xpose.msra.mxu0 0.0
    %1371 = vmatprep.subr.mxu0 0.0
    %1372 = vmatpush1.xpose.msra.mxu0 0.0
    %1373 = vmatprep.subr.mxu0 0.0
    %1374 = vmatpush1.xpose.msra.mxu0 0.0
    %1375 = vmatprep.subr.mxu0 0.0
    %1376 = vmatpush1.xpose.msra.mxu0 0.0
    %1377 = vmatprep.subr.mxu0 0.0
    %1378 = vmatpush1.xpose.msra.mxu0 0.0
    %1379 = vmatprep.subr.mxu0 0.0
    %1380 = vmatpush1.xpose.msra.mxu0 0.0
    %1381 = vmatprep.subr.mxu0 0.0
    %1382 = vmatpush1.xpose.msra.mxu0 0.0
    %1383 = vmatprep.subr.mxu0 0.0
    %1384 = vmatpush1.xpose.msra.mxu0 0.0
    %1385 = vmatprep.subr.mxu0 0.0
    %1386 = vmatpush1.xpose.msra.mxu0 0.0
    %1387 = vmatprep.subr.mxu0 0.0
    %1388 = vmatpush1.xpose.msra.mxu0 0.0
    %1389 = vmatprep.subr.mxu0 0.0
    %1390 = vmatpush1.xpose.msra.mxu0 0.0
    %1391 = vmatprep.subr.mxu0 0.0
    %1392 = vmatpush1.xpose.msra.mxu0 0.0
    %1393 = vmatprep.subr.mxu0 0.0
    %1394 = vmatpush1.xpose.msra.mxu0 0.0
    %1395 = vmatprep.subr.mxu0 0.0
    %1396 = vmatpush1.xpose.msra.mxu0 0.0
    %1397 = vmatprep.subr.mxu0 0.0
    %1398 = vmatpush1.xpose.msra.mxu0 0.0
    %1399 = vmatprep.subr.mxu0 0.0
    %1400 = vmatpush1.xpose.msra.mxu0 0.0
    %1401 = vmatprep.subr.mxu0 0.0
    %1402 = vmatpush1.xpose.msra.mxu0 0.0
    %1403 = vmatprep.subr.mxu0 0.0
    %1404 = vmatpush1.xpose.msra.mxu0 0.0
    %1405 = vmatprep.subr.mxu0 0.0
    %1406 = vmatpush1.xpose.msra.mxu0 0.0
    %1407 = vmatprep.subr.mxu0 0.0
    %1408 = vmatpush1.xpose.msra.mxu0 0.0
    %1409 = vmatprep.subr.mxu0 0.0
    %1410 = vmatpush1.xpose.msra.mxu0 0.0
    %1411 = vmatprep.subr.mxu0 0.0
    %1412 = vmatpush1.xpose.msra.mxu0 0.0
    %1413 = vmatprep.subr.mxu0 0.0
    %1414 = vmatpush1.xpose.msra.mxu0 0.0
    %1415 = vmatprep.subr.mxu0 0.0
    %1416 = vmatpush1.xpose.msra.mxu0 0.0
    %v1417 = vand.u32 %v72, 4294901760
    %1418 = vmatprep.mubr.f32.mxu0 %v1417
    %v1419 = vand.u32 %v71, 4294901760
    %1420 = vmatmul.mubr.f32.gmra.mrb[0].mxu0 %v1419
    %v1421 = vpop.f32.mrb[0].mxu0
    %v1422 = vadd.f32 %v1344, %v1421
    %v1423 = vpop.f32.mrb[0].mxu0
    %1424 = vdwg.mxu0
    %v1425 = vand.u32 %v72, 4294901760
    %1426 = vmatprep.subr.mxu0 %v1425
    %v1427 = vand.u32 %v71, 4294901760
    %1428 = vmatpush1.xpose.msra.mxu0 %v1427
    %1429 = vmatprep.subr.mxu0 0.0
    %1430 = vmatpush1.xpose.msra.mxu0 0.0
    %1431 = vmatprep.subr.mxu0 0.0
    %1432 = vmatpush1.xpose.msra.mxu0 0.0
    %1433 = vmatprep.subr.mxu0 0.0
    %1434 = vmatpush1.xpose.msra.mxu0 0.0
    %1435 = vmatprep.subr.mxu0 0.0
    %1436 = vmatpush1.xpose.msra.mxu0 0.0
    %1437 = vmatprep.subr.mxu0 0.0
    %1438 = vmatpush1.xpose.msra.mxu0 0.0
    %1439 = vmatprep.subr.mxu0 0.0
    %1440 = vmatpush1.xpose.msra.mxu0 0.0
    %1441 = vmatprep.subr.mxu0 0.0
    %1442 = vmatpush1.xpose.msra.mxu0 0.0
    %1443 = vmatprep.subr.mxu0 0.0
    %1444 = vmatpush1.xpose.msra.mxu0 0.0
    %1445 = vmatprep.subr.mxu0 0.0
    %1446 = vmatpush1.xpose.msra.mxu0 0.0
    %1447 = vmatprep.subr.mxu0 0.0
    %1448 = vmatpush1.xpose.msra.mxu0 0.0
    %1449 = vmatprep.subr.mxu0 0.0
    %1450 = vmatpush1.xpose.msra.mxu0 0.0
    %1451 = vmatprep.subr.mxu0 0.0
    %1452 = vmatpush1.xpose.msra.mxu0 0.0
    %1453 = vmatprep.subr.mxu0 0.0
    %1454 = vmatpush1.xpose.msra.mxu0 0.0
    %1455 = vmatprep.subr.mxu0 0.0
    %1456 = vmatpush1.xpose.msra.mxu0 0.0
    %1457 = vmatprep.subr.mxu0 0.0
    %1458 = vmatpush1.xpose.msra.mxu0 0.0
    %1459 = vmatprep.subr.mxu0 0.0
    %1460 = vmatpush1.xpose.msra.mxu0 0.0
    %1461 = vmatprep.subr.mxu0 0.0
    %1462 = vmatpush1.xpose.msra.mxu0 0.0
    %1463 = vmatprep.subr.mxu0 0.0
    %1464 = vmatpush1.xpose.msra.mxu0 0.0
    %1465 = vmatprep.subr.mxu0 0.0
    %1466 = vmatpush1.xpose.msra.mxu0 0.0
    %1467 = vmatprep.subr.mxu0 0.0
    %1468 = vmatpush1.xpose.msra.mxu0 0.0
    %1469 = vmatprep.subr.mxu0 0.0
    %1470 = vmatpush1.xpose.msra.mxu0 0.0
    %1471 = vmatprep.subr.mxu0 0.0
    %1472 = vmatpush1.xpose.msra.mxu0 0.0
    %1473 = vmatprep.subr.mxu0 0.0
    %1474 = vmatpush1.xpose.msra.mxu0 0.0
    %1475 = vmatprep.subr.mxu0 0.0
    %1476 = vmatpush1.xpose.msra.mxu0 0.0
    %1477 = vmatprep.subr.mxu0 0.0
    %1478 = vmatpush1.xpose.msra.mxu0 0.0
    %1479 = vmatprep.subr.mxu0 0.0
    %1480 = vmatpush1.xpose.msra.mxu0 0.0
    %1481 = vmatprep.subr.mxu0 0.0
    %1482 = vmatpush1.xpose.msra.mxu0 0.0
    %1483 = vmatprep.subr.mxu0 0.0
    %1484 = vmatpush1.xpose.msra.mxu0 0.0
    %1485 = vmatprep.subr.mxu0 0.0
    %1486 = vmatpush1.xpose.msra.mxu0 0.0
    %1487 = vmatprep.subr.mxu0 0.0
    %1488 = vmatpush1.xpose.msra.mxu0 0.0
    %1489 = vmatprep.subr.mxu0 0.0
    %1490 = vmatpush1.xpose.msra.mxu0 0.0
    %v1491 = vand.u32 %v72, 4294901760
    %1492 = vmatprep.mubr.f32.mxu0 %v1491
    %v1493 = vand.u32 %v71, 4294901760
    %1494 = vmatmul.mubr.f32.gmra.mrb[0].mxu0 %v1493
    %v1495 = vpop.f32.mrb[0].mxu0
    %v1496 = vadd.f32 %v1422, %v1495
    %v1497 = vpop.f32.mrb[0].mxu0
    %1498 = vdwg.mxu0
    %v1499 = vand.u32 %v74, 4294901760
    %1500 = vmatprep.subr.mxu0 %v1499
    %v1501 = vand.u32 %v73, 4294901760
    %1502 = vmatpush1.xpose.msra.mxu0 %v1501
    %1503 = vmatprep.subr.mxu0 0.0
    %1504 = vmatpush1.xpose.msra.mxu0 0.0
    %1505 = vmatprep.subr.mxu0 0.0
    %1506 = vmatpush1.xpose.msra.mxu0 0.0
    %1507 = vmatprep.subr.mxu0 0.0
    %1508 = vmatpush1.xpose.msra.mxu0 0.0
    %1509 = vmatprep.subr.mxu0 0.0
    %1510 = vmatpush1.xpose.msra.mxu0 0.0
    %1511 = vmatprep.subr.mxu0 0.0
    %1512 = vmatpush1.xpose.msra.mxu0 0.0
    %1513 = vmatprep.subr.mxu0 0.0
    %1514 = vmatpush1.xpose.msra.mxu0 0.0
    %1515 = vmatprep.subr.mxu0 0.0
    %1516 = vmatpush1.xpose.msra.mxu0 0.0
    %1517 = vmatprep.subr.mxu0 0.0
    %1518 = vmatpush1.xpose.msra.mxu0 0.0
    %1519 = vmatprep.subr.mxu0 0.0
    %1520 = vmatpush1.xpose.msra.mxu0 0.0
    %1521 = vmatprep.subr.mxu0 0.0
    %1522 = vmatpush1.xpose.msra.mxu0 0.0
    %1523 = vmatprep.subr.mxu0 0.0
    %1524 = vmatpush1.xpose.msra.mxu0 0.0
    %1525 = vmatprep.subr.mxu0 0.0
    %1526 = vmatpush1.xpose.msra.mxu0 0.0
    %1527 = vmatprep.subr.mxu0 0.0
    %1528 = vmatpush1.xpose.msra.mxu0 0.0
    %1529 = vmatprep.subr.mxu0 0.0
    %1530 = vmatpush1.xpose.msra.mxu0 0.0
    %1531 = vmatprep.subr.mxu0 0.0
    %1532 = vmatpush1.xpose.msra.mxu0 0.0
    %1533 = vmatprep.subr.mxu0 0.0
    %1534 = vmatpush1.xpose.msra.mxu0 0.0
    %1535 = vmatprep.subr.mxu0 0.0
    %1536 = vmatpush1.xpose.msra.mxu0 0.0
    %1537 = vmatprep.subr.mxu0 0.0
    %1538 = vmatpush1.xpose.msra.mxu0 0.0
    %1539 = vmatprep.subr.mxu0 0.0
    %1540 = vmatpush1.xpose.msra.mxu0 0.0
    %1541 = vmatprep.subr.mxu0 0.0
    %1542 = vmatpush1.xpose.msra.mxu0 0.0
    %1543 = vmatprep.subr.mxu0 0.0
    %1544 = vmatpush1.xpose.msra.mxu0 0.0
    %1545 = vmatprep.subr.mxu0 0.0
    %1546 = vmatpush1.xpose.msra.mxu0 0.0
    %1547 = vmatprep.subr.mxu0 0.0
    %1548 = vmatpush1.xpose.msra.mxu0 0.0
    %1549 = vmatprep.subr.mxu0 0.0
    %1550 = vmatpush1.xpose.msra.mxu0 0.0
    %1551 = vmatprep.subr.mxu0 0.0
    %1552 = vmatpush1.xpose.msra.mxu0 0.0
    %1553 = vmatprep.subr.mxu0 0.0
    %1554 = vmatpush1.xpose.msra.mxu0 0.0
    %1555 = vmatprep.subr.mxu0 0.0
    %1556 = vmatpush1.xpose.msra.mxu0 0.0
    %1557 = vmatprep.subr.mxu0 0.0
    %1558 = vmatpush1.xpose.msra.mxu0 0.0
    %1559 = vmatprep.subr.mxu0 0.0
    %1560 = vmatpush1.xpose.msra.mxu0 0.0
    %1561 = vmatprep.subr.mxu0 0.0
    %1562 = vmatpush1.xpose.msra.mxu0 0.0
    %1563 = vmatprep.subr.mxu0 0.0
    %1564 = vmatpush1.xpose.msra.mxu0 0.0
    %v1565 = vand.u32 %v74, 4294901760
    %v1566 = vsub.f32 %v74, %v1565
    %v1567 = vand.u32 %v1566, 4294901760
    %v1568 = vsub.f32 %v1566, %v1567
    %v1569 = vand.u32 %v1568, 4294901760
    %1570 = vmatprep.mubr.f32.mxu0 %v1569
    %v1571 = vand.u32 %v73, 4294901760
    %v1572 = vsub.f32 %v73, %v1571
    %v1573 = vand.u32 %v1572, 4294901760
    %v1574 = vsub.f32 %v1572, %v1573
    %v1575 = vand.u32 %v1574, 4294901760
    %1576 = vmatmul.mubr.f32.gmra.mrb[0].mxu0 %v1575
    %v1577 = vpop.f32.mrb[0].mxu0
    %v1578 = vadd.f32 %v1496, %v1577
    %v1579 = vpop.f32.mrb[0].mxu0
    %1580 = vdwg.mxu0
    %v1581 = vand.u32 %v74, 4294901760
    %v1582 = vsub.f32 %v74, %v1581
    %v1583 = vand.u32 %v1582, 4294901760
    %v1584 = vsub.f32 %v1582, %v1583
    %v1585 = vand.u32 %v1584, 4294901760
    %1586 = vmatprep.subr.mxu0 %v1585
    %v1587 = vand.u32 %v73, 4294901760
    %v1588 = vsub.f32 %v73, %v1587
    %v1589 = vand.u32 %v1588, 4294901760
    %v1590 = vsub.f32 %v1588, %v1589
    %v1591 = vand.u32 %v1590, 4294901760
    %1592 = vmatpush1.xpose.msra.mxu0 %v1591
    %1593 = vmatprep.subr.mxu0 0.0
    %1594 = vmatpush1.xpose.msra.mxu0 0.0
    %1595 = vmatprep.subr.mxu0 0.0
    %1596 = vmatpush1.xpose.msra.mxu0 0.0
    %1597 = vmatprep.subr.mxu0 0.0
    %1598 = vmatpush1.xpose.msra.mxu0 0.0
    %1599 = vmatprep.subr.mxu0 0.0
    %1600 = vmatpush1.xpose.msra.mxu0 0.0
    %1601 = vmatprep.subr.mxu0 0.0
    %1602 = vmatpush1.xpose.msra.mxu0 0.0
    %1603 = vmatprep.subr.mxu0 0.0
    %1604 = vmatpush1.xpose.msra.mxu0 0.0
    %1605 = vmatprep.subr.mxu0 0.0
    %1606 = vmatpush1.xpose.msra.mxu0 0.0
    %1607 = vmatprep.subr.mxu0 0.0
    %1608 = vmatpush1.xpose.msra.mxu0 0.0
    %1609 = vmatprep.subr.mxu0 0.0
    %1610 = vmatpush1.xpose.msra.mxu0 0.0
    %1611 = vmatprep.subr.mxu0 0.0
    %1612 = vmatpush1.xpose.msra.mxu0 0.0
    %1613 = vmatprep.subr.mxu0 0.0
    %1614 = vmatpush1.xpose.msra.mxu0 0.0
    %1615 = vmatprep.subr.mxu0 0.0
    %1616 = vmatpush1.xpose.msra.mxu0 0.0
    %1617 = vmatprep.subr.mxu0 0.0
    %1618 = vmatpush1.xpose.msra.mxu0 0.0
    %1619 = vmatprep.subr.mxu0 0.0
    %1620 = vmatpush1.xpose.msra.mxu0 0.0
    %1621 = vmatprep.subr.mxu0 0.0
    %1622 = vmatpush1.xpose.msra.mxu0 0.0
    %1623 = vmatprep.subr.mxu0 0.0
    %1624 = vmatpush1.xpose.msra.mxu0 0.0
    %1625 = vmatprep.subr.mxu0 0.0
    %1626 = vmatpush1.xpose.msra.mxu0 0.0
    %1627 = vmatprep.subr.mxu0 0.0
    %1628 = vmatpush1.xpose.msra.mxu0 0.0
    %1629 = vmatprep.subr.mxu0 0.0
    %1630 = vmatpush1.xpose.msra.mxu0 0.0
    %1631 = vmatprep.subr.mxu0 0.0
    %1632 = vmatpush1.xpose.msra.mxu0 0.0
    %1633 = vmatprep.subr.mxu0 0.0
    %1634 = vmatpush1.xpose.msra.mxu0 0.0
    %1635 = vmatprep.subr.mxu0 0.0
    %1636 = vmatpush1.xpose.msra.mxu0 0.0
    %1637 = vmatprep.subr.mxu0 0.0
    %1638 = vmatpush1.xpose.msra.mxu0 0.0
    %1639 = vmatprep.subr.mxu0 0.0
    %1640 = vmatpush1.xpose.msra.mxu0 0.0
    %1641 = vmatprep.subr.mxu0 0.0
    %1642 = vmatpush1.xpose.msra.mxu0 0.0
    %1643 = vmatprep.subr.mxu0 0.0
    %1644 = vmatpush1.xpose.msra.mxu0 0.0
    %1645 = vmatprep.subr.mxu0 0.0
    %1646 = vmatpush1.xpose.msra.mxu0 0.0
    %1647 = vmatprep.subr.mxu0 0.0
    %1648 = vmatpush1.xpose.msra.mxu0 0.0
    %1649 = vmatprep.subr.mxu0 0.0
    %1650 = vmatpush1.xpose.msra.mxu0 0.0
    %1651 = vmatprep.subr.mxu0 0.0
    %1652 = vmatpush1.xpose.msra.mxu0 0.0
    %1653 = vmatprep.subr.mxu0 0.0
    %1654 = vmatpush1.xpose.msra.mxu0 0.0
    %v1655 = vand.u32 %v74, 4294901760
    %1656 = vmatprep.mubr.f32.mxu0 %v1655
    %v1657 = vand.u32 %v73, 4294901760
    %1658 = vmatmul.mubr.f32.gmra.mrb[0].mxu0 %v1657
    %v1659 = vpop.f32.mrb[0].mxu0
    %v1660 = vadd.f32 %v1578, %v1659
    %v1661 = vpop.f32.mrb[0].mxu0
    %1662 = vdwg.mxu0
    %v1663 = vand.u32 %v74, 4294901760
    %v1664 = vsub.f32 %v74, %v1663
    %1665 = vmatprep.subr.mxu0 %v1664
    %v1666 = vand.u32 %v73, 4294901760
    %v1667 = vsub.f32 %v73, %v1666
    %1668 = vmatpush1.xpose.msra.mxu0 %v1667
    %1669 = vmatprep.subr.mxu0 0.0
    %1670 = vmatpush1.xpose.msra.mxu0 0.0
    %1671 = vmatprep.subr.mxu0 0.0
    %1672 = vmatpush1.xpose.msra.mxu0 0.0
    %1673 = vmatprep.subr.mxu0 0.0
    %1674 = vmatpush1.xpose.msra.mxu0 0.0
    %1675 = vmatprep.subr.mxu0 0.0
    %1676 = vmatpush1.xpose.msra.mxu0 0.0
    %1677 = vmatprep.subr.mxu0 0.0
    %1678 = vmatpush1.xpose.msra.mxu0 0.0
    %1679 = vmatprep.subr.mxu0 0.0
    %1680 = vmatpush1.xpose.msra.mxu0 0.0
    %1681 = vmatprep.subr.mxu0 0.0
    %1682 = vmatpush1.xpose.msra.mxu0 0.0
    %1683 = vmatprep.subr.mxu0 0.0
    %1684 = vmatpush1.xpose.msra.mxu0 0.0
    %1685 = vmatprep.subr.mxu0 0.0
    %1686 = vmatpush1.xpose.msra.mxu0 0.0
    %1687 = vmatprep.subr.mxu0 0.0
    %1688 = vmatpush1.xpose.msra.mxu0 0.0
    %1689 = vmatprep.subr.mxu0 0.0
    %1690 = vmatpush1.xpose.msra.mxu0 0.0
    %1691 = vmatprep.subr.mxu0 0.0
    %1692 = vmatpush1.xpose.msra.mxu0 0.0
    %1693 = vmatprep.subr.mxu0 0.0
    %1694 = vmatpush1.xpose.msra.mxu0 0.0
    %1695 = vmatprep.subr.mxu0 0.0
    %1696 = vmatpush1.xpose.msra.mxu0 0.0
    %1697 = vmatprep.subr.mxu0 0.0
    %1698 = vmatpush1.xpose.msra.mxu0 0.0
    %1699 = vmatprep.subr.mxu0 0.0
    %1700 = vmatpush1.xpose.msra.mxu0 0.0
    %1701 = vmatprep.subr.mxu0 0.0
    %1702 = vmatpush1.xpose.msra.mxu0 0.0
    %1703 = vmatprep.subr.mxu0 0.0
    %1704 = vmatpush1.xpose.msra.mxu0 0.0
    %1705 = vmatprep.subr.mxu0 0.0
    %1706 = vmatpush1.xpose.msra.mxu0 0.0
    %1707 = vmatprep.subr.mxu0 0.0
    %1708 = vmatpush1.xpose.msra.mxu0 0.0
    %1709 = vmatprep.subr.mxu0 0.0
    %1710 = vmatpush1.xpose.msra.mxu0 0.0
    %1711 = vmatprep.subr.mxu0 0.0
    %1712 = vmatpush1.xpose.msra.mxu0 0.0
    %1713 = vmatprep.subr.mxu0 0.0
    %1714 = vmatpush1.xpose.msra.mxu0 0.0
    %1715 = vmatprep.subr.mxu0 0.0
    %1716 = vmatpush1.xpose.msra.mxu0 0.0
    %1717 = vmatprep.subr.mxu0 0.0
    %1718 = vmatpush1.xpose.msra.mxu0 0.0
    %1719 = vmatprep.subr.mxu0 0.0
    %1720 = vmatpush1.xpose.msra.mxu0 0.0
    %1721 = vmatprep.subr.mxu0 0.0
    %1722 = vmatpush1.xpose.msra.mxu0 0.0
    %1723 = vmatprep.subr.mxu0 0.0
    %1724 = vmatpush1.xpose.msra.mxu0 0.0
    %1725 = vmatprep.subr.mxu0 0.0
    %1726 = vmatpush1.xpose.msra.mxu0 0.0
    %1727 = vmatprep.subr.mxu0 0.0
    %1728 = vmatpush1.xpose.msra.mxu0 0.0
    %1729 = vmatprep.subr.mxu0 0.0
    %1730 = vmatpush1.xpose.msra.mxu0 0.0
    %v1731 = vand.u32 %v74, 4294901760
    %v1732 = vsub.f32 %v74, %v1731
    %1733 = vmatprep.mubr.f32.mxu0 %v1732
    %v1734 = vand.u32 %v73, 4294901760
    %v1735 = vsub.f32 %v73, %v1734
    %1736 = vmatmul.mubr.f32.gmra.mrb[0].mxu0 %v1735
    %v1737 = vpop.f32.mrb[0].mxu0
    %v1738 = vadd.f32 %v1660, %v1737
    %v1739 = vpop.f32.mrb[0].mxu0
    %1740 = vdwg.mxu0
    %v1741 = vand.u32 %v74, 4294901760
    %1742 = vmatprep.subr.mxu0 %v1741
    %v1743 = vand.u32 %v73, 4294901760
    %1744 = vmatpush1.xpose.msra.mxu0 %v1743
    %1745 = vmatprep.subr.mxu0 0.0
    %1746 = vmatpush1.xpose.msra.mxu0 0.0
    %1747 = vmatprep.subr.mxu0 0.0
    %1748 = vmatpush1.xpose.msra.mxu0 0.0
    %1749 = vmatprep.subr.mxu0 0.0
    %1750 = vmatpush1.xpose.msra.mxu0 0.0
    %1751 = vmatprep.subr.mxu0 0.0
    %1752 = vmatpush1.xpose.msra.mxu0 0.0
    %1753 = vmatprep.subr.mxu0 0.0
    %1754 = vmatpush1.xpose.msra.mxu0 0.0
    %1755 = vmatprep.subr.mxu0 0.0
    %1756 = vmatpush1.xpose.msra.mxu0 0.0
    %1757 = vmatprep.subr.mxu0 0.0
    %1758 = vmatpush1.xpose.msra.mxu0 0.0
    %1759 = vmatprep.subr.mxu0 0.0
    %1760 = vmatpush1.xpose.msra.mxu0 0.0
    %1761 = vmatprep.subr.mxu0 0.0
    %1762 = vmatpush1.xpose.msra.mxu0 0.0
    %1763 = vmatprep.subr.mxu0 0.0
    %1764 = vmatpush1.xpose.msra.mxu0 0.0
    %1765 = vmatprep.subr.mxu0 0.0
    %1766 = vmatpush1.xpose.msra.mxu0 0.0
    %1767 = vmatprep.subr.mxu0 0.0
    %1768 = vmatpush1.xpose.msra.mxu0 0.0
    %1769 = vmatprep.subr.mxu0 0.0
    %1770 = vmatpush1.xpose.msra.mxu0 0.0
    %1771 = vmatprep.subr.mxu0 0.0
    %1772 = vmatpush1.xpose.msra.mxu0 0.0
    %1773 = vmatprep.subr.mxu0 0.0
    %1774 = vmatpush1.xpose.msra.mxu0 0.0
    %1775 = vmatprep.subr.mxu0 0.0
    %1776 = vmatpush1.xpose.msra.mxu0 0.0
    %1777 = vmatprep.subr.mxu0 0.0
    %1778 = vmatpush1.xpose.msra.mxu0 0.0
    %1779 = vmatprep.subr.mxu0 0.0
    %1780 = vmatpush1.xpose.msra.mxu0 0.0
    %1781 = vmatprep.subr.mxu0 0.0
    %1782 = vmatpush1.xpose.msra.mxu0 0.0
    %1783 = vmatprep.subr.mxu0 0.0
    %1784 = vmatpush1.xpose.msra.mxu0 0.0
    %1785 = vmatprep.subr.mxu0 0.0
    %1786 = vmatpush1.xpose.msra.mxu0 0.0
    %1787 = vmatprep.subr.mxu0 0.0
    %1788 = vmatpush1.xpose.msra.mxu0 0.0
    %1789 = vmatprep.subr.mxu0 0.0
    %1790 = vmatpush1.xpose.msra.mxu0 0.0
    %1791 = vmatprep.subr.mxu0 0.0
    %1792 = vmatpush1.xpose.msra.mxu0 0.0
    %1793 = vmatprep.subr.mxu0 0.0
    %1794 = vmatpush1.xpose.msra.mxu0 0.0
    %1795 = vmatprep.subr.mxu0 0.0
    %1796 = vmatpush1.xpose.msra.mxu0 0.0
    %1797 = vmatprep.subr.mxu0 0.0
    %1798 = vmatpush1.xpose.msra.mxu0 0.0
    %1799 = vmatprep.subr.mxu0 0.0
    %1800 = vmatpush1.xpose.msra.mxu0 0.0
    %1801 = vmatprep.subr.mxu0 0.0
    %1802 = vmatpush1.xpose.msra.mxu0 0.0
    %1803 = vmatprep.subr.mxu0 0.0
    %1804 = vmatpush1.xpose.msra.mxu0 0.0
    %1805 = vmatprep.subr.mxu0 0.0
    %1806 = vmatpush1.xpose.msra.mxu0 0.0
    %v1807 = vand.u32 %v74, 4294901760
    %v1808 = vsub.f32 %v74, %v1807
    %v1809 = vand.u32 %v1808, 4294901760
    %1810 = vmatprep.mubr.f32.mxu0 %v1809
    %v1811 = vand.u32 %v73, 4294901760
    %v1812 = vsub.f32 %v73, %v1811
    %v1813 = vand.u32 %v1812, 4294901760
    %1814 = vmatmul.mubr.f32.gmra.mrb[0].mxu0 %v1813
    %v1815 = vpop.f32.mrb[0].mxu0
    %v1816 = vadd.f32 %v1738, %v1815
    %v1817 = vpop.f32.mrb[0].mxu0
    %1818 = vdwg.mxu0
    %v1819 = vand.u32 %v74, 4294901760
    %v1820 = vsub.f32 %v74, %v1819
    %v1821 = vand.u32 %v1820, 4294901760
    %1822 = vmatprep.subr.mxu0 %v1821
    %v1823 = vand.u32 %v73, 4294901760
    %v1824 = vsub.f32 %v73, %v1823
    %v1825 = vand.u32 %v1824, 4294901760
    %1826 = vmatpush1.xpose.msra.mxu0 %v1825
    %1827 = vmatprep.subr.mxu0 0.0
    %1828 = vmatpush1.xpose.msra.mxu0 0.0
    %1829 = vmatprep.subr.mxu0 0.0
    %1830 = vmatpush1.xpose.msra.mxu0 0.0
    %1831 = vmatprep.subr.mxu0 0.0
    %1832 = vmatpush1.xpose.msra.mxu0 0.0
    %1833 = vmatprep.subr.mxu0 0.0
    %1834 = vmatpush1.xpose.msra.mxu0 0.0
    %1835 = vmatprep.subr.mxu0 0.0
    %1836 = vmatpush1.xpose.msra.mxu0 0.0
    %1837 = vmatprep.subr.mxu0 0.0
    %1838 = vmatpush1.xpose.msra.mxu0 0.0
    %1839 = vmatprep.subr.mxu0 0.0
    %1840 = vmatpush1.xpose.msra.mxu0 0.0
    %1841 = vmatprep.subr.mxu0 0.0
    %1842 = vmatpush1.xpose.msra.mxu0 0.0
    %1843 = vmatprep.subr.mxu0 0.0
    %1844 = vmatpush1.xpose.msra.mxu0 0.0
    %1845 = vmatprep.subr.mxu0 0.0
    %1846 = vmatpush1.xpose.msra.mxu0 0.0
    %1847 = vmatprep.subr.mxu0 0.0
    %1848 = vmatpush1.xpose.msra.mxu0 0.0
    %1849 = vmatprep.subr.mxu0 0.0
    %1850 = vmatpush1.xpose.msra.mxu0 0.0
    %1851 = vmatprep.subr.mxu0 0.0
    %1852 = vmatpush1.xpose.msra.mxu0 0.0
    %1853 = vmatprep.subr.mxu0 0.0
    %1854 = vmatpush1.xpose.msra.mxu0 0.0
    %1855 = vmatprep.subr.mxu0 0.0
    %1856 = vmatpush1.xpose.msra.mxu0 0.0
    %1857 = vmatprep.subr.mxu0 0.0
    %1858 = vmatpush1.xpose.msra.mxu0 0.0
    %1859 = vmatprep.subr.mxu0 0.0
    %1860 = vmatpush1.xpose.msra.mxu0 0.0
    %1861 = vmatprep.subr.mxu0 0.0
    %1862 = vmatpush1.xpose.msra.mxu0 0.0
    %1863 = vmatprep.subr.mxu0 0.0
    %1864 = vmatpush1.xpose.msra.mxu0 0.0
    %1865 = vmatprep.subr.mxu0 0.0
    %1866 = vmatpush1.xpose.msra.mxu0 0.0
    %1867 = vmatprep.subr.mxu0 0.0
    %1868 = vmatpush1.xpose.msra.mxu0 0.0
    %1869 = vmatprep.subr.mxu0 0.0
    %1870 = vmatpush1.xpose.msra.mxu0 0.0
    %1871 = vmatprep.subr.mxu0 0.0
    %1872 = vmatpush1.xpose.msra.mxu0 0.0
    %1873 = vmatprep.subr.mxu0 0.0
    %1874 = vmatpush1.xpose.msra.mxu0 0.0
    %1875 = vmatprep.subr.mxu0 0.0
    %1876 = vmatpush1.xpose.msra.mxu0 0.0
    %1877 = vmatprep.subr.mxu0 0.0
    %1878 = vmatpush1.xpose.msra.mxu0 0.0
    %1879 = vmatprep.subr.mxu0 0.0
    %1880 = vmatpush1.xpose.msra.mxu0 0.0
    %1881 = vmatprep.subr.mxu0 0.0
    %1882 = vmatpush1.xpose.msra.mxu0 0.0
    %1883 = vmatprep.subr.mxu0 0.0
    %1884 = vmatpush1.xpose.msra.mxu0 0.0
    %1885 = vmatprep.subr.mxu0 0.0
    %1886 = vmatpush1.xpose.msra.mxu0 0.0
    %1887 = vmatprep.subr.mxu0 0.0
    %1888 = vmatpush1.xpose.msra.mxu0 0.0
    %v1889 = vand.u32 %v74, 4294901760
    %1890 = vmatprep.mubr.f32.mxu0 %v1889
    %v1891 = vand.u32 %v73, 4294901760
    %1892 = vmatmul.mubr.f32.gmra.mrb[0].mxu0 %v1891
    %v1893 = vpop.f32.mrb[0].mxu0
    %v1894 = vadd.f32 %v1816, %v1893
    %v1895 = vpop.f32.mrb[0].mxu0
    %1896 = vdwg.mxu0
    %v1897 = vand.u32 %v74, 4294901760
    %1898 = vmatprep.subr.mxu0 %v1897
    %v1899 = vand.u32 %v73, 4294901760
    %1900 = vmatpush1.xpose.msra.mxu0 %v1899
    %1901 = vmatprep.subr.mxu0 0.0
    %1902 = vmatpush1.xpose.msra.mxu0 0.0
    %1903 = vmatprep.subr.mxu0 0.0
    %1904 = vmatpush1.xpose.msra.mxu0 0.0
    %1905 = vmatprep.subr.mxu0 0.0
    %1906 = vmatpush1.xpose.msra.mxu0 0.0
    %1907 = vmatprep.subr.mxu0 0.0
    %1908 = vmatpush1.xpose.msra.mxu0 0.0
    %1909 = vmatprep.subr.mxu0 0.0
    %1910 = vmatpush1.xpose.msra.mxu0 0.0
    %1911 = vmatprep.subr.mxu0 0.0
    %1912 = vmatpush1.xpose.msra.mxu0 0.0
    %1913 = vmatprep.subr.mxu0 0.0
    %1914 = vmatpush1.xpose.msra.mxu0 0.0
    %1915 = vmatprep.subr.mxu0 0.0
    %1916 = vmatpush1.xpose.msra.mxu0 0.0
    %1917 = vmatprep.subr.mxu0 0.0
    %1918 = vmatpush1.xpose.msra.mxu0 0.0
    %1919 = vmatprep.subr.mxu0 0.0
    %1920 = vmatpush1.xpose.msra.mxu0 0.0
    %1921 = vmatprep.subr.mxu0 0.0
    %1922 = vmatpush1.xpose.msra.mxu0 0.0
    %1923 = vmatprep.subr.mxu0 0.0
    %1924 = vmatpush1.xpose.msra.mxu0 0.0
    %1925 = vmatprep.subr.mxu0 0.0
    %1926 = vmatpush1.xpose.msra.mxu0 0.0
    %1927 = vmatprep.subr.mxu0 0.0
    %1928 = vmatpush1.xpose.msra.mxu0 0.0
    %1929 = vmatprep.subr.mxu0 0.0
    %1930 = vmatpush1.xpose.msra.mxu0 0.0
    %1931 = vmatprep.subr.mxu0 0.0
    %1932 = vmatpush1.xpose.msra.mxu0 0.0
    %1933 = vmatprep.subr.mxu0 0.0
    %1934 = vmatpush1.xpose.msra.mxu0 0.0
    %1935 = vmatprep.subr.mxu0 0.0
    %1936 = vmatpush1.xpose.msra.mxu0 0.0
    %1937 = vmatprep.subr.mxu0 0.0
    %1938 = vmatpush1.xpose.msra.mxu0 0.0
    %1939 = vmatprep.subr.mxu0 0.0
    %1940 = vmatpush1.xpose.msra.mxu0 0.0
    %1941 = vmatprep.subr.mxu0 0.0
    %1942 = vmatpush1.xpose.msra.mxu0 0.0
    %1943 = vmatprep.subr.mxu0 0.0
    %1944 = vmatpush1.xpose.msra.mxu0 0.0
    %1945 = vmatprep.subr.mxu0 0.0
    %1946 = vmatpush1.xpose.msra.mxu0 0.0
    %1947 = vmatprep.subr.mxu0 0.0
    %1948 = vmatpush1.xpose.msra.mxu0 0.0
    %1949 = vmatprep.subr.mxu0 0.0
    %1950 = vmatpush1.xpose.msra.mxu0 0.0
    %1951 = vmatprep.subr.mxu0 0.0
    %1952 = vmatpush1.xpose.msra.mxu0 0.0
    %1953 = vmatprep.subr.mxu0 0.0
    %1954 = vmatpush1.xpose.msra.mxu0 0.0
    %1955 = vmatprep.subr.mxu0 0.0
    %1956 = vmatpush1.xpose.msra.mxu0 0.0
    %1957 = vmatprep.subr.mxu0 0.0
    %1958 = vmatpush1.xpose.msra.mxu0 0.0
    %1959 = vmatprep.subr.mxu0 0.0
    %1960 = vmatpush1.xpose.msra.mxu0 0.0
    %1961 = vmatprep.subr.mxu0 0.0
    %1962 = vmatpush1.xpose.msra.mxu0 0.0
    %v1963 = vand.u32 %v74, 4294901760
    %1964 = vmatprep.mubr.f32.mxu0 %v1963
    %v1965 = vand.u32 %v73, 4294901760
    %1966 = vmatmul.mubr.f32.gmra.mrb[0].mxu0 %v1965
    %v1967 = vpop.f32.mrb[0].mxu0
    %v1968 = vadd.f32 %v1894, %v1967
    %v1969 = vpop.f32.mrb[0].mxu0
    %1970 = vdwg.mxu0
    %v1971 = vand.u32 %v76, 4294901760
    %1972 = vmatprep.subr.mxu0 %v1971
    %v1973 = vand.u32 %v75, 4294901760
    %1974 = vmatpush1.xpose.msra.mxu0 %v1973
    %1975 = vmatprep.subr.mxu0 0.0
    %1976 = vmatpush1.xpose.msra.mxu0 0.0
    %1977 = vmatprep.subr.mxu0 0.0
    %1978 = vmatpush1.xpose.msra.mxu0 0.0
    %1979 = vmatprep.subr.mxu0 0.0
    %1980 = vmatpush1.xpose.msra.mxu0 0.0
    %1981 = vmatprep.subr.mxu0 0.0
    %1982 = vmatpush1.xpose.msra.mxu0 0.0
    %1983 = vmatprep.subr.mxu0 0.0
    %1984 = vmatpush1.xpose.msra.mxu0 0.0
    %1985 = vmatprep.subr.mxu0 0.0
    %1986 = vmatpush1.xpose.msra.mxu0 0.0
    %1987 = vmatprep.subr.mxu0 0.0
    %1988 = vmatpush1.xpose.msra.mxu0 0.0
    %1989 = vmatprep.subr.mxu0 0.0
    %1990 = vmatpush1.xpose.msra.mxu0 0.0
    %1991 = vmatprep.subr.mxu0 0.0
    %1992 = vmatpush1.xpose.msra.mxu0 0.0
    %1993 = vmatprep.subr.mxu0 0.0
    %1994 = vmatpush1.xpose.msra.mxu0 0.0
    %1995 = vmatprep.subr.mxu0 0.0
    %1996 = vmatpush1.xpose.msra.mxu0 0.0
    %1997 = vmatprep.subr.mxu0 0.0
    %1998 = vmatpush1.xpose.msra.mxu0 0.0
    %1999 = vmatprep.subr.mxu0 0.0
    %2000 = vmatpush1.xpose.msra.mxu0 0.0
    %2001 = vmatprep.subr.mxu0 0.0
    %2002 = vmatpush1.xpose.msra.mxu0 0.0
    %2003 = vmatprep.subr.mxu0 0.0
    %2004 = vmatpush1.xpose.msra.mxu0 0.0
    %2005 = vmatprep.subr.mxu0 0.0
    %2006 = vmatpush1.xpose.msra.mxu0 0.0
    %2007 = vmatprep.subr.mxu0 0.0
    %2008 = vmatpush1.xpose.msra.mxu0 0.0
    %2009 = vmatprep.subr.mxu0 0.0
    %2010 = vmatpush1.xpose.msra.mxu0 0.0
    %2011 = vmatprep.subr.mxu0 0.0
    %2012 = vmatpush1.xpose.msra.mxu0 0.0
    %2013 = vmatprep.subr.mxu0 0.0
    %2014 = vmatpush1.xpose.msra.mxu0 0.0
    %2015 = vmatprep.subr.mxu0 0.0
    %2016 = vmatpush1.xpose.msra.mxu0 0.0
    %2017 = vmatprep.subr.mxu0 0.0
    %2018 = vmatpush1.xpose.msra.mxu0 0.0
    %2019 = vmatprep.subr.mxu0 0.0
    %2020 = vmatpush1.xpose.msra.mxu0 0.0
    %2021 = vmatprep.subr.mxu0 0.0
    %2022 = vmatpush1.xpose.msra.mxu0 0.0
    %2023 = vmatprep.subr.mxu0 0.0
    %2024 = vmatpush1.xpose.msra.mxu0 0.0
    %2025 = vmatprep.subr.mxu0 0.0
    %2026 = vmatpush1.xpose.msra.mxu0 0.0
    %2027 = vmatprep.subr.mxu0 0.0
    %2028 = vmatpush1.xpose.msra.mxu0 0.0
    %2029 = vmatprep.subr.mxu0 0.0
    %2030 = vmatpush1.xpose.msra.mxu0 0.0
    %2031 = vmatprep.subr.mxu0 0.0
    %2032 = vmatpush1.xpose.msra.mxu0 0.0
    %2033 = vmatprep.subr.mxu0 0.0
    %2034 = vmatpush1.xpose.msra.mxu0 0.0
    %2035 = vmatprep.subr.mxu0 0.0
    %2036 = vmatpush1.xpose.msra.mxu0 0.0
    %v2037 = vand.u32 %v76, 4294901760
    %v2038 = vsub.f32 %v76, %v2037
    %v2039 = vand.u32 %v2038, 4294901760
    %v2040 = vsub.f32 %v2038, %v2039
    %v2041 = vand.u32 %v2040, 4294901760
    %2042 = vmatprep.mubr.f32.mxu0 %v2041
    %v2043 = vand.u32 %v75, 4294901760
    %v2044 = vsub.f32 %v75, %v2043
    %v2045 = vand.u32 %v2044, 4294901760
    %v2046 = vsub.f32 %v2044, %v2045
    %v2047 = vand.u32 %v2046, 4294901760
    %2048 = vmatmul.mubr.f32.gmra.mrb[0].mxu0 %v2047
    %v2049 = vpop.f32.mrb[0].mxu0
    %v2050 = vadd.f32 %v1968, %v2049
    %v2051 = vpop.f32.mrb[0].mxu0
    %2052 = vdwg.mxu0
    %v2053 = vand.u32 %v76, 4294901760
    %v2054 = vsub.f32 %v76, %v2053
    %v2055 = vand.u32 %v2054, 4294901760
    %v2056 = vsub.f32 %v2054, %v2055
    %v2057 = vand.u32 %v2056, 4294901760
    %2058 = vmatprep.subr.mxu0 %v2057
    %v2059 = vand.u32 %v75, 4294901760
    %v2060 = vsub.f32 %v75, %v2059
    %v2061 = vand.u32 %v2060, 4294901760
    %v2062 = vsub.f32 %v2060, %v2061
    %v2063 = vand.u32 %v2062, 4294901760
    %2064 = vmatpush1.xpose.msra.mxu0 %v2063
    %2065 = vmatprep.subr.mxu0 0.0
    %2066 = vmatpush1.xpose.msra.mxu0 0.0
    %2067 = vmatprep.subr.mxu0 0.0
    %2068 = vmatpush1.xpose.msra.mxu0 0.0
    %2069 = vmatprep.subr.mxu0 0.0
    %2070 = vmatpush1.xpose.msra.mxu0 0.0
    %2071 = vmatprep.subr.mxu0 0.0
    %2072 = vmatpush1.xpose.msra.mxu0 0.0
    %2073 = vmatprep.subr.mxu0 0.0
    %2074 = vmatpush1.xpose.msra.mxu0 0.0
    %2075 = vmatprep.subr.mxu0 0.0
    %2076 = vmatpush1.xpose.msra.mxu0 0.0
    %2077 = vmatprep.subr.mxu0 0.0
    %2078 = vmatpush1.xpose.msra.mxu0 0.0
    %2079 = vmatprep.subr.mxu0 0.0
    %2080 = vmatpush1.xpose.msra.mxu0 0.0
    %2081 = vmatprep.subr.mxu0 0.0
    %2082 = vmatpush1.xpose.msra.mxu0 0.0
    %2083 = vmatprep.subr.mxu0 0.0
    %2084 = vmatpush1.xpose.msra.mxu0 0.0
    %2085 = vmatprep.subr.mxu0 0.0
    %2086 = vmatpush1.xpose.msra.mxu0 0.0
    %2087 = vmatprep.subr.mxu0 0.0
    %2088 = vmatpush1.xpose.msra.mxu0 0.0
    %2089 = vmatprep.subr.mxu0 0.0
    %2090 = vmatpush1.xpose.msra.mxu0 0.0
    %2091 = vmatprep.subr.mxu0 0.0
    %2092 = vmatpush1.xpose.msra.mxu0 0.0
    %2093 = vmatprep.subr.mxu0 0.0
    %2094 = vmatpush1.xpose.msra.mxu0 0.0
    %2095 = vmatprep.subr.mxu0 0.0
    %2096 = vmatpush1.xpose.msra.mxu0 0.0
    %2097 = vmatprep.subr.mxu0 0.0
    %2098 = vmatpush1.xpose.msra.mxu0 0.0
    %2099 = vmatprep.subr.mxu0 0.0
    %2100 = vmatpush1.xpose.msra.mxu0 0.0
    %2101 = vmatprep.subr.mxu0 0.0
    %2102 = vmatpush1.xpose.msra.mxu0 0.0
    %2103 = vmatprep.subr.mxu0 0.0
    %2104 = vmatpush1.xpose.msra.mxu0 0.0
    %2105 = vmatprep.subr.mxu0 0.0
    %2106 = vmatpush1.xpose.msra.mxu0 0.0
    %2107 = vmatprep.subr.mxu0 0.0
    %2108 = vmatpush1.xpose.msra.mxu0 0.0
    %2109 = vmatprep.subr.mxu0 0.0
    %2110 = vmatpush1.xpose.msra.mxu0 0.0
    %2111 = vmatprep.subr.mxu0 0.0
    %2112 = vmatpush1.xpose.msra.mxu0 0.0
    %2113 = vmatprep.subr.mxu0 0.0
    %2114 = vmatpush1.xpose.msra.mxu0 0.0
    %2115 = vmatprep.subr.mxu0 0.0
    %2116 = vmatpush1.xpose.msra.mxu0 0.0
    %2117 = vmatprep.subr.mxu0 0.0
    %2118 = vmatpush1.xpose.msra.mxu0 0.0
    %2119 = vmatprep.subr.mxu0 0.0
    %2120 = vmatpush1.xpose.msra.mxu0 0.0
    %2121 = vmatprep.subr.mxu0 0.0
    %2122 = vmatpush1.xpose.msra.mxu0 0.0
    %2123 = vmatprep.subr.mxu0 0.0
    %2124 = vmatpush1.xpose.msra.mxu0 0.0
    %2125 = vmatprep.subr.mxu0 0.0
    %2126 = vmatpush1.xpose.msra.mxu0 0.0
    %v2127 = vand.u32 %v76, 4294901760
    %2128 = vmatprep.mubr.f32.mxu0 %v2127
    %v2129 = vand.u32 %v75, 4294901760
    %2130 = vmatmul.mubr.f32.gmra.mrb[0].mxu0 %v2129
    %v2131 = vpop.f32.mrb[0].mxu0
    %v2132 = vadd.f32 %v2050, %v2131
    %v2133 = vpop.f32.mrb[0].mxu0
    %2134 = vdwg.mxu0
    %v2135 = vand.u32 %v76, 4294901760
    %v2136 = vsub.f32 %v76, %v2135
    %2137 = vmatprep.subr.mxu0 %v2136
    %v2138 = vand.u32 %v75, 4294901760
    %v2139 = vsub.f32 %v75, %v2138
    %2140 = vmatpush1.xpose.msra.mxu0 %v2139
    %2141 = vmatprep.subr.mxu0 0.0
    %2142 = vmatpush1.xpose.msra.mxu0 0.0
    %2143 = vmatprep.subr.mxu0 0.0
    %2144 = vmatpush1.xpose.msra.mxu0 0.0
    %2145 = vmatprep.subr.mxu0 0.0
    %2146 = vmatpush1.xpose.msra.mxu0 0.0
    %2147 = vmatprep.subr.mxu0 0.0
    %2148 = vmatpush1.xpose.msra.mxu0 0.0
    %2149 = vmatprep.subr.mxu0 0.0
    %2150 = vmatpush1.xpose.msra.mxu0 0.0
    %2151 = vmatprep.subr.mxu0 0.0
    %2152 = vmatpush1.xpose.msra.mxu0 0.0
    %2153 = vmatprep.subr.mxu0 0.0
    %2154 = vmatpush1.xpose.msra.mxu0 0.0
    %2155 = vmatprep.subr.mxu0 0.0
    %2156 = vmatpush1.xpose.msra.mxu0 0.0
    %2157 = vmatprep.subr.mxu0 0.0
    %2158 = vmatpush1.xpose.msra.mxu0 0.0
    %2159 = vmatprep.subr.mxu0 0.0
    %2160 = vmatpush1.xpose.msra.mxu0 0.0
    %2161 = vmatprep.subr.mxu0 0.0
    %2162 = vmatpush1.xpose.msra.mxu0 0.0
    %2163 = vmatprep.subr.mxu0 0.0
    %2164 = vmatpush1.xpose.msra.mxu0 0.0
    %2165 = vmatprep.subr.mxu0 0.0
    %2166 = vmatpush1.xpose.msra.mxu0 0.0
    %2167 = vmatprep.subr.mxu0 0.0
    %2168 = vmatpush1.xpose.msra.mxu0 0.0
    %2169 = vmatprep.subr.mxu0 0.0
    %2170 = vmatpush1.xpose.msra.mxu0 0.0
    %2171 = vmatprep.subr.mxu0 0.0
    %2172 = vmatpush1.xpose.msra.mxu0 0.0
    %2173 = vmatprep.subr.mxu0 0.0
    %2174 = vmatpush1.xpose.msra.mxu0 0.0
    %2175 = vmatprep.subr.mxu0 0.0
    %2176 = vmatpush1.xpose.msra.mxu0 0.0
    %2177 = vmatprep.subr.mxu0 0.0
    %2178 = vmatpush1.xpose.msra.mxu0 0.0
    %2179 = vmatprep.subr.mxu0 0.0
    %2180 = vmatpush1.xpose.msra.mxu0 0.0
    %2181 = vmatprep.subr.mxu0 0.0
    %2182 = vmatpush1.xpose.msra.mxu0 0.0
    %2183 = vmatprep.subr.mxu0 0.0
    %2184 = vmatpush1.xpose.msra.mxu0 0.0
    %2185 = vmatprep.subr.mxu0 0.0
    %2186 = vmatpush1.xpose.msra.mxu0 0.0
    %2187 = vmatprep.subr.mxu0 0.0
    %2188 = vmatpush1.xpose.msra.mxu0 0.0
    %2189 = vmatprep.subr.mxu0 0.0
    %2190 = vmatpush1.xpose.msra.mxu0 0.0
    %2191 = vmatprep.subr.mxu0 0.0
    %2192 = vmatpush1.xpose.msra.mxu0 0.0
    %2193 = vmatprep.subr.mxu0 0.0
    %2194 = vmatpush1.xpose.msra.mxu0 0.0
    %2195 = vmatprep.subr.mxu0 0.0
    %2196 = vmatpush1.xpose.msra.mxu0 0.0
    %2197 = vmatprep.subr.mxu0 0.0
    %2198 = vmatpush1.xpose.msra.mxu0 0.0
    %2199 = vmatprep.subr.mxu0 0.0
    %2200 = vmatpush1.xpose.msra.mxu0 0.0
    %2201 = vmatprep.subr.mxu0 0.0
    %2202 = vmatpush1.xpose.msra.mxu0 0.0
    %v2203 = vand.u32 %v76, 4294901760
    %v2204 = vsub.f32 %v76, %v2203
    %2205 = vmatprep.mubr.f32.mxu0 %v2204
    %v2206 = vand.u32 %v75, 4294901760
    %v2207 = vsub.f32 %v75, %v2206
    %2208 = vmatmul.mubr.f32.gmra.mrb[0].mxu0 %v2207
    %v2209 = vpop.f32.mrb[0].mxu0
    %v2210 = vadd.f32 %v2132, %v2209
    %v2211 = vpop.f32.mrb[0].mxu0
    %2212 = vdwg.mxu0
    %v2213 = vand.u32 %v76, 4294901760
    %2214 = vmatprep.subr.mxu0 %v2213
    %v2215 = vand.u32 %v75, 4294901760
    %2216 = vmatpush1.xpose.msra.mxu0 %v2215
    %2217 = vmatprep.subr.mxu0 0.0
    %2218 = vmatpush1.xpose.msra.mxu0 0.0
    %2219 = vmatprep.subr.mxu0 0.0
    %2220 = vmatpush1.xpose.msra.mxu0 0.0
    %2221 = vmatprep.subr.mxu0 0.0
    %2222 = vmatpush1.xpose.msra.mxu0 0.0
    %2223 = vmatprep.subr.mxu0 0.0
    %2224 = vmatpush1.xpose.msra.mxu0 0.0
    %2225 = vmatprep.subr.mxu0 0.0
    %2226 = vmatpush1.xpose.msra.mxu0 0.0
    %2227 = vmatprep.subr.mxu0 0.0
    %2228 = vmatpush1.xpose.msra.mxu0 0.0
    %2229 = vmatprep.subr.mxu0 0.0
    %2230 = vmatpush1.xpose.msra.mxu0 0.0
    %2231 = vmatprep.subr.mxu0 0.0
    %2232 = vmatpush1.xpose.msra.mxu0 0.0
    %2233 = vmatprep.subr.mxu0 0.0
    %2234 = vmatpush1.xpose.msra.mxu0 0.0
    %2235 = vmatprep.subr.mxu0 0.0
    %2236 = vmatpush1.xpose.msra.mxu0 0.0
    %2237 = vmatprep.subr.mxu0 0.0
    %2238 = vmatpush1.xpose.msra.mxu0 0.0
    %2239 = vmatprep.subr.mxu0 0.0
    %2240 = vmatpush1.xpose.msra.mxu0 0.0
    %2241 = vmatprep.subr.mxu0 0.0
    %2242 = vmatpush1.xpose.msra.mxu0 0.0
    %2243 = vmatprep.subr.mxu0 0.0
    %2244 = vmatpush1.xpose.msra.mxu0 0.0
    %2245 = vmatprep.subr.mxu0 0.0
    %2246 = vmatpush1.xpose.msra.mxu0 0.0
    %2247 = vmatprep.subr.mxu0 0.0
    %2248 = vmatpush1.xpose.msra.mxu0 0.0
    %2249 = vmatprep.subr.mxu0 0.0
    %2250 = vmatpush1.xpose.msra.mxu0 0.0
    %2251 = vmatprep.subr.mxu0 0.0
    %2252 = vmatpush1.xpose.msra.mxu0 0.0
    %2253 = vmatprep.subr.mxu0 0.0
    %2254 = vmatpush1.xpose.msra.mxu0 0.0
    %2255 = vmatprep.subr.mxu0 0.0
    %2256 = vmatpush1.xpose.msra.mxu0 0.0
    %2257 = vmatprep.subr.mxu0 0.0
    %2258 = vmatpush1.xpose.msra.mxu0 0.0
    %2259 = vmatprep.subr.mxu0 0.0
    %2260 = vmatpush1.xpose.msra.mxu0 0.0
    %2261 = vmatprep.subr.mxu0 0.0
    %2262 = vmatpush1.xpose.msra.mxu0 0.0
    %2263 = vmatprep.subr.mxu0 0.0
    %2264 = vmatpush1.xpose.msra.mxu0 0.0
    %2265 = vmatprep.subr.mxu0 0.0
    %2266 = vmatpush1.xpose.msra.mxu0 0.0
    %2267 = vmatprep.subr.mxu0 0.0
    %2268 = vmatpush1.xpose.msra.mxu0 0.0
    %2269 = vmatprep.subr.mxu0 0.0
    %2270 = vmatpush1.xpose.msra.mxu0 0.0
    %2271 = vmatprep.subr.mxu0 0.0
    %2272 = vmatpush1.xpose.msra.mxu0 0.0
    %2273 = vmatprep.subr.mxu0 0.0
    %2274 = vmatpush1.xpose.msra.mxu0 0.0
    %2275 = vmatprep.subr.mxu0 0.0
    %2276 = vmatpush1.xpose.msra.mxu0 0.0
    %2277 = vmatprep.subr.mxu0 0.0
    %2278 = vmatpush1.xpose.msra.mxu0 0.0
    %v2279 = vand.u32 %v76, 4294901760
    %v2280 = vsub.f32 %v76, %v2279
    %v2281 = vand.u32 %v2280, 4294901760
    %2282 = vmatprep.mubr.f32.mxu0 %v2281
    %v2283 = vand.u32 %v75, 4294901760
    %v2284 = vsub.f32 %v75, %v2283
    %v2285 = vand.u32 %v2284, 4294901760
    %2286 = vmatmul.mubr.f32.gmra.mrb[0].mxu0 %v2285
    %v2287 = vpop.f32.mrb[0].mxu0
    %v2288 = vadd.f32 %v2210, %v2287
    %v2289 = vpop.f32.mrb[0].mxu0
    %2290 = vdwg.mxu0
    %v2291 = vand.u32 %v76, 4294901760
    %v2292 = vsub.f32 %v76, %v2291
    %v2293 = vand.u32 %v2292, 4294901760
    %2294 = vmatprep.subr.mxu0 %v2293
    %v2295 = vand.u32 %v75, 4294901760
    %v2296 = vsub.f32 %v75, %v2295
    %v2297 = vand.u32 %v2296, 4294901760
    %2298 = vmatpush1.xpose.msra.mxu0 %v2297
    %2299 = vmatprep.subr.mxu0 0.0
    %2300 = vmatpush1.xpose.msra.mxu0 0.0
    %2301 = vmatprep.subr.mxu0 0.0
    %2302 = vmatpush1.xpose.msra.mxu0 0.0
    %2303 = vmatprep.subr.mxu0 0.0
    %2304 = vmatpush1.xpose.msra.mxu0 0.0
    %2305 = vmatprep.subr.mxu0 0.0
    %2306 = vmatpush1.xpose.msra.mxu0 0.0
    %2307 = vmatprep.subr.mxu0 0.0
    %2308 = vmatpush1.xpose.msra.mxu0 0.0
    %2309 = vmatprep.subr.mxu0 0.0
    %2310 = vmatpush1.xpose.msra.mxu0 0.0
    %2311 = vmatprep.subr.mxu0 0.0
    %2312 = vmatpush1.xpose.msra.mxu0 0.0
    %2313 = vmatprep.subr.mxu0 0.0
    %2314 = vmatpush1.xpose.msra.mxu0 0.0
    %2315 = vmatprep.subr.mxu0 0.0
    %2316 = vmatpush1.xpose.msra.mxu0 0.0
    %2317 = vmatprep.subr.mxu0 0.0
    %2318 = vmatpush1.xpose.msra.mxu0 0.0
    %2319 = vmatprep.subr.mxu0 0.0
    %2320 = vmatpush1.xpose.msra.mxu0 0.0
    %2321 = vmatprep.subr.mxu0 0.0
    %2322 = vmatpush1.xpose.msra.mxu0 0.0
    %2323 = vmatprep.subr.mxu0 0.0
    %2324 = vmatpush1.xpose.msra.mxu0 0.0
    %2325 = vmatprep.subr.mxu0 0.0
    %2326 = vmatpush1.xpose.msra.mxu0 0.0
    %2327 = vmatprep.subr.mxu0 0.0
    %2328 = vmatpush1.xpose.msra.mxu0 0.0
    %2329 = vmatprep.subr.mxu0 0.0
    %2330 = vmatpush1.xpose.msra.mxu0 0.0
    %2331 = vmatprep.subr.mxu0 0.0
    %2332 = vmatpush1.xpose.msra.mxu0 0.0
    %2333 = vmatprep.subr.mxu0 0.0
    %2334 = vmatpush1.xpose.msra.mxu0 0.0
    %2335 = vmatprep.subr.mxu0 0.0
    %2336 = vmatpush1.xpose.msra.mxu0 0.0
    %2337 = vmatprep.subr.mxu0 0.0
    %2338 = vmatpush1.xpose.msra.mxu0 0.0
    %2339 = vmatprep.subr.mxu0 0.0
    %2340 = vmatpush1.xpose.msra.mxu0 0.0
    %2341 = vmatprep.subr.mxu0 0.0
    %2342 = vmatpush1.xpose.msra.mxu0 0.0
    %2343 = vmatprep.subr.mxu0 0.0
    %2344 = vmatpush1.xpose.msra.mxu0 0.0
    %2345 = vmatprep.subr.mxu0 0.0
    %2346 = vmatpush1.xpose.msra.mxu0 0.0
    %2347 = vmatprep.subr.mxu0 0.0
    %2348 = vmatpush1.xpose.msra.mxu0 0.0
    %2349 = vmatprep.subr.mxu0 0.0
    %2350 = vmatpush1.xpose.msra.mxu0 0.0
    %2351 = vmatprep.subr.mxu0 0.0
    %2352 = vmatpush1.xpose.msra.mxu0 0.0
    %2353 = vmatprep.subr.mxu0 0.0
    %2354 = vmatpush1.xpose.msra.mxu0 0.0
    %2355 = vmatprep.subr.mxu0 0.0
    %2356 = vmatpush1.xpose.msra.mxu0 0.0
    %2357 = vmatprep.subr.mxu0 0.0
    %2358 = vmatpush1.xpose.msra.mxu0 0.0
    %2359 = vmatprep.subr.mxu0 0.0
    %2360 = vmatpush1.xpose.msra.mxu0 0.0
    %v2361 = vand.u32 %v76, 4294901760
    %2362 = vmatprep.mubr.f32.mxu0 %v2361
    %v2363 = vand.u32 %v75, 4294901760
    %2364 = vmatmul.mubr.f32.gmra.mrb[0].mxu0 %v2363
    %v2365 = vpop.f32.mrb[0].mxu0
    %v2366 = vadd.f32 %v2288, %v2365
    %v2367 = vpop.f32.mrb[0].mxu0
    %2368 = vdwg.mxu0
    %v2369 = vand.u32 %v76, 4294901760
    %2370 = vmatprep.subr.mxu0 %v2369
    %v2371 = vand.u32 %v75, 4294901760
    %2372 = vmatpush1.xpose.msra.mxu0 %v2371
    %2373 = vmatprep.subr.mxu0 0.0
    %2374 = vmatpush1.xpose.msra.mxu0 0.0
    %2375 = vmatprep.subr.mxu0 0.0
    %2376 = vmatpush1.xpose.msra.mxu0 0.0
    %2377 = vmatprep.subr.mxu0 0.0
    %2378 = vmatpush1.xpose.msra.mxu0 0.0
    %2379 = vmatprep.subr.mxu0 0.0
    %2380 = vmatpush1.xpose.msra.mxu0 0.0
    %2381 = vmatprep.subr.mxu0 0.0
    %2382 = vmatpush1.xpose.msra.mxu0 0.0
    %2383 = vmatprep.subr.mxu0 0.0
    %2384 = vmatpush1.xpose.msra.mxu0 0.0
    %2385 = vmatprep.subr.mxu0 0.0
    %2386 = vmatpush1.xpose.msra.mxu0 0.0
    %2387 = vmatprep.subr.mxu0 0.0
    %2388 = vmatpush1.xpose.msra.mxu0 0.0
    %2389 = vmatprep.subr.mxu0 0.0
    %2390 = vmatpush1.xpose.msra.mxu0 0.0
    %2391 = vmatprep.subr.mxu0 0.0
    %2392 = vmatpush1.xpose.msra.mxu0 0.0
    %2393 = vmatprep.subr.mxu0 0.0
    %2394 = vmatpush1.xpose.msra.mxu0 0.0
    %2395 = vmatprep.subr.mxu0 0.0
    %2396 = vmatpush1.xpose.msra.mxu0 0.0
    %2397 = vmatprep.subr.mxu0 0.0
    %2398 = vmatpush1.xpose.msra.mxu0 0.0
    %2399 = vmatprep.subr.mxu0 0.0
    %2400 = vmatpush1.xpose.msra.mxu0 0.0
    %2401 = vmatprep.subr.mxu0 0.0
    %2402 = vmatpush1.xpose.msra.mxu0 0.0
    %2403 = vmatprep.subr.mxu0 0.0
    %2404 = vmatpush1.xpose.msra.mxu0 0.0
    %2405 = vmatprep.subr.mxu0 0.0
    %2406 = vmatpush1.xpose.msra.mxu0 0.0
    %2407 = vmatprep.subr.mxu0 0.0
    %2408 = vmatpush1.xpose.msra.mxu0 0.0
    %2409 = vmatprep.subr.mxu0 0.0
    %2410 = vmatpush1.xpose.msra.mxu0 0.0
    %2411 = vmatprep.subr.mxu0 0.0
    %2412 = vmatpush1.xpose.msra.mxu0 0.0
    %2413 = vmatprep.subr.mxu0 0.0
    %2414 = vmatpush1.xpose.msra.mxu0 0.0
    %2415 = vmatprep.subr.mxu0 0.0
    %2416 = vmatpush1.xpose.msra.mxu0 0.0
    %2417 = vmatprep.subr.mxu0 0.0
    %2418 = vmatpush1.xpose.msra.mxu0 0.0
    %2419 = vmatprep.subr.mxu0 0.0
    %2420 = vmatpush1.xpose.msra.mxu0 0.0
    %2421 = vmatprep.subr.mxu0 0.0
    %2422 = vmatpush1.xpose.msra.mxu0 0.0
    %2423 = vmatprep.subr.mxu0 0.0
    %2424 = vmatpush1.xpose.msra.mxu0 0.0
    %2425 = vmatprep.subr.mxu0 0.0
    %2426 = vmatpush1.xpose.msra.mxu0 0.0
    %2427 = vmatprep.subr.mxu0 0.0
    %2428 = vmatpush1.xpose.msra.mxu0 0.0
    %2429 = vmatprep.subr.mxu0 0.0
    %2430 = vmatpush1.xpose.msra.mxu0 0.0
    %2431 = vmatprep.subr.mxu0 0.0
    %2432 = vmatpush1.xpose.msra.mxu0 0.0
    %2433 = vmatprep.subr.mxu0 0.0
    %2434 = vmatpush1.xpose.msra.mxu0 0.0
    %v2435 = vand.u32 %v76, 4294901760
    %2436 = vmatprep.mubr.f32.mxu0 %v2435
    %v2437 = vand.u32 %v75, 4294901760
    %2438 = vmatmul.mubr.f32.gmra.mrb[0].mxu0 %v2437
    %v2439 = vpop.f32.mrb[0].mxu0
    %v2440 = vadd.f32 %v2366, %v2439
    %v2441 = vpop.f32.mrb[0].mxu0
    %2442 = vdwg.mxu0
    %v2443 = vand.u32 %v78, 4294901760
    %2444 = vmatprep.subr.mxu0 %v2443
    %v2445 = vand.u32 %v77, 4294901760
    %2446 = vmatpush1.xpose.msra.mxu0 %v2445
    %2447 = vmatprep.subr.mxu0 0.0
    %2448 = vmatpush1.xpose.msra.mxu0 0.0
    %2449 = vmatprep.subr.mxu0 0.0
    %2450 = vmatpush1.xpose.msra.mxu0 0.0
    %2451 = vmatprep.subr.mxu0 0.0
    %2452 = vmatpush1.xpose.msra.mxu0 0.0
    %2453 = vmatprep.subr.mxu0 0.0
    %2454 = vmatpush1.xpose.msra.mxu0 0.0
    %2455 = vmatprep.subr.mxu0 0.0
    %2456 = vmatpush1.xpose.msra.mxu0 0.0
    %2457 = vmatprep.subr.mxu0 0.0
    %2458 = vmatpush1.xpose.msra.mxu0 0.0
    %2459 = vmatprep.subr.mxu0 0.0
    %2460 = vmatpush1.xpose.msra.mxu0 0.0
    %2461 = vmatprep.subr.mxu0 0.0
    %2462 = vmatpush1.xpose.msra.mxu0 0.0
    %2463 = vmatprep.subr.mxu0 0.0
    %2464 = vmatpush1.xpose.msra.mxu0 0.0
    %2465 = vmatprep.subr.mxu0 0.0
    %2466 = vmatpush1.xpose.msra.mxu0 0.0
    %2467 = vmatprep.subr.mxu0 0.0
    %2468 = vmatpush1.xpose.msra.mxu0 0.0
    %2469 = vmatprep.subr.mxu0 0.0
    %2470 = vmatpush1.xpose.msra.mxu0 0.0
    %2471 = vmatprep.subr.mxu0 0.0
    %2472 = vmatpush1.xpose.msra.mxu0 0.0
    %2473 = vmatprep.subr.mxu0 0.0
    %2474 = vmatpush1.xpose.msra.mxu0 0.0
    %2475 = vmatprep.subr.mxu0 0.0
    %2476 = vmatpush1.xpose.msra.mxu0 0.0
    %2477 = vmatprep.subr.mxu0 0.0
    %2478 = vmatpush1.xpose.msra.mxu0 0.0
    %2479 = vmatprep.subr.mxu0 0.0
    %2480 = vmatpush1.xpose.msra.mxu0 0.0
    %2481 = vmatprep.subr.mxu0 0.0
    %2482 = vmatpush1.xpose.msra.mxu0 0.0
    %2483 = vmatprep.subr.mxu0 0.0
    %2484 = vmatpush1.xpose.msra.mxu0 0.0
    %2485 = vmatprep.subr.mxu0 0.0
    %2486 = vmatpush1.xpose.msra.mxu0 0.0
    %2487 = vmatprep.subr.mxu0 0.0
    %2488 = vmatpush1.xpose.msra.mxu0 0.0
    %2489 = vmatprep.subr.mxu0 0.0
    %2490 = vmatpush1.xpose.msra.mxu0 0.0
    %2491 = vmatprep.subr.mxu0 0.0
    %2492 = vmatpush1.xpose.msra.mxu0 0.0
    %2493 = vmatprep.subr.mxu0 0.0
    %2494 = vmatpush1.xpose.msra.mxu0 0.0
    %2495 = vmatprep.subr.mxu0 0.0
    %2496 = vmatpush1.xpose.msra.mxu0 0.0
    %2497 = vmatprep.subr.mxu0 0.0
    %2498 = vmatpush1.xpose.msra.mxu0 0.0
    %2499 = vmatprep.subr.mxu0 0.0
    %2500 = vmatpush1.xpose.msra.mxu0 0.0
    %2501 = vmatprep.subr.mxu0 0.0
    %2502 = vmatpush1.xpose.msra.mxu0 0.0
    %2503 = vmatprep.subr.mxu0 0.0
    %2504 = vmatpush1.xpose.msra.mxu0 0.0
    %2505 = vmatprep.subr.mxu0 0.0
    %2506 = vmatpush1.xpose.msra.mxu0 0.0
    %2507 = vmatprep.subr.mxu0 0.0
    %2508 = vmatpush1.xpose.msra.mxu0 0.0
    %v2509 = vand.u32 %v78, 4294901760
    %v2510 = vsub.f32 %v78, %v2509
    %v2511 = vand.u32 %v2510, 4294901760
    %v2512 = vsub.f32 %v2510, %v2511
    %v2513 = vand.u32 %v2512, 4294901760
    %2514 = vmatprep.mubr.f32.mxu0 %v2513
    %v2515 = vand.u32 %v77, 4294901760
    %v2516 = vsub.f32 %v77, %v2515
    %v2517 = vand.u32 %v2516, 4294901760
    %v2518 = vsub.f32 %v2516, %v2517
    %v2519 = vand.u32 %v2518, 4294901760
    %2520 = vmatmul.mubr.f32.gmra.mrb[0].mxu0 %v2519
    %v2521 = vpop.f32.mrb[0].mxu0
    %v2522 = vadd.f32 %v2440, %v2521
    %v2523 = vpop.f32.mrb[0].mxu0
    %2524 = vdwg.mxu0
    %v2525 = vand.u32 %v78, 4294901760
    %v2526 = vsub.f32 %v78, %v2525
    %v2527 = vand.u32 %v2526, 4294901760
    %v2528 = vsub.f32 %v2526, %v2527
    %v2529 = vand.u32 %v2528, 4294901760
    %2530 = vmatprep.subr.mxu0 %v2529
    %v2531 = vand.u32 %v77, 4294901760
    %v2532 = vsub.f32 %v77, %v2531
    %v2533 = vand.u32 %v2532, 4294901760
    %v2534 = vsub.f32 %v2532, %v2533
    %v2535 = vand.u32 %v2534, 4294901760
    %2536 = vmatpush1.xpose.msra.mxu0 %v2535
    %2537 = vmatprep.subr.mxu0 0.0
    %2538 = vmatpush1.xpose.msra.mxu0 0.0
    %2539 = vmatprep.subr.mxu0 0.0
    %2540 = vmatpush1.xpose.msra.mxu0 0.0
    %2541 = vmatprep.subr.mxu0 0.0
    %2542 = vmatpush1.xpose.msra.mxu0 0.0
    %2543 = vmatprep.subr.mxu0 0.0
    %2544 = vmatpush1.xpose.msra.mxu0 0.0
    %2545 = vmatprep.subr.mxu0 0.0
    %2546 = vmatpush1.xpose.msra.mxu0 0.0
    %2547 = vmatprep.subr.mxu0 0.0
    %2548 = vmatpush1.xpose.msra.mxu0 0.0
    %2549 = vmatprep.subr.mxu0 0.0
    %2550 = vmatpush1.xpose.msra.mxu0 0.0
    %2551 = vmatprep.subr.mxu0 0.0
    %2552 = vmatpush1.xpose.msra.mxu0 0.0
    %2553 = vmatprep.subr.mxu0 0.0
    %2554 = vmatpush1.xpose.msra.mxu0 0.0
    %2555 = vmatprep.subr.mxu0 0.0
    %2556 = vmatpush1.xpose.msra.mxu0 0.0
    %2557 = vmatprep.subr.mxu0 0.0
    %2558 = vmatpush1.xpose.msra.mxu0 0.0
    %2559 = vmatprep.subr.mxu0 0.0
    %2560 = vmatpush1.xpose.msra.mxu0 0.0
    %2561 = vmatprep.subr.mxu0 0.0
    %2562 = vmatpush1.xpose.msra.mxu0 0.0
    %2563 = vmatprep.subr.mxu0 0.0
    %2564 = vmatpush1.xpose.msra.mxu0 0.0
    %2565 = vmatprep.subr.mxu0 0.0
    %2566 = vmatpush1.xpose.msra.mxu0 0.0
    %2567 = vmatprep.subr.mxu0 0.0
    %2568 = vmatpush1.xpose.msra.mxu0 0.0
    %2569 = vmatprep.subr.mxu0 0.0
    %2570 = vmatpush1.xpose.msra.mxu0 0.0
    %2571 = vmatprep.subr.mxu0 0.0
    %2572 = vmatpush1.xpose.msra.mxu0 0.0
    %2573 = vmatprep.subr.mxu0 0.0
    %2574 = vmatpush1.xpose.msra.mxu0 0.0
    %2575 = vmatprep.subr.mxu0 0.0
    %2576 = vmatpush1.xpose.msra.mxu0 0.0
    %2577 = vmatprep.subr.mxu0 0.0
    %2578 = vmatpush1.xpose.msra.mxu0 0.0
    %2579 = vmatprep.subr.mxu0 0.0
    %2580 = vmatpush1.xpose.msra.mxu0 0.0
    %2581 = vmatprep.subr.mxu0 0.0
    %2582 = vmatpush1.xpose.msra.mxu0 0.0
    %2583 = vmatprep.subr.mxu0 0.0
    %2584 = vmatpush1.xpose.msra.mxu0 0.0
    %2585 = vmatprep.subr.mxu0 0.0
    %2586 = vmatpush1.xpose.msra.mxu0 0.0
    %2587 = vmatprep.subr.mxu0 0.0
    %2588 = vmatpush1.xpose.msra.mxu0 0.0
    %2589 = vmatprep.subr.mxu0 0.0
    %2590 = vmatpush1.xpose.msra.mxu0 0.0
    %2591 = vmatprep.subr.mxu0 0.0
    %2592 = vmatpush1.xpose.msra.mxu0 0.0
    %2593 = vmatprep.subr.mxu0 0.0
    %2594 = vmatpush1.xpose.msra.mxu0 0.0
    %2595 = vmatprep.subr.mxu0 0.0
    %2596 = vmatpush1.xpose.msra.mxu0 0.0
    %2597 = vmatprep.subr.mxu0 0.0
    %2598 = vmatpush1.xpose.msra.mxu0 0.0
    %v2599 = vand.u32 %v78, 4294901760
    %2600 = vmatprep.mubr.f32.mxu0 %v2599
    %v2601 = vand.u32 %v77, 4294901760
    %2602 = vmatmul.mubr.f32.gmra.mrb[0].mxu0 %v2601
    %v2603 = vpop.f32.mrb[0].mxu0
    %v2604 = vadd.f32 %v2522, %v2603
    %v2605 = vpop.f32.mrb[0].mxu0
    %2606 = vdwg.mxu0
    %v2607 = vand.u32 %v78, 4294901760
    %v2608 = vsub.f32 %v78, %v2607
    %2609 = vmatprep.subr.mxu0 %v2608
    %v2610 = vand.u32 %v77, 4294901760
    %v2611 = vsub.f32 %v77, %v2610
    %2612 = vmatpush1.xpose.msra.mxu0 %v2611
    %2613 = vmatprep.subr.mxu0 0.0
    %2614 = vmatpush1.xpose.msra.mxu0 0.0
    %2615 = vmatprep.subr.mxu0 0.0
    %2616 = vmatpush1.xpose.msra.mxu0 0.0
    %2617 = vmatprep.subr.mxu0 0.0
    %2618 = vmatpush1.xpose.msra.mxu0 0.0
    %2619 = vmatprep.subr.mxu0 0.0
    %2620 = vmatpush1.xpose.msra.mxu0 0.0
    %2621 = vmatprep.subr.mxu0 0.0
    %2622 = vmatpush1.xpose.msra.mxu0 0.0
    %2623 = vmatprep.subr.mxu0 0.0
    %2624 = vmatpush1.xpose.msra.mxu0 0.0
    %2625 = vmatprep.subr.mxu0 0.0
    %2626 = vmatpush1.xpose.msra.mxu0 0.0
    %2627 = vmatprep.subr.mxu0 0.0
    %2628 = vmatpush1.xpose.msra.mxu0 0.0
    %2629 = vmatprep.subr.mxu0 0.0
    %2630 = vmatpush1.xpose.msra.mxu0 0.0
    %2631 = vmatprep.subr.mxu0 0.0
    %2632 = vmatpush1.xpose.msra.mxu0 0.0
    %2633 = vmatprep.subr.mxu0 0.0
    %2634 = vmatpush1.xpose.msra.mxu0 0.0
    %2635 = vmatprep.subr.mxu0 0.0
    %2636 = vmatpush1.xpose.msra.mxu0 0.0
    %2637 = vmatprep.subr.mxu0 0.0
    %2638 = vmatpush1.xpose.msra.mxu0 0.0
    %2639 = vmatprep.subr.mxu0 0.0
    %2640 = vmatpush1.xpose.msra.mxu0 0.0
    %2641 = vmatprep.subr.mxu0 0.0
    %2642 = vmatpush1.xpose.msra.mxu0 0.0
    %2643 = vmatprep.subr.mxu0 0.0
    %2644 = vmatpush1.xpose.msra.mxu0 0.0
    %2645 = vmatprep.subr.mxu0 0.0
    %2646 = vmatpush1.xpose.msra.mxu0 0.0
    %2647 = vmatprep.subr.mxu0 0.0
    %2648 = vmatpush1.xpose.msra.mxu0 0.0
    %2649 = vmatprep.subr.mxu0 0.0
    %2650 = vmatpush1.xpose.msra.mxu0 0.0
    %2651 = vmatprep.subr.mxu0 0.0
    %2652 = vmatpush1.xpose.msra.mxu0 0.0
    %2653 = vmatprep.subr.mxu0 0.0
    %2654 = vmatpush1.xpose.msra.mxu0 0.0
    %2655 = vmatprep.subr.mxu0 0.0
    %2656 = vmatpush1.xpose.msra.mxu0 0.0
    %2657 = vmatprep.subr.mxu0 0.0
    %2658 = vmatpush1.xpose.msra.mxu0 0.0
    %2659 = vmatprep.subr.mxu0 0.0
    %2660 = vmatpush1.xpose.msra.mxu0 0.0
    %2661 = vmatprep.subr.mxu0 0.0
    %2662 = vmatpush1.xpose.msra.mxu0 0.0
    %2663 = vmatprep.subr.mxu0 0.0
    %2664 = vmatpush1.xpose.msra.mxu0 0.0
    %2665 = vmatprep.subr.mxu0 0.0
    %2666 = vmatpush1.xpose.msra.mxu0 0.0
    %2667 = vmatprep.subr.mxu0 0.0
    %2668 = vmatpush1.xpose.msra.mxu0 0.0
    %2669 = vmatprep.subr.mxu0 0.0
    %2670 = vmatpush1.xpose.msra.mxu0 0.0
    %2671 = vmatprep.subr.mxu0 0.0
    %2672 = vmatpush1.xpose.msra.mxu0 0.0
    %2673 = vmatprep.subr.mxu0 0.0
    %2674 = vmatpush1.xpose.msra.mxu0 0.0
    %v2675 = vand.u32 %v78, 4294901760
    %v2676 = vsub.f32 %v78, %v2675
    %2677 = vmatprep.mubr.f32.mxu0 %v2676
    %v2678 = vand.u32 %v77, 4294901760
    %v2679 = vsub.f32 %v77, %v2678
    %2680 = vmatmul.mubr.f32.gmra.mrb[0].mxu0 %v2679
    %v2681 = vpop.f32.mrb[0].mxu0
    %v2682 = vadd.f32 %v2604, %v2681
    %v2683 = vpop.f32.mrb[0].mxu0
    %2684 = vdwg.mxu0
    %v2685 = vand.u32 %v78, 4294901760
    %2686 = vmatprep.subr.mxu0 %v2685
    %v2687 = vand.u32 %v77, 4294901760
    %2688 = vmatpush1.xpose.msra.mxu0 %v2687
    %2689 = vmatprep.subr.mxu0 0.0
    %2690 = vmatpush1.xpose.msra.mxu0 0.0
    %2691 = vmatprep.subr.mxu0 0.0
    %2692 = vmatpush1.xpose.msra.mxu0 0.0
    %2693 = vmatprep.subr.mxu0 0.0
    %2694 = vmatpush1.xpose.msra.mxu0 0.0
    %2695 = vmatprep.subr.mxu0 0.0
    %2696 = vmatpush1.xpose.msra.mxu0 0.0
    %2697 = vmatprep.subr.mxu0 0.0
    %2698 = vmatpush1.xpose.msra.mxu0 0.0
    %2699 = vmatprep.subr.mxu0 0.0
    %2700 = vmatpush1.xpose.msra.mxu0 0.0
    %2701 = vmatprep.subr.mxu0 0.0
    %2702 = vmatpush1.xpose.msra.mxu0 0.0
    %2703 = vmatprep.subr.mxu0 0.0
    %2704 = vmatpush1.xpose.msra.mxu0 0.0
    %2705 = vmatprep.subr.mxu0 0.0
    %2706 = vmatpush1.xpose.msra.mxu0 0.0
    %2707 = vmatprep.subr.mxu0 0.0
    %2708 = vmatpush1.xpose.msra.mxu0 0.0
    %2709 = vmatprep.subr.mxu0 0.0
    %2710 = vmatpush1.xpose.msra.mxu0 0.0
    %2711 = vmatprep.subr.mxu0 0.0
    %2712 = vmatpush1.xpose.msra.mxu0 0.0
    %2713 = vmatprep.subr.mxu0 0.0
    %2714 = vmatpush1.xpose.msra.mxu0 0.0
    %2715 = vmatprep.subr.mxu0 0.0
    %2716 = vmatpush1.xpose.msra.mxu0 0.0
    %2717 = vmatprep.subr.mxu0 0.0
    %2718 = vmatpush1.xpose.msra.mxu0 0.0
    %2719 = vmatprep.subr.mxu0 0.0
    %2720 = vmatpush1.xpose.msra.mxu0 0.0
    %2721 = vmatprep.subr.mxu0 0.0
    %2722 = vmatpush1.xpose.msra.mxu0 0.0
    %2723 = vmatprep.subr.mxu0 0.0
    %2724 = vmatpush1.xpose.msra.mxu0 0.0
    %2725 = vmatprep.subr.mxu0 0.0
    %2726 = vmatpush1.xpose.msra.mxu0 0.0
    %2727 = vmatprep.subr.mxu0 0.0
    %2728 = vmatpush1.xpose.msra.mxu0 0.0
    %2729 = vmatprep.subr.mxu0 0.0
    %2730 = vmatpush1.xpose.msra.mxu0 0.0
    %2731 = vmatprep.subr.mxu0 0.0
    %2732 = vmatpush1.xpose.msra.mxu0 0.0
    %2733 = vmatprep.subr.mxu0 0.0
    %2734 = vmatpush1.xpose.msra.mxu0 0.0
    %2735 = vmatprep.subr.mxu0 0.0
    %2736 = vmatpush1.xpose.msra.mxu0 0.0
    %2737 = vmatprep.subr.mxu0 0.0
    %2738 = vmatpush1.xpose.msra.mxu0 0.0
    %2739 = vmatprep.subr.mxu0 0.0
    %2740 = vmatpush1.xpose.msra.mxu0 0.0
    %2741 = vmatprep.subr.mxu0 0.0
    %2742 = vmatpush1.xpose.msra.mxu0 0.0
    %2743 = vmatprep.subr.mxu0 0.0
    %2744 = vmatpush1.xpose.msra.mxu0 0.0
    %2745 = vmatprep.subr.mxu0 0.0
    %2746 = vmatpush1.xpose.msra.mxu0 0.0
    %2747 = vmatprep.subr.mxu0 0.0
    %2748 = vmatpush1.xpose.msra.mxu0 0.0
    %2749 = vmatprep.subr.mxu0 0.0
    %2750 = vmatpush1.xpose.msra.mxu0 0.0
    %v2751 = vand.u32 %v78, 4294901760
    %v2752 = vsub.f32 %v78, %v2751
    %v2753 = vand.u32 %v2752, 4294901760
    %2754 = vmatprep.mubr.f32.mxu0 %v2753
    %v2755 = vand.u32 %v77, 4294901760
    %v2756 = vsub.f32 %v77, %v2755
    %v2757 = vand.u32 %v2756, 4294901760
    %2758 = vmatmul.mubr.f32.gmra.mrb[0].mxu0 %v2757
    %v2759 = vpop.f32.mrb[0].mxu0
    %v2760 = vadd.f32 %v2682, %v2759
    %v2761 = vpop.f32.mrb[0].mxu0
    %2762 = vdwg.mxu0
    %v2763 = vand.u32 %v78, 4294901760
    %v2764 = vsub.f32 %v78, %v2763
    %v2765 = vand.u32 %v2764, 4294901760
    %2766 = vmatprep.subr.mxu0 %v2765
    %v2767 = vand.u32 %v77, 4294901760
    %v2768 = vsub.f32 %v77, %v2767
    %v2769 = vand.u32 %v2768, 4294901760
    %2770 = vmatpush1.xpose.msra.mxu0 %v2769
    %2771 = vmatprep.subr.mxu0 0.0
    %2772 = vmatpush1.xpose.msra.mxu0 0.0
    %2773 = vmatprep.subr.mxu0 0.0
    %2774 = vmatpush1.xpose.msra.mxu0 0.0
    %2775 = vmatprep.subr.mxu0 0.0
    %2776 = vmatpush1.xpose.msra.mxu0 0.0
    %2777 = vmatprep.subr.mxu0 0.0
    %2778 = vmatpush1.xpose.msra.mxu0 0.0
    %2779 = vmatprep.subr.mxu0 0.0
    %2780 = vmatpush1.xpose.msra.mxu0 0.0
    %2781 = vmatprep.subr.mxu0 0.0
    %2782 = vmatpush1.xpose.msra.mxu0 0.0
    %2783 = vmatprep.subr.mxu0 0.0
    %2784 = vmatpush1.xpose.msra.mxu0 0.0
    %2785 = vmatprep.subr.mxu0 0.0
    %2786 = vmatpush1.xpose.msra.mxu0 0.0
    %2787 = vmatprep.subr.mxu0 0.0
    %2788 = vmatpush1.xpose.msra.mxu0 0.0
    %2789 = vmatprep.subr.mxu0 0.0
    %2790 = vmatpush1.xpose.msra.mxu0 0.0
    %2791 = vmatprep.subr.mxu0 0.0
    %2792 = vmatpush1.xpose.msra.mxu0 0.0
    %2793 = vmatprep.subr.mxu0 0.0
    %2794 = vmatpush1.xpose.msra.mxu0 0.0
    %2795 = vmatprep.subr.mxu0 0.0
    %2796 = vmatpush1.xpose.msra.mxu0 0.0
    %2797 = vmatprep.subr.mxu0 0.0
    %2798 = vmatpush1.xpose.msra.mxu0 0.0
    %2799 = vmatprep.subr.mxu0 0.0
    %2800 = vmatpush1.xpose.msra.mxu0 0.0
    %2801 = vmatprep.subr.mxu0 0.0
    %2802 = vmatpush1.xpose.msra.mxu0 0.0
    %2803 = vmatprep.subr.mxu0 0.0
    %2804 = vmatpush1.xpose.msra.mxu0 0.0
    %2805 = vmatprep.subr.mxu0 0.0
    %2806 = vmatpush1.xpose.msra.mxu0 0.0
    %2807 = vmatprep.subr.mxu0 0.0
    %2808 = vmatpush1.xpose.msra.mxu0 0.0
    %2809 = vmatprep.subr.mxu0 0.0
    %2810 = vmatpush1.xpose.msra.mxu0 0.0
    %2811 = vmatprep.subr.mxu0 0.0
    %2812 = vmatpush1.xpose.msra.mxu0 0.0
    %2813 = vmatprep.subr.mxu0 0.0
    %2814 = vmatpush1.xpose.msra.mxu0 0.0
    %2815 = vmatprep.subr.mxu0 0.0
    %2816 = vmatpush1.xpose.msra.mxu0 0.0
    %2817 = vmatprep.subr.mxu0 0.0
    %2818 = vmatpush1.xpose.msra.mxu0 0.0
    %2819 = vmatprep.subr.mxu0 0.0
    %2820 = vmatpush1.xpose.msra.mxu0 0.0
    %2821 = vmatprep.subr.mxu0 0.0
    %2822 = vmatpush1.xpose.msra.mxu0 0.0
    %2823 = vmatprep.subr.mxu0 0.0
    %2824 = vmatpush1.xpose.msra.mxu0 0.0
    %2825 = vmatprep.subr.mxu0 0.0
    %2826 = vmatpush1.xpose.msra.mxu0 0.0
    %2827 = vmatprep.subr.mxu0 0.0
    %2828 = vmatpush1.xpose.msra.mxu0 0.0
    %2829 = vmatprep.subr.mxu0 0.0
    %2830 = vmatpush1.xpose.msra.mxu0 0.0
    %2831 = vmatprep.subr.mxu0 0.0
    %2832 = vmatpush1.xpose.msra.mxu0 0.0
    %v2833 = vand.u32 %v78, 4294901760
    %2834 = vmatprep.mubr.f32.mxu0 %v2833
    %v2835 = vand.u32 %v77, 4294901760
    %2836 = vmatmul.mubr.f32.gmra.mrb[0].mxu0 %v2835
    %v2837 = vpop.f32.mrb[0].mxu0
    %v2838 = vadd.f32 %v2760, %v2837
    %v2839 = vpop.f32.mrb[0].mxu0
    %2840 = vdwg.mxu0
    %v2841 = vand.u32 %v78, 4294901760
    %2842 = vmatprep.subr.mxu0 %v2841
    %v2843 = vand.u32 %v77, 4294901760
    %2844 = vmatpush1.xpose.msra.mxu0 %v2843
    %2845 = vmatprep.subr.mxu0 0.0
    %2846 = vmatpush1.xpose.msra.mxu0 0.0
    %2847 = vmatprep.subr.mxu0 0.0
    %2848 = vmatpush1.xpose.msra.mxu0 0.0
    %2849 = vmatprep.subr.mxu0 0.0
    %2850 = vmatpush1.xpose.msra.mxu0 0.0
    %2851 = vmatprep.subr.mxu0 0.0
    %2852 = vmatpush1.xpose.msra.mxu0 0.0
    %2853 = vmatprep.subr.mxu0 0.0
    %2854 = vmatpush1.xpose.msra.mxu0 0.0
    %2855 = vmatprep.subr.mxu0 0.0
    %2856 = vmatpush1.xpose.msra.mxu0 0.0
    %2857 = vmatprep.subr.mxu0 0.0
    %2858 = vmatpush1.xpose.msra.mxu0 0.0
    %2859 = vmatprep.subr.mxu0 0.0
    %2860 = vmatpush1.xpose.msra.mxu0 0.0
    %2861 = vmatprep.subr.mxu0 0.0
    %2862 = vmatpush1.xpose.msra.mxu0 0.0
    %2863 = vmatprep.subr.mxu0 0.0
    %2864 = vmatpush1.xpose.msra.mxu0 0.0
    %2865 = vmatprep.subr.mxu0 0.0
    %2866 = vmatpush1.xpose.msra.mxu0 0.0
    %2867 = vmatprep.subr.mxu0 0.0
    %2868 = vmatpush1.xpose.msra.mxu0 0.0
    %2869 = vmatprep.subr.mxu0 0.0
    %2870 = vmatpush1.xpose.msra.mxu0 0.0
    %2871 = vmatprep.subr.mxu0 0.0
    %2872 = vmatpush1.xpose.msra.mxu0 0.0
    %2873 = vmatprep.subr.mxu0 0.0
    %2874 = vmatpush1.xpose.msra.mxu0 0.0
    %2875 = vmatprep.subr.mxu0 0.0
    %2876 = vmatpush1.xpose.msra.mxu0 0.0
    %2877 = vmatprep.subr.mxu0 0.0
    %2878 = vmatpush1.xpose.msra.mxu0 0.0
    %2879 = vmatprep.subr.mxu0 0.0
    %2880 = vmatpush1.xpose.msra.mxu0 0.0
    %2881 = vmatprep.subr.mxu0 0.0
    %2882 = vmatpush1.xpose.msra.mxu0 0.0
    %2883 = vmatprep.subr.mxu0 0.0
    %2884 = vmatpush1.xpose.msra.mxu0 0.0
    %2885 = vmatprep.subr.mxu0 0.0
    %2886 = vmatpush1.xpose.msra.mxu0 0.0
    %2887 = vmatprep.subr.mxu0 0.0
    %2888 = vmatpush1.xpose.msra.mxu0 0.0
    %2889 = vmatprep.subr.mxu0 0.0
    %2890 = vmatpush1.xpose.msra.mxu0 0.0
    %2891 = vmatprep.subr.mxu0 0.0
    %2892 = vmatpush1.xpose.msra.mxu0 0.0
    %2893 = vmatprep.subr.mxu0 0.0
    %2894 = vmatpush1.xpose.msra.mxu0 0.0
    %2895 = vmatprep.subr.mxu0 0.0
    %2896 = vmatpush1.xpose.msra.mxu0 0.0
    %2897 = vmatprep.subr.mxu0 0.0
    %2898 = vmatpush1.xpose.msra.mxu0 0.0
    %2899 = vmatprep.subr.mxu0 0.0
    %2900 = vmatpush1.xpose.msra.mxu0 0.0
    %2901 = vmatprep.subr.mxu0 0.0
    %2902 = vmatpush1.xpose.msra.mxu0 0.0
    %2903 = vmatprep.subr.mxu0 0.0
    %2904 = vmatpush1.xpose.msra.mxu0 0.0
    %2905 = vmatprep.subr.mxu0 0.0
    %2906 = vmatpush1.xpose.msra.mxu0 0.0
    %v2907 = vand.u32 %v78, 4294901760
    %2908 = vmatprep.mubr.f32.mxu0 %v2907
    %v2909 = vand.u32 %v77, 4294901760
    %2910 = vmatmul.mubr.f32.gmra.mrb[0].mxu0 %v2909
    %v2911 = vpop.f32.mrb[0].mxu0
    %v2912 = vadd.f32 %v2838, %v2911
    %v2913 = vpop.f32.mrb[0].mxu0
    %2914 = vdwg.mxu0
    %v2915 = vand.u32 %v80, 4294901760
    %2916 = vmatprep.subr.mxu0 %v2915
    %v2917 = vand.u32 %v79, 4294901760
    %2918 = vmatpush1.xpose.msra.mxu0 %v2917
    %2919 = vmatprep.subr.mxu0 0.0
    %2920 = vmatpush1.xpose.msra.mxu0 0.0
    %2921 = vmatprep.subr.mxu0 0.0
    %2922 = vmatpush1.xpose.msra.mxu0 0.0
    %2923 = vmatprep.subr.mxu0 0.0
    %2924 = vmatpush1.xpose.msra.mxu0 0.0
    %2925 = vmatprep.subr.mxu0 0.0
    %2926 = vmatpush1.xpose.msra.mxu0 0.0
    %2927 = vmatprep.subr.mxu0 0.0
    %2928 = vmatpush1.xpose.msra.mxu0 0.0
    %2929 = vmatprep.subr.mxu0 0.0
    %2930 = vmatpush1.xpose.msra.mxu0 0.0
    %2931 = vmatprep.subr.mxu0 0.0
    %2932 = vmatpush1.xpose.msra.mxu0 0.0
    %2933 = vmatprep.subr.mxu0 0.0
    %2934 = vmatpush1.xpose.msra.mxu0 0.0
    %2935 = vmatprep.subr.mxu0 0.0
    %2936 = vmatpush1.xpose.msra.mxu0 0.0
    %2937 = vmatprep.subr.mxu0 0.0
    %2938 = vmatpush1.xpose.msra.mxu0 0.0
    %2939 = vmatprep.subr.mxu0 0.0
    %2940 = vmatpush1.xpose.msra.mxu0 0.0
    %2941 = vmatprep.subr.mxu0 0.0
    %2942 = vmatpush1.xpose.msra.mxu0 0.0
    %2943 = vmatprep.subr.mxu0 0.0
    %2944 = vmatpush1.xpose.msra.mxu0 0.0
    %2945 = vmatprep.subr.mxu0 0.0
    %2946 = vmatpush1.xpose.msra.mxu0 0.0
    %2947 = vmatprep.subr.mxu0 0.0
    %2948 = vmatpush1.xpose.msra.mxu0 0.0
    %2949 = vmatprep.subr.mxu0 0.0
    %2950 = vmatpush1.xpose.msra.mxu0 0.0
    %2951 = vmatprep.subr.mxu0 0.0
    %2952 = vmatpush1.xpose.msra.mxu0 0.0
    %2953 = vmatprep.subr.mxu0 0.0
    %2954 = vmatpush1.xpose.msra.mxu0 0.0
    %2955 = vmatprep.subr.mxu0 0.0
    %2956 = vmatpush1.xpose.msra.mxu0 0.0
    %2957 = vmatprep.subr.mxu0 0.0
    %2958 = vmatpush1.xpose.msra.mxu0 0.0
    %2959 = vmatprep.subr.mxu0 0.0
    %2960 = vmatpush1.xpose.msra.mxu0 0.0
    %2961 = vmatprep.subr.mxu0 0.0
    %2962 = vmatpush1.xpose.msra.mxu0 0.0
    %2963 = vmatprep.subr.mxu0 0.0
    %2964 = vmatpush1.xpose.msra.mxu0 0.0
    %2965 = vmatprep.subr.mxu0 0.0
    %2966 = vmatpush1.xpose.msra.mxu0 0.0
    %2967 = vmatprep.subr.mxu0 0.0
    %2968 = vmatpush1.xpose.msra.mxu0 0.0
    %2969 = vmatprep.subr.mxu0 0.0
    %2970 = vmatpush1.xpose.msra.mxu0 0.0
    %2971 = vmatprep.subr.mxu0 0.0
    %2972 = vmatpush1.xpose.msra.mxu0 0.0
    %2973 = vmatprep.subr.mxu0 0.0
    %2974 = vmatpush1.xpose.msra.mxu0 0.0
    %2975 = vmatprep.subr.mxu0 0.0
    %2976 = vmatpush1.xpose.msra.mxu0 0.0
    %2977 = vmatprep.subr.mxu0 0.0
    %2978 = vmatpush1.xpose.msra.mxu0 0.0
    %2979 = vmatprep.subr.mxu0 0.0
    %2980 = vmatpush1.xpose.msra.mxu0 0.0
    %v2981 = vand.u32 %v80, 4294901760
    %v2982 = vsub.f32 %v80, %v2981
    %v2983 = vand.u32 %v2982, 4294901760
    %v2984 = vsub.f32 %v2982, %v2983
    %v2985 = vand.u32 %v2984, 4294901760
    %2986 = vmatprep.mubr.f32.mxu0 %v2985
    %v2987 = vand.u32 %v79, 4294901760
    %v2988 = vsub.f32 %v79, %v2987
    %v2989 = vand.u32 %v2988, 4294901760
    %v2990 = vsub.f32 %v2988, %v2989
    %v2991 = vand.u32 %v2990, 4294901760
    %2992 = vmatmul.mubr.f32.gmra.mrb[0].mxu0 %v2991
    %v2993 = vpop.f32.mrb[0].mxu0
    %v2994 = vadd.f32 %v2912, %v2993
    %v2995 = vpop.f32.mrb[0].mxu0
    %2996 = vdwg.mxu0
    %v2997 = vand.u32 %v80, 4294901760
    %v2998 = vsub.f32 %v80, %v2997
    %v2999 = vand.u32 %v2998, 4294901760
    %v3000 = vsub.f32 %v2998, %v2999
    %v3001 = vand.u32 %v3000, 4294901760
    %3002 = vmatprep.subr.mxu0 %v3001
    %v3003 = vand.u32 %v79, 4294901760
    %v3004 = vsub.f32 %v79, %v3003
    %v3005 = vand.u32 %v3004, 4294901760
    %v3006 = vsub.f32 %v3004, %v3005
    %v3007 = vand.u32 %v3006, 4294901760
    %3008 = vmatpush1.xpose.msra.mxu0 %v3007
    %3009 = vmatprep.subr.mxu0 0.0
    %3010 = vmatpush1.xpose.msra.mxu0 0.0
    %3011 = vmatprep.subr.mxu0 0.0
    %3012 = vmatpush1.xpose.msra.mxu0 0.0
    %3013 = vmatprep.subr.mxu0 0.0
    %3014 = vmatpush1.xpose.msra.mxu0 0.0
    %3015 = vmatprep.subr.mxu0 0.0
    %3016 = vmatpush1.xpose.msra.mxu0 0.0
    %3017 = vmatprep.subr.mxu0 0.0
    %3018 = vmatpush1.xpose.msra.mxu0 0.0
    %3019 = vmatprep.subr.mxu0 0.0
    %3020 = vmatpush1.xpose.msra.mxu0 0.0
    %3021 = vmatprep.subr.mxu0 0.0
    %3022 = vmatpush1.xpose.msra.mxu0 0.0
    %3023 = vmatprep.subr.mxu0 0.0
    %3024 = vmatpush1.xpose.msra.mxu0 0.0
    %3025 = vmatprep.subr.mxu0 0.0
    %3026 = vmatpush1.xpose.msra.mxu0 0.0
    %3027 = vmatprep.subr.mxu0 0.0
    %3028 = vmatpush1.xpose.msra.mxu0 0.0
    %3029 = vmatprep.subr.mxu0 0.0
    %3030 = vmatpush1.xpose.msra.mxu0 0.0
    %3031 = vmatprep.subr.mxu0 0.0
    %3032 = vmatpush1.xpose.msra.mxu0 0.0
    %3033 = vmatprep.subr.mxu0 0.0
    %3034 = vmatpush1.xpose.msra.mxu0 0.0
    %3035 = vmatprep.subr.mxu0 0.0
    %3036 = vmatpush1.xpose.msra.mxu0 0.0
    %3037 = vmatprep.subr.mxu0 0.0
    %3038 = vmatpush1.xpose.msra.mxu0 0.0
    %3039 = vmatprep.subr.mxu0 0.0
    %3040 = vmatpush1.xpose.msra.mxu0 0.0
    %3041 = vmatprep.subr.mxu0 0.0
    %3042 = vmatpush1.xpose.msra.mxu0 0.0
    %3043 = vmatprep.subr.mxu0 0.0
    %3044 = vmatpush1.xpose.msra.mxu0 0.0
    %3045 = vmatprep.subr.mxu0 0.0
    %3046 = vmatpush1.xpose.msra.mxu0 0.0
    %3047 = vmatprep.subr.mxu0 0.0
    %3048 = vmatpush1.xpose.msra.mxu0 0.0
    %3049 = vmatprep.subr.mxu0 0.0
    %3050 = vmatpush1.xpose.msra.mxu0 0.0
    %3051 = vmatprep.subr.mxu0 0.0
    %3052 = vmatpush1.xpose.msra.mxu0 0.0
    %3053 = vmatprep.subr.mxu0 0.0
    %3054 = vmatpush1.xpose.msra.mxu0 0.0
    %3055 = vmatprep.subr.mxu0 0.0
    %3056 = vmatpush1.xpose.msra.mxu0 0.0
    %3057 = vmatprep.subr.mxu0 0.0
    %3058 = vmatpush1.xpose.msra.mxu0 0.0
    %3059 = vmatprep.subr.mxu0 0.0
    %3060 = vmatpush1.xpose.msra.mxu0 0.0
    %3061 = vmatprep.subr.mxu0 0.0
    %3062 = vmatpush1.xpose.msra.mxu0 0.0
    %3063 = vmatprep.subr.mxu0 0.0
    %3064 = vmatpush1.xpose.msra.mxu0 0.0
    %3065 = vmatprep.subr.mxu0 0.0
    %3066 = vmatpush1.xpose.msra.mxu0 0.0
    %3067 = vmatprep.subr.mxu0 0.0
    %3068 = vmatpush1.xpose.msra.mxu0 0.0
    %3069 = vmatprep.subr.mxu0 0.0
    %3070 = vmatpush1.xpose.msra.mxu0 0.0
    %v3071 = vand.u32 %v80, 4294901760
    %3072 = vmatprep.mubr.f32.mxu0 %v3071
    %v3073 = vand.u32 %v79, 4294901760
    %3074 = vmatmul.mubr.f32.gmra.mrb[0].mxu0 %v3073
    %v3075 = vpop.f32.mrb[0].mxu0
    %v3076 = vadd.f32 %v2994, %v3075
    %v3077 = vpop.f32.mrb[0].mxu0
    %3078 = vdwg.mxu0
    %v3079 = vand.u32 %v80, 4294901760
    %v3080 = vsub.f32 %v80, %v3079
    %3081 = vmatprep.subr.mxu0 %v3080
    %v3082 = vand.u32 %v79, 4294901760
    %v3083 = vsub.f32 %v79, %v3082
    %3084 = vmatpush1.xpose.msra.mxu0 %v3083
    %3085 = vmatprep.subr.mxu0 0.0
    %3086 = vmatpush1.xpose.msra.mxu0 0.0
    %3087 = vmatprep.subr.mxu0 0.0
    %3088 = vmatpush1.xpose.msra.mxu0 0.0
    %3089 = vmatprep.subr.mxu0 0.0
    %3090 = vmatpush1.xpose.msra.mxu0 0.0
    %3091 = vmatprep.subr.mxu0 0.0
    %3092 = vmatpush1.xpose.msra.mxu0 0.0
    %3093 = vmatprep.subr.mxu0 0.0
    %3094 = vmatpush1.xpose.msra.mxu0 0.0
    %3095 = vmatprep.subr.mxu0 0.0
    %3096 = vmatpush1.xpose.msra.mxu0 0.0
    %3097 = vmatprep.subr.mxu0 0.0
    %3098 = vmatpush1.xpose.msra.mxu0 0.0
    %3099 = vmatprep.subr.mxu0 0.0
    %3100 = vmatpush1.xpose.msra.mxu0 0.0
    %3101 = vmatprep.subr.mxu0 0.0
    %3102 = vmatpush1.xpose.msra.mxu0 0.0
    %3103 = vmatprep.subr.mxu0 0.0
    %3104 = vmatpush1.xpose.msra.mxu0 0.0
    %3105 = vmatprep.subr.mxu0 0.0
    %3106 = vmatpush1.xpose.msra.mxu0 0.0
    %3107 = vmatprep.subr.mxu0 0.0
    %3108 = vmatpush1.xpose.msra.mxu0 0.0
    %3109 = vmatprep.subr.mxu0 0.0
    %3110 = vmatpush1.xpose.msra.mxu0 0.0
    %3111 = vmatprep.subr.mxu0 0.0
    %3112 = vmatpush1.xpose.msra.mxu0 0.0
    %3113 = vmatprep.subr.mxu0 0.0
    %3114 = vmatpush1.xpose.msra.mxu0 0.0
    %3115 = vmatprep.subr.mxu0 0.0
    %3116 = vmatpush1.xpose.msra.mxu0 0.0
    %3117 = vmatprep.subr.mxu0 0.0
    %3118 = vmatpush1.xpose.msra.mxu0 0.0
    %3119 = vmatprep.subr.mxu0 0.0
    %3120 = vmatpush1.xpose.msra.mxu0 0.0
    %3121 = vmatprep.subr.mxu0 0.0
    %3122 = vmatpush1.xpose.msra.mxu0 0.0
    %3123 = vmatprep.subr.mxu0 0.0
    %3124 = vmatpush1.xpose.msra.mxu0 0.0
    %3125 = vmatprep.subr.mxu0 0.0
    %3126 = vmatpush1.xpose.msra.mxu0 0.0
    %3127 = vmatprep.subr.mxu0 0.0
    %3128 = vmatpush1.xpose.msra.mxu0 0.0
    %3129 = vmatprep.subr.mxu0 0.0
    %3130 = vmatpush1.xpose.msra.mxu0 0.0
    %3131 = vmatprep.subr.mxu0 0.0
    %3132 = vmatpush1.xpose.msra.mxu0 0.0
    %3133 = vmatprep.subr.mxu0 0.0
    %3134 = vmatpush1.xpose.msra.mxu0 0.0
    %3135 = vmatprep.subr.mxu0 0.0
    %3136 = vmatpush1.xpose.msra.mxu0 0.0
    %3137 = vmatprep.subr.mxu0 0.0
    %3138 = vmatpush1.xpose.msra.mxu0 0.0
    %3139 = vmatprep.subr.mxu0 0.0
    %3140 = vmatpush1.xpose.msra.mxu0 0.0
    %3141 = vmatprep.subr.mxu0 0.0
    %3142 = vmatpush1.xpose.msra.mxu0 0.0
    %3143 = vmatprep.subr.mxu0 0.0
    %3144 = vmatpush1.xpose.msra.mxu0 0.0
    %3145 = vmatprep.subr.mxu0 0.0
    %3146 = vmatpush1.xpose.msra.mxu0 0.0
    %v3147 = vand.u32 %v80, 4294901760
    %v3148 = vsub.f32 %v80, %v3147
    %3149 = vmatprep.mubr.f32.mxu0 %v3148
    %v3150 = vand.u32 %v79, 4294901760
    %v3151 = vsub.f32 %v79, %v3150
    %3152 = vmatmul.mubr.f32.gmra.mrb[0].mxu0 %v3151
    %v3153 = vpop.f32.mrb[0].mxu0
    %v3154 = vadd.f32 %v3076, %v3153
    %v3155 = vpop.f32.mrb[0].mxu0
    %3156 = vdwg.mxu0
    %v3157 = vand.u32 %v80, 4294901760
    %3158 = vmatprep.subr.mxu0 %v3157
    %v3159 = vand.u32 %v79, 4294901760
    %3160 = vmatpush1.xpose.msra.mxu0 %v3159
    %3161 = vmatprep.subr.mxu0 0.0
    %3162 = vmatpush1.xpose.msra.mxu0 0.0
    %3163 = vmatprep.subr.mxu0 0.0
    %3164 = vmatpush1.xpose.msra.mxu0 0.0
    %3165 = vmatprep.subr.mxu0 0.0
    %3166 = vmatpush1.xpose.msra.mxu0 0.0
    %3167 = vmatprep.subr.mxu0 0.0
    %3168 = vmatpush1.xpose.msra.mxu0 0.0
    %3169 = vmatprep.subr.mxu0 0.0
    %3170 = vmatpush1.xpose.msra.mxu0 0.0
    %3171 = vmatprep.subr.mxu0 0.0
    %3172 = vmatpush1.xpose.msra.mxu0 0.0
    %3173 = vmatprep.subr.mxu0 0.0
    %3174 = vmatpush1.xpose.msra.mxu0 0.0
    %3175 = vmatprep.subr.mxu0 0.0
    %3176 = vmatpush1.xpose.msra.mxu0 0.0
    %3177 = vmatprep.subr.mxu0 0.0
    %3178 = vmatpush1.xpose.msra.mxu0 0.0
    %3179 = vmatprep.subr.mxu0 0.0
    %3180 = vmatpush1.xpose.msra.mxu0 0.0
    %3181 = vmatprep.subr.mxu0 0.0
    %3182 = vmatpush1.xpose.msra.mxu0 0.0
    %3183 = vmatprep.subr.mxu0 0.0
    %3184 = vmatpush1.xpose.msra.mxu0 0.0
    %3185 = vmatprep.subr.mxu0 0.0
    %3186 = vmatpush1.xpose.msra.mxu0 0.0
    %3187 = vmatprep.subr.mxu0 0.0
    %3188 = vmatpush1.xpose.msra.mxu0 0.0
    %3189 = vmatprep.subr.mxu0 0.0
    %3190 = vmatpush1.xpose.msra.mxu0 0.0
    %3191 = vmatprep.subr.mxu0 0.0
    %3192 = vmatpush1.xpose.msra.mxu0 0.0
    %3193 = vmatprep.subr.mxu0 0.0
    %3194 = vmatpush1.xpose.msra.mxu0 0.0
    %3195 = vmatprep.subr.mxu0 0.0
    %3196 = vmatpush1.xpose.msra.mxu0 0.0
    %3197 = vmatprep.subr.mxu0 0.0
    %3198 = vmatpush1.xpose.msra.mxu0 0.0
    %3199 = vmatprep.subr.mxu0 0.0
    %3200 = vmatpush1.xpose.msra.mxu0 0.0
    %3201 = vmatprep.subr.mxu0 0.0
    %3202 = vmatpush1.xpose.msra.mxu0 0.0
    %3203 = vmatprep.subr.mxu0 0.0
    %3204 = vmatpush1.xpose.msra.mxu0 0.0
    %3205 = vmatprep.subr.mxu0 0.0
    %3206 = vmatpush1.xpose.msra.mxu0 0.0
    %3207 = vmatprep.subr.mxu0 0.0
    %3208 = vmatpush1.xpose.msra.mxu0 0.0
    %3209 = vmatprep.subr.mxu0 0.0
    %3210 = vmatpush1.xpose.msra.mxu0 0.0
    %3211 = vmatprep.subr.mxu0 0.0
    %3212 = vmatpush1.xpose.msra.mxu0 0.0
    %3213 = vmatprep.subr.mxu0 0.0
    %3214 = vmatpush1.xpose.msra.mxu0 0.0
    %3215 = vmatprep.subr.mxu0 0.0
    %3216 = vmatpush1.xpose.msra.mxu0 0.0
    %3217 = vmatprep.subr.mxu0 0.0
    %3218 = vmatpush1.xpose.msra.mxu0 0.0
    %3219 = vmatprep.subr.mxu0 0.0
    %3220 = vmatpush1.xpose.msra.mxu0 0.0
    %3221 = vmatprep.subr.mxu0 0.0
    %3222 = vmatpush1.xpose.msra.mxu0 0.0
    %v3223 = vand.u32 %v80, 4294901760
    %v3224 = vsub.f32 %v80, %v3223
    %v3225 = vand.u32 %v3224, 4294901760
    %3226 = vmatprep.mubr.f32.mxu0 %v3225
    %v3227 = vand.u32 %v79, 4294901760
    %v3228 = vsub.f32 %v79, %v3227
    %v3229 = vand.u32 %v3228, 4294901760
    %3230 = vmatmul.mubr.f32.gmra.mrb[0].mxu0 %v3229
    %v3231 = vpop.f32.mrb[0].mxu0
    %v3232 = vadd.f32 %v3154, %v3231
    %v3233 = vpop.f32.mrb[0].mxu0
    %3234 = vdwg.mxu0
    %v3235 = vand.u32 %v80, 4294901760
    %v3236 = vsub.f32 %v80, %v3235
    %v3237 = vand.u32 %v3236, 4294901760
    %3238 = vmatprep.subr.mxu0 %v3237
    %v3239 = vand.u32 %v79, 4294901760
    %v3240 = vsub.f32 %v79, %v3239
    %v3241 = vand.u32 %v3240, 4294901760
    %3242 = vmatpush1.xpose.msra.mxu0 %v3241
    %3243 = vmatprep.subr.mxu0 0.0
    %3244 = vmatpush1.xpose.msra.mxu0 0.0
    %3245 = vmatprep.subr.mxu0 0.0
    %3246 = vmatpush1.xpose.msra.mxu0 0.0
    %3247 = vmatprep.subr.mxu0 0.0
    %3248 = vmatpush1.xpose.msra.mxu0 0.0
    %3249 = vmatprep.subr.mxu0 0.0
    %3250 = vmatpush1.xpose.msra.mxu0 0.0
    %3251 = vmatprep.subr.mxu0 0.0
    %3252 = vmatpush1.xpose.msra.mxu0 0.0
    %3253 = vmatprep.subr.mxu0 0.0
    %3254 = vmatpush1.xpose.msra.mxu0 0.0
    %3255 = vmatprep.subr.mxu0 0.0
    %3256 = vmatpush1.xpose.msra.mxu0 0.0
    %3257 = vmatprep.subr.mxu0 0.0
    %3258 = vmatpush1.xpose.msra.mxu0 0.0
    %3259 = vmatprep.subr.mxu0 0.0
    %3260 = vmatpush1.xpose.msra.mxu0 0.0
    %3261 = vmatprep.subr.mxu0 0.0
    %3262 = vmatpush1.xpose.msra.mxu0 0.0
    %3263 = vmatprep.subr.mxu0 0.0
    %3264 = vmatpush1.xpose.msra.mxu0 0.0
    %3265 = vmatprep.subr.mxu0 0.0
    %3266 = vmatpush1.xpose.msra.mxu0 0.0
    %3267 = vmatprep.subr.mxu0 0.0
    %3268 = vmatpush1.xpose.msra.mxu0 0.0
    %3269 = vmatprep.subr.mxu0 0.0
    %3270 = vmatpush1.xpose.msra.mxu0 0.0
    %3271 = vmatprep.subr.mxu0 0.0
    %3272 = vmatpush1.xpose.msra.mxu0 0.0
    %3273 = vmatprep.subr.mxu0 0.0
    %3274 = vmatpush1.xpose.msra.mxu0 0.0
    %3275 = vmatprep.subr.mxu0 0.0
    %3276 = vmatpush1.xpose.msra.mxu0 0.0
    %3277 = vmatprep.subr.mxu0 0.0
    %3278 = vmatpush1.xpose.msra.mxu0 0.0
    %3279 = vmatprep.subr.mxu0 0.0
    %3280 = vmatpush1.xpose.msra.mxu0 0.0
    %3281 = vmatprep.subr.mxu0 0.0
    %3282 = vmatpush1.xpose.msra.mxu0 0.0
    %3283 = vmatprep.subr.mxu0 0.0
    %3284 = vmatpush1.xpose.msra.mxu0 0.0
    %3285 = vmatprep.subr.mxu0 0.0
    %3286 = vmatpush1.xpose.msra.mxu0 0.0
    %3287 = vmatprep.subr.mxu0 0.0
    %3288 = vmatpush1.xpose.msra.mxu0 0.0
    %3289 = vmatprep.subr.mxu0 0.0
    %3290 = vmatpush1.xpose.msra.mxu0 0.0
    %3291 = vmatprep.subr.mxu0 0.0
    %3292 = vmatpush1.xpose.msra.mxu0 0.0
    %3293 = vmatprep.subr.mxu0 0.0
    %3294 = vmatpush1.xpose.msra.mxu0 0.0
    %3295 = vmatprep.subr.mxu0 0.0
    %3296 = vmatpush1.xpose.msra.mxu0 0.0
    %3297 = vmatprep.subr.mxu0 0.0
    %3298 = vmatpush1.xpose.msra.mxu0 0.0
    %3299 = vmatprep.subr.mxu0 0.0
    %3300 = vmatpush1.xpose.msra.mxu0 0.0
    %3301 = vmatprep.subr.mxu0 0.0
    %3302 = vmatpush1.xpose.msra.mxu0 0.0
    %3303 = vmatprep.subr.mxu0 0.0
    %3304 = vmatpush1.xpose.msra.mxu0 0.0
    %v3305 = vand.u32 %v80, 4294901760
    %3306 = vmatprep.mubr.f32.mxu0 %v3305
    %v3307 = vand.u32 %v79, 4294901760
    %3308 = vmatmul.mubr.f32.gmra.mrb[0].mxu0 %v3307
    %v3309 = vpop.f32.mrb[0].mxu0
    %v3310 = vadd.f32 %v3232, %v3309
    %v3311 = vpop.f32.mrb[0].mxu0
    %3312 = vdwg.mxu0
    %v3313 = vand.u32 %v80, 4294901760
    %3314 = vmatprep.subr.mxu0 %v3313
    %v3315 = vand.u32 %v79, 4294901760
    %3316 = vmatpush1.xpose.msra.mxu0 %v3315
    %3317 = vmatprep.subr.mxu0 0.0
    %3318 = vmatpush1.xpose.msra.mxu0 0.0
    %3319 = vmatprep.subr.mxu0 0.0
    %3320 = vmatpush1.xpose.msra.mxu0 0.0
    %3321 = vmatprep.subr.mxu0 0.0
    %3322 = vmatpush1.xpose.msra.mxu0 0.0
    %3323 = vmatprep.subr.mxu0 0.0
    %3324 = vmatpush1.xpose.msra.mxu0 0.0
    %3325 = vmatprep.subr.mxu0 0.0
    %3326 = vmatpush1.xpose.msra.mxu0 0.0
    %3327 = vmatprep.subr.mxu0 0.0
    %3328 = vmatpush1.xpose.msra.mxu0 0.0
    %3329 = vmatprep.subr.mxu0 0.0
    %3330 = vmatpush1.xpose.msra.mxu0 0.0
    %3331 = vmatprep.subr.mxu0 0.0
    %3332 = vmatpush1.xpose.msra.mxu0 0.0
    %3333 = vmatprep.subr.mxu0 0.0
    %3334 = vmatpush1.xpose.msra.mxu0 0.0
    %3335 = vmatprep.subr.mxu0 0.0
    %3336 = vmatpush1.xpose.msra.mxu0 0.0
    %3337 = vmatprep.subr.mxu0 0.0
    %3338 = vmatpush1.xpose.msra.mxu0 0.0
    %3339 = vmatprep.subr.mxu0 0.0
    %3340 = vmatpush1.xpose.msra.mxu0 0.0
    %3341 = vmatprep.subr.mxu0 0.0
    %3342 = vmatpush1.xpose.msra.mxu0 0.0
    %3343 = vmatprep.subr.mxu0 0.0
    %3344 = vmatpush1.xpose.msra.mxu0 0.0
    %3345 = vmatprep.subr.mxu0 0.0
    %3346 = vmatpush1.xpose.msra.mxu0 0.0
    %3347 = vmatprep.subr.mxu0 0.0
    %3348 = vmatpush1.xpose.msra.mxu0 0.0
    %3349 = vmatprep.subr.mxu0 0.0
    %3350 = vmatpush1.xpose.msra.mxu0 0.0
    %3351 = vmatprep.subr.mxu0 0.0
    %3352 = vmatpush1.xpose.msra.mxu0 0.0
    %3353 = vmatprep.subr.mxu0 0.0
    %3354 = vmatpush1.xpose.msra.mxu0 0.0
    %3355 = vmatprep.subr.mxu0 0.0
    %3356 = vmatpush1.xpose.msra.mxu0 0.0
    %3357 = vmatprep.subr.mxu0 0.0
    %3358 = vmatpush1.xpose.msra.mxu0 0.0
    %3359 = vmatprep.subr.mxu0 0.0
    %3360 = vmatpush1.xpose.msra.mxu0 0.0
    %3361 = vmatprep.subr.mxu0 0.0
    %3362 = vmatpush1.xpose.msra.mxu0 0.0
    %3363 = vmatprep.subr.mxu0 0.0
    %3364 = vmatpush1.xpose.msra.mxu0 0.0
    %3365 = vmatprep.subr.mxu0 0.0
    %3366 = vmatpush1.xpose.msra.mxu0 0.0
    %3367 = vmatprep.subr.mxu0 0.0
    %3368 = vmatpush1.xpose.msra.mxu0 0.0
    %3369 = vmatprep.subr.mxu0 0.0
    %3370 = vmatpush1.xpose.msra.mxu0 0.0
    %3371 = vmatprep.subr.mxu0 0.0
    %3372 = vmatpush1.xpose.msra.mxu0 0.0
    %3373 = vmatprep.subr.mxu0 0.0
    %3374 = vmatpush1.xpose.msra.mxu0 0.0
    %3375 = vmatprep.subr.mxu0 0.0
    %3376 = vmatpush1.xpose.msra.mxu0 0.0
    %3377 = vmatprep.subr.mxu0 0.0
    %3378 = vmatpush1.xpose.msra.mxu0 0.0
    %v3379 = vand.u32 %v80, 4294901760
    %3380 = vmatprep.mubr.f32.mxu0 %v3379
    %v3381 = vand.u32 %v79, 4294901760
    %3382 = vmatmul.mubr.f32.gmra.mrb[0].mxu0 %v3381
    %v3383 = vpop.f32.mrb[0].mxu0
    %v3384 = vadd.f32 %v3310, %v3383
    %v3385 = vpop.f32.mrb[0].mxu0
    %3386 = vdwg.mxu0
    %v3387 = vand.u32 %v82, 4294901760
    %3388 = vmatprep.subr.mxu0 %v3387
    %v3389 = vand.u32 %v81, 4294901760
    %3390 = vmatpush1.xpose.msra.mxu0 %v3389
    %3391 = vmatprep.subr.mxu0 0.0
    %3392 = vmatpush1.xpose.msra.mxu0 0.0
    %3393 = vmatprep.subr.mxu0 0.0
    %3394 = vmatpush1.xpose.msra.mxu0 0.0
    %3395 = vmatprep.subr.mxu0 0.0
    %3396 = vmatpush1.xpose.msra.mxu0 0.0
    %3397 = vmatprep.subr.mxu0 0.0
    %3398 = vmatpush1.xpose.msra.mxu0 0.0
    %3399 = vmatprep.subr.mxu0 0.0
    %3400 = vmatpush1.xpose.msra.mxu0 0.0
    %3401 = vmatprep.subr.mxu0 0.0
    %3402 = vmatpush1.xpose.msra.mxu0 0.0
    %3403 = vmatprep.subr.mxu0 0.0
    %3404 = vmatpush1.xpose.msra.mxu0 0.0
    %3405 = vmatprep.subr.mxu0 0.0
    %3406 = vmatpush1.xpose.msra.mxu0 0.0
    %3407 = vmatprep.subr.mxu0 0.0
    %3408 = vmatpush1.xpose.msra.mxu0 0.0
    %3409 = vmatprep.subr.mxu0 0.0
    %3410 = vmatpush1.xpose.msra.mxu0 0.0
    %3411 = vmatprep.subr.mxu0 0.0
    %3412 = vmatpush1.xpose.msra.mxu0 0.0
    %3413 = vmatprep.subr.mxu0 0.0
    %3414 = vmatpush1.xpose.msra.mxu0 0.0
    %3415 = vmatprep.subr.mxu0 0.0
    %3416 = vmatpush1.xpose.msra.mxu0 0.0
    %3417 = vmatprep.subr.mxu0 0.0
    %3418 = vmatpush1.xpose.msra.mxu0 0.0
    %3419 = vmatprep.subr.mxu0 0.0
    %3420 = vmatpush1.xpose.msra.mxu0 0.0
    %3421 = vmatprep.subr.mxu0 0.0
    %3422 = vmatpush1.xpose.msra.mxu0 0.0
    %3423 = vmatprep.subr.mxu0 0.0
    %3424 = vmatpush1.xpose.msra.mxu0 0.0
    %3425 = vmatprep.subr.mxu0 0.0
    %3426 = vmatpush1.xpose.msra.mxu0 0.0
    %3427 = vmatprep.subr.mxu0 0.0
    %3428 = vmatpush1.xpose.msra.mxu0 0.0
    %3429 = vmatprep.subr.mxu0 0.0
    %3430 = vmatpush1.xpose.msra.mxu0 0.0
    %3431 = vmatprep.subr.mxu0 0.0
    %3432 = vmatpush1.xpose.msra.mxu0 0.0
    %3433 = vmatprep.subr.mxu0 0.0
    %3434 = vmatpush1.xpose.msra.mxu0 0.0
    %3435 = vmatprep.subr.mxu0 0.0
    %3436 = vmatpush1.xpose.msra.mxu0 0.0
    %3437 = vmatprep.subr.mxu0 0.0
    %3438 = vmatpush1.xpose.msra.mxu0 0.0
    %3439 = vmatprep.subr.mxu0 0.0
    %3440 = vmatpush1.xpose.msra.mxu0 0.0
    %3441 = vmatprep.subr.mxu0 0.0
    %3442 = vmatpush1.xpose.msra.mxu0 0.0
    %3443 = vmatprep.subr.mxu0 0.0
    %3444 = vmatpush1.xpose.msra.mxu0 0.0
    %3445 = vmatprep.subr.mxu0 0.0
    %3446 = vmatpush1.xpose.msra.mxu0 0.0
    %3447 = vmatprep.subr.mxu0 0.0
    %3448 = vmatpush1.xpose.msra.mxu0 0.0
    %3449 = vmatprep.subr.mxu0 0.0
    %3450 = vmatpush1.xpose.msra.mxu0 0.0
    %3451 = vmatprep.subr.mxu0 0.0
    %3452 = vmatpush1.xpose.msra.mxu0 0.0
    %v3453 = vand.u32 %v82, 4294901760
    %v3454 = vsub.f32 %v82, %v3453
    %v3455 = vand.u32 %v3454, 4294901760
    %v3456 = vsub.f32 %v3454, %v3455
    %v3457 = vand.u32 %v3456, 4294901760
    %3458 = vmatprep.mubr.f32.mxu0 %v3457
    %v3459 = vand.u32 %v81, 4294901760
    %v3460 = vsub.f32 %v81, %v3459
    %v3461 = vand.u32 %v3460, 4294901760
    %v3462 = vsub.f32 %v3460, %v3461
    %v3463 = vand.u32 %v3462, 4294901760
    %3464 = vmatmul.mubr.f32.gmra.mrb[0].mxu0 %v3463
    %v3465 = vpop.f32.mrb[0].mxu0
    %v3466 = vadd.f32 %v3384, %v3465
    %v3467 = vpop.f32.mrb[0].mxu0
    %3468 = vdwg.mxu0
    %v3469 = vand.u32 %v82, 4294901760
    %v3470 = vsub.f32 %v82, %v3469
    %v3471 = vand.u32 %v3470, 4294901760
    %v3472 = vsub.f32 %v3470, %v3471
    %v3473 = vand.u32 %v3472, 4294901760
    %3474 = vmatprep.subr.mxu0 %v3473
    %v3475 = vand.u32 %v81, 4294901760
    %v3476 = vsub.f32 %v81, %v3475
    %v3477 = vand.u32 %v3476, 4294901760
    %v3478 = vsub.f32 %v3476, %v3477
    %v3479 = vand.u32 %v3478, 4294901760
    %3480 = vmatpush1.xpose.msra.mxu0 %v3479
    %3481 = vmatprep.subr.mxu0 0.0
    %3482 = vmatpush1.xpose.msra.mxu0 0.0
    %3483 = vmatprep.subr.mxu0 0.0
    %3484 = vmatpush1.xpose.msra.mxu0 0.0
    %3485 = vmatprep.subr.mxu0 0.0
    %3486 = vmatpush1.xpose.msra.mxu0 0.0
    %3487 = vmatprep.subr.mxu0 0.0
    %3488 = vmatpush1.xpose.msra.mxu0 0.0
    %3489 = vmatprep.subr.mxu0 0.0
    %3490 = vmatpush1.xpose.msra.mxu0 0.0
    %3491 = vmatprep.subr.mxu0 0.0
    %3492 = vmatpush1.xpose.msra.mxu0 0.0
    %3493 = vmatprep.subr.mxu0 0.0
    %3494 = vmatpush1.xpose.msra.mxu0 0.0
    %3495 = vmatprep.subr.mxu0 0.0
    %3496 = vmatpush1.xpose.msra.mxu0 0.0
    %3497 = vmatprep.subr.mxu0 0.0
    %3498 = vmatpush1.xpose.msra.mxu0 0.0
    %3499 = vmatprep.subr.mxu0 0.0
    %3500 = vmatpush1.xpose.msra.mxu0 0.0
    %3501 = vmatprep.subr.mxu0 0.0
    %3502 = vmatpush1.xpose.msra.mxu0 0.0
    %3503 = vmatprep.subr.mxu0 0.0
    %3504 = vmatpush1.xpose.msra.mxu0 0.0
    %3505 = vmatprep.subr.mxu0 0.0
    %3506 = vmatpush1.xpose.msra.mxu0 0.0
    %3507 = vmatprep.subr.mxu0 0.0
    %3508 = vmatpush1.xpose.msra.mxu0 0.0
    %3509 = vmatprep.subr.mxu0 0.0
    %3510 = vmatpush1.xpose.msra.mxu0 0.0
    %3511 = vmatprep.subr.mxu0 0.0
    %3512 = vmatpush1.xpose.msra.mxu0 0.0
    %3513 = vmatprep.subr.mxu0 0.0
    %3514 = vmatpush1.xpose.msra.mxu0 0.0
    %3515 = vmatprep.subr.mxu0 0.0
    %3516 = vmatpush1.xpose.msra.mxu0 0.0
    %3517 = vmatprep.subr.mxu0 0.0
    %3518 = vmatpush1.xpose.msra.mxu0 0.0
    %3519 = vmatprep.subr.mxu0 0.0
    %3520 = vmatpush1.xpose.msra.mxu0 0.0
    %3521 = vmatprep.subr.mxu0 0.0
    %3522 = vmatpush1.xpose.msra.mxu0 0.0
    %3523 = vmatprep.subr.mxu0 0.0
    %3524 = vmatpush1.xpose.msra.mxu0 0.0
    %3525 = vmatprep.subr.mxu0 0.0
    %3526 = vmatpush1.xpose.msra.mxu0 0.0
    %3527 = vmatprep.subr.mxu0 0.0
    %3528 = vmatpush1.xpose.msra.mxu0 0.0
    %3529 = vmatprep.subr.mxu0 0.0
    %3530 = vmatpush1.xpose.msra.mxu0 0.0
    %3531 = vmatprep.subr.mxu0 0.0
    %3532 = vmatpush1.xpose.msra.mxu0 0.0
    %3533 = vmatprep.subr.mxu0 0.0
    %3534 = vmatpush1.xpose.msra.mxu0 0.0
    %3535 = vmatprep.subr.mxu0 0.0
    %3536 = vmatpush1.xpose.msra.mxu0 0.0
    %3537 = vmatprep.subr.mxu0 0.0
    %3538 = vmatpush1.xpose.msra.mxu0 0.0
    %3539 = vmatprep.subr.mxu0 0.0
    %3540 = vmatpush1.xpose.msra.mxu0 0.0
    %3541 = vmatprep.subr.mxu0 0.0
    %3542 = vmatpush1.xpose.msra.mxu0 0.0
    %v3543 = vand.u32 %v82, 4294901760
    %3544 = vmatprep.mubr.f32.mxu0 %v3543
    %v3545 = vand.u32 %v81, 4294901760
    %3546 = vmatmul.mubr.f32.gmra.mrb[0].mxu0 %v3545
    %v3547 = vpop.f32.mrb[0].mxu0
    %v3548 = vadd.f32 %v3466, %v3547
    %v3549 = vpop.f32.mrb[0].mxu0
    %3550 = vdwg.mxu0
    %v3551 = vand.u32 %v82, 4294901760
    %v3552 = vsub.f32 %v82, %v3551
    %3553 = vmatprep.subr.mxu0 %v3552
    %v3554 = vand.u32 %v81, 4294901760
    %v3555 = vsub.f32 %v81, %v3554
    %3556 = vmatpush1.xpose.msra.mxu0 %v3555
    %3557 = vmatprep.subr.mxu0 0.0
    %3558 = vmatpush1.xpose.msra.mxu0 0.0
    %3559 = vmatprep.subr.mxu0 0.0
    %3560 = vmatpush1.xpose.msra.mxu0 0.0
    %3561 = vmatprep.subr.mxu0 0.0
    %3562 = vmatpush1.xpose.msra.mxu0 0.0
    %3563 = vmatprep.subr.mxu0 0.0
    %3564 = vmatpush1.xpose.msra.mxu0 0.0
    %3565 = vmatprep.subr.mxu0 0.0
    %3566 = vmatpush1.xpose.msra.mxu0 0.0
    %3567 = vmatprep.subr.mxu0 0.0
    %3568 = vmatpush1.xpose.msra.mxu0 0.0
    %3569 = vmatprep.subr.mxu0 0.0
    %3570 = vmatpush1.xpose.msra.mxu0 0.0
    %3571 = vmatprep.subr.mxu0 0.0
    %3572 = vmatpush1.xpose.msra.mxu0 0.0
    %3573 = vmatprep.subr.mxu0 0.0
    %3574 = vmatpush1.xpose.msra.mxu0 0.0
    %3575 = vmatprep.subr.mxu0 0.0
    %3576 = vmatpush1.xpose.msra.mxu0 0.0
    %3577 = vmatprep.subr.mxu0 0.0
    %3578 = vmatpush1.xpose.msra.mxu0 0.0
    %3579 = vmatprep.subr.mxu0 0.0
    %3580 = vmatpush1.xpose.msra.mxu0 0.0
    %3581 = vmatprep.subr.mxu0 0.0
    %3582 = vmatpush1.xpose.msra.mxu0 0.0
    %3583 = vmatprep.subr.mxu0 0.0
    %3584 = vmatpush1.xpose.msra.mxu0 0.0
    %3585 = vmatprep.subr.mxu0 0.0
    %3586 = vmatpush1.xpose.msra.mxu0 0.0
    %3587 = vmatprep.subr.mxu0 0.0
    %3588 = vmatpush1.xpose.msra.mxu0 0.0
    %3589 = vmatprep.subr.mxu0 0.0
    %3590 = vmatpush1.xpose.msra.mxu0 0.0
    %3591 = vmatprep.subr.mxu0 0.0
    %3592 = vmatpush1.xpose.msra.mxu0 0.0
    %3593 = vmatprep.subr.mxu0 0.0
    %3594 = vmatpush1.xpose.msra.mxu0 0.0
    %3595 = vmatprep.subr.mxu0 0.0
    %3596 = vmatpush1.xpose.msra.mxu0 0.0
    %3597 = vmatprep.subr.mxu0 0.0
    %3598 = vmatpush1.xpose.msra.mxu0 0.0
    %3599 = vmatprep.subr.mxu0 0.0
    %3600 = vmatpush1.xpose.msra.mxu0 0.0
    %3601 = vmatprep.subr.mxu0 0.0
    %3602 = vmatpush1.xpose.msra.mxu0 0.0
    %3603 = vmatprep.subr.mxu0 0.0
    %3604 = vmatpush1.xpose.msra.mxu0 0.0
    %3605 = vmatprep.subr.mxu0 0.0
    %3606 = vmatpush1.xpose.msra.mxu0 0.0
    %3607 = vmatprep.subr.mxu0 0.0
    %3608 = vmatpush1.xpose.msra.mxu0 0.0
    %3609 = vmatprep.subr.mxu0 0.0
    %3610 = vmatpush1.xpose.msra.mxu0 0.0
    %3611 = vmatprep.subr.mxu0 0.0
    %3612 = vmatpush1.xpose.msra.mxu0 0.0
    %3613 = vmatprep.subr.mxu0 0.0
    %3614 = vmatpush1.xpose.msra.mxu0 0.0
    %3615 = vmatprep.subr.mxu0 0.0
    %3616 = vmatpush1.xpose.msra.mxu0 0.0
    %3617 = vmatprep.subr.mxu0 0.0
    %3618 = vmatpush1.xpose.msra.mxu0 0.0
    %v3619 = vand.u32 %v82, 4294901760
    %v3620 = vsub.f32 %v82, %v3619
    %3621 = vmatprep.mubr.f32.mxu0 %v3620
    %v3622 = vand.u32 %v81, 4294901760
    %v3623 = vsub.f32 %v81, %v3622
    %3624 = vmatmul.mubr.f32.gmra.mrb[0].mxu0 %v3623
    %v3625 = vpop.f32.mrb[0].mxu0
    %v3626 = vadd.f32 %v3548, %v3625
    %v3627 = vpop.f32.mrb[0].mxu0
    %3628 = vdwg.mxu0
    %v3629 = vand.u32 %v82, 4294901760
    %3630 = vmatprep.subr.mxu0 %v3629
    %v3631 = vand.u32 %v81, 4294901760
    %3632 = vmatpush1.xpose.msra.mxu0 %v3631
    %3633 = vmatprep.subr.mxu0 0.0
    %3634 = vmatpush1.xpose.msra.mxu0 0.0
    %3635 = vmatprep.subr.mxu0 0.0
    %3636 = vmatpush1.xpose.msra.mxu0 0.0
    %3637 = vmatprep.subr.mxu0 0.0
    %3638 = vmatpush1.xpose.msra.mxu0 0.0
    %3639 = vmatprep.subr.mxu0 0.0
    %3640 = vmatpush1.xpose.msra.mxu0 0.0
    %3641 = vmatprep.subr.mxu0 0.0
    %3642 = vmatpush1.xpose.msra.mxu0 0.0
    %3643 = vmatprep.subr.mxu0 0.0
    %3644 = vmatpush1.xpose.msra.mxu0 0.0
    %3645 = vmatprep.subr.mxu0 0.0
    %3646 = vmatpush1.xpose.msra.mxu0 0.0
    %3647 = vmatprep.subr.mxu0 0.0
    %3648 = vmatpush1.xpose.msra.mxu0 0.0
    %3649 = vmatprep.subr.mxu0 0.0
    %3650 = vmatpush1.xpose.msra.mxu0 0.0
    %3651 = vmatprep.subr.mxu0 0.0
    %3652 = vmatpush1.xpose.msra.mxu0 0.0
    %3653 = vmatprep.subr.mxu0 0.0
    %3654 = vmatpush1.xpose.msra.mxu0 0.0
    %3655 = vmatprep.subr.mxu0 0.0
    %3656 = vmatpush1.xpose.msra.mxu0 0.0
    %3657 = vmatprep.subr.mxu0 0.0
    %3658 = vmatpush1.xpose.msra.mxu0 0.0
    %3659 = vmatprep.subr.mxu0 0.0
    %3660 = vmatpush1.xpose.msra.mxu0 0.0
    %3661 = vmatprep.subr.mxu0 0.0
    %3662 = vmatpush1.xpose.msra.mxu0 0.0
    %3663 = vmatprep.subr.mxu0 0.0
    %3664 = vmatpush1.xpose.msra.mxu0 0.0
    %3665 = vmatprep.subr.mxu0 0.0
    %3666 = vmatpush1.xpose.msra.mxu0 0.0
    %3667 = vmatprep.subr.mxu0 0.0
    %3668 = vmatpush1.xpose.msra.mxu0 0.0
    %3669 = vmatprep.subr.mxu0 0.0
    %3670 = vmatpush1.xpose.msra.mxu0 0.0
    %3671 = vmatprep.subr.mxu0 0.0
    %3672 = vmatpush1.xpose.msra.mxu0 0.0
    %3673 = vmatprep.subr.mxu0 0.0
    %3674 = vmatpush1.xpose.msra.mxu0 0.0
    %3675 = vmatprep.subr.mxu0 0.0
    %3676 = vmatpush1.xpose.msra.mxu0 0.0
    %3677 = vmatprep.subr.mxu0 0.0
    %3678 = vmatpush1.xpose.msra.mxu0 0.0
    %3679 = vmatprep.subr.mxu0 0.0
    %3680 = vmatpush1.xpose.msra.mxu0 0.0
    %3681 = vmatprep.subr.mxu0 0.0
    %3682 = vmatpush1.xpose.msra.mxu0 0.0
    %3683 = vmatprep.subr.mxu0 0.0
    %3684 = vmatpush1.xpose.msra.mxu0 0.0
    %3685 = vmatprep.subr.mxu0 0.0
    %3686 = vmatpush1.xpose.msra.mxu0 0.0
    %3687 = vmatprep.subr.mxu0 0.0
    %3688 = vmatpush1.xpose.msra.mxu0 0.0
    %3689 = vmatprep.subr.mxu0 0.0
    %3690 = vmatpush1.xpose.msra.mxu0 0.0
    %3691 = vmatprep.subr.mxu0 0.0
    %3692 = vmatpush1.xpose.msra.mxu0 0.0
    %3693 = vmatprep.subr.mxu0 0.0
    %3694 = vmatpush1.xpose.msra.mxu0 0.0
    %v3695 = vand.u32 %v82, 4294901760
    %v3696 = vsub.f32 %v82, %v3695
    %v3697 = vand.u32 %v3696, 4294901760
    %3698 = vmatprep.mubr.f32.mxu0 %v3697
    %v3699 = vand.u32 %v81, 4294901760
    %v3700 = vsub.f32 %v81, %v3699
    %v3701 = vand.u32 %v3700, 4294901760
    %3702 = vmatmul.mubr.f32.gmra.mrb[0].mxu0 %v3701
    %v3703 = vpop.f32.mrb[0].mxu0
    %v3704 = vadd.f32 %v3626, %v3703
    %v3705 = vpop.f32.mrb[0].mxu0
    %3706 = vdwg.mxu0
    %v3707 = vand.u32 %v82, 4294901760
    %v3708 = vsub.f32 %v82, %v3707
    %v3709 = vand.u32 %v3708, 4294901760
    %3710 = vmatprep.subr.mxu0 %v3709
    %v3711 = vand.u32 %v81, 4294901760
    %v3712 = vsub.f32 %v81, %v3711
    %v3713 = vand.u32 %v3712, 4294901760
    %3714 = vmatpush1.xpose.msra.mxu0 %v3713
    %3715 = vmatprep.subr.mxu0 0.0
    %3716 = vmatpush1.xpose.msra.mxu0 0.0
    %3717 = vmatprep.subr.mxu0 0.0
    %3718 = vmatpush1.xpose.msra.mxu0 0.0
    %3719 = vmatprep.subr.mxu0 0.0
    %3720 = vmatpush1.xpose.msra.mxu0 0.0
    %3721 = vmatprep.subr.mxu0 0.0
    %3722 = vmatpush1.xpose.msra.mxu0 0.0
    %3723 = vmatprep.subr.mxu0 0.0
    %3724 = vmatpush1.xpose.msra.mxu0 0.0
    %3725 = vmatprep.subr.mxu0 0.0
    %3726 = vmatpush1.xpose.msra.mxu0 0.0
    %3727 = vmatprep.subr.mxu0 0.0
    %3728 = vmatpush1.xpose.msra.mxu0 0.0
    %3729 = vmatprep.subr.mxu0 0.0
    %3730 = vmatpush1.xpose.msra.mxu0 0.0
    %3731 = vmatprep.subr.mxu0 0.0
    %3732 = vmatpush1.xpose.msra.mxu0 0.0
    %3733 = vmatprep.subr.mxu0 0.0
    %3734 = vmatpush1.xpose.msra.mxu0 0.0
    %3735 = vmatprep.subr.mxu0 0.0
    %3736 = vmatpush1.xpose.msra.mxu0 0.0
    %3737 = vmatprep.subr.mxu0 0.0
    %3738 = vmatpush1.xpose.msra.mxu0 0.0
    %3739 = vmatprep.subr.mxu0 0.0
    %3740 = vmatpush1.xpose.msra.mxu0 0.0
    %3741 = vmatprep.subr.mxu0 0.0
    %3742 = vmatpush1.xpose.msra.mxu0 0.0
    %3743 = vmatprep.subr.mxu0 0.0
    %3744 = vmatpush1.xpose.msra.mxu0 0.0
    %3745 = vmatprep.subr.mxu0 0.0
    %3746 = vmatpush1.xpose.msra.mxu0 0.0
    %3747 = vmatprep.subr.mxu0 0.0
    %3748 = vmatpush1.xpose.msra.mxu0 0.0
    %3749 = vmatprep.subr.mxu0 0.0
    %3750 = vmatpush1.xpose.msra.mxu0 0.0
    %3751 = vmatprep.subr.mxu0 0.0
    %3752 = vmatpush1.xpose.msra.mxu0 0.0
    %3753 = vmatprep.subr.mxu0 0.0
    %3754 = vmatpush1.xpose.msra.mxu0 0.0
    %3755 = vmatprep.subr.mxu0 0.0
    %3756 = vmatpush1.xpose.msra.mxu0 0.0
    %3757 = vmatprep.subr.mxu0 0.0
    %3758 = vmatpush1.xpose.msra.mxu0 0.0
    %3759 = vmatprep.subr.mxu0 0.0
    %3760 = vmatpush1.xpose.msra.mxu0 0.0
    %3761 = vmatprep.subr.mxu0 0.0
    %3762 = vmatpush1.xpose.msra.mxu0 0.0
    %3763 = vmatprep.subr.mxu0 0.0
    %3764 = vmatpush1.xpose.msra.mxu0 0.0
    %3765 = vmatprep.subr.mxu0 0.0
    %3766 = vmatpush1.xpose.msra.mxu0 0.0
    %3767 = vmatprep.subr.mxu0 0.0
    %3768 = vmatpush1.xpose.msra.mxu0 0.0
    %3769 = vmatprep.subr.mxu0 0.0
    %3770 = vmatpush1.xpose.msra.mxu0 0.0
    %3771 = vmatprep.subr.mxu0 0.0
    %3772 = vmatpush1.xpose.msra.mxu0 0.0
    %3773 = vmatprep.subr.mxu0 0.0
    %3774 = vmatpush1.xpose.msra.mxu0 0.0
    %3775 = vmatprep.subr.mxu0 0.0
    %3776 = vmatpush1.xpose.msra.mxu0 0.0
    %v3777 = vand.u32 %v82, 4294901760
    %3778 = vmatprep.mubr.f32.mxu0 %v3777
    %v3779 = vand.u32 %v81, 4294901760
    %3780 = vmatmul.mubr.f32.gmra.mrb[0].mxu0 %v3779
    %v3781 = vpop.f32.mrb[0].mxu0
    %v3782 = vadd.f32 %v3704, %v3781
    %v3783 = vpop.f32.mrb[0].mxu0
    %3784 = vdwg.mxu0
    %v3785 = vand.u32 %v82, 4294901760
    %3786 = vmatprep.subr.mxu0 %v3785
    %v3787 = vand.u32 %v81, 4294901760
    %3788 = vmatpush1.xpose.msra.mxu0 %v3787
    %3789 = vmatprep.subr.mxu0 0.0
    %3790 = vmatpush1.xpose.msra.mxu0 0.0
    %3791 = vmatprep.subr.mxu0 0.0
    %3792 = vmatpush1.xpose.msra.mxu0 0.0
    %3793 = vmatprep.subr.mxu0 0.0
    %3794 = vmatpush1.xpose.msra.mxu0 0.0
    %3795 = vmatprep.subr.mxu0 0.0
    %3796 = vmatpush1.xpose.msra.mxu0 0.0
    %3797 = vmatprep.subr.mxu0 0.0
    %3798 = vmatpush1.xpose.msra.mxu0 0.0
    %3799 = vmatprep.subr.mxu0 0.0
    %3800 = vmatpush1.xpose.msra.mxu0 0.0
    %3801 = vmatprep.subr.mxu0 0.0
    %3802 = vmatpush1.xpose.msra.mxu0 0.0
    %3803 = vmatprep.subr.mxu0 0.0
    %3804 = vmatpush1.xpose.msra.mxu0 0.0
    %3805 = vmatprep.subr.mxu0 0.0
    %3806 = vmatpush1.xpose.msra.mxu0 0.0
    %3807 = vmatprep.subr.mxu0 0.0
    %3808 = vmatpush1.xpose.msra.mxu0 0.0
    %3809 = vmatprep.subr.mxu0 0.0
    %3810 = vmatpush1.xpose.msra.mxu0 0.0
    %3811 = vmatprep.subr.mxu0 0.0
    %3812 = vmatpush1.xpose.msra.mxu0 0.0
    %3813 = vmatprep.subr.mxu0 0.0
    %3814 = vmatpush1.xpose.msra.mxu0 0.0
    %3815 = vmatprep.subr.mxu0 0.0
    %3816 = vmatpush1.xpose.msra.mxu0 0.0
    %3817 = vmatprep.subr.mxu0 0.0
    %3818 = vmatpush1.xpose.msra.mxu0 0.0
    %3819 = vmatprep.subr.mxu0 0.0
    %3820 = vmatpush1.xpose.msra.mxu0 0.0
    %3821 = vmatprep.subr.mxu0 0.0
    %3822 = vmatpush1.xpose.msra.mxu0 0.0
    %3823 = vmatprep.subr.mxu0 0.0
    %3824 = vmatpush1.xpose.msra.mxu0 0.0
    %3825 = vmatprep.subr.mxu0 0.0
    %3826 = vmatpush1.xpose.msra.mxu0 0.0
    %3827 = vmatprep.subr.mxu0 0.0
    %3828 = vmatpush1.xpose.msra.mxu0 0.0
    %3829 = vmatprep.subr.mxu0 0.0
    %3830 = vmatpush1.xpose.msra.mxu0 0.0
    %3831 = vmatprep.subr.mxu0 0.0
    %3832 = vmatpush1.xpose.msra.mxu0 0.0
    %3833 = vmatprep.subr.mxu0 0.0
    %3834 = vmatpush1.xpose.msra.mxu0 0.0
    %3835 = vmatprep.subr.mxu0 0.0
    %3836 = vmatpush1.xpose.msra.mxu0 0.0
    %3837 = vmatprep.subr.mxu0 0.0
    %3838 = vmatpush1.xpose.msra.mxu0 0.0
    %3839 = vmatprep.subr.mxu0 0.0
    %3840 = vmatpush1.xpose.msra.mxu0 0.0
    %3841 = vmatprep.subr.mxu0 0.0
    %3842 = vmatpush1.xpose.msra.mxu0 0.0
    %3843 = vmatprep.subr.mxu0 0.0
    %3844 = vmatpush1.xpose.msra.mxu0 0.0
    %3845 = vmatprep.subr.mxu0 0.0
    %3846 = vmatpush1.xpose.msra.mxu0 0.0
    %3847 = vmatprep.subr.mxu0 0.0
    %3848 = vmatpush1.xpose.msra.mxu0 0.0
    %3849 = vmatprep.subr.mxu0 0.0
    %3850 = vmatpush1.xpose.msra.mxu0 0.0
    %v3851 = vand.u32 %v82, 4294901760
    %3852 = vmatprep.mubr.f32.mxu0 %v3851
    %v3853 = vand.u32 %v81, 4294901760
    %3854 = vmatmul.mubr.f32.gmra.mrb[0].mxu0 %v3853
    %v3855 = vpop.f32.mrb[0].mxu0
    %v3856 = vadd.f32 %v3782, %v3855
    %v3857 = vpop.f32.mrb[0].mxu0
    %3858 = vdwg.mxu0
    %v3859 = vadd.f32 %v66, %v3856
    %vm3860 = vcmask 64512
    %3861 = vst.msk [vmem:[#allocation7] sm:$0xff] %vm3860, %v3859
    %v3862 = vld [vmem:[#allocation8] sm:$0xff]
    %v3863 = vld [vmem:[#allocation5] sm:$0xff]
    %v3864 = vld [vmem:[#allocation5 + $0x8] sm:$0xff]
    %v3865 = vld [vmem:[#allocation5 + $0x10] sm:$0xff]
    %v3866 = vld [vmem:[#allocation5 + $0x18] sm:$0xff]
    %v3867 = vld [vmem:[#allocation5 + $0x20] sm:$0xff]
    %v3868 = vld [vmem:[#allocation5 + $0x28] sm:$0xff]
    %v3869 = vld [vmem:[#allocation5 + $0x30] sm:$0xff]
    %v3870 = vld [vmem:[#allocation5 + $0x38] sm:$0xff]
    %v3871 = vld [vmem:[#allocation5 + $0x40] sm:$0xff]
    %v3872 = vld [vmem:[#allocation5 + $0x48] sm:$0xff]
    %v3873 = vld [vmem:[#allocation5 + $0x50] sm:$0xff]
    %v3874 = vld [vmem:[#allocation5 + $0x58] sm:$0xff]
    %v3875 = vld [vmem:[#allocation5 + $0x60] sm:$0xff]
    %v3876 = vld [vmem:[#allocation5 + $0x68] sm:$0xff]
    %v3877 = vld [vmem:[#allocation5 + $0x70] sm:$0xff]
    %v3878 = vld [vmem:[#allocation5 + $0x78] sm:$0xff]
    %v3879 = vand.u32 %v3864, 4294901760
    %3880 = vmatprep.subr.mxu0 %v3879
    %v3881 = vand.u32 %v3863, 4294901760
    %3882 = vmatpush1.xpose.msra.mxu0 %v3881
    %3883 = vmatprep.subr.mxu0 0.0
    %3884 = vmatpush1.xpose.msra.mxu0 0.0
    %3885 = vmatprep.subr.mxu0 0.0
    %3886 = vmatpush1.xpose.msra.mxu0 0.0
    %3887 = vmatprep.subr.mxu0 0.0
    %3888 = vmatpush1.xpose.msra.mxu0 0.0
    %3889 = vmatprep.subr.mxu0 0.0
    %3890 = vmatpush1.xpose.msra.mxu0 0.0
    %3891 = vmatprep.subr.mxu0 0.0
    %3892 = vmatpush1.xpose.msra.mxu0 0.0
    %3893 = vmatprep.subr.mxu0 0.0
    %3894 = vmatpush1.xpose.msra.mxu0 0.0
    %3895 = vmatprep.subr.mxu0 0.0
    %3896 = vmatpush1.xpose.msra.mxu0 0.0
    %3897 = vmatprep.subr.mxu0 0.0
    %3898 = vmatpush1.xpose.msra.mxu0 0.0
    %3899 = vmatprep.subr.mxu0 0.0
    %3900 = vmatpush1.xpose.msra.mxu0 0.0
    %3901 = vmatprep.subr.mxu0 0.0
    %3902 = vmatpush1.xpose.msra.mxu0 0.0
    %3903 = vmatprep.subr.mxu0 0.0
    %3904 = vmatpush1.xpose.msra.mxu0 0.0
    %3905 = vmatprep.subr.mxu0 0.0
    %3906 = vmatpush1.xpose.msra.mxu0 0.0
    %3907 = vmatprep.subr.mxu0 0.0
    %3908 = vmatpush1.xpose.msra.mxu0 0.0
    %3909 = vmatprep.subr.mxu0 0.0
    %3910 = vmatpush1.xpose.msra.mxu0 0.0
    %3911 = vmatprep.subr.mxu0 0.0
    %3912 = vmatpush1.xpose.msra.mxu0 0.0
    %3913 = vmatprep.subr.mxu0 0.0
    %3914 = vmatpush1.xpose.msra.mxu0 0.0
    %3915 = vmatprep.subr.mxu0 0.0
    %3916 = vmatpush1.xpose.msra.mxu0 0.0
    %3917 = vmatprep.subr.mxu0 0.0
    %3918 = vmatpush1.xpose.msra.mxu0 0.0
    %3919 = vmatprep.subr.mxu0 0.0
    %3920 = vmatpush1.xpose.msra.mxu0 0.0
    %3921 = vmatprep.subr.mxu0 0.0
    %3922 = vmatpush1.xpose.msra.mxu0 0.0
    %3923 = vmatprep.subr.mxu0 0.0
    %3924 = vmatpush1.xpose.msra.mxu0 0.0
    %3925 = vmatprep.subr.mxu0 0.0
    %3926 = vmatpush1.xpose.msra.mxu0 0.0
    %3927 = vmatprep.subr.mxu0 0.0
    %3928 = vmatpush1.xpose.msra.mxu0 0.0
    %3929 = vmatprep.subr.mxu0 0.0
    %3930 = vmatpush1.xpose.msra.mxu0 0.0
    %3931 = vmatprep.subr.mxu0 0.0
    %3932 = vmatpush1.xpose.msra.mxu0 0.0
    %3933 = vmatprep.subr.mxu0 0.0
    %3934 = vmatpush1.xpose.msra.mxu0 0.0
    %3935 = vmatprep.subr.mxu0 0.0
    %3936 = vmatpush1.xpose.msra.mxu0 0.0
    %3937 = vmatprep.subr.mxu0 0.0
    %3938 = vmatpush1.xpose.msra.mxu0 0.0
    %3939 = vmatprep.subr.mxu0 0.0
    %3940 = vmatpush1.xpose.msra.mxu0 0.0
    %3941 = vmatprep.subr.mxu0 0.0
    %3942 = vmatpush1.xpose.msra.mxu0 0.0
    %3943 = vmatprep.subr.mxu0 0.0
    %3944 = vmatpush1.xpose.msra.mxu0 0.0
    %v3945 = vand.u32 %v3864, 4294901760
    %v3946 = vsub.f32 %v3864, %v3945
    %v3947 = vand.u32 %v3946, 4294901760
    %v3948 = vsub.f32 %v3946, %v3947
    %v3949 = vand.u32 %v3948, 4294901760
    %3950 = vmatprep.mubr.f32.mxu0 %v3949
    %v3951 = vand.u32 %v3863, 4294901760
    %v3952 = vsub.f32 %v3863, %v3951
    %v3953 = vand.u32 %v3952, 4294901760
    %v3954 = vsub.f32 %v3952, %v3953
    %v3955 = vand.u32 %v3954, 4294901760
    %3956 = vmatmul.mubr.f32.gmra.mrb[0].mxu0 %v3955
    %v3957 = vpop.f32.mrb[0].mxu0
    %v3958 = vadd.f32 0.0, %v3957
    %v3959 = vpop.f32.mrb[0].mxu0
    %3960 = vdwg.mxu0
    %v3961 = vand.u32 %v3864, 4294901760
    %v3962 = vsub.f32 %v3864, %v3961
    %v3963 = vand.u32 %v3962, 4294901760
    %v3964 = vsub.f32 %v3962, %v3963
    %v3965 = vand.u32 %v3964, 4294901760
    %3966 = vmatprep.subr.mxu0 %v3965
    %v3967 = vand.u32 %v3863, 4294901760
    %v3968 = vsub.f32 %v3863, %v3967
    %v3969 = vand.u32 %v3968, 4294901760
    %v3970 = vsub.f32 %v3968, %v3969
    %v3971 = vand.u32 %v3970, 4294901760
    %3972 = vmatpush1.xpose.msra.mxu0 %v3971
    %3973 = vmatprep.subr.mxu0 0.0
    %3974 = vmatpush1.xpose.msra.mxu0 0.0
    %3975 = vmatprep.subr.mxu0 0.0
    %3976 = vmatpush1.xpose.msra.mxu0 0.0
    %3977 = vmatprep.subr.mxu0 0.0
    %3978 = vmatpush1.xpose.msra.mxu0 0.0
    %3979 = vmatprep.subr.mxu0 0.0
    %3980 = vmatpush1.xpose.msra.mxu0 0.0
    %3981 = vmatprep.subr.mxu0 0.0
    %3982 = vmatpush1.xpose.msra.mxu0 0.0
    %3983 = vmatprep.subr.mxu0 0.0
    %3984 = vmatpush1.xpose.msra.mxu0 0.0
    %3985 = vmatprep.subr.mxu0 0.0
    %3986 = vmatpush1.xpose.msra.mxu0 0.0
    %3987 = vmatprep.subr.mxu0 0.0
    %3988 = vmatpush1.xpose.msra.mxu0 0.0
    %3989 = vmatprep.subr.mxu0 0.0
    %3990 = vmatpush1.xpose.msra.mxu0 0.0
    %3991 = vmatprep.subr.mxu0 0.0
    %3992 = vmatpush1.xpose.msra.mxu0 0.0
    %3993 = vmatprep.subr.mxu0 0.0
    %3994 = vmatpush1.xpose.msra.mxu0 0.0
    %3995 = vmatprep.subr.mxu0 0.0
    %3996 = vmatpush1.xpose.msra.mxu0 0.0
    %3997 = vmatprep.subr.mxu0 0.0
    %3998 = vmatpush1.xpose.msra.mxu0 0.0
    %3999 = vmatprep.subr.mxu0 0.0
    %4000 = vmatpush1.xpose.msra.mxu0 0.0
    %4001 = vmatprep.subr.mxu0 0.0
    %4002 = vmatpush1.xpose.msra.mxu0 0.0
    %4003 = vmatprep.subr.mxu0 0.0
    %4004 = vmatpush1.xpose.msra.mxu0 0.0
    %4005 = vmatprep.subr.mxu0 0.0
    %4006 = vmatpush1.xpose.msra.mxu0 0.0
    %4007 = vmatprep.subr.mxu0 0.0
    %4008 = vmatpush1.xpose.msra.mxu0 0.0
    %4009 = vmatprep.subr.mxu0 0.0
    %4010 = vmatpush1.xpose.msra.mxu0 0.0
    %4011 = vmatprep.subr.mxu0 0.0
    %4012 = vmatpush1.xpose.msra.mxu0 0.0
    %4013 = vmatprep.subr.mxu0 0.0
    %4014 = vmatpush1.xpose.msra.mxu0 0.0
    %4015 = vmatprep.subr.mxu0 0.0
    %4016 = vmatpush1.xpose.msra.mxu0 0.0
    %4017 = vmatprep.subr.mxu0 0.0
    %4018 = vmatpush1.xpose.msra.mxu0 0.0
    %4019 = vmatprep.subr.mxu0 0.0
    %4020 = vmatpush1.xpose.msra.mxu0 0.0
    %4021 = vmatprep.subr.mxu0 0.0
    %4022 = vmatpush1.xpose.msra.mxu0 0.0
    %4023 = vmatprep.subr.mxu0 0.0
    %4024 = vmatpush1.xpose.msra.mxu0 0.0
    %4025 = vmatprep.subr.mxu0 0.0
    %4026 = vmatpush1.xpose.msra.mxu0 0.0
    %4027 = vmatprep.subr.mxu0 0.0
    %4028 = vmatpush1.xpose.msra.mxu0 0.0
    %4029 = vmatprep.subr.mxu0 0.0
    %4030 = vmatpush1.xpose.msra.mxu0 0.0
    %4031 = vmatprep.subr.mxu0 0.0
    %4032 = vmatpush1.xpose.msra.mxu0 0.0
    %4033 = vmatprep.subr.mxu0 0.0
    %4034 = vmatpush1.xpose.msra.mxu0 0.0
    %v4035 = vand.u32 %v3864, 4294901760
    %4036 = vmatprep.mubr.f32.mxu0 %v4035
    %v4037 = vand.u32 %v3863, 4294901760
    %4038 = vmatmul.mubr.f32.gmra.mrb[0].mxu0 %v4037
    %v4039 = vpop.f32.mrb[0].mxu0
    %v4040 = vadd.f32 %v3958, %v4039
    %v4041 = vpop.f32.mrb[0].mxu0
    %4042 = vdwg.mxu0
    %v4043 = vand.u32 %v3864, 4294901760
    %v4044 = vsub.f32 %v3864, %v4043
    %4045 = vmatprep.subr.mxu0 %v4044
    %v4046 = vand.u32 %v3863, 4294901760
    %v4047 = vsub.f32 %v3863, %v4046
    %4048 = vmatpush1.xpose.msra.mxu0 %v4047
    %4049 = vmatprep.subr.mxu0 0.0
    %4050 = vmatpush1.xpose.msra.mxu0 0.0
    %4051 = vmatprep.subr.mxu0 0.0
    %4052 = vmatpush1.xpose.msra.mxu0 0.0
    %4053 = vmatprep.subr.mxu0 0.0
    %4054 = vmatpush1.xpose.msra.mxu0 0.0
    %4055 = vmatprep.subr.mxu0 0.0
    %4056 = vmatpush1.xpose.msra.mxu0 0.0
    %4057 = vmatprep.subr.mxu0 0.0
    %4058 = vmatpush1.xpose.msra.mxu0 0.0
    %4059 = vmatprep.subr.mxu0 0.0
    %4060 = vmatpush1.xpose.msra.mxu0 0.0
    %4061 = vmatprep.subr.mxu0 0.0
    %4062 = vmatpush1.xpose.msra.mxu0 0.0
    %4063 = vmatprep.subr.mxu0 0.0
    %4064 = vmatpush1.xpose.msra.mxu0 0.0
    %4065 = vmatprep.subr.mxu0 0.0
    %4066 = vmatpush1.xpose.msra.mxu0 0.0
    %4067 = vmatprep.subr.mxu0 0.0
    %4068 = vmatpush1.xpose.msra.mxu0 0.0
    %4069 = vmatprep.subr.mxu0 0.0
    %4070 = vmatpush1.xpose.msra.mxu0 0.0
    %4071 = vmatprep.subr.mxu0 0.0
    %4072 = vmatpush1.xpose.msra.mxu0 0.0
    %4073 = vmatprep.subr.mxu0 0.0
    %4074 = vmatpush1.xpose.msra.mxu0 0.0
    %4075 = vmatprep.subr.mxu0 0.0
    %4076 = vmatpush1.xpose.msra.mxu0 0.0
    %4077 = vmatprep.subr.mxu0 0.0
    %4078 = vmatpush1.xpose.msra.mxu0 0.0
    %4079 = vmatprep.subr.mxu0 0.0
    %4080 = vmatpush1.xpose.msra.mxu0 0.0
    %4081 = vmatprep.subr.mxu0 0.0
    %4082 = vmatpush1.xpose.msra.mxu0 0.0
    %4083 = vmatprep.subr.mxu0 0.0
    %4084 = vmatpush1.xpose.msra.mxu0 0.0
    %4085 = vmatprep.subr.mxu0 0.0
    %4086 = vmatpush1.xpose.msra.mxu0 0.0
    %4087 = vmatprep.subr.mxu0 0.0
    %4088 = vmatpush1.xpose.msra.mxu0 0.0
    %4089 = vmatprep.subr.mxu0 0.0
    %4090 = vmatpush1.xpose.msra.mxu0 0.0
    %4091 = vmatprep.subr.mxu0 0.0
    %4092 = vmatpush1.xpose.msra.mxu0 0.0
    %4093 = vmatprep.subr.mxu0 0.0
    %4094 = vmatpush1.xpose.msra.mxu0 0.0
    %4095 = vmatprep.subr.mxu0 0.0
    %4096 = vmatpush1.xpose.msra.mxu0 0.0
    %4097 = vmatprep.subr.mxu0 0.0
    %4098 = vmatpush1.xpose.msra.mxu0 0.0
    %4099 = vmatprep.subr.mxu0 0.0
    %4100 = vmatpush1.xpose.msra.mxu0 0.0
    %4101 = vmatprep.subr.mxu0 0.0
    %4102 = vmatpush1.xpose.msra.mxu0 0.0
    %4103 = vmatprep.subr.mxu0 0.0
    %4104 = vmatpush1.xpose.msra.mxu0 0.0
    %4105 = vmatprep.subr.mxu0 0.0
    %4106 = vmatpush1.xpose.msra.mxu0 0.0
    %4107 = vmatprep.subr.mxu0 0.0
    %4108 = vmatpush1.xpose.msra.mxu0 0.0
    %4109 = vmatprep.subr.mxu0 0.0
    %4110 = vmatpush1.xpose.msra.mxu0 0.0
    %v4111 = vand.u32 %v3864, 4294901760
    %v4112 = vsub.f32 %v3864, %v4111
    %4113 = vmatprep.mubr.f32.mxu0 %v4112
    %v4114 = vand.u32 %v3863, 4294901760
    %v4115 = vsub.f32 %v3863, %v4114
    %4116 = vmatmul.mubr.f32.gmra.mrb[0].mxu0 %v4115
    %v4117 = vpop.f32.mrb[0].mxu0
    %v4118 = vadd.f32 %v4040, %v4117
    %v4119 = vpop.f32.mrb[0].mxu0
    %4120 = vdwg.mxu0
    %v4121 = vand.u32 %v3864, 4294901760
    %4122 = vmatprep.subr.mxu0 %v4121
    %v4123 = vand.u32 %v3863, 4294901760
    %4124 = vmatpush1.xpose.msra.mxu0 %v4123
    %4125 = vmatprep.subr.mxu0 0.0
    %4126 = vmatpush1.xpose.msra.mxu0 0.0
    %4127 = vmatprep.subr.mxu0 0.0
    %4128 = vmatpush1.xpose.msra.mxu0 0.0
    %4129 = vmatprep.subr.mxu0 0.0
    %4130 = vmatpush1.xpose.msra.mxu0 0.0
    %4131 = vmatprep.subr.mxu0 0.0
    %4132 = vmatpush1.xpose.msra.mxu0 0.0
    %4133 = vmatprep.subr.mxu0 0.0
    %4134 = vmatpush1.xpose.msra.mxu0 0.0
    %4135 = vmatprep.subr.mxu0 0.0
    %4136 = vmatpush1.xpose.msra.mxu0 0.0
    %4137 = vmatprep.subr.mxu0 0.0
    %4138 = vmatpush1.xpose.msra.mxu0 0.0
    %4139 = vmatprep.subr.mxu0 0.0
    %4140 = vmatpush1.xpose.msra.mxu0 0.0
    %4141 = vmatprep.subr.mxu0 0.0
    %4142 = vmatpush1.xpose.msra.mxu0 0.0
    %4143 = vmatprep.subr.mxu0 0.0
    %4144 = vmatpush1.xpose.msra.mxu0 0.0
    %4145 = vmatprep.subr.mxu0 0.0
    %4146 = vmatpush1.xpose.msra.mxu0 0.0
    %4147 = vmatprep.subr.mxu0 0.0
    %4148 = vmatpush1.xpose.msra.mxu0 0.0
    %4149 = vmatprep.subr.mxu0 0.0
    %4150 = vmatpush1.xpose.msra.mxu0 0.0
    %4151 = vmatprep.subr.mxu0 0.0
    %4152 = vmatpush1.xpose.msra.mxu0 0.0
    %4153 = vmatprep.subr.mxu0 0.0
    %4154 = vmatpush1.xpose.msra.mxu0 0.0
    %4155 = vmatprep.subr.mxu0 0.0
    %4156 = vmatpush1.xpose.msra.mxu0 0.0
    %4157 = vmatprep.subr.mxu0 0.0
    %4158 = vmatpush1.xpose.msra.mxu0 0.0
    %4159 = vmatprep.subr.mxu0 0.0
    %4160 = vmatpush1.xpose.msra.mxu0 0.0
    %4161 = vmatprep.subr.mxu0 0.0
    %4162 = vmatpush1.xpose.msra.mxu0 0.0
    %4163 = vmatprep.subr.mxu0 0.0
    %4164 = vmatpush1.xpose.msra.mxu0 0.0
    %4165 = vmatprep.subr.mxu0 0.0
    %4166 = vmatpush1.xpose.msra.mxu0 0.0
    %4167 = vmatprep.subr.mxu0 0.0
    %4168 = vmatpush1.xpose.msra.mxu0 0.0
    %4169 = vmatprep.subr.mxu0 0.0
    %4170 = vmatpush1.xpose.msra.mxu0 0.0
    %4171 = vmatprep.subr.mxu0 0.0
    %4172 = vmatpush1.xpose.msra.mxu0 0.0
    %4173 = vmatprep.subr.mxu0 0.0
    %4174 = vmatpush1.xpose.msra.mxu0 0.0
    %4175 = vmatprep.subr.mxu0 0.0
    %4176 = vmatpush1.xpose.msra.mxu0 0.0
    %4177 = vmatprep.subr.mxu0 0.0
    %4178 = vmatpush1.xpose.msra.mxu0 0.0
    %4179 = vmatprep.subr.mxu0 0.0
    %4180 = vmatpush1.xpose.msra.mxu0 0.0
    %4181 = vmatprep.subr.mxu0 0.0
    %4182 = vmatpush1.xpose.msra.mxu0 0.0
    %4183 = vmatprep.subr.mxu0 0.0
    %4184 = vmatpush1.xpose.msra.mxu0 0.0
    %4185 = vmatprep.subr.mxu0 0.0
    %4186 = vmatpush1.xpose.msra.mxu0 0.0
    %v4187 = vand.u32 %v3864, 4294901760
    %v4188 = vsub.f32 %v3864, %v4187
    %v4189 = vand.u32 %v4188, 4294901760
    %4190 = vmatprep.mubr.f32.mxu0 %v4189
    %v4191 = vand.u32 %v3863, 4294901760
    %v4192 = vsub.f32 %v3863, %v4191
    %v4193 = vand.u32 %v4192, 4294901760
    %4194 = vmatmul.mubr.f32.gmra.mrb[0].mxu0 %v4193
    %v4195 = vpop.f32.mrb[0].mxu0
    %v4196 = vadd.f32 %v4118, %v4195
    %v4197 = vpop.f32.mrb[0].mxu0
    %4198 = vdwg.mxu0
    %v4199 = vand.u32 %v3864, 4294901760
    %v4200 = vsub.f32 %v3864, %v4199
    %v4201 = vand.u32 %v4200, 4294901760
    %4202 = vmatprep.subr.mxu0 %v4201
    %v4203 = vand.u32 %v3863, 4294901760
    %v4204 = vsub.f32 %v3863, %v4203
    %v4205 = vand.u32 %v4204, 4294901760
    %4206 = vmatpush1.xpose.msra.mxu0 %v4205
    %4207 = vmatprep.subr.mxu0 0.0
    %4208 = vmatpush1.xpose.msra.mxu0 0.0
    %4209 = vmatprep.subr.mxu0 0.0
    %4210 = vmatpush1.xpose.msra.mxu0 0.0
    %4211 = vmatprep.subr.mxu0 0.0
    %4212 = vmatpush1.xpose.msra.mxu0 0.0
    %4213 = vmatprep.subr.mxu0 0.0
    %4214 = vmatpush1.xpose.msra.mxu0 0.0
    %4215 = vmatprep.subr.mxu0 0.0
    %4216 = vmatpush1.xpose.msra.mxu0 0.0
    %4217 = vmatprep.subr.mxu0 0.0
    %4218 = vmatpush1.xpose.msra.mxu0 0.0
    %4219 = vmatprep.subr.mxu0 0.0
    %4220 = vmatpush1.xpose.msra.mxu0 0.0
    %4221 = vmatprep.subr.mxu0 0.0
    %4222 = vmatpush1.xpose.msra.mxu0 0.0
    %4223 = vmatprep.subr.mxu0 0.0
    %4224 = vmatpush1.xpose.msra.mxu0 0.0
    %4225 = vmatprep.subr.mxu0 0.0
    %4226 = vmatpush1.xpose.msra.mxu0 0.0
    %4227 = vmatprep.subr.mxu0 0.0
    %4228 = vmatpush1.xpose.msra.mxu0 0.0
    %4229 = vmatprep.subr.mxu0 0.0
    %4230 = vmatpush1.xpose.msra.mxu0 0.0
    %4231 = vmatprep.subr.mxu0 0.0
    %4232 = vmatpush1.xpose.msra.mxu0 0.0
    %4233 = vmatprep.subr.mxu0 0.0
    %4234 = vmatpush1.xpose.msra.mxu0 0.0
    %4235 = vmatprep.subr.mxu0 0.0
    %4236 = vmatpush1.xpose.msra.mxu0 0.0
    %4237 = vmatprep.subr.mxu0 0.0
    %4238 = vmatpush1.xpose.msra.mxu0 0.0
    %4239 = vmatprep.subr.mxu0 0.0
    %4240 = vmatpush1.xpose.msra.mxu0 0.0
    %4241 = vmatprep.subr.mxu0 0.0
    %4242 = vmatpush1.xpose.msra.mxu0 0.0
    %4243 = vmatprep.subr.mxu0 0.0
    %4244 = vmatpush1.xpose.msra.mxu0 0.0
    %4245 = vmatprep.subr.mxu0 0.0
    %4246 = vmatpush1.xpose.msra.mxu0 0.0
    %4247 = vmatprep.subr.mxu0 0.0
    %4248 = vmatpush1.xpose.msra.mxu0 0.0
    %4249 = vmatprep.subr.mxu0 0.0
    %4250 = vmatpush1.xpose.msra.mxu0 0.0
    %4251 = vmatprep.subr.mxu0 0.0
    %4252 = vmatpush1.xpose.msra.mxu0 0.0
    %4253 = vmatprep.subr.mxu0 0.0
    %4254 = vmatpush1.xpose.msra.mxu0 0.0
    %4255 = vmatprep.subr.mxu0 0.0
    %4256 = vmatpush1.xpose.msra.mxu0 0.0
    %4257 = vmatprep.subr.mxu0 0.0
    %4258 = vmatpush1.xpose.msra.mxu0 0.0
    %4259 = vmatprep.subr.mxu0 0.0
    %4260 = vmatpush1.xpose.msra.mxu0 0.0
    %4261 = vmatprep.subr.mxu0 0.0
    %4262 = vmatpush1.xpose.msra.mxu0 0.0
    %4263 = vmatprep.subr.mxu0 0.0
    %4264 = vmatpush1.xpose.msra.mxu0 0.0
    %4265 = vmatprep.subr.mxu0 0.0
    %4266 = vmatpush1.xpose.msra.mxu0 0.0
    %4267 = vmatprep.subr.mxu0 0.0
    %4268 = vmatpush1.xpose.msra.mxu0 0.0
    %v4269 = vand.u32 %v3864, 4294901760
    %4270 = vmatprep.mubr.f32.mxu0 %v4269
    %v4271 = vand.u32 %v3863, 4294901760
    %4272 = vmatmul.mubr.f32.gmra.mrb[0].mxu0 %v4271
    %v4273 = vpop.f32.mrb[0].mxu0
    %v4274 = vadd.f32 %v4196, %v4273
    %v4275 = vpop.f32.mrb[0].mxu0
    %4276 = vdwg.mxu0
    %v4277 = vand.u32 %v3864, 4294901760
    %4278 = vmatprep.subr.mxu0 %v4277
    %v4279 = vand.u32 %v3863, 4294901760
    %4280 = vmatpush1.xpose.msra.mxu0 %v4279
    %4281 = vmatprep.subr.mxu0 0.0
    %4282 = vmatpush1.xpose.msra.mxu0 0.0
    %4283 = vmatprep.subr.mxu0 0.0
    %4284 = vmatpush1.xpose.msra.mxu0 0.0
    %4285 = vmatprep.subr.mxu0 0.0
    %4286 = vmatpush1.xpose.msra.mxu0 0.0
    %4287 = vmatprep.subr.mxu0 0.0
    %4288 = vmatpush1.xpose.msra.mxu0 0.0
    %4289 = vmatprep.subr.mxu0 0.0
    %4290 = vmatpush1.xpose.msra.mxu0 0.0
    %4291 = vmatprep.subr.mxu0 0.0
    %4292 = vmatpush1.xpose.msra.mxu0 0.0
    %4293 = vmatprep.subr.mxu0 0.0
    %4294 = vmatpush1.xpose.msra.mxu0 0.0
    %4295 = vmatprep.subr.mxu0 0.0
    %4296 = vmatpush1.xpose.msra.mxu0 0.0
    %4297 = vmatprep.subr.mxu0 0.0
    %4298 = vmatpush1.xpose.msra.mxu0 0.0
    %4299 = vmatprep.subr.mxu0 0.0
    %4300 = vmatpush1.xpose.msra.mxu0 0.0
    %4301 = vmatprep.subr.mxu0 0.0
    %4302 = vmatpush1.xpose.msra.mxu0 0.0
    %4303 = vmatprep.subr.mxu0 0.0
    %4304 = vmatpush1.xpose.msra.mxu0 0.0
    %4305 = vmatprep.subr.mxu0 0.0
    %4306 = vmatpush1.xpose.msra.mxu0 0.0
    %4307 = vmatprep.subr.mxu0 0.0
    %4308 = vmatpush1.xpose.msra.mxu0 0.0
    %4309 = vmatprep.subr.mxu0 0.0
    %4310 = vmatpush1.xpose.msra.mxu0 0.0
    %4311 = vmatprep.subr.mxu0 0.0
    %4312 = vmatpush1.xpose.msra.mxu0 0.0
    %4313 = vmatprep.subr.mxu0 0.0
    %4314 = vmatpush1.xpose.msra.mxu0 0.0
    %4315 = vmatprep.subr.mxu0 0.0
    %4316 = vmatpush1.xpose.msra.mxu0 0.0
    %4317 = vmatprep.subr.mxu0 0.0
    %4318 = vmatpush1.xpose.msra.mxu0 0.0
    %4319 = vmatprep.subr.mxu0 0.0
    %4320 = vmatpush1.xpose.msra.mxu0 0.0
    %4321 = vmatprep.subr.mxu0 0.0
    %4322 = vmatpush1.xpose.msra.mxu0 0.0
    %4323 = vmatprep.subr.mxu0 0.0
    %4324 = vmatpush1.xpose.msra.mxu0 0.0
    %4325 = vmatprep.subr.mxu0 0.0
    %4326 = vmatpush1.xpose.msra.mxu0 0.0
    %4327 = vmatprep.subr.mxu0 0.0
    %4328 = vmatpush1.xpose.msra.mxu0 0.0
    %4329 = vmatprep.subr.mxu0 0.0
    %4330 = vmatpush1.xpose.msra.mxu0 0.0
    %4331 = vmatprep.subr.mxu0 0.0
    %4332 = vmatpush1.xpose.msra.mxu0 0.0
    %4333 = vmatprep.subr.mxu0 0.0
    %4334 = vmatpush1.xpose.msra.mxu0 0.0
    %4335 = vmatprep.subr.mxu0 0.0
    %4336 = vmatpush1.xpose.msra.mxu0 0.0
    %4337 = vmatprep.subr.mxu0 0.0
    %4338 = vmatpush1.xpose.msra.mxu0 0.0
    %4339 = vmatprep.subr.mxu0 0.0
    %4340 = vmatpush1.xpose.msra.mxu0 0.0
    %4341 = vmatprep.subr.mxu0 0.0
    %4342 = vmatpush1.xpose.msra.mxu0 0.0
    %v4343 = vand.u32 %v3864, 4294901760
    %4344 = vmatprep.mubr.f32.mxu0 %v4343
    %v4345 = vand.u32 %v3863, 4294901760
    %4346 = vmatmul.mubr.f32.gmra.mrb[0].mxu0 %v4345
    %v4347 = vpop.f32.mrb[0].mxu0
    %v4348 = vadd.f32 %v4274, %v4347
    %v4349 = vpop.f32.mrb[0].mxu0
    %4350 = vdwg.mxu0
    %v4351 = vand.u32 %v3866, 4294901760
    %4352 = vmatprep.subr.mxu0 %v4351
    %v4353 = vand.u32 %v3865, 4294901760
    %4354 = vmatpush1.xpose.msra.mxu0 %v4353
    %4355 = vmatprep.subr.mxu0 0.0
    %4356 = vmatpush1.xpose.msra.mxu0 0.0
    %4357 = vmatprep.subr.mxu0 0.0
    %4358 = vmatpush1.xpose.msra.mxu0 0.0
    %4359 = vmatprep.subr.mxu0 0.0
    %4360 = vmatpush1.xpose.msra.mxu0 0.0
    %4361 = vmatprep.subr.mxu0 0.0
    %4362 = vmatpush1.xpose.msra.mxu0 0.0
    %4363 = vmatprep.subr.mxu0 0.0
    %4364 = vmatpush1.xpose.msra.mxu0 0.0
    %4365 = vmatprep.subr.mxu0 0.0
    %4366 = vmatpush1.xpose.msra.mxu0 0.0
    %4367 = vmatprep.subr.mxu0 0.0
    %4368 = vmatpush1.xpose.msra.mxu0 0.0
    %4369 = vmatprep.subr.mxu0 0.0
    %4370 = vmatpush1.xpose.msra.mxu0 0.0
    %4371 = vmatprep.subr.mxu0 0.0
    %4372 = vmatpush1.xpose.msra.mxu0 0.0
    %4373 = vmatprep.subr.mxu0 0.0
    %4374 = vmatpush1.xpose.msra.mxu0 0.0
    %4375 = vmatprep.subr.mxu0 0.0
    %4376 = vmatpush1.xpose.msra.mxu0 0.0
    %4377 = vmatprep.subr.mxu0 0.0
    %4378 = vmatpush1.xpose.msra.mxu0 0.0
    %4379 = vmatprep.subr.mxu0 0.0
    %4380 = vmatpush1.xpose.msra.mxu0 0.0
    %4381 = vmatprep.subr.mxu0 0.0
    %4382 = vmatpush1.xpose.msra.mxu0 0.0
    %4383 = vmatprep.subr.mxu0 0.0
    %4384 = vmatpush1.xpose.msra.mxu0 0.0
    %4385 = vmatprep.subr.mxu0 0.0
    %4386 = vmatpush1.xpose.msra.mxu0 0.0
    %4387 = vmatprep.subr.mxu0 0.0
    %4388 = vmatpush1.xpose.msra.mxu0 0.0
    %4389 = vmatprep.subr.mxu0 0.0
    %4390 = vmatpush1.xpose.msra.mxu0 0.0
    %4391 = vmatprep.subr.mxu0 0.0
    %4392 = vmatpush1.xpose.msra.mxu0 0.0
    %4393 = vmatprep.subr.mxu0 0.0
    %4394 = vmatpush1.xpose.msra.mxu0 0.0
    %4395 = vmatprep.subr.mxu0 0.0
    %4396 = vmatpush1.xpose.msra.mxu0 0.0
    %4397 = vmatprep.subr.mxu0 0.0
    %4398 = vmatpush1.xpose.msra.mxu0 0.0
    %4399 = vmatprep.subr.mxu0 0.0
    %4400 = vmatpush1.xpose.msra.mxu0 0.0
    %4401 = vmatprep.subr.mxu0 0.0
    %4402 = vmatpush1.xpose.msra.mxu0 0.0
    %4403 = vmatprep.subr.mxu0 0.0
    %4404 = vmatpush1.xpose.msra.mxu0 0.0
    %4405 = vmatprep.subr.mxu0 0.0
    %4406 = vmatpush1.xpose.msra.mxu0 0.0
    %4407 = vmatprep.subr.mxu0 0.0
    %4408 = vmatpush1.xpose.msra.mxu0 0.0
    %4409 = vmatprep.subr.mxu0 0.0
    %4410 = vmatpush1.xpose.msra.mxu0 0.0
    %4411 = vmatprep.subr.mxu0 0.0
    %4412 = vmatpush1.xpose.msra.mxu0 0.0
    %4413 = vmatprep.subr.mxu0 0.0
    %4414 = vmatpush1.xpose.msra.mxu0 0.0
    %4415 = vmatprep.subr.mxu0 0.0
    %4416 = vmatpush1.xpose.msra.mxu0 0.0
    %v4417 = vand.u32 %v3866, 4294901760
    %v4418 = vsub.f32 %v3866, %v4417
    %v4419 = vand.u32 %v4418, 4294901760
    %v4420 = vsub.f32 %v4418, %v4419
    %v4421 = vand.u32 %v4420, 4294901760
    %4422 = vmatprep.mubr.f32.mxu0 %v4421
    %v4423 = vand.u32 %v3865, 4294901760
    %v4424 = vsub.f32 %v3865, %v4423
    %v4425 = vand.u32 %v4424, 4294901760
    %v4426 = vsub.f32 %v4424, %v4425
    %v4427 = vand.u32 %v4426, 4294901760
    %4428 = vmatmul.mubr.f32.gmra.mrb[0].mxu0 %v4427
    %v4429 = vpop.f32.mrb[0].mxu0
    %v4430 = vadd.f32 %v4348, %v4429
    %v4431 = vpop.f32.mrb[0].mxu0
    %4432 = vdwg.mxu0
    %v4433 = vand.u32 %v3866, 4294901760
    %v4434 = vsub.f32 %v3866, %v4433
    %v4435 = vand.u32 %v4434, 4294901760
    %v4436 = vsub.f32 %v4434, %v4435
    %v4437 = vand.u32 %v4436, 4294901760
    %4438 = vmatprep.subr.mxu0 %v4437
    %v4439 = vand.u32 %v3865, 4294901760
    %v4440 = vsub.f32 %v3865, %v4439
    %v4441 = vand.u32 %v4440, 4294901760
    %v4442 = vsub.f32 %v4440, %v4441
    %v4443 = vand.u32 %v4442, 4294901760
    %4444 = vmatpush1.xpose.msra.mxu0 %v4443
    %4445 = vmatprep.subr.mxu0 0.0
    %4446 = vmatpush1.xpose.msra.mxu0 0.0
    %4447 = vmatprep.subr.mxu0 0.0
    %4448 = vmatpush1.xpose.msra.mxu0 0.0
    %4449 = vmatprep.subr.mxu0 0.0
    %4450 = vmatpush1.xpose.msra.mxu0 0.0
    %4451 = vmatprep.subr.mxu0 0.0
    %4452 = vmatpush1.xpose.msra.mxu0 0.0
    %4453 = vmatprep.subr.mxu0 0.0
    %4454 = vmatpush1.xpose.msra.mxu0 0.0
    %4455 = vmatprep.subr.mxu0 0.0
    %4456 = vmatpush1.xpose.msra.mxu0 0.0
    %4457 = vmatprep.subr.mxu0 0.0
    %4458 = vmatpush1.xpose.msra.mxu0 0.0
    %4459 = vmatprep.subr.mxu0 0.0
    %4460 = vmatpush1.xpose.msra.mxu0 0.0
    %4461 = vmatprep.subr.mxu0 0.0
    %4462 = vmatpush1.xpose.msra.mxu0 0.0
    %4463 = vmatprep.subr.mxu0 0.0
    %4464 = vmatpush1.xpose.msra.mxu0 0.0
    %4465 = vmatprep.subr.mxu0 0.0
    %4466 = vmatpush1.xpose.msra.mxu0 0.0
    %4467 = vmatprep.subr.mxu0 0.0
    %4468 = vmatpush1.xpose.msra.mxu0 0.0
    %4469 = vmatprep.subr.mxu0 0.0
    %4470 = vmatpush1.xpose.msra.mxu0 0.0
    %4471 = vmatprep.subr.mxu0 0.0
    %4472 = vmatpush1.xpose.msra.mxu0 0.0
    %4473 = vmatprep.subr.mxu0 0.0
    %4474 = vmatpush1.xpose.msra.mxu0 0.0
    %4475 = vmatprep.subr.mxu0 0.0
    %4476 = vmatpush1.xpose.msra.mxu0 0.0
    %4477 = vmatprep.subr.mxu0 0.0
    %4478 = vmatpush1.xpose.msra.mxu0 0.0
    %4479 = vmatprep.subr.mxu0 0.0
    %4480 = vmatpush1.xpose.msra.mxu0 0.0
    %4481 = vmatprep.subr.mxu0 0.0
    %4482 = vmatpush1.xpose.msra.mxu0 0.0
    %4483 = vmatprep.subr.mxu0 0.0
    %4484 = vmatpush1.xpose.msra.mxu0 0.0
    %4485 = vmatprep.subr.mxu0 0.0
    %4486 = vmatpush1.xpose.msra.mxu0 0.0
    %4487 = vmatprep.subr.mxu0 0.0
    %4488 = vmatpush1.xpose.msra.mxu0 0.0
    %4489 = vmatprep.subr.mxu0 0.0
    %4490 = vmatpush1.xpose.msra.mxu0 0.0
    %4491 = vmatprep.subr.mxu0 0.0
    %4492 = vmatpush1.xpose.msra.mxu0 0.0
    %4493 = vmatprep.subr.mxu0 0.0
    %4494 = vmatpush1.xpose.msra.mxu0 0.0
    %4495 = vmatprep.subr.mxu0 0.0
    %4496 = vmatpush1.xpose.msra.mxu0 0.0
    %4497 = vmatprep.subr.mxu0 0.0
    %4498 = vmatpush1.xpose.msra.mxu0 0.0
    %4499 = vmatprep.subr.mxu0 0.0
    %4500 = vmatpush1.xpose.msra.mxu0 0.0
    %4501 = vmatprep.subr.mxu0 0.0
    %4502 = vmatpush1.xpose.msra.mxu0 0.0
    %4503 = vmatprep.subr.mxu0 0.0
    %4504 = vmatpush1.xpose.msra.mxu0 0.0
    %4505 = vmatprep.subr.mxu0 0.0
    %4506 = vmatpush1.xpose.msra.mxu0 0.0
    %v4507 = vand.u32 %v3866, 4294901760
    %4508 = vmatprep.mubr.f32.mxu0 %v4507
    %v4509 = vand.u32 %v3865, 4294901760
    %4510 = vmatmul.mubr.f32.gmra.mrb[0].mxu0 %v4509
    %v4511 = vpop.f32.mrb[0].mxu0
    %v4512 = vadd.f32 %v4430, %v4511
    %v4513 = vpop.f32.mrb[0].mxu0
    %4514 = vdwg.mxu0
    %v4515 = vand.u32 %v3866, 4294901760
    %v4516 = vsub.f32 %v3866, %v4515
    %4517 = vmatprep.subr.mxu0 %v4516
    %v4518 = vand.u32 %v3865, 4294901760
    %v4519 = vsub.f32 %v3865, %v4518
    %4520 = vmatpush1.xpose.msra.mxu0 %v4519
    %4521 = vmatprep.subr.mxu0 0.0
    %4522 = vmatpush1.xpose.msra.mxu0 0.0
    %4523 = vmatprep.subr.mxu0 0.0
    %4524 = vmatpush1.xpose.msra.mxu0 0.0
    %4525 = vmatprep.subr.mxu0 0.0
    %4526 = vmatpush1.xpose.msra.mxu0 0.0
    %4527 = vmatprep.subr.mxu0 0.0
    %4528 = vmatpush1.xpose.msra.mxu0 0.0
    %4529 = vmatprep.subr.mxu0 0.0
    %4530 = vmatpush1.xpose.msra.mxu0 0.0
    %4531 = vmatprep.subr.mxu0 0.0
    %4532 = vmatpush1.xpose.msra.mxu0 0.0
    %4533 = vmatprep.subr.mxu0 0.0
    %4534 = vmatpush1.xpose.msra.mxu0 0.0
    %4535 = vmatprep.subr.mxu0 0.0
    %4536 = vmatpush1.xpose.msra.mxu0 0.0
    %4537 = vmatprep.subr.mxu0 0.0
    %4538 = vmatpush1.xpose.msra.mxu0 0.0
    %4539 = vmatprep.subr.mxu0 0.0
    %4540 = vmatpush1.xpose.msra.mxu0 0.0
    %4541 = vmatprep.subr.mxu0 0.0
    %4542 = vmatpush1.xpose.msra.mxu0 0.0
    %4543 = vmatprep.subr.mxu0 0.0
    %4544 = vmatpush1.xpose.msra.mxu0 0.0
    %4545 = vmatprep.subr.mxu0 0.0
    %4546 = vmatpush1.xpose.msra.mxu0 0.0
    %4547 = vmatprep.subr.mxu0 0.0
    %4548 = vmatpush1.xpose.msra.mxu0 0.0
    %4549 = vmatprep.subr.mxu0 0.0
    %4550 = vmatpush1.xpose.msra.mxu0 0.0
    %4551 = vmatprep.subr.mxu0 0.0
    %4552 = vmatpush1.xpose.msra.mxu0 0.0
    %4553 = vmatprep.subr.mxu0 0.0
    %4554 = vmatpush1.xpose.msra.mxu0 0.0
    %4555 = vmatprep.subr.mxu0 0.0
    %4556 = vmatpush1.xpose.msra.mxu0 0.0
    %4557 = vmatprep.subr.mxu0 0.0
    %4558 = vmatpush1.xpose.msra.mxu0 0.0
    %4559 = vmatprep.subr.mxu0 0.0
    %4560 = vmatpush1.xpose.msra.mxu0 0.0
    %4561 = vmatprep.subr.mxu0 0.0
    %4562 = vmatpush1.xpose.msra.mxu0 0.0
    %4563 = vmatprep.subr.mxu0 0.0
    %4564 = vmatpush1.xpose.msra.mxu0 0.0
    %4565 = vmatprep.subr.mxu0 0.0
    %4566 = vmatpush1.xpose.msra.mxu0 0.0
    %4567 = vmatprep.subr.mxu0 0.0
    %4568 = vmatpush1.xpose.msra.mxu0 0.0
    %4569 = vmatprep.subr.mxu0 0.0
    %4570 = vmatpush1.xpose.msra.mxu0 0.0
    %4571 = vmatprep.subr.mxu0 0.0
    %4572 = vmatpush1.xpose.msra.mxu0 0.0
    %4573 = vmatprep.subr.mxu0 0.0
    %4574 = vmatpush1.xpose.msra.mxu0 0.0
    %4575 = vmatprep.subr.mxu0 0.0
    %4576 = vmatpush1.xpose.msra.mxu0 0.0
    %4577 = vmatprep.subr.mxu0 0.0
    %4578 = vmatpush1.xpose.msra.mxu0 0.0
    %4579 = vmatprep.subr.mxu0 0.0
    %4580 = vmatpush1.xpose.msra.mxu0 0.0
    %4581 = vmatprep.subr.mxu0 0.0
    %4582 = vmatpush1.xpose.msra.mxu0 0.0
    %v4583 = vand.u32 %v3866, 4294901760
    %v4584 = vsub.f32 %v3866, %v4583
    %4585 = vmatprep.mubr.f32.mxu0 %v4584
    %v4586 = vand.u32 %v3865, 4294901760
    %v4587 = vsub.f32 %v3865, %v4586
    %4588 = vmatmul.mubr.f32.gmra.mrb[0].mxu0 %v4587
    %v4589 = vpop.f32.mrb[0].mxu0
    %v4590 = vadd.f32 %v4512, %v4589
    %v4591 = vpop.f32.mrb[0].mxu0
    %4592 = vdwg.mxu0
    %v4593 = vand.u32 %v3866, 4294901760
    %4594 = vmatprep.subr.mxu0 %v4593
    %v4595 = vand.u32 %v3865, 4294901760
    %4596 = vmatpush1.xpose.msra.mxu0 %v4595
    %4597 = vmatprep.subr.mxu0 0.0
    %4598 = vmatpush1.xpose.msra.mxu0 0.0
    %4599 = vmatprep.subr.mxu0 0.0
    %4600 = vmatpush1.xpose.msra.mxu0 0.0
    %4601 = vmatprep.subr.mxu0 0.0
    %4602 = vmatpush1.xpose.msra.mxu0 0.0
    %4603 = vmatprep.subr.mxu0 0.0
    %4604 = vmatpush1.xpose.msra.mxu0 0.0
    %4605 = vmatprep.subr.mxu0 0.0
    %4606 = vmatpush1.xpose.msra.mxu0 0.0
    %4607 = vmatprep.subr.mxu0 0.0
    %4608 = vmatpush1.xpose.msra.mxu0 0.0
    %4609 = vmatprep.subr.mxu0 0.0
    %4610 = vmatpush1.xpose.msra.mxu0 0.0
    %4611 = vmatprep.subr.mxu0 0.0
    %4612 = vmatpush1.xpose.msra.mxu0 0.0
    %4613 = vmatprep.subr.mxu0 0.0
    %4614 = vmatpush1.xpose.msra.mxu0 0.0
    %4615 = vmatprep.subr.mxu0 0.0
    %4616 = vmatpush1.xpose.msra.mxu0 0.0
    %4617 = vmatprep.subr.mxu0 0.0
    %4618 = vmatpush1.xpose.msra.mxu0 0.0
    %4619 = vmatprep.subr.mxu0 0.0
    %4620 = vmatpush1.xpose.msra.mxu0 0.0
    %4621 = vmatprep.subr.mxu0 0.0
    %4622 = vmatpush1.xpose.msra.mxu0 0.0
    %4623 = vmatprep.subr.mxu0 0.0
    %4624 = vmatpush1.xpose.msra.mxu0 0.0
    %4625 = vmatprep.subr.mxu0 0.0
    %4626 = vmatpush1.xpose.msra.mxu0 0.0
    %4627 = vmatprep.subr.mxu0 0.0
    %4628 = vmatpush1.xpose.msra.mxu0 0.0
    %4629 = vmatprep.subr.mxu0 0.0
    %4630 = vmatpush1.xpose.msra.mxu0 0.0
    %4631 = vmatprep.subr.mxu0 0.0
    %4632 = vmatpush1.xpose.msra.mxu0 0.0
    %4633 = vmatprep.subr.mxu0 0.0
    %4634 = vmatpush1.xpose.msra.mxu0 0.0
    %4635 = vmatprep.subr.mxu0 0.0
    %4636 = vmatpush1.xpose.msra.mxu0 0.0
    %4637 = vmatprep.subr.mxu0 0.0
    %4638 = vmatpush1.xpose.msra.mxu0 0.0
    %4639 = vmatprep.subr.mxu0 0.0
    %4640 = vmatpush1.xpose.msra.mxu0 0.0
    %4641 = vmatprep.subr.mxu0 0.0
    %4642 = vmatpush1.xpose.msra.mxu0 0.0
    %4643 = vmatprep.subr.mxu0 0.0
    %4644 = vmatpush1.xpose.msra.mxu0 0.0
    %4645 = vmatprep.subr.mxu0 0.0
    %4646 = vmatpush1.xpose.msra.mxu0 0.0
    %4647 = vmatprep.subr.mxu0 0.0
    %4648 = vmatpush1.xpose.msra.mxu0 0.0
    %4649 = vmatprep.subr.mxu0 0.0
    %4650 = vmatpush1.xpose.msra.mxu0 0.0
    %4651 = vmatprep.subr.mxu0 0.0
    %4652 = vmatpush1.xpose.msra.mxu0 0.0
    %4653 = vmatprep.subr.mxu0 0.0
    %4654 = vmatpush1.xpose.msra.mxu0 0.0
    %4655 = vmatprep.subr.mxu0 0.0
    %4656 = vmatpush1.xpose.msra.mxu0 0.0
    %4657 = vmatprep.subr.mxu0 0.0
    %4658 = vmatpush1.xpose.msra.mxu0 0.0
    %v4659 = vand.u32 %v3866, 4294901760
    %v4660 = vsub.f32 %v3866, %v4659
    %v4661 = vand.u32 %v4660, 4294901760
    %4662 = vmatprep.mubr.f32.mxu0 %v4661
    %v4663 = vand.u32 %v3865, 4294901760
    %v4664 = vsub.f32 %v3865, %v4663
    %v4665 = vand.u32 %v4664, 4294901760
    %4666 = vmatmul.mubr.f32.gmra.mrb[0].mxu0 %v4665
    %v4667 = vpop.f32.mrb[0].mxu0
    %v4668 = vadd.f32 %v4590, %v4667
    %v4669 = vpop.f32.mrb[0].mxu0
    %4670 = vdwg.mxu0
    %v4671 = vand.u32 %v3866, 4294901760
    %v4672 = vsub.f32 %v3866, %v4671
    %v4673 = vand.u32 %v4672, 4294901760
    %4674 = vmatprep.subr.mxu0 %v4673
    %v4675 = vand.u32 %v3865, 4294901760
    %v4676 = vsub.f32 %v3865, %v4675
    %v4677 = vand.u32 %v4676, 4294901760
    %4678 = vmatpush1.xpose.msra.mxu0 %v4677
    %4679 = vmatprep.subr.mxu0 0.0
    %4680 = vmatpush1.xpose.msra.mxu0 0.0
    %4681 = vmatprep.subr.mxu0 0.0
    %4682 = vmatpush1.xpose.msra.mxu0 0.0
    %4683 = vmatprep.subr.mxu0 0.0
    %4684 = vmatpush1.xpose.msra.mxu0 0.0
    %4685 = vmatprep.subr.mxu0 0.0
    %4686 = vmatpush1.xpose.msra.mxu0 0.0
    %4687 = vmatprep.subr.mxu0 0.0
    %4688 = vmatpush1.xpose.msra.mxu0 0.0
    %4689 = vmatprep.subr.mxu0 0.0
    %4690 = vmatpush1.xpose.msra.mxu0 0.0
    %4691 = vmatprep.subr.mxu0 0.0
    %4692 = vmatpush1.xpose.msra.mxu0 0.0
    %4693 = vmatprep.subr.mxu0 0.0
    %4694 = vmatpush1.xpose.msra.mxu0 0.0
    %4695 = vmatprep.subr.mxu0 0.0
    %4696 = vmatpush1.xpose.msra.mxu0 0.0
    %4697 = vmatprep.subr.mxu0 0.0
    %4698 = vmatpush1.xpose.msra.mxu0 0.0
    %4699 = vmatprep.subr.mxu0 0.0
    %4700 = vmatpush1.xpose.msra.mxu0 0.0
    %4701 = vmatprep.subr.mxu0 0.0
    %4702 = vmatpush1.xpose.msra.mxu0 0.0
    %4703 = vmatprep.subr.mxu0 0.0
    %4704 = vmatpush1.xpose.msra.mxu0 0.0
    %4705 = vmatprep.subr.mxu0 0.0
    %4706 = vmatpush1.xpose.msra.mxu0 0.0
    %4707 = vmatprep.subr.mxu0 0.0
    %4708 = vmatpush1.xpose.msra.mxu0 0.0
    %4709 = vmatprep.subr.mxu0 0.0
    %4710 = vmatpush1.xpose.msra.mxu0 0.0
    %4711 = vmatprep.subr.mxu0 0.0
    %4712 = vmatpush1.xpose.msra.mxu0 0.0
    %4713 = vmatprep.subr.mxu0 0.0
    %4714 = vmatpush1.xpose.msra.mxu0 0.0
    %4715 = vmatprep.subr.mxu0 0.0
    %4716 = vmatpush1.xpose.msra.mxu0 0.0
    %4717 = vmatprep.subr.mxu0 0.0
    %4718 = vmatpush1.xpose.msra.mxu0 0.0
    %4719 = vmatprep.subr.mxu0 0.0
    %4720 = vmatpush1.xpose.msra.mxu0 0.0
    %4721 = vmatprep.subr.mxu0 0.0
    %4722 = vmatpush1.xpose.msra.mxu0 0.0
    %4723 = vmatprep.subr.mxu0 0.0
    %4724 = vmatpush1.xpose.msra.mxu0 0.0
    %4725 = vmatprep.subr.mxu0 0.0
    %4726 = vmatpush1.xpose.msra.mxu0 0.0
    %4727 = vmatprep.subr.mxu0 0.0
    %4728 = vmatpush1.xpose.msra.mxu0 0.0
    %4729 = vmatprep.subr.mxu0 0.0
    %4730 = vmatpush1.xpose.msra.mxu0 0.0
    %4731 = vmatprep.subr.mxu0 0.0
    %4732 = vmatpush1.xpose.msra.mxu0 0.0
    %4733 = vmatprep.subr.mxu0 0.0
    %4734 = vmatpush1.xpose.msra.mxu0 0.0
    %4735 = vmatprep.subr.mxu0 0.0
    %4736 = vmatpush1.xpose.msra.mxu0 0.0
    %4737 = vmatprep.subr.mxu0 0.0
    %4738 = vmatpush1.xpose.msra.mxu0 0.0
    %4739 = vmatprep.subr.mxu0 0.0
    %4740 = vmatpush1.xpose.msra.mxu0 0.0
    %v4741 = vand.u32 %v3866, 4294901760
    %4742 = vmatprep.mubr.f32.mxu0 %v4741
    %v4743 = vand.u32 %v3865, 4294901760
    %4744 = vmatmul.mubr.f32.gmra.mrb[0].mxu0 %v4743
    %v4745 = vpop.f32.mrb[0].mxu0
    %v4746 = vadd.f32 %v4668, %v4745
    %v4747 = vpop.f32.mrb[0].mxu0
    %4748 = vdwg.mxu0
    %v4749 = vand.u32 %v3866, 4294901760
    %4750 = vmatprep.subr.mxu0 %v4749
    %v4751 = vand.u32 %v3865, 4294901760
    %4752 = vmatpush1.xpose.msra.mxu0 %v4751
    %4753 = vmatprep.subr.mxu0 0.0
    %4754 = vmatpush1.xpose.msra.mxu0 0.0
    %4755 = vmatprep.subr.mxu0 0.0
    %4756 = vmatpush1.xpose.msra.mxu0 0.0
    %4757 = vmatprep.subr.mxu0 0.0
    %4758 = vmatpush1.xpose.msra.mxu0 0.0
    %4759 = vmatprep.subr.mxu0 0.0
    %4760 = vmatpush1.xpose.msra.mxu0 0.0
    %4761 = vmatprep.subr.mxu0 0.0
    %4762 = vmatpush1.xpose.msra.mxu0 0.0
    %4763 = vmatprep.subr.mxu0 0.0
    %4764 = vmatpush1.xpose.msra.mxu0 0.0
    %4765 = vmatprep.subr.mxu0 0.0
    %4766 = vmatpush1.xpose.msra.mxu0 0.0
    %4767 = vmatprep.subr.mxu0 0.0
    %4768 = vmatpush1.xpose.msra.mxu0 0.0
    %4769 = vmatprep.subr.mxu0 0.0
    %4770 = vmatpush1.xpose.msra.mxu0 0.0
    %4771 = vmatprep.subr.mxu0 0.0
    %4772 = vmatpush1.xpose.msra.mxu0 0.0
    %4773 = vmatprep.subr.mxu0 0.0
    %4774 = vmatpush1.xpose.msra.mxu0 0.0
    %4775 = vmatprep.subr.mxu0 0.0
    %4776 = vmatpush1.xpose.msra.mxu0 0.0
    %4777 = vmatprep.subr.mxu0 0.0
    %4778 = vmatpush1.xpose.msra.mxu0 0.0
    %4779 = vmatprep.subr.mxu0 0.0
    %4780 = vmatpush1.xpose.msra.mxu0 0.0
    %4781 = vmatprep.subr.mxu0 0.0
    %4782 = vmatpush1.xpose.msra.mxu0 0.0
    %4783 = vmatprep.subr.mxu0 0.0
    %4784 = vmatpush1.xpose.msra.mxu0 0.0
    %4785 = vmatprep.subr.mxu0 0.0
    %4786 = vmatpush1.xpose.msra.mxu0 0.0
    %4787 = vmatprep.subr.mxu0 0.0
    %4788 = vmatpush1.xpose.msra.mxu0 0.0
    %4789 = vmatprep.subr.mxu0 0.0
    %4790 = vmatpush1.xpose.msra.mxu0 0.0
    %4791 = vmatprep.subr.mxu0 0.0
    %4792 = vmatpush1.xpose.msra.mxu0 0.0
    %4793 = vmatprep.subr.mxu0 0.0
    %4794 = vmatpush1.xpose.msra.mxu0 0.0
    %4795 = vmatprep.subr.mxu0 0.0
    %4796 = vmatpush1.xpose.msra.mxu0 0.0
    %4797 = vmatprep.subr.mxu0 0.0
    %4798 = vmatpush1.xpose.msra.mxu0 0.0
    %4799 = vmatprep.subr.mxu0 0.0
    %4800 = vmatpush1.xpose.msra.mxu0 0.0
    %4801 = vmatprep.subr.mxu0 0.0
    %4802 = vmatpush1.xpose.msra.mxu0 0.0
    %4803 = vmatprep.subr.mxu0 0.0
    %4804 = vmatpush1.xpose.msra.mxu0 0.0
    %4805 = vmatprep.subr.mxu0 0.0
    %4806 = vmatpush1.xpose.msra.mxu0 0.0
    %4807 = vmatprep.subr.mxu0 0.0
    %4808 = vmatpush1.xpose.msra.mxu0 0.0
    %4809 = vmatprep.subr.mxu0 0.0
    %4810 = vmatpush1.xpose.msra.mxu0 0.0
    %4811 = vmatprep.subr.mxu0 0.0
    %4812 = vmatpush1.xpose.msra.mxu0 0.0
    %4813 = vmatprep.subr.mxu0 0.0
    %4814 = vmatpush1.xpose.msra.mxu0 0.0
    %v4815 = vand.u32 %v3866, 4294901760
    %4816 = vmatprep.mubr.f32.mxu0 %v4815
    %v4817 = vand.u32 %v3865, 4294901760
    %4818 = vmatmul.mubr.f32.gmra.mrb[0].mxu0 %v4817
    %v4819 = vpop.f32.mrb[0].mxu0
    %v4820 = vadd.f32 %v4746, %v4819
    %v4821 = vpop.f32.mrb[0].mxu0
    %4822 = vdwg.mxu0
    %v4823 = vand.u32 %v3868, 4294901760
    %4824 = vmatprep.subr.mxu0 %v4823
    %v4825 = vand.u32 %v3867, 4294901760
    %4826 = vmatpush1.xpose.msra.mxu0 %v4825
    %4827 = vmatprep.subr.mxu0 0.0
    %4828 = vmatpush1.xpose.msra.mxu0 0.0
    %4829 = vmatprep.subr.mxu0 0.0
    %4830 = vmatpush1.xpose.msra.mxu0 0.0
    %4831 = vmatprep.subr.mxu0 0.0
    %4832 = vmatpush1.xpose.msra.mxu0 0.0
    %4833 = vmatprep.subr.mxu0 0.0
    %4834 = vmatpush1.xpose.msra.mxu0 0.0
    %4835 = vmatprep.subr.mxu0 0.0
    %4836 = vmatpush1.xpose.msra.mxu0 0.0
    %4837 = vmatprep.subr.mxu0 0.0
    %4838 = vmatpush1.xpose.msra.mxu0 0.0
    %4839 = vmatprep.subr.mxu0 0.0
    %4840 = vmatpush1.xpose.msra.mxu0 0.0
    %4841 = vmatprep.subr.mxu0 0.0
    %4842 = vmatpush1.xpose.msra.mxu0 0.0
    %4843 = vmatprep.subr.mxu0 0.0
    %4844 = vmatpush1.xpose.msra.mxu0 0.0
    %4845 = vmatprep.subr.mxu0 0.0
    %4846 = vmatpush1.xpose.msra.mxu0 0.0
    %4847 = vmatprep.subr.mxu0 0.0
    %4848 = vmatpush1.xpose.msra.mxu0 0.0
    %4849 = vmatprep.subr.mxu0 0.0
    %4850 = vmatpush1.xpose.msra.mxu0 0.0
    %4851 = vmatprep.subr.mxu0 0.0
    %4852 = vmatpush1.xpose.msra.mxu0 0.0
    %4853 = vmatprep.subr.mxu0 0.0
    %4854 = vmatpush1.xpose.msra.mxu0 0.0
    %4855 = vmatprep.subr.mxu0 0.0
    %4856 = vmatpush1.xpose.msra.mxu0 0.0
    %4857 = vmatprep.subr.mxu0 0.0
    %4858 = vmatpush1.xpose.msra.mxu0 0.0
    %4859 = vmatprep.subr.mxu0 0.0
    %4860 = vmatpush1.xpose.msra.mxu0 0.0
    %4861 = vmatprep.subr.mxu0 0.0
    %4862 = vmatpush1.xpose.msra.mxu0 0.0
    %4863 = vmatprep.subr.mxu0 0.0
    %4864 = vmatpush1.xpose.msra.mxu0 0.0
    %4865 = vmatprep.subr.mxu0 0.0
    %4866 = vmatpush1.xpose.msra.mxu0 0.0
    %4867 = vmatprep.subr.mxu0 0.0
    %4868 = vmatpush1.xpose.msra.mxu0 0.0
    %4869 = vmatprep.subr.mxu0 0.0
    %4870 = vmatpush1.xpose.msra.mxu0 0.0
    %4871 = vmatprep.subr.mxu0 0.0
    %4872 = vmatpush1.xpose.msra.mxu0 0.0
    %4873 = vmatprep.subr.mxu0 0.0
    %4874 = vmatpush1.xpose.msra.mxu0 0.0
    %4875 = vmatprep.subr.mxu0 0.0
    %4876 = vmatpush1.xpose.msra.mxu0 0.0
    %4877 = vmatprep.subr.mxu0 0.0
    %4878 = vmatpush1.xpose.msra.mxu0 0.0
    %4879 = vmatprep.subr.mxu0 0.0
    %4880 = vmatpush1.xpose.msra.mxu0 0.0
    %4881 = vmatprep.subr.mxu0 0.0
    %4882 = vmatpush1.xpose.msra.mxu0 0.0
    %4883 = vmatprep.subr.mxu0 0.0
    %4884 = vmatpush1.xpose.msra.mxu0 0.0
    %4885 = vmatprep.subr.mxu0 0.0
    %4886 = vmatpush1.xpose.msra.mxu0 0.0
    %4887 = vmatprep.subr.mxu0 0.0
    %4888 = vmatpush1.xpose.msra.mxu0 0.0
    %v4889 = vand.u32 %v3868, 4294901760
    %v4890 = vsub.f32 %v3868, %v4889
    %v4891 = vand.u32 %v4890, 4294901760
    %v4892 = vsub.f32 %v4890, %v4891
    %v4893 = vand.u32 %v4892, 4294901760
    %4894 = vmatprep.mubr.f32.mxu0 %v4893
    %v4895 = vand.u32 %v3867, 4294901760
    %v4896 = vsub.f32 %v3867, %v4895
    %v4897 = vand.u32 %v4896, 4294901760
    %v4898 = vsub.f32 %v4896, %v4897
    %v4899 = vand.u32 %v4898, 4294901760
    %4900 = vmatmul.mubr.f32.gmra.mrb[0].mxu0 %v4899
    %v4901 = vpop.f32.mrb[0].mxu0
    %v4902 = vadd.f32 %v4820, %v4901
    %v4903 = vpop.f32.mrb[0].mxu0
    %4904 = vdwg.mxu0
    %v4905 = vand.u32 %v3868, 4294901760
    %v4906 = vsub.f32 %v3868, %v4905
    %v4907 = vand.u32 %v4906, 4294901760
    %v4908 = vsub.f32 %v4906, %v4907
    %v4909 = vand.u32 %v4908, 4294901760
    %4910 = vmatprep.subr.mxu0 %v4909
    %v4911 = vand.u32 %v3867, 4294901760
    %v4912 = vsub.f32 %v3867, %v4911
    %v4913 = vand.u32 %v4912, 4294901760
    %v4914 = vsub.f32 %v4912, %v4913
    %v4915 = vand.u32 %v4914, 4294901760
    %4916 = vmatpush1.xpose.msra.mxu0 %v4915
    %4917 = vmatprep.subr.mxu0 0.0
    %4918 = vmatpush1.xpose.msra.mxu0 0.0
    %4919 = vmatprep.subr.mxu0 0.0
    %4920 = vmatpush1.xpose.msra.mxu0 0.0
    %4921 = vmatprep.subr.mxu0 0.0
    %4922 = vmatpush1.xpose.msra.mxu0 0.0
    %4923 = vmatprep.subr.mxu0 0.0
    %4924 = vmatpush1.xpose.msra.mxu0 0.0
    %4925 = vmatprep.subr.mxu0 0.0
    %4926 = vmatpush1.xpose.msra.mxu0 0.0
    %4927 = vmatprep.subr.mxu0 0.0
    %4928 = vmatpush1.xpose.msra.mxu0 0.0
    %4929 = vmatprep.subr.mxu0 0.0
    %4930 = vmatpush1.xpose.msra.mxu0 0.0
    %4931 = vmatprep.subr.mxu0 0.0
    %4932 = vmatpush1.xpose.msra.mxu0 0.0
    %4933 = vmatprep.subr.mxu0 0.0
    %4934 = vmatpush1.xpose.msra.mxu0 0.0
    %4935 = vmatprep.subr.mxu0 0.0
    %4936 = vmatpush1.xpose.msra.mxu0 0.0
    %4937 = vmatprep.subr.mxu0 0.0
    %4938 = vmatpush1.xpose.msra.mxu0 0.0
    %4939 = vmatprep.subr.mxu0 0.0
    %4940 = vmatpush1.xpose.msra.mxu0 0.0
    %4941 = vmatprep.subr.mxu0 0.0
    %4942 = vmatpush1.xpose.msra.mxu0 0.0
    %4943 = vmatprep.subr.mxu0 0.0
    %4944 = vmatpush1.xpose.msra.mxu0 0.0
    %4945 = vmatprep.subr.mxu0 0.0
    %4946 = vmatpush1.xpose.msra.mxu0 0.0
    %4947 = vmatprep.subr.mxu0 0.0
    %4948 = vmatpush1.xpose.msra.mxu0 0.0
    %4949 = vmatprep.subr.mxu0 0.0
    %4950 = vmatpush1.xpose.msra.mxu0 0.0
    %4951 = vmatprep.subr.mxu0 0.0
    %4952 = vmatpush1.xpose.msra.mxu0 0.0
    %4953 = vmatprep.subr.mxu0 0.0
    %4954 = vmatpush1.xpose.msra.mxu0 0.0
    %4955 = vmatprep.subr.mxu0 0.0
    %4956 = vmatpush1.xpose.msra.mxu0 0.0
    %4957 = vmatprep.subr.mxu0 0.0
    %4958 = vmatpush1.xpose.msra.mxu0 0.0
    %4959 = vmatprep.subr.mxu0 0.0
    %4960 = vmatpush1.xpose.msra.mxu0 0.0
    %4961 = vmatprep.subr.mxu0 0.0
    %4962 = vmatpush1.xpose.msra.mxu0 0.0
    %4963 = vmatprep.subr.mxu0 0.0
    %4964 = vmatpush1.xpose.msra.mxu0 0.0
    %4965 = vmatprep.subr.mxu0 0.0
    %4966 = vmatpush1.xpose.msra.mxu0 0.0
    %4967 = vmatprep.subr.mxu0 0.0
    %4968 = vmatpush1.xpose.msra.mxu0 0.0
    %4969 = vmatprep.subr.mxu0 0.0
    %4970 = vmatpush1.xpose.msra.mxu0 0.0
    %4971 = vmatprep.subr.mxu0 0.0
    %4972 = vmatpush1.xpose.msra.mxu0 0.0
    %4973 = vmatprep.subr.mxu0 0.0
    %4974 = vmatpush1.xpose.msra.mxu0 0.0
    %4975 = vmatprep.subr.mxu0 0.0
    %4976 = vmatpush1.xpose.msra.mxu0 0.0
    %4977 = vmatprep.subr.mxu0 0.0
    %4978 = vmatpush1.xpose.msra.mxu0 0.0
    %v4979 = vand.u32 %v3868, 4294901760
    %4980 = vmatprep.mubr.f32.mxu0 %v4979
    %v4981 = vand.u32 %v3867, 4294901760
    %4982 = vmatmul.mubr.f32.gmra.mrb[0].mxu0 %v4981
    %v4983 = vpop.f32.mrb[0].mxu0
    %v4984 = vadd.f32 %v4902, %v4983
    %v4985 = vpop.f32.mrb[0].mxu0
    %4986 = vdwg.mxu0
    %v4987 = vand.u32 %v3868, 4294901760
    %v4988 = vsub.f32 %v3868, %v4987
    %4989 = vmatprep.subr.mxu0 %v4988
    %v4990 = vand.u32 %v3867, 4294901760
    %v4991 = vsub.f32 %v3867, %v4990
    %4992 = vmatpush1.xpose.msra.mxu0 %v4991
    %4993 = vmatprep.subr.mxu0 0.0
    %4994 = vmatpush1.xpose.msra.mxu0 0.0
    %4995 = vmatprep.subr.mxu0 0.0
    %4996 = vmatpush1.xpose.msra.mxu0 0.0
    %4997 = vmatprep.subr.mxu0 0.0
    %4998 = vmatpush1.xpose.msra.mxu0 0.0
    %4999 = vmatprep.subr.mxu0 0.0
    %5000 = vmatpush1.xpose.msra.mxu0 0.0
    %5001 = vmatprep.subr.mxu0 0.0
    %5002 = vmatpush1.xpose.msra.mxu0 0.0
    %5003 = vmatprep.subr.mxu0 0.0
    %5004 = vmatpush1.xpose.msra.mxu0 0.0
    %5005 = vmatprep.subr.mxu0 0.0
    %5006 = vmatpush1.xpose.msra.mxu0 0.0
    %5007 = vmatprep.subr.mxu0 0.0
    %5008 = vmatpush1.xpose.msra.mxu0 0.0
    %5009 = vmatprep.subr.mxu0 0.0
    %5010 = vmatpush1.xpose.msra.mxu0 0.0
    %5011 = vmatprep.subr.mxu0 0.0
    %5012 = vmatpush1.xpose.msra.mxu0 0.0
    %5013 = vmatprep.subr.mxu0 0.0
    %5014 = vmatpush1.xpose.msra.mxu0 0.0
    %5015 = vmatprep.subr.mxu0 0.0
    %5016 = vmatpush1.xpose.msra.mxu0 0.0
    %5017 = vmatprep.subr.mxu0 0.0
    %5018 = vmatpush1.xpose.msra.mxu0 0.0
    %5019 = vmatprep.subr.mxu0 0.0
    %5020 = vmatpush1.xpose.msra.mxu0 0.0
    %5021 = vmatprep.subr.mxu0 0.0
    %5022 = vmatpush1.xpose.msra.mxu0 0.0
    %5023 = vmatprep.subr.mxu0 0.0
    %5024 = vmatpush1.xpose.msra.mxu0 0.0
    %5025 = vmatprep.subr.mxu0 0.0
    %5026 = vmatpush1.xpose.msra.mxu0 0.0
    %5027 = vmatprep.subr.mxu0 0.0
    %5028 = vmatpush1.xpose.msra.mxu0 0.0
    %5029 = vmatprep.subr.mxu0 0.0
    %5030 = vmatpush1.xpose.msra.mxu0 0.0
    %5031 = vmatprep.subr.mxu0 0.0
    %5032 = vmatpush1.xpose.msra.mxu0 0.0
    %5033 = vmatprep.subr.mxu0 0.0
    %5034 = vmatpush1.xpose.msra.mxu0 0.0
    %5035 = vmatprep.subr.mxu0 0.0
    %5036 = vmatpush1.xpose.msra.mxu0 0.0
    %5037 = vmatprep.subr.mxu0 0.0
    %5038 = vmatpush1.xpose.msra.mxu0 0.0
    %5039 = vmatprep.subr.mxu0 0.0
    %5040 = vmatpush1.xpose.msra.mxu0 0.0
    %5041 = vmatprep.subr.mxu0 0.0
    %5042 = vmatpush1.xpose.msra.mxu0 0.0
    %5043 = vmatprep.subr.mxu0 0.0
    %5044 = vmatpush1.xpose.msra.mxu0 0.0
    %5045 = vmatprep.subr.mxu0 0.0
    %5046 = vmatpush1.xpose.msra.mxu0 0.0
    %5047 = vmatprep.subr.mxu0 0.0
    %5048 = vmatpush1.xpose.msra.mxu0 0.0
    %5049 = vmatprep.subr.mxu0 0.0
    %5050 = vmatpush1.xpose.msra.mxu0 0.0
    %5051 = vmatprep.subr.mxu0 0.0
    %5052 = vmatpush1.xpose.msra.mxu0 0.0
    %5053 = vmatprep.subr.mxu0 0.0
    %5054 = vmatpush1.xpose.msra.mxu0 0.0
    %v5055 = vand.u32 %v3868, 4294901760
    %v5056 = vsub.f32 %v3868, %v5055
    %5057 = vmatprep.mubr.f32.mxu0 %v5056
    %v5058 = vand.u32 %v3867, 4294901760
    %v5059 = vsub.f32 %v3867, %v5058
    %5060 = vmatmul.mubr.f32.gmra.mrb[0].mxu0 %v5059
    %v5061 = vpop.f32.mrb[0].mxu0
    %v5062 = vadd.f32 %v4984, %v5061
    %v5063 = vpop.f32.mrb[0].mxu0
    %5064 = vdwg.mxu0
    %v5065 = vand.u32 %v3868, 4294901760
    %5066 = vmatprep.subr.mxu0 %v5065
    %v5067 = vand.u32 %v3867, 4294901760
    %5068 = vmatpush1.xpose.msra.mxu0 %v5067
    %5069 = vmatprep.subr.mxu0 0.0
    %5070 = vmatpush1.xpose.msra.mxu0 0.0
    %5071 = vmatprep.subr.mxu0 0.0
    %5072 = vmatpush1.xpose.msra.mxu0 0.0
    %5073 = vmatprep.subr.mxu0 0.0
    %5074 = vmatpush1.xpose.msra.mxu0 0.0
    %5075 = vmatprep.subr.mxu0 0.0
    %5076 = vmatpush1.xpose.msra.mxu0 0.0
    %5077 = vmatprep.subr.mxu0 0.0
    %5078 = vmatpush1.xpose.msra.mxu0 0.0
    %5079 = vmatprep.subr.mxu0 0.0
    %5080 = vmatpush1.xpose.msra.mxu0 0.0
    %5081 = vmatprep.subr.mxu0 0.0
    %5082 = vmatpush1.xpose.msra.mxu0 0.0
    %5083 = vmatprep.subr.mxu0 0.0
    %5084 = vmatpush1.xpose.msra.mxu0 0.0
    %5085 = vmatprep.subr.mxu0 0.0
    %5086 = vmatpush1.xpose.msra.mxu0 0.0
    %5087 = vmatprep.subr.mxu0 0.0
    %5088 = vmatpush1.xpose.msra.mxu0 0.0
    %5089 = vmatprep.subr.mxu0 0.0
    %5090 = vmatpush1.xpose.msra.mxu0 0.0
    %5091 = vmatprep.subr.mxu0 0.0
    %5092 = vmatpush1.xpose.msra.mxu0 0.0
    %5093 = vmatprep.subr.mxu0 0.0
    %5094 = vmatpush1.xpose.msra.mxu0 0.0
    %5095 = vmatprep.subr.mxu0 0.0
    %5096 = vmatpush1.xpose.msra.mxu0 0.0
    %5097 = vmatprep.subr.mxu0 0.0
    %5098 = vmatpush1.xpose.msra.mxu0 0.0
    %5099 = vmatprep.subr.mxu0 0.0
    %5100 = vmatpush1.xpose.msra.mxu0 0.0
    %5101 = vmatprep.subr.mxu0 0.0
    %5102 = vmatpush1.xpose.msra.mxu0 0.0
    %5103 = vmatprep.subr.mxu0 0.0
    %5104 = vmatpush1.xpose.msra.mxu0 0.0
    %5105 = vmatprep.subr.mxu0 0.0
    %5106 = vmatpush1.xpose.msra.mxu0 0.0
    %5107 = vmatprep.subr.mxu0 0.0
    %5108 = vmatpush1.xpose.msra.mxu0 0.0
    %5109 = vmatprep.subr.mxu0 0.0
    %5110 = vmatpush1.xpose.msra.mxu0 0.0
    %5111 = vmatprep.subr.mxu0 0.0
    %5112 = vmatpush1.xpose.msra.mxu0 0.0
    %5113 = vmatprep.subr.mxu0 0.0
    %5114 = vmatpush1.xpose.msra.mxu0 0.0
    %5115 = vmatprep.subr.mxu0 0.0
    %5116 = vmatpush1.xpose.msra.mxu0 0.0
    %5117 = vmatprep.subr.mxu0 0.0
    %5118 = vmatpush1.xpose.msra.mxu0 0.0
    %5119 = vmatprep.subr.mxu0 0.0
    %5120 = vmatpush1.xpose.msra.mxu0 0.0
    %5121 = vmatprep.subr.mxu0 0.0
    %5122 = vmatpush1.xpose.msra.mxu0 0.0
    %5123 = vmatprep.subr.mxu0 0.0
    %5124 = vmatpush1.xpose.msra.mxu0 0.0
    %5125 = vmatprep.subr.mxu0 0.0
    %5126 = vmatpush1.xpose.msra.mxu0 0.0
    %5127 = vmatprep.subr.mxu0 0.0
    %5128 = vmatpush1.xpose.msra.mxu0 0.0
    %5129 = vmatprep.subr.mxu0 0.0
    %5130 = vmatpush1.xpose.msra.mxu0 0.0
    %v5131 = vand.u32 %v3868, 4294901760
    %v5132 = vsub.f32 %v3868, %v5131
    %v5133 = vand.u32 %v5132, 4294901760
    %5134 = vmatprep.mubr.f32.mxu0 %v5133
    %v5135 = vand.u32 %v3867, 4294901760
    %v5136 = vsub.f32 %v3867, %v5135
    %v5137 = vand.u32 %v5136, 4294901760
    %5138 = vmatmul.mubr.f32.gmra.mrb[0].mxu0 %v5137
    %v5139 = vpop.f32.mrb[0].mxu0
    %v5140 = vadd.f32 %v5062, %v5139
    %v5141 = vpop.f32.mrb[0].mxu0
    %5142 = vdwg.mxu0
    %v5143 = vand.u32 %v3868, 4294901760
    %v5144 = vsub.f32 %v3868, %v5143
    %v5145 = vand.u32 %v5144, 4294901760
    %5146 = vmatprep.subr.mxu0 %v5145
    %v5147 = vand.u32 %v3867, 4294901760
    %v5148 = vsub.f32 %v3867, %v5147
    %v5149 = vand.u32 %v5148, 4294901760
    %5150 = vmatpush1.xpose.msra.mxu0 %v5149
    %5151 = vmatprep.subr.mxu0 0.0
    %5152 = vmatpush1.xpose.msra.mxu0 0.0
    %5153 = vmatprep.subr.mxu0 0.0
    %5154 = vmatpush1.xpose.msra.mxu0 0.0
    %5155 = vmatprep.subr.mxu0 0.0
    %5156 = vmatpush1.xpose.msra.mxu0 0.0
    %5157 = vmatprep.subr.mxu0 0.0
    %5158 = vmatpush1.xpose.msra.mxu0 0.0
    %5159 = vmatprep.subr.mxu0 0.0
    %5160 = vmatpush1.xpose.msra.mxu0 0.0
    %5161 = vmatprep.subr.mxu0 0.0
    %5162 = vmatpush1.xpose.msra.mxu0 0.0
    %5163 = vmatprep.subr.mxu0 0.0
    %5164 = vmatpush1.xpose.msra.mxu0 0.0
    %5165 = vmatprep.subr.mxu0 0.0
    %5166 = vmatpush1.xpose.msra.mxu0 0.0
    %5167 = vmatprep.subr.mxu0 0.0
    %5168 = vmatpush1.xpose.msra.mxu0 0.0
    %5169 = vmatprep.subr.mxu0 0.0
    %5170 = vmatpush1.xpose.msra.mxu0 0.0
    %5171 = vmatprep.subr.mxu0 0.0
    %5172 = vmatpush1.xpose.msra.mxu0 0.0
    %5173 = vmatprep.subr.mxu0 0.0
    %5174 = vmatpush1.xpose.msra.mxu0 0.0
    %5175 = vmatprep.subr.mxu0 0.0
    %5176 = vmatpush1.xpose.msra.mxu0 0.0
    %5177 = vmatprep.subr.mxu0 0.0
    %5178 = vmatpush1.xpose.msra.mxu0 0.0
    %5179 = vmatprep.subr.mxu0 0.0
    %5180 = vmatpush1.xpose.msra.mxu0 0.0
    %5181 = vmatprep.subr.mxu0 0.0
    %5182 = vmatpush1.xpose.msra.mxu0 0.0
    %5183 = vmatprep.subr.mxu0 0.0
    %5184 = vmatpush1.xpose.msra.mxu0 0.0
    %5185 = vmatprep.subr.mxu0 0.0
    %5186 = vmatpush1.xpose.msra.mxu0 0.0
    %5187 = vmatprep.subr.mxu0 0.0
    %5188 = vmatpush1.xpose.msra.mxu0 0.0
    %5189 = vmatprep.subr.mxu0 0.0
    %5190 = vmatpush1.xpose.msra.mxu0 0.0
    %5191 = vmatprep.subr.mxu0 0.0
    %5192 = vmatpush1.xpose.msra.mxu0 0.0
    %5193 = vmatprep.subr.mxu0 0.0
    %5194 = vmatpush1.xpose.msra.mxu0 0.0
    %5195 = vmatprep.subr.mxu0 0.0
    %5196 = vmatpush1.xpose.msra.mxu0 0.0
    %5197 = vmatprep.subr.mxu0 0.0
    %5198 = vmatpush1.xpose.msra.mxu0 0.0
    %5199 = vmatprep.subr.mxu0 0.0
    %5200 = vmatpush1.xpose.msra.mxu0 0.0
    %5201 = vmatprep.subr.mxu0 0.0
    %5202 = vmatpush1.xpose.msra.mxu0 0.0
    %5203 = vmatprep.subr.mxu0 0.0
    %5204 = vmatpush1.xpose.msra.mxu0 0.0
    %5205 = vmatprep.subr.mxu0 0.0
    %5206 = vmatpush1.xpose.msra.mxu0 0.0
    %5207 = vmatprep.subr.mxu0 0.0
    %5208 = vmatpush1.xpose.msra.mxu0 0.0
    %5209 = vmatprep.subr.mxu0 0.0
    %5210 = vmatpush1.xpose.msra.mxu0 0.0
    %5211 = vmatprep.subr.mxu0 0.0
    %5212 = vmatpush1.xpose.msra.mxu0 0.0
    %v5213 = vand.u32 %v3868, 4294901760
    %5214 = vmatprep.mubr.f32.mxu0 %v5213
    %v5215 = vand.u32 %v3867, 4294901760
    %5216 = vmatmul.mubr.f32.gmra.mrb[0].mxu0 %v5215
    %v5217 = vpop.f32.mrb[0].mxu0
    %v5218 = vadd.f32 %v5140, %v5217
    %v5219 = vpop.f32.mrb[0].mxu0
    %5220 = vdwg.mxu0
    %v5221 = vand.u32 %v3868, 4294901760
    %5222 = vmatprep.subr.mxu0 %v5221
    %v5223 = vand.u32 %v3867, 4294901760
    %5224 = vmatpush1.xpose.msra.mxu0 %v5223
    %5225 = vmatprep.subr.mxu0 0.0
    %5226 = vmatpush1.xpose.msra.mxu0 0.0
    %5227 = vmatprep.subr.mxu0 0.0
    %5228 = vmatpush1.xpose.msra.mxu0 0.0
    %5229 = vmatprep.subr.mxu0 0.0
    %5230 = vmatpush1.xpose.msra.mxu0 0.0
    %5231 = vmatprep.subr.mxu0 0.0
    %5232 = vmatpush1.xpose.msra.mxu0 0.0
    %5233 = vmatprep.subr.mxu0 0.0
    %5234 = vmatpush1.xpose.msra.mxu0 0.0
    %5235 = vmatprep.subr.mxu0 0.0
    %5236 = vmatpush1.xpose.msra.mxu0 0.0
    %5237 = vmatprep.subr.mxu0 0.0
    %5238 = vmatpush1.xpose.msra.mxu0 0.0
    %5239 = vmatprep.subr.mxu0 0.0
    %5240 = vmatpush1.xpose.msra.mxu0 0.0
    %5241 = vmatprep.subr.mxu0 0.0
    %5242 = vmatpush1.xpose.msra.mxu0 0.0
    %5243 = vmatprep.subr.mxu0 0.0
    %5244 = vmatpush1.xpose.msra.mxu0 0.0
    %5245 = vmatprep.subr.mxu0 0.0
    %5246 = vmatpush1.xpose.msra.mxu0 0.0
    %5247 = vmatprep.subr.mxu0 0.0
    %5248 = vmatpush1.xpose.msra.mxu0 0.0
    %5249 = vmatprep.subr.mxu0 0.0
    %5250 = vmatpush1.xpose.msra.mxu0 0.0
    %5251 = vmatprep.subr.mxu0 0.0
    %5252 = vmatpush1.xpose.msra.mxu0 0.0
    %5253 = vmatprep.subr.mxu0 0.0
    %5254 = vmatpush1.xpose.msra.mxu0 0.0
    %5255 = vmatprep.subr.mxu0 0.0
    %5256 = vmatpush1.xpose.msra.mxu0 0.0
    %5257 = vmatprep.subr.mxu0 0.0
    %5258 = vmatpush1.xpose.msra.mxu0 0.0
    %5259 = vmatprep.subr.mxu0 0.0
    %5260 = vmatpush1.xpose.msra.mxu0 0.0
    %5261 = vmatprep.subr.mxu0 0.0
    %5262 = vmatpush1.xpose.msra.mxu0 0.0
    %5263 = vmatprep.subr.mxu0 0.0
    %5264 = vmatpush1.xpose.msra.mxu0 0.0
    %5265 = vmatprep.subr.mxu0 0.0
    %5266 = vmatpush1.xpose.msra.mxu0 0.0
    %5267 = vmatprep.subr.mxu0 0.0
    %5268 = vmatpush1.xpose.msra.mxu0 0.0
    %5269 = vmatprep.subr.mxu0 0.0
    %5270 = vmatpush1.xpose.msra.mxu0 0.0
    %5271 = vmatprep.subr.mxu0 0.0
    %5272 = vmatpush1.xpose.msra.mxu0 0.0
    %5273 = vmatprep.subr.mxu0 0.0
    %5274 = vmatpush1.xpose.msra.mxu0 0.0
    %5275 = vmatprep.subr.mxu0 0.0
    %5276 = vmatpush1.xpose.msra.mxu0 0.0
    %5277 = vmatprep.subr.mxu0 0.0
    %5278 = vmatpush1.xpose.msra.mxu0 0.0
    %5279 = vmatprep.subr.mxu0 0.0
    %5280 = vmatpush1.xpose.msra.mxu0 0.0
    %5281 = vmatprep.subr.mxu0 0.0
    %5282 = vmatpush1.xpose.msra.mxu0 0.0
    %5283 = vmatprep.subr.mxu0 0.0
    %5284 = vmatpush1.xpose.msra.mxu0 0.0
    %5285 = vmatprep.subr.mxu0 0.0
    %5286 = vmatpush1.xpose.msra.mxu0 0.0
    %v5287 = vand.u32 %v3868, 4294901760
    %5288 = vmatprep.mubr.f32.mxu0 %v5287
    %v5289 = vand.u32 %v3867, 4294901760
    %5290 = vmatmul.mubr.f32.gmra.mrb[0].mxu0 %v5289
    %v5291 = vpop.f32.mrb[0].mxu0
    %v5292 = vadd.f32 %v5218, %v5291
    %v5293 = vpop.f32.mrb[0].mxu0
    %5294 = vdwg.mxu0
    %v5295 = vand.u32 %v3870, 4294901760
    %5296 = vmatprep.subr.mxu0 %v5295
    %v5297 = vand.u32 %v3869, 4294901760
    %5298 = vmatpush1.xpose.msra.mxu0 %v5297
    %5299 = vmatprep.subr.mxu0 0.0
    %5300 = vmatpush1.xpose.msra.mxu0 0.0
    %5301 = vmatprep.subr.mxu0 0.0
    %5302 = vmatpush1.xpose.msra.mxu0 0.0
    %5303 = vmatprep.subr.mxu0 0.0
    %5304 = vmatpush1.xpose.msra.mxu0 0.0
    %5305 = vmatprep.subr.mxu0 0.0
    %5306 = vmatpush1.xpose.msra.mxu0 0.0
    %5307 = vmatprep.subr.mxu0 0.0
    %5308 = vmatpush1.xpose.msra.mxu0 0.0
    %5309 = vmatprep.subr.mxu0 0.0
    %5310 = vmatpush1.xpose.msra.mxu0 0.0
    %5311 = vmatprep.subr.mxu0 0.0
    %5312 = vmatpush1.xpose.msra.mxu0 0.0
    %5313 = vmatprep.subr.mxu0 0.0
    %5314 = vmatpush1.xpose.msra.mxu0 0.0
    %5315 = vmatprep.subr.mxu0 0.0
    %5316 = vmatpush1.xpose.msra.mxu0 0.0
    %5317 = vmatprep.subr.mxu0 0.0
    %5318 = vmatpush1.xpose.msra.mxu0 0.0
    %5319 = vmatprep.subr.mxu0 0.0
    %5320 = vmatpush1.xpose.msra.mxu0 0.0
    %5321 = vmatprep.subr.mxu0 0.0
    %5322 = vmatpush1.xpose.msra.mxu0 0.0
    %5323 = vmatprep.subr.mxu0 0.0
    %5324 = vmatpush1.xpose.msra.mxu0 0.0
    %5325 = vmatprep.subr.mxu0 0.0
    %5326 = vmatpush1.xpose.msra.mxu0 0.0
    %5327 = vmatprep.subr.mxu0 0.0
    %5328 = vmatpush1.xpose.msra.mxu0 0.0
    %5329 = vmatprep.subr.mxu0 0.0
    %5330 = vmatpush1.xpose.msra.mxu0 0.0
    %5331 = vmatprep.subr.mxu0 0.0
    %5332 = vmatpush1.xpose.msra.mxu0 0.0
    %5333 = vmatprep.subr.mxu0 0.0
    %5334 = vmatpush1.xpose.msra.mxu0 0.0
    %5335 = vmatprep.subr.mxu0 0.0
    %5336 = vmatpush1.xpose.msra.mxu0 0.0
    %5337 = vmatprep.subr.mxu0 0.0
    %5338 = vmatpush1.xpose.msra.mxu0 0.0
    %5339 = vmatprep.subr.mxu0 0.0
    %5340 = vmatpush1.xpose.msra.mxu0 0.0
    %5341 = vmatprep.subr.mxu0 0.0
    %5342 = vmatpush1.xpose.msra.mxu0 0.0
    %5343 = vmatprep.subr.mxu0 0.0
    %5344 = vmatpush1.xpose.msra.mxu0 0.0
    %5345 = vmatprep.subr.mxu0 0.0
    %5346 = vmatpush1.xpose.msra.mxu0 0.0
    %5347 = vmatprep.subr.mxu0 0.0
    %5348 = vmatpush1.xpose.msra.mxu0 0.0
    %5349 = vmatprep.subr.mxu0 0.0
    %5350 = vmatpush1.xpose.msra.mxu0 0.0
    %5351 = vmatprep.subr.mxu0 0.0
    %5352 = vmatpush1.xpose.msra.mxu0 0.0
    %5353 = vmatprep.subr.mxu0 0.0
    %5354 = vmatpush1.xpose.msra.mxu0 0.0
    %5355 = vmatprep.subr.mxu0 0.0
    %5356 = vmatpush1.xpose.msra.mxu0 0.0
    %5357 = vmatprep.subr.mxu0 0.0
    %5358 = vmatpush1.xpose.msra.mxu0 0.0
    %5359 = vmatprep.subr.mxu0 0.0
    %5360 = vmatpush1.xpose.msra.mxu0 0.0
    %v5361 = vand.u32 %v3870, 4294901760
    %v5362 = vsub.f32 %v3870, %v5361
    %v5363 = vand.u32 %v5362, 4294901760
    %v5364 = vsub.f32 %v5362, %v5363
    %v5365 = vand.u32 %v5364, 4294901760
    %5366 = vmatprep.mubr.f32.mxu0 %v5365
    %v5367 = vand.u32 %v3869, 4294901760
    %v5368 = vsub.f32 %v3869, %v5367
    %v5369 = vand.u32 %v5368, 4294901760
    %v5370 = vsub.f32 %v5368, %v5369
    %v5371 = vand.u32 %v5370, 4294901760
    %5372 = vmatmul.mubr.f32.gmra.mrb[0].mxu0 %v5371
    %v5373 = vpop.f32.mrb[0].mxu0
    %v5374 = vadd.f32 %v5292, %v5373
    %v5375 = vpop.f32.mrb[0].mxu0
    %5376 = vdwg.mxu0
    %v5377 = vand.u32 %v3870, 4294901760
    %v5378 = vsub.f32 %v3870, %v5377
    %v5379 = vand.u32 %v5378, 4294901760
    %v5380 = vsub.f32 %v5378, %v5379
    %v5381 = vand.u32 %v5380, 4294901760
    %5382 = vmatprep.subr.mxu0 %v5381
    %v5383 = vand.u32 %v3869, 4294901760
    %v5384 = vsub.f32 %v3869, %v5383
    %v5385 = vand.u32 %v5384, 4294901760
    %v5386 = vsub.f32 %v5384, %v5385
    %v5387 = vand.u32 %v5386, 4294901760
    %5388 = vmatpush1.xpose.msra.mxu0 %v5387
    %5389 = vmatprep.subr.mxu0 0.0
    %5390 = vmatpush1.xpose.msra.mxu0 0.0
    %5391 = vmatprep.subr.mxu0 0.0
    %5392 = vmatpush1.xpose.msra.mxu0 0.0
    %5393 = vmatprep.subr.mxu0 0.0
    %5394 = vmatpush1.xpose.msra.mxu0 0.0
    %5395 = vmatprep.subr.mxu0 0.0
    %5396 = vmatpush1.xpose.msra.mxu0 0.0
    %5397 = vmatprep.subr.mxu0 0.0
    %5398 = vmatpush1.xpose.msra.mxu0 0.0
    %5399 = vmatprep.subr.mxu0 0.0
    %5400 = vmatpush1.xpose.msra.mxu0 0.0
    %5401 = vmatprep.subr.mxu0 0.0
    %5402 = vmatpush1.xpose.msra.mxu0 0.0
    %5403 = vmatprep.subr.mxu0 0.0
    %5404 = vmatpush1.xpose.msra.mxu0 0.0
    %5405 = vmatprep.subr.mxu0 0.0
    %5406 = vmatpush1.xpose.msra.mxu0 0.0
    %5407 = vmatprep.subr.mxu0 0.0
    %5408 = vmatpush1.xpose.msra.mxu0 0.0
    %5409 = vmatprep.subr.mxu0 0.0
    %5410 = vmatpush1.xpose.msra.mxu0 0.0
    %5411 = vmatprep.subr.mxu0 0.0
    %5412 = vmatpush1.xpose.msra.mxu0 0.0
    %5413 = vmatprep.subr.mxu0 0.0
    %5414 = vmatpush1.xpose.msra.mxu0 0.0
    %5415 = vmatprep.subr.mxu0 0.0
    %5416 = vmatpush1.xpose.msra.mxu0 0.0
    %5417 = vmatprep.subr.mxu0 0.0
    %5418 = vmatpush1.xpose.msra.mxu0 0.0
    %5419 = vmatprep.subr.mxu0 0.0
    %5420 = vmatpush1.xpose.msra.mxu0 0.0
    %5421 = vmatprep.subr.mxu0 0.0
    %5422 = vmatpush1.xpose.msra.mxu0 0.0
    %5423 = vmatprep.subr.mxu0 0.0
    %5424 = vmatpush1.xpose.msra.mxu0 0.0
    %5425 = vmatprep.subr.mxu0 0.0
    %5426 = vmatpush1.xpose.msra.mxu0 0.0
    %5427 = vmatprep.subr.mxu0 0.0
    %5428 = vmatpush1.xpose.msra.mxu0 0.0
    %5429 = vmatprep.subr.mxu0 0.0
    %5430 = vmatpush1.xpose.msra.mxu0 0.0
    %5431 = vmatprep.subr.mxu0 0.0
    %5432 = vmatpush1.xpose.msra.mxu0 0.0
    %5433 = vmatprep.subr.mxu0 0.0
    %5434 = vmatpush1.xpose.msra.mxu0 0.0
    %5435 = vmatprep.subr.mxu0 0.0
    %5436 = vmatpush1.xpose.msra.mxu0 0.0
    %5437 = vmatprep.subr.mxu0 0.0
    %5438 = vmatpush1.xpose.msra.mxu0 0.0
    %5439 = vmatprep.subr.mxu0 0.0
    %5440 = vmatpush1.xpose.msra.mxu0 0.0
    %5441 = vmatprep.subr.mxu0 0.0
    %5442 = vmatpush1.xpose.msra.mxu0 0.0
    %5443 = vmatprep.subr.mxu0 0.0
    %5444 = vmatpush1.xpose.msra.mxu0 0.0
    %5445 = vmatprep.subr.mxu0 0.0
    %5446 = vmatpush1.xpose.msra.mxu0 0.0
    %5447 = vmatprep.subr.mxu0 0.0
    %5448 = vmatpush1.xpose.msra.mxu0 0.0
    %5449 = vmatprep.subr.mxu0 0.0
    %5450 = vmatpush1.xpose.msra.mxu0 0.0
    %v5451 = vand.u32 %v3870, 4294901760
    %5452 = vmatprep.mubr.f32.mxu0 %v5451
    %v5453 = vand.u32 %v3869, 4294901760
    %5454 = vmatmul.mubr.f32.gmra.mrb[0].mxu0 %v5453
    %v5455 = vpop.f32.mrb[0].mxu0
    %v5456 = vadd.f32 %v5374, %v5455
    %v5457 = vpop.f32.mrb[0].mxu0
    %5458 = vdwg.mxu0
    %v5459 = vand.u32 %v3870, 4294901760
    %v5460 = vsub.f32 %v3870, %v5459
    %5461 = vmatprep.subr.mxu0 %v5460
    %v5462 = vand.u32 %v3869, 4294901760
    %v5463 = vsub.f32 %v3869, %v5462
    %5464 = vmatpush1.xpose.msra.mxu0 %v5463
    %5465 = vmatprep.subr.mxu0 0.0
    %5466 = vmatpush1.xpose.msra.mxu0 0.0
    %5467 = vmatprep.subr.mxu0 0.0
    %5468 = vmatpush1.xpose.msra.mxu0 0.0
    %5469 = vmatprep.subr.mxu0 0.0
    %5470 = vmatpush1.xpose.msra.mxu0 0.0
    %5471 = vmatprep.subr.mxu0 0.0
    %5472 = vmatpush1.xpose.msra.mxu0 0.0
    %5473 = vmatprep.subr.mxu0 0.0
    %5474 = vmatpush1.xpose.msra.mxu0 0.0
    %5475 = vmatprep.subr.mxu0 0.0
    %5476 = vmatpush1.xpose.msra.mxu0 0.0
    %5477 = vmatprep.subr.mxu0 0.0
    %5478 = vmatpush1.xpose.msra.mxu0 0.0
    %5479 = vmatprep.subr.mxu0 0.0
    %5480 = vmatpush1.xpose.msra.mxu0 0.0
    %5481 = vmatprep.subr.mxu0 0.0
    %5482 = vmatpush1.xpose.msra.mxu0 0.0
    %5483 = vmatprep.subr.mxu0 0.0
    %5484 = vmatpush1.xpose.msra.mxu0 0.0
    %5485 = vmatprep.subr.mxu0 0.0
    %5486 = vmatpush1.xpose.msra.mxu0 0.0
    %5487 = vmatprep.subr.mxu0 0.0
    %5488 = vmatpush1.xpose.msra.mxu0 0.0
    %5489 = vmatprep.subr.mxu0 0.0
    %5490 = vmatpush1.xpose.msra.mxu0 0.0
    %5491 = vmatprep.subr.mxu0 0.0
    %5492 = vmatpush1.xpose.msra.mxu0 0.0
    %5493 = vmatprep.subr.mxu0 0.0
    %5494 = vmatpush1.xpose.msra.mxu0 0.0
    %5495 = vmatprep.subr.mxu0 0.0
    %5496 = vmatpush1.xpose.msra.mxu0 0.0
    %5497 = vmatprep.subr.mxu0 0.0
    %5498 = vmatpush1.xpose.msra.mxu0 0.0
    %5499 = vmatprep.subr.mxu0 0.0
    %5500 = vmatpush1.xpose.msra.mxu0 0.0
    %5501 = vmatprep.subr.mxu0 0.0
    %5502 = vmatpush1.xpose.msra.mxu0 0.0
    %5503 = vmatprep.subr.mxu0 0.0
    %5504 = vmatpush1.xpose.msra.mxu0 0.0
    %5505 = vmatprep.subr.mxu0 0.0
    %5506 = vmatpush1.xpose.msra.mxu0 0.0
    %5507 = vmatprep.subr.mxu0 0.0
    %5508 = vmatpush1.xpose.msra.mxu0 0.0
    %5509 = vmatprep.subr.mxu0 0.0
    %5510 = vmatpush1.xpose.msra.mxu0 0.0
    %5511 = vmatprep.subr.mxu0 0.0
    %5512 = vmatpush1.xpose.msra.mxu0 0.0
    %5513 = vmatprep.subr.mxu0 0.0
    %5514 = vmatpush1.xpose.msra.mxu0 0.0
    %5515 = vmatprep.subr.mxu0 0.0
    %5516 = vmatpush1.xpose.msra.mxu0 0.0
    %5517 = vmatprep.subr.mxu0 0.0
    %5518 = vmatpush1.xpose.msra.mxu0 0.0
    %5519 = vmatprep.subr.mxu0 0.0
    %5520 = vmatpush1.xpose.msra.mxu0 0.0
    %5521 = vmatprep.subr.mxu0 0.0
    %5522 = vmatpush1.xpose.msra.mxu0 0.0
    %5523 = vmatprep.subr.mxu0 0.0
    %5524 = vmatpush1.xpose.msra.mxu0 0.0
    %5525 = vmatprep.subr.mxu0 0.0
    %5526 = vmatpush1.xpose.msra.mxu0 0.0
    %v5527 = vand.u32 %v3870, 4294901760
    %v5528 = vsub.f32 %v3870, %v5527
    %5529 = vmatprep.mubr.f32.mxu0 %v5528
    %v5530 = vand.u32 %v3869, 4294901760
    %v5531 = vsub.f32 %v3869, %v5530
    %5532 = vmatmul.mubr.f32.gmra.mrb[0].mxu0 %v5531
    %v5533 = vpop.f32.mrb[0].mxu0
    %v5534 = vadd.f32 %v5456, %v5533
    %v5535 = vpop.f32.mrb[0].mxu0
    %5536 = vdwg.mxu0
    %v5537 = vand.u32 %v3870, 4294901760
    %5538 = vmatprep.subr.mxu0 %v5537
    %v5539 = vand.u32 %v3869, 4294901760
    %5540 = vmatpush1.xpose.msra.mxu0 %v5539
    %5541 = vmatprep.subr.mxu0 0.0
    %5542 = vmatpush1.xpose.msra.mxu0 0.0
    %5543 = vmatprep.subr.mxu0 0.0
    %5544 = vmatpush1.xpose.msra.mxu0 0.0
    %5545 = vmatprep.subr.mxu0 0.0
    %5546 = vmatpush1.xpose.msra.mxu0 0.0
    %5547 = vmatprep.subr.mxu0 0.0
    %5548 = vmatpush1.xpose.msra.mxu0 0.0
    %5549 = vmatprep.subr.mxu0 0.0
    %5550 = vmatpush1.xpose.msra.mxu0 0.0
    %5551 = vmatprep.subr.mxu0 0.0
    %5552 = vmatpush1.xpose.msra.mxu0 0.0
    %5553 = vmatprep.subr.mxu0 0.0
    %5554 = vmatpush1.xpose.msra.mxu0 0.0
    %5555 = vmatprep.subr.mxu0 0.0
    %5556 = vmatpush1.xpose.msra.mxu0 0.0
    %5557 = vmatprep.subr.mxu0 0.0
    %5558 = vmatpush1.xpose.msra.mxu0 0.0
    %5559 = vmatprep.subr.mxu0 0.0
    %5560 = vmatpush1.xpose.msra.mxu0 0.0
    %5561 = vmatprep.subr.mxu0 0.0
    %5562 = vmatpush1.xpose.msra.mxu0 0.0
    %5563 = vmatprep.subr.mxu0 0.0
    %5564 = vmatpush1.xpose.msra.mxu0 0.0
    %5565 = vmatprep.subr.mxu0 0.0
    %5566 = vmatpush1.xpose.msra.mxu0 0.0
    %5567 = vmatprep.subr.mxu0 0.0
    %5568 = vmatpush1.xpose.msra.mxu0 0.0
    %5569 = vmatprep.subr.mxu0 0.0
    %5570 = vmatpush1.xpose.msra.mxu0 0.0
    %5571 = vmatprep.subr.mxu0 0.0
    %5572 = vmatpush1.xpose.msra.mxu0 0.0
    %5573 = vmatprep.subr.mxu0 0.0
    %5574 = vmatpush1.xpose.msra.mxu0 0.0
    %5575 = vmatprep.subr.mxu0 0.0
    %5576 = vmatpush1.xpose.msra.mxu0 0.0
    %5577 = vmatprep.subr.mxu0 0.0
    %5578 = vmatpush1.xpose.msra.mxu0 0.0
    %5579 = vmatprep.subr.mxu0 0.0
    %5580 = vmatpush1.xpose.msra.mxu0 0.0
    %5581 = vmatprep.subr.mxu0 0.0
    %5582 = vmatpush1.xpose.msra.mxu0 0.0
    %5583 = vmatprep.subr.mxu0 0.0
    %5584 = vmatpush1.xpose.msra.mxu0 0.0
    %5585 = vmatprep.subr.mxu0 0.0
    %5586 = vmatpush1.xpose.msra.mxu0 0.0
    %5587 = vmatprep.subr.mxu0 0.0
    %5588 = vmatpush1.xpose.msra.mxu0 0.0
    %5589 = vmatprep.subr.mxu0 0.0
    %5590 = vmatpush1.xpose.msra.mxu0 0.0
    %5591 = vmatprep.subr.mxu0 0.0
    %5592 = vmatpush1.xpose.msra.mxu0 0.0
    %5593 = vmatprep.subr.mxu0 0.0
    %5594 = vmatpush1.xpose.msra.mxu0 0.0
    %5595 = vmatprep.subr.mxu0 0.0
    %5596 = vmatpush1.xpose.msra.mxu0 0.0
    %5597 = vmatprep.subr.mxu0 0.0
    %5598 = vmatpush1.xpose.msra.mxu0 0.0
    %5599 = vmatprep.subr.mxu0 0.0
    %5600 = vmatpush1.xpose.msra.mxu0 0.0
    %5601 = vmatprep.subr.mxu0 0.0
    %5602 = vmatpush1.xpose.msra.mxu0 0.0
    %v5603 = vand.u32 %v3870, 4294901760
    %v5604 = vsub.f32 %v3870, %v5603
    %v5605 = vand.u32 %v5604, 4294901760
    %5606 = vmatprep.mubr.f32.mxu0 %v5605
    %v5607 = vand.u32 %v3869, 4294901760
    %v5608 = vsub.f32 %v3869, %v5607
    %v5609 = vand.u32 %v5608, 4294901760
    %5610 = vmatmul.mubr.f32.gmra.mrb[0].mxu0 %v5609
    %v5611 = vpop.f32.mrb[0].mxu0
    %v5612 = vadd.f32 %v5534, %v5611
    %v5613 = vpop.f32.mrb[0].mxu0
    %5614 = vdwg.mxu0
    %v5615 = vand.u32 %v3870, 4294901760
    %v5616 = vsub.f32 %v3870, %v5615
    %v5617 = vand.u32 %v5616, 4294901760
    %5618 = vmatprep.subr.mxu0 %v5617
    %v5619 = vand.u32 %v3869, 4294901760
    %v5620 = vsub.f32 %v3869, %v5619
    %v5621 = vand.u32 %v5620, 4294901760
    %5622 = vmatpush1.xpose.msra.mxu0 %v5621
    %5623 = vmatprep.subr.mxu0 0.0
    %5624 = vmatpush1.xpose.msra.mxu0 0.0
    %5625 = vmatprep.subr.mxu0 0.0
    %5626 = vmatpush1.xpose.msra.mxu0 0.0
    %5627 = vmatprep.subr.mxu0 0.0
    %5628 = vmatpush1.xpose.msra.mxu0 0.0
    %5629 = vmatprep.subr.mxu0 0.0
    %5630 = vmatpush1.xpose.msra.mxu0 0.0
    %5631 = vmatprep.subr.mxu0 0.0
    %5632 = vmatpush1.xpose.msra.mxu0 0.0
    %5633 = vmatprep.subr.mxu0 0.0
    %5634 = vmatpush1.xpose.msra.mxu0 0.0
    %5635 = vmatprep.subr.mxu0 0.0
    %5636 = vmatpush1.xpose.msra.mxu0 0.0
    %5637 = vmatprep.subr.mxu0 0.0
    %5638 = vmatpush1.xpose.msra.mxu0 0.0
    %5639 = vmatprep.subr.mxu0 0.0
    %5640 = vmatpush1.xpose.msra.mxu0 0.0
    %5641 = vmatprep.subr.mxu0 0.0
    %5642 = vmatpush1.xpose.msra.mxu0 0.0
    %5643 = vmatprep.subr.mxu0 0.0
    %5644 = vmatpush1.xpose.msra.mxu0 0.0
    %5645 = vmatprep.subr.mxu0 0.0
    %5646 = vmatpush1.xpose.msra.mxu0 0.0
    %5647 = vmatprep.subr.mxu0 0.0
    %5648 = vmatpush1.xpose.msra.mxu0 0.0
    %5649 = vmatprep.subr.mxu0 0.0
    %5650 = vmatpush1.xpose.msra.mxu0 0.0
    %5651 = vmatprep.subr.mxu0 0.0
    %5652 = vmatpush1.xpose.msra.mxu0 0.0
    %5653 = vmatprep.subr.mxu0 0.0
    %5654 = vmatpush1.xpose.msra.mxu0 0.0
    %5655 = vmatprep.subr.mxu0 0.0
    %5656 = vmatpush1.xpose.msra.mxu0 0.0
    %5657 = vmatprep.subr.mxu0 0.0
    %5658 = vmatpush1.xpose.msra.mxu0 0.0
    %5659 = vmatprep.subr.mxu0 0.0
    %5660 = vmatpush1.xpose.msra.mxu0 0.0
    %5661 = vmatprep.subr.mxu0 0.0
    %5662 = vmatpush1.xpose.msra.mxu0 0.0
    %5663 = vmatprep.subr.mxu0 0.0
    %5664 = vmatpush1.xpose.msra.mxu0 0.0
    %5665 = vmatprep.subr.mxu0 0.0
    %5666 = vmatpush1.xpose.msra.mxu0 0.0
    %5667 = vmatprep.subr.mxu0 0.0
    %5668 = vmatpush1.xpose.msra.mxu0 0.0
    %5669 = vmatprep.subr.mxu0 0.0
    %5670 = vmatpush1.xpose.msra.mxu0 0.0
    %5671 = vmatprep.subr.mxu0 0.0
    %5672 = vmatpush1.xpose.msra.mxu0 0.0
    %5673 = vmatprep.subr.mxu0 0.0
    %5674 = vmatpush1.xpose.msra.mxu0 0.0
    %5675 = vmatprep.subr.mxu0 0.0
    %5676 = vmatpush1.xpose.msra.mxu0 0.0
    %5677 = vmatprep.subr.mxu0 0.0
    %5678 = vmatpush1.xpose.msra.mxu0 0.0
    %5679 = vmatprep.subr.mxu0 0.0
    %5680 = vmatpush1.xpose.msra.mxu0 0.0
    %5681 = vmatprep.subr.mxu0 0.0
    %5682 = vmatpush1.xpose.msra.mxu0 0.0
    %5683 = vmatprep.subr.mxu0 0.0
    %5684 = vmatpush1.xpose.msra.mxu0 0.0
    %v5685 = vand.u32 %v3870, 4294901760
    %5686 = vmatprep.mubr.f32.mxu0 %v5685
    %v5687 = vand.u32 %v3869, 4294901760
    %5688 = vmatmul.mubr.f32.gmra.mrb[0].mxu0 %v5687
    %v5689 = vpop.f32.mrb[0].mxu0
    %v5690 = vadd.f32 %v5612, %v5689
    %v5691 = vpop.f32.mrb[0].mxu0
    %5692 = vdwg.mxu0
    %v5693 = vand.u32 %v3870, 4294901760
    %5694 = vmatprep.subr.mxu0 %v5693
    %v5695 = vand.u32 %v3869, 4294901760
    %5696 = vmatpush1.xpose.msra.mxu0 %v5695
    %5697 = vmatprep.subr.mxu0 0.0
    %5698 = vmatpush1.xpose.msra.mxu0 0.0
    %5699 = vmatprep.subr.mxu0 0.0
    %5700 = vmatpush1.xpose.msra.mxu0 0.0
    %5701 = vmatprep.subr.mxu0 0.0
    %5702 = vmatpush1.xpose.msra.mxu0 0.0
    %5703 = vmatprep.subr.mxu0 0.0
    %5704 = vmatpush1.xpose.msra.mxu0 0.0
    %5705 = vmatprep.subr.mxu0 0.0
    %5706 = vmatpush1.xpose.msra.mxu0 0.0
    %5707 = vmatprep.subr.mxu0 0.0
    %5708 = vmatpush1.xpose.msra.mxu0 0.0
    %5709 = vmatprep.subr.mxu0 0.0
    %5710 = vmatpush1.xpose.msra.mxu0 0.0
    %5711 = vmatprep.subr.mxu0 0.0
    %5712 = vmatpush1.xpose.msra.mxu0 0.0
    %5713 = vmatprep.subr.mxu0 0.0
    %5714 = vmatpush1.xpose.msra.mxu0 0.0
    %5715 = vmatprep.subr.mxu0 0.0
    %5716 = vmatpush1.xpose.msra.mxu0 0.0
    %5717 = vmatprep.subr.mxu0 0.0
    %5718 = vmatpush1.xpose.msra.mxu0 0.0
    %5719 = vmatprep.subr.mxu0 0.0
    %5720 = vmatpush1.xpose.msra.mxu0 0.0
    %5721 = vmatprep.subr.mxu0 0.0
    %5722 = vmatpush1.xpose.msra.mxu0 0.0
    %5723 = vmatprep.subr.mxu0 0.0
    %5724 = vmatpush1.xpose.msra.mxu0 0.0
    %5725 = vmatprep.subr.mxu0 0.0
    %5726 = vmatpush1.xpose.msra.mxu0 0.0
    %5727 = vmatprep.subr.mxu0 0.0
    %5728 = vmatpush1.xpose.msra.mxu0 0.0
    %5729 = vmatprep.subr.mxu0 0.0
    %5730 = vmatpush1.xpose.msra.mxu0 0.0
    %5731 = vmatprep.subr.mxu0 0.0
    %5732 = vmatpush1.xpose.msra.mxu0 0.0
    %5733 = vmatprep.subr.mxu0 0.0
    %5734 = vmatpush1.xpose.msra.mxu0 0.0
    %5735 = vmatprep.subr.mxu0 0.0
    %5736 = vmatpush1.xpose.msra.mxu0 0.0
    %5737 = vmatprep.subr.mxu0 0.0
    %5738 = vmatpush1.xpose.msra.mxu0 0.0
    %5739 = vmatprep.subr.mxu0 0.0
    %5740 = vmatpush1.xpose.msra.mxu0 0.0
    %5741 = vmatprep.subr.mxu0 0.0
    %5742 = vmatpush1.xpose.msra.mxu0 0.0
    %5743 = vmatprep.subr.mxu0 0.0
    %5744 = vmatpush1.xpose.msra.mxu0 0.0
    %5745 = vmatprep.subr.mxu0 0.0
    %5746 = vmatpush1.xpose.msra.mxu0 0.0
    %5747 = vmatprep.subr.mxu0 0.0
    %5748 = vmatpush1.xpose.msra.mxu0 0.0
    %5749 = vmatprep.subr.mxu0 0.0
    %5750 = vmatpush1.xpose.msra.mxu0 0.0
    %5751 = vmatprep.subr.mxu0 0.0
    %5752 = vmatpush1.xpose.msra.mxu0 0.0
    %5753 = vmatprep.subr.mxu0 0.0
    %5754 = vmatpush1.xpose.msra.mxu0 0.0
    %5755 = vmatprep.subr.mxu0 0.0
    %5756 = vmatpush1.xpose.msra.mxu0 0.0
    %5757 = vmatprep.subr.mxu0 0.0
    %5758 = vmatpush1.xpose.msra.mxu0 0.0
    %v5759 = vand.u32 %v3870, 4294901760
    %5760 = vmatprep.mubr.f32.mxu0 %v5759
    %v5761 = vand.u32 %v3869, 4294901760
    %5762 = vmatmul.mubr.f32.gmra.mrb[0].mxu0 %v5761
    %v5763 = vpop.f32.mrb[0].mxu0
    %v5764 = vadd.f32 %v5690, %v5763
    %v5765 = vpop.f32.mrb[0].mxu0
    %5766 = vdwg.mxu0
    %v5767 = vand.u32 %v3872, 4294901760
    %5768 = vmatprep.subr.mxu0 %v5767
    %v5769 = vand.u32 %v3871, 4294901760
    %5770 = vmatpush1.xpose.msra.mxu0 %v5769
    %5771 = vmatprep.subr.mxu0 0.0
    %5772 = vmatpush1.xpose.msra.mxu0 0.0
    %5773 = vmatprep.subr.mxu0 0.0
    %5774 = vmatpush1.xpose.msra.mxu0 0.0
    %5775 = vmatprep.subr.mxu0 0.0
    %5776 = vmatpush1.xpose.msra.mxu0 0.0
    %5777 = vmatprep.subr.mxu0 0.0
    %5778 = vmatpush1.xpose.msra.mxu0 0.0
    %5779 = vmatprep.subr.mxu0 0.0
    %5780 = vmatpush1.xpose.msra.mxu0 0.0
    %5781 = vmatprep.subr.mxu0 0.0
    %5782 = vmatpush1.xpose.msra.mxu0 0.0
    %5783 = vmatprep.subr.mxu0 0.0
    %5784 = vmatpush1.xpose.msra.mxu0 0.0
    %5785 = vmatprep.subr.mxu0 0.0
    %5786 = vmatpush1.xpose.msra.mxu0 0.0
    %5787 = vmatprep.subr.mxu0 0.0
    %5788 = vmatpush1.xpose.msra.mxu0 0.0
    %5789 = vmatprep.subr.mxu0 0.0
    %5790 = vmatpush1.xpose.msra.mxu0 0.0
    %5791 = vmatprep.subr.mxu0 0.0
    %5792 = vmatpush1.xpose.msra.mxu0 0.0
    %5793 = vmatprep.subr.mxu0 0.0
    %5794 = vmatpush1.xpose.msra.mxu0 0.0
    %5795 = vmatprep.subr.mxu0 0.0
    %5796 = vmatpush1.xpose.msra.mxu0 0.0
    %5797 = vmatprep.subr.mxu0 0.0
    %5798 = vmatpush1.xpose.msra.mxu0 0.0
    %5799 = vmatprep.subr.mxu0 0.0
    %5800 = vmatpush1.xpose.msra.mxu0 0.0
    %5801 = vmatprep.subr.mxu0 0.0
    %5802 = vmatpush1.xpose.msra.mxu0 0.0
    %5803 = vmatprep.subr.mxu0 0.0
    %5804 = vmatpush1.xpose.msra.mxu0 0.0
    %5805 = vmatprep.subr.mxu0 0.0
    %5806 = vmatpush1.xpose.msra.mxu0 0.0
    %5807 = vmatprep.subr.mxu0 0.0
    %5808 = vmatpush1.xpose.msra.mxu0 0.0
    %5809 = vmatprep.subr.mxu0 0.0
    %5810 = vmatpush1.xpose.msra.mxu0 0.0
    %5811 = vmatprep.subr.mxu0 0.0
    %5812 = vmatpush1.xpose.msra.mxu0 0.0
    %5813 = vmatprep.subr.mxu0 0.0
    %5814 = vmatpush1.xpose.msra.mxu0 0.0
    %5815 = vmatprep.subr.mxu0 0.0
    %5816 = vmatpush1.xpose.msra.mxu0 0.0
    %5817 = vmatprep.subr.mxu0 0.0
    %5818 = vmatpush1.xpose.msra.mxu0 0.0
    %5819 = vmatprep.subr.mxu0 0.0
    %5820 = vmatpush1.xpose.msra.mxu0 0.0
    %5821 = vmatprep.subr.mxu0 0.0
    %5822 = vmatpush1.xpose.msra.mxu0 0.0
    %5823 = vmatprep.subr.mxu0 0.0
    %5824 = vmatpush1.xpose.msra.mxu0 0.0
    %5825 = vmatprep.subr.mxu0 0.0
    %5826 = vmatpush1.xpose.msra.mxu0 0.0
    %5827 = vmatprep.subr.mxu0 0.0
    %5828 = vmatpush1.xpose.msra.mxu0 0.0
    %5829 = vmatprep.subr.mxu0 0.0
    %5830 = vmatpush1.xpose.msra.mxu0 0.0
    %5831 = vmatprep.subr.mxu0 0.0
    %5832 = vmatpush1.xpose.msra.mxu0 0.0
    %v5833 = vand.u32 %v3872, 4294901760
    %v5834 = vsub.f32 %v3872, %v5833
    %v5835 = vand.u32 %v5834, 4294901760
    %v5836 = vsub.f32 %v5834, %v5835
    %v5837 = vand.u32 %v5836, 4294901760
    %5838 = vmatprep.mubr.f32.mxu0 %v5837
    %v5839 = vand.u32 %v3871, 4294901760
    %v5840 = vsub.f32 %v3871, %v5839
    %v5841 = vand.u32 %v5840, 4294901760
    %v5842 = vsub.f32 %v5840, %v5841
    %v5843 = vand.u32 %v5842, 4294901760
    %5844 = vmatmul.mubr.f32.gmra.mrb[0].mxu0 %v5843
    %v5845 = vpop.f32.mrb[0].mxu0
    %v5846 = vadd.f32 %v5764, %v5845
    %v5847 = vpop.f32.mrb[0].mxu0
    %5848 = vdwg.mxu0
    %v5849 = vand.u32 %v3872, 4294901760
    %v5850 = vsub.f32 %v3872, %v5849
    %v5851 = vand.u32 %v5850, 4294901760
    %v5852 = vsub.f32 %v5850, %v5851
    %v5853 = vand.u32 %v5852, 4294901760
    %5854 = vmatprep.subr.mxu0 %v5853
    %v5855 = vand.u32 %v3871, 4294901760
    %v5856 = vsub.f32 %v3871, %v5855
    %v5857 = vand.u32 %v5856, 4294901760
    %v5858 = vsub.f32 %v5856, %v5857
    %v5859 = vand.u32 %v5858, 4294901760
    %5860 = vmatpush1.xpose.msra.mxu0 %v5859
    %5861 = vmatprep.subr.mxu0 0.0
    %5862 = vmatpush1.xpose.msra.mxu0 0.0
    %5863 = vmatprep.subr.mxu0 0.0
    %5864 = vmatpush1.xpose.msra.mxu0 0.0
    %5865 = vmatprep.subr.mxu0 0.0
    %5866 = vmatpush1.xpose.msra.mxu0 0.0
    %5867 = vmatprep.subr.mxu0 0.0
    %5868 = vmatpush1.xpose.msra.mxu0 0.0
    %5869 = vmatprep.subr.mxu0 0.0
    %5870 = vmatpush1.xpose.msra.mxu0 0.0
    %5871 = vmatprep.subr.mxu0 0.0
    %5872 = vmatpush1.xpose.msra.mxu0 0.0
    %5873 = vmatprep.subr.mxu0 0.0
    %5874 = vmatpush1.xpose.msra.mxu0 0.0
    %5875 = vmatprep.subr.mxu0 0.0
    %5876 = vmatpush1.xpose.msra.mxu0 0.0
    %5877 = vmatprep.subr.mxu0 0.0
    %5878 = vmatpush1.xpose.msra.mxu0 0.0
    %5879 = vmatprep.subr.mxu0 0.0
    %5880 = vmatpush1.xpose.msra.mxu0 0.0
    %5881 = vmatprep.subr.mxu0 0.0
    %5882 = vmatpush1.xpose.msra.mxu0 0.0
    %5883 = vmatprep.subr.mxu0 0.0
    %5884 = vmatpush1.xpose.msra.mxu0 0.0
    %5885 = vmatprep.subr.mxu0 0.0
    %5886 = vmatpush1.xpose.msra.mxu0 0.0
    %5887 = vmatprep.subr.mxu0 0.0
    %5888 = vmatpush1.xpose.msra.mxu0 0.0
    %5889 = vmatprep.subr.mxu0 0.0
    %5890 = vmatpush1.xpose.msra.mxu0 0.0
    %5891 = vmatprep.subr.mxu0 0.0
    %5892 = vmatpush1.xpose.msra.mxu0 0.0
    %5893 = vmatprep.subr.mxu0 0.0
    %5894 = vmatpush1.xpose.msra.mxu0 0.0
    %5895 = vmatprep.subr.mxu0 0.0
    %5896 = vmatpush1.xpose.msra.mxu0 0.0
    %5897 = vmatprep.subr.mxu0 0.0
    %5898 = vmatpush1.xpose.msra.mxu0 0.0
    %5899 = vmatprep.subr.mxu0 0.0
    %5900 = vmatpush1.xpose.msra.mxu0 0.0
    %5901 = vmatprep.subr.mxu0 0.0
    %5902 = vmatpush1.xpose.msra.mxu0 0.0
    %5903 = vmatprep.subr.mxu0 0.0
    %5904 = vmatpush1.xpose.msra.mxu0 0.0
    %5905 = vmatprep.subr.mxu0 0.0
    %5906 = vmatpush1.xpose.msra.mxu0 0.0
    %5907 = vmatprep.subr.mxu0 0.0
    %5908 = vmatpush1.xpose.msra.mxu0 0.0
    %5909 = vmatprep.subr.mxu0 0.0
    %5910 = vmatpush1.xpose.msra.mxu0 0.0
    %5911 = vmatprep.subr.mxu0 0.0
    %5912 = vmatpush1.xpose.msra.mxu0 0.0
    %5913 = vmatprep.subr.mxu0 0.0
    %5914 = vmatpush1.xpose.msra.mxu0 0.0
    %5915 = vmatprep.subr.mxu0 0.0
    %5916 = vmatpush1.xpose.msra.mxu0 0.0
    %5917 = vmatprep.subr.mxu0 0.0
    %5918 = vmatpush1.xpose.msra.mxu0 0.0
    %5919 = vmatprep.subr.mxu0 0.0
    %5920 = vmatpush1.xpose.msra.mxu0 0.0
    %5921 = vmatprep.subr.mxu0 0.0
    %5922 = vmatpush1.xpose.msra.mxu0 0.0
    %v5923 = vand.u32 %v3872, 4294901760
    %5924 = vmatprep.mubr.f32.mxu0 %v5923
    %v5925 = vand.u32 %v3871, 4294901760
    %5926 = vmatmul.mubr.f32.gmra.mrb[0].mxu0 %v5925
    %v5927 = vpop.f32.mrb[0].mxu0
    %v5928 = vadd.f32 %v5846, %v5927
    %v5929 = vpop.f32.mrb[0].mxu0
    %5930 = vdwg.mxu0
    %v5931 = vand.u32 %v3872, 4294901760
    %v5932 = vsub.f32 %v3872, %v5931
    %5933 = vmatprep.subr.mxu0 %v5932
    %v5934 = vand.u32 %v3871, 4294901760
    %v5935 = vsub.f32 %v3871, %v5934
    %5936 = vmatpush1.xpose.msra.mxu0 %v5935
    %5937 = vmatprep.subr.mxu0 0.0
    %5938 = vmatpush1.xpose.msra.mxu0 0.0
    %5939 = vmatprep.subr.mxu0 0.0
    %5940 = vmatpush1.xpose.msra.mxu0 0.0
    %5941 = vmatprep.subr.mxu0 0.0
    %5942 = vmatpush1.xpose.msra.mxu0 0.0
    %5943 = vmatprep.subr.mxu0 0.0
    %5944 = vmatpush1.xpose.msra.mxu0 0.0
    %5945 = vmatprep.subr.mxu0 0.0
    %5946 = vmatpush1.xpose.msra.mxu0 0.0
    %5947 = vmatprep.subr.mxu0 0.0
    %5948 = vmatpush1.xpose.msra.mxu0 0.0
    %5949 = vmatprep.subr.mxu0 0.0
    %5950 = vmatpush1.xpose.msra.mxu0 0.0
    %5951 = vmatprep.subr.mxu0 0.0
    %5952 = vmatpush1.xpose.msra.mxu0 0.0
    %5953 = vmatprep.subr.mxu0 0.0
    %5954 = vmatpush1.xpose.msra.mxu0 0.0
    %5955 = vmatprep.subr.mxu0 0.0
    %5956 = vmatpush1.xpose.msra.mxu0 0.0
    %5957 = vmatprep.subr.mxu0 0.0
    %5958 = vmatpush1.xpose.msra.mxu0 0.0
    %5959 = vmatprep.subr.mxu0 0.0
    %5960 = vmatpush1.xpose.msra.mxu0 0.0
    %5961 = vmatprep.subr.mxu0 0.0
    %5962 = vmatpush1.xpose.msra.mxu0 0.0
    %5963 = vmatprep.subr.mxu0 0.0
    %5964 = vmatpush1.xpose.msra.mxu0 0.0
    %5965 = vmatprep.subr.mxu0 0.0
    %5966 = vmatpush1.xpose.msra.mxu0 0.0
    %5967 = vmatprep.subr.mxu0 0.0
    %5968 = vmatpush1.xpose.msra.mxu0 0.0
    %5969 = vmatprep.subr.mxu0 0.0
    %5970 = vmatpush1.xpose.msra.mxu0 0.0
    %5971 = vmatprep.subr.mxu0 0.0
    %5972 = vmatpush1.xpose.msra.mxu0 0.0
    %5973 = vmatprep.subr.mxu0 0.0
    %5974 = vmatpush1.xpose.msra.mxu0 0.0
    %5975 = vmatprep.subr.mxu0 0.0
    %5976 = vmatpush1.xpose.msra.mxu0 0.0
    %5977 = vmatprep.subr.mxu0 0.0
    %5978 = vmatpush1.xpose.msra.mxu0 0.0
    %5979 = vmatprep.subr.mxu0 0.0
    %5980 = vmatpush1.xpose.msra.mxu0 0.0
    %5981 = vmatprep.subr.mxu0 0.0
    %5982 = vmatpush1.xpose.msra.mxu0 0.0
    %5983 = vmatprep.subr.mxu0 0.0
    %5984 = vmatpush1.xpose.msra.mxu0 0.0
    %5985 = vmatprep.subr.mxu0 0.0
    %5986 = vmatpush1.xpose.msra.mxu0 0.0
    %5987 = vmatprep.subr.mxu0 0.0
    %5988 = vmatpush1.xpose.msra.mxu0 0.0
    %5989 = vmatprep.subr.mxu0 0.0
    %5990 = vmatpush1.xpose.msra.mxu0 0.0
    %5991 = vmatprep.subr.mxu0 0.0
    %5992 = vmatpush1.xpose.msra.mxu0 0.0
    %5993 = vmatprep.subr.mxu0 0.0
    %5994 = vmatpush1.xpose.msra.mxu0 0.0
    %5995 = vmatprep.subr.mxu0 0.0
    %5996 = vmatpush1.xpose.msra.mxu0 0.0
    %5997 = vmatprep.subr.mxu0 0.0
    %5998 = vmatpush1.xpose.msra.mxu0 0.0
    %v5999 = vand.u32 %v3872, 4294901760
    %v6000 = vsub.f32 %v3872, %v5999
    %6001 = vmatprep.mubr.f32.mxu0 %v6000
    %v6002 = vand.u32 %v3871, 4294901760
    %v6003 = vsub.f32 %v3871, %v6002
    %6004 = vmatmul.mubr.f32.gmra.mrb[0].mxu0 %v6003
    %v6005 = vpop.f32.mrb[0].mxu0
    %v6006 = vadd.f32 %v5928, %v6005
    %v6007 = vpop.f32.mrb[0].mxu0
    %6008 = vdwg.mxu0
    %v6009 = vand.u32 %v3872, 4294901760
    %6010 = vmatprep.subr.mxu0 %v6009
    %v6011 = vand.u32 %v3871, 4294901760
    %6012 = vmatpush1.xpose.msra.mxu0 %v6011
    %6013 = vmatprep.subr.mxu0 0.0
    %6014 = vmatpush1.xpose.msra.mxu0 0.0
    %6015 = vmatprep.subr.mxu0 0.0
    %6016 = vmatpush1.xpose.msra.mxu0 0.0
    %6017 = vmatprep.subr.mxu0 0.0
    %6018 = vmatpush1.xpose.msra.mxu0 0.0
    %6019 = vmatprep.subr.mxu0 0.0
    %6020 = vmatpush1.xpose.msra.mxu0 0.0
    %6021 = vmatprep.subr.mxu0 0.0
    %6022 = vmatpush1.xpose.msra.mxu0 0.0
    %6023 = vmatprep.subr.mxu0 0.0
    %6024 = vmatpush1.xpose.msra.mxu0 0.0
    %6025 = vmatprep.subr.mxu0 0.0
    %6026 = vmatpush1.xpose.msra.mxu0 0.0
    %6027 = vmatprep.subr.mxu0 0.0
    %6028 = vmatpush1.xpose.msra.mxu0 0.0
    %6029 = vmatprep.subr.mxu0 0.0
    %6030 = vmatpush1.xpose.msra.mxu0 0.0
    %6031 = vmatprep.subr.mxu0 0.0
    %6032 = vmatpush1.xpose.msra.mxu0 0.0
    %6033 = vmatprep.subr.mxu0 0.0
    %6034 = vmatpush1.xpose.msra.mxu0 0.0
    %6035 = vmatprep.subr.mxu0 0.0
    %6036 = vmatpush1.xpose.msra.mxu0 0.0
    %6037 = vmatprep.subr.mxu0 0.0
    %6038 = vmatpush1.xpose.msra.mxu0 0.0
    %6039 = vmatprep.subr.mxu0 0.0
    %6040 = vmatpush1.xpose.msra.mxu0 0.0
    %6041 = vmatprep.subr.mxu0 0.0
    %6042 = vmatpush1.xpose.msra.mxu0 0.0
    %6043 = vmatprep.subr.mxu0 0.0
    %6044 = vmatpush1.xpose.msra.mxu0 0.0
    %6045 = vmatprep.subr.mxu0 0.0
    %6046 = vmatpush1.xpose.msra.mxu0 0.0
    %6047 = vmatprep.subr.mxu0 0.0
    %6048 = vmatpush1.xpose.msra.mxu0 0.0
    %6049 = vmatprep.subr.mxu0 0.0
    %6050 = vmatpush1.xpose.msra.mxu0 0.0
    %6051 = vmatprep.subr.mxu0 0.0
    %6052 = vmatpush1.xpose.msra.mxu0 0.0
    %6053 = vmatprep.subr.mxu0 0.0
    %6054 = vmatpush1.xpose.msra.mxu0 0.0
    %6055 = vmatprep.subr.mxu0 0.0
    %6056 = vmatpush1.xpose.msra.mxu0 0.0
    %6057 = vmatprep.subr.mxu0 0.0
    %6058 = vmatpush1.xpose.msra.mxu0 0.0
    %6059 = vmatprep.subr.mxu0 0.0
    %6060 = vmatpush1.xpose.msra.mxu0 0.0
    %6061 = vmatprep.subr.mxu0 0.0
    %6062 = vmatpush1.xpose.msra.mxu0 0.0
    %6063 = vmatprep.subr.mxu0 0.0
    %6064 = vmatpush1.xpose.msra.mxu0 0.0
    %6065 = vmatprep.subr.mxu0 0.0
    %6066 = vmatpush1.xpose.msra.mxu0 0.0
    %6067 = vmatprep.subr.mxu0 0.0
    %6068 = vmatpush1.xpose.msra.mxu0 0.0
    %6069 = vmatprep.subr.mxu0 0.0
    %6070 = vmatpush1.xpose.msra.mxu0 0.0
    %6071 = vmatprep.subr.mxu0 0.0
    %6072 = vmatpush1.xpose.msra.mxu0 0.0
    %6073 = vmatprep.subr.mxu0 0.0
    %6074 = vmatpush1.xpose.msra.mxu0 0.0
    %v6075 = vand.u32 %v3872, 4294901760
    %v6076 = vsub.f32 %v3872, %v6075
    %v6077 = vand.u32 %v6076, 4294901760
    %6078 = vmatprep.mubr.f32.mxu0 %v6077
    %v6079 = vand.u32 %v3871, 4294901760
    %v6080 = vsub.f32 %v3871, %v6079
    %v6081 = vand.u32 %v6080, 4294901760
    %6082 = vmatmul.mubr.f32.gmra.mrb[0].mxu0 %v6081
    %v6083 = vpop.f32.mrb[0].mxu0
    %v6084 = vadd.f32 %v6006, %v6083
    %v6085 = vpop.f32.mrb[0].mxu0
    %6086 = vdwg.mxu0
    %v6087 = vand.u32 %v3872, 4294901760
    %v6088 = vsub.f32 %v3872, %v6087
    %v6089 = vand.u32 %v6088, 4294901760
    %6090 = vmatprep.subr.mxu0 %v6089
    %v6091 = vand.u32 %v3871, 4294901760
    %v6092 = vsub.f32 %v3871, %v6091
    %v6093 = vand.u32 %v6092, 4294901760
    %6094 = vmatpush1.xpose.msra.mxu0 %v6093
    %6095 = vmatprep.subr.mxu0 0.0
    %6096 = vmatpush1.xpose.msra.mxu0 0.0
    %6097 = vmatprep.subr.mxu0 0.0
    %6098 = vmatpush1.xpose.msra.mxu0 0.0
    %6099 = vmatprep.subr.mxu0 0.0
    %6100 = vmatpush1.xpose.msra.mxu0 0.0
    %6101 = vmatprep.subr.mxu0 0.0
    %6102 = vmatpush1.xpose.msra.mxu0 0.0
    %6103 = vmatprep.subr.mxu0 0.0
    %6104 = vmatpush1.xpose.msra.mxu0 0.0
    %6105 = vmatprep.subr.mxu0 0.0
    %6106 = vmatpush1.xpose.msra.mxu0 0.0
    %6107 = vmatprep.subr.mxu0 0.0
    %6108 = vmatpush1.xpose.msra.mxu0 0.0
    %6109 = vmatprep.subr.mxu0 0.0
    %6110 = vmatpush1.xpose.msra.mxu0 0.0
    %6111 = vmatprep.subr.mxu0 0.0
    %6112 = vmatpush1.xpose.msra.mxu0 0.0
    %6113 = vmatprep.subr.mxu0 0.0
    %6114 = vmatpush1.xpose.msra.mxu0 0.0
    %6115 = vmatprep.subr.mxu0 0.0
    %6116 = vmatpush1.xpose.msra.mxu0 0.0
    %6117 = vmatprep.subr.mxu0 0.0
    %6118 = vmatpush1.xpose.msra.mxu0 0.0
    %6119 = vmatprep.subr.mxu0 0.0
    %6120 = vmatpush1.xpose.msra.mxu0 0.0
    %6121 = vmatprep.subr.mxu0 0.0
    %6122 = vmatpush1.xpose.msra.mxu0 0.0
    %6123 = vmatprep.subr.mxu0 0.0
    %6124 = vmatpush1.xpose.msra.mxu0 0.0
    %6125 = vmatprep.subr.mxu0 0.0
    %6126 = vmatpush1.xpose.msra.mxu0 0.0
    %6127 = vmatprep.subr.mxu0 0.0
    %6128 = vmatpush1.xpose.msra.mxu0 0.0
    %6129 = vmatprep.subr.mxu0 0.0
    %6130 = vmatpush1.xpose.msra.mxu0 0.0
    %6131 = vmatprep.subr.mxu0 0.0
    %6132 = vmatpush1.xpose.msra.mxu0 0.0
    %6133 = vmatprep.subr.mxu0 0.0
    %6134 = vmatpush1.xpose.msra.mxu0 0.0
    %6135 = vmatprep.subr.mxu0 0.0
    %6136 = vmatpush1.xpose.msra.mxu0 0.0
    %6137 = vmatprep.subr.mxu0 0.0
    %6138 = vmatpush1.xpose.msra.mxu0 0.0
    %6139 = vmatprep.subr.mxu0 0.0
    %6140 = vmatpush1.xpose.msra.mxu0 0.0
    %6141 = vmatprep.subr.mxu0 0.0
    %6142 = vmatpush1.xpose.msra.mxu0 0.0
    %6143 = vmatprep.subr.mxu0 0.0
    %6144 = vmatpush1.xpose.msra.mxu0 0.0
    %6145 = vmatprep.subr.mxu0 0.0
    %6146 = vmatpush1.xpose.msra.mxu0 0.0
    %6147 = vmatprep.subr.mxu0 0.0
    %6148 = vmatpush1.xpose.msra.mxu0 0.0
    %6149 = vmatprep.subr.mxu0 0.0
    %6150 = vmatpush1.xpose.msra.mxu0 0.0
    %6151 = vmatprep.subr.mxu0 0.0
    %6152 = vmatpush1.xpose.msra.mxu0 0.0
    %6153 = vmatprep.subr.mxu0 0.0
    %6154 = vmatpush1.xpose.msra.mxu0 0.0
    %6155 = vmatprep.subr.mxu0 0.0
    %6156 = vmatpush1.xpose.msra.mxu0 0.0
    %v6157 = vand.u32 %v3872, 4294901760
    %6158 = vmatprep.mubr.f32.mxu0 %v6157
    %v6159 = vand.u32 %v3871, 4294901760
    %6160 = vmatmul.mubr.f32.gmra.mrb[0].mxu0 %v6159
    %v6161 = vpop.f32.mrb[0].mxu0
    %v6162 = vadd.f32 %v6084, %v6161
    %v6163 = vpop.f32.mrb[0].mxu0
    %6164 = vdwg.mxu0
    %v6165 = vand.u32 %v3872, 4294901760
    %6166 = vmatprep.subr.mxu0 %v6165
    %v6167 = vand.u32 %v3871, 4294901760
    %6168 = vmatpush1.xpose.msra.mxu0 %v6167
    %6169 = vmatprep.subr.mxu0 0.0
    %6170 = vmatpush1.xpose.msra.mxu0 0.0
    %6171 = vmatprep.subr.mxu0 0.0
    %6172 = vmatpush1.xpose.msra.mxu0 0.0
    %6173 = vmatprep.subr.mxu0 0.0
    %6174 = vmatpush1.xpose.msra.mxu0 0.0
    %6175 = vmatprep.subr.mxu0 0.0
    %6176 = vmatpush1.xpose.msra.mxu0 0.0
    %6177 = vmatprep.subr.mxu0 0.0
    %6178 = vmatpush1.xpose.msra.mxu0 0.0
    %6179 = vmatprep.subr.mxu0 0.0
    %6180 = vmatpush1.xpose.msra.mxu0 0.0
    %6181 = vmatprep.subr.mxu0 0.0
    %6182 = vmatpush1.xpose.msra.mxu0 0.0
    %6183 = vmatprep.subr.mxu0 0.0
    %6184 = vmatpush1.xpose.msra.mxu0 0.0
    %6185 = vmatprep.subr.mxu0 0.0
    %6186 = vmatpush1.xpose.msra.mxu0 0.0
    %6187 = vmatprep.subr.mxu0 0.0
    %6188 = vmatpush1.xpose.msra.mxu0 0.0
    %6189 = vmatprep.subr.mxu0 0.0
    %6190 = vmatpush1.xpose.msra.mxu0 0.0
    %6191 = vmatprep.subr.mxu0 0.0
    %6192 = vmatpush1.xpose.msra.mxu0 0.0
    %6193 = vmatprep.subr.mxu0 0.0
    %6194 = vmatpush1.xpose.msra.mxu0 0.0
    %6195 = vmatprep.subr.mxu0 0.0
    %6196 = vmatpush1.xpose.msra.mxu0 0.0
    %6197 = vmatprep.subr.mxu0 0.0
    %6198 = vmatpush1.xpose.msra.mxu0 0.0
    %6199 = vmatprep.subr.mxu0 0.0
    %6200 = vmatpush1.xpose.msra.mxu0 0.0
    %6201 = vmatprep.subr.mxu0 0.0
    %6202 = vmatpush1.xpose.msra.mxu0 0.0
    %6203 = vmatprep.subr.mxu0 0.0
    %6204 = vmatpush1.xpose.msra.mxu0 0.0
    %6205 = vmatprep.subr.mxu0 0.0
    %6206 = vmatpush1.xpose.msra.mxu0 0.0
    %6207 = vmatprep.subr.mxu0 0.0
    %6208 = vmatpush1.xpose.msra.mxu0 0.0
    %6209 = vmatprep.subr.mxu0 0.0
    %6210 = vmatpush1.xpose.msra.mxu0 0.0
    %6211 = vmatprep.subr.mxu0 0.0
    %6212 = vmatpush1.xpose.msra.mxu0 0.0
    %6213 = vmatprep.subr.mxu0 0.0
    %6214 = vmatpush1.xpose.msra.mxu0 0.0
    %6215 = vmatprep.subr.mxu0 0.0
    %6216 = vmatpush1.xpose.msra.mxu0 0.0
    %6217 = vmatprep.subr.mxu0 0.0
    %6218 = vmatpush1.xpose.msra.mxu0 0.0
    %6219 = vmatprep.subr.mxu0 0.0
    %6220 = vmatpush1.xpose.msra.mxu0 0.0
    %6221 = vmatprep.subr.mxu0 0.0
    %6222 = vmatpush1.xpose.msra.mxu0 0.0
    %6223 = vmatprep.subr.mxu0 0.0
    %6224 = vmatpush1.xpose.msra.mxu0 0.0
    %6225 = vmatprep.subr.mxu0 0.0
    %6226 = vmatpush1.xpose.msra.mxu0 0.0
    %6227 = vmatprep.subr.mxu0 0.0
    %6228 = vmatpush1.xpose.msra.mxu0 0.0
    %6229 = vmatprep.subr.mxu0 0.0
    %6230 = vmatpush1.xpose.msra.mxu0 0.0
    %v6231 = vand.u32 %v3872, 4294901760
    %6232 = vmatprep.mubr.f32.mxu0 %v6231
    %v6233 = vand.u32 %v3871, 4294901760
    %6234 = vmatmul.mubr.f32.gmra.mrb[0].mxu0 %v6233
    %v6235 = vpop.f32.mrb[0].mxu0
    %v6236 = vadd.f32 %v6162, %v6235
    %v6237 = vpop.f32.mrb[0].mxu0
    %6238 = vdwg.mxu0
    %v6239 = vand.u32 %v3874, 4294901760
    %6240 = vmatprep.subr.mxu0 %v6239
    %v6241 = vand.u32 %v3873, 4294901760
    %6242 = vmatpush1.xpose.msra.mxu0 %v6241
    %6243 = vmatprep.subr.mxu0 0.0
    %6244 = vmatpush1.xpose.msra.mxu0 0.0
    %6245 = vmatprep.subr.mxu0 0.0
    %6246 = vmatpush1.xpose.msra.mxu0 0.0
    %6247 = vmatprep.subr.mxu0 0.0
    %6248 = vmatpush1.xpose.msra.mxu0 0.0
    %6249 = vmatprep.subr.mxu0 0.0
    %6250 = vmatpush1.xpose.msra.mxu0 0.0
    %6251 = vmatprep.subr.mxu0 0.0
    %6252 = vmatpush1.xpose.msra.mxu0 0.0
    %6253 = vmatprep.subr.mxu0 0.0
    %6254 = vmatpush1.xpose.msra.mxu0 0.0
    %6255 = vmatprep.subr.mxu0 0.0
    %6256 = vmatpush1.xpose.msra.mxu0 0.0
    %6257 = vmatprep.subr.mxu0 0.0
    %6258 = vmatpush1.xpose.msra.mxu0 0.0
    %6259 = vmatprep.subr.mxu0 0.0
    %6260 = vmatpush1.xpose.msra.mxu0 0.0
    %6261 = vmatprep.subr.mxu0 0.0
    %6262 = vmatpush1.xpose.msra.mxu0 0.0
    %6263 = vmatprep.subr.mxu0 0.0
    %6264 = vmatpush1.xpose.msra.mxu0 0.0
    %6265 = vmatprep.subr.mxu0 0.0
    %6266 = vmatpush1.xpose.msra.mxu0 0.0
    %6267 = vmatprep.subr.mxu0 0.0
    %6268 = vmatpush1.xpose.msra.mxu0 0.0
    %6269 = vmatprep.subr.mxu0 0.0
    %6270 = vmatpush1.xpose.msra.mxu0 0.0
    %6271 = vmatprep.subr.mxu0 0.0
    %6272 = vmatpush1.xpose.msra.mxu0 0.0
    %6273 = vmatprep.subr.mxu0 0.0
    %6274 = vmatpush1.xpose.msra.mxu0 0.0
    %6275 = vmatprep.subr.mxu0 0.0
    %6276 = vmatpush1.xpose.msra.mxu0 0.0
    %6277 = vmatprep.subr.mxu0 0.0
    %6278 = vmatpush1.xpose.msra.mxu0 0.0
    %6279 = vmatprep.subr.mxu0 0.0
    %6280 = vmatpush1.xpose.msra.mxu0 0.0
    %6281 = vmatprep.subr.mxu0 0.0
    %6282 = vmatpush1.xpose.msra.mxu0 0.0
    %6283 = vmatprep.subr.mxu0 0.0
    %6284 = vmatpush1.xpose.msra.mxu0 0.0
    %6285 = vmatprep.subr.mxu0 0.0
    %6286 = vmatpush1.xpose.msra.mxu0 0.0
    %6287 = vmatprep.subr.mxu0 0.0
    %6288 = vmatpush1.xpose.msra.mxu0 0.0
    %6289 = vmatprep.subr.mxu0 0.0
    %6290 = vmatpush1.xpose.msra.mxu0 0.0
    %6291 = vmatprep.subr.mxu0 0.0
    %6292 = vmatpush1.xpose.msra.mxu0 0.0
    %6293 = vmatprep.subr.mxu0 0.0
    %6294 = vmatpush1.xpose.msra.mxu0 0.0
    %6295 = vmatprep.subr.mxu0 0.0
    %6296 = vmatpush1.xpose.msra.mxu0 0.0
    %6297 = vmatprep.subr.mxu0 0.0
    %6298 = vmatpush1.xpose.msra.mxu0 0.0
    %6299 = vmatprep.subr.mxu0 0.0
    %6300 = vmatpush1.xpose.msra.mxu0 0.0
    %6301 = vmatprep.subr.mxu0 0.0
    %6302 = vmatpush1.xpose.msra.mxu0 0.0
    %6303 = vmatprep.subr.mxu0 0.0
    %6304 = vmatpush1.xpose.msra.mxu0 0.0
    %v6305 = vand.u32 %v3874, 4294901760
    %v6306 = vsub.f32 %v3874, %v6305
    %v6307 = vand.u32 %v6306, 4294901760
    %v6308 = vsub.f32 %v6306, %v6307
    %v6309 = vand.u32 %v6308, 4294901760
    %6310 = vmatprep.mubr.f32.mxu0 %v6309
    %v6311 = vand.u32 %v3873, 4294901760
    %v6312 = vsub.f32 %v3873, %v6311
    %v6313 = vand.u32 %v6312, 4294901760
    %v6314 = vsub.f32 %v6312, %v6313
    %v6315 = vand.u32 %v6314, 4294901760
    %6316 = vmatmul.mubr.f32.gmra.mrb[0].mxu0 %v6315
    %v6317 = vpop.f32.mrb[0].mxu0
    %v6318 = vadd.f32 %v6236, %v6317
    %v6319 = vpop.f32.mrb[0].mxu0
    %6320 = vdwg.mxu0
    %v6321 = vand.u32 %v3874, 4294901760
    %v6322 = vsub.f32 %v3874, %v6321
    %v6323 = vand.u32 %v6322, 4294901760
    %v6324 = vsub.f32 %v6322, %v6323
    %v6325 = vand.u32 %v6324, 4294901760
    %6326 = vmatprep.subr.mxu0 %v6325
    %v6327 = vand.u32 %v3873, 4294901760
    %v6328 = vsub.f32 %v3873, %v6327
    %v6329 = vand.u32 %v6328, 4294901760
    %v6330 = vsub.f32 %v6328, %v6329
    %v6331 = vand.u32 %v6330, 4294901760
    %6332 = vmatpush1.xpose.msra.mxu0 %v6331
    %6333 = vmatprep.subr.mxu0 0.0
    %6334 = vmatpush1.xpose.msra.mxu0 0.0
    %6335 = vmatprep.subr.mxu0 0.0
    %6336 = vmatpush1.xpose.msra.mxu0 0.0
    %6337 = vmatprep.subr.mxu0 0.0
    %6338 = vmatpush1.xpose.msra.mxu0 0.0
    %6339 = vmatprep.subr.mxu0 0.0
    %6340 = vmatpush1.xpose.msra.mxu0 0.0
    %6341 = vmatprep.subr.mxu0 0.0
    %6342 = vmatpush1.xpose.msra.mxu0 0.0
    %6343 = vmatprep.subr.mxu0 0.0
    %6344 = vmatpush1.xpose.msra.mxu0 0.0
    %6345 = vmatprep.subr.mxu0 0.0
    %6346 = vmatpush1.xpose.msra.mxu0 0.0
    %6347 = vmatprep.subr.mxu0 0.0
    %6348 = vmatpush1.xpose.msra.mxu0 0.0
    %6349 = vmatprep.subr.mxu0 0.0
    %6350 = vmatpush1.xpose.msra.mxu0 0.0
    %6351 = vmatprep.subr.mxu0 0.0
    %6352 = vmatpush1.xpose.msra.mxu0 0.0
    %6353 = vmatprep.subr.mxu0 0.0
    %6354 = vmatpush1.xpose.msra.mxu0 0.0
    %6355 = vmatprep.subr.mxu0 0.0
    %6356 = vmatpush1.xpose.msra.mxu0 0.0
    %6357 = vmatprep.subr.mxu0 0.0
    %6358 = vmatpush1.xpose.msra.mxu0 0.0
    %6359 = vmatprep.subr.mxu0 0.0
    %6360 = vmatpush1.xpose.msra.mxu0 0.0
    %6361 = vmatprep.subr.mxu0 0.0
    %6362 = vmatpush1.xpose.msra.mxu0 0.0
    %6363 = vmatprep.subr.mxu0 0.0
    %6364 = vmatpush1.xpose.msra.mxu0 0.0
    %6365 = vmatprep.subr.mxu0 0.0
    %6366 = vmatpush1.xpose.msra.mxu0 0.0
    %6367 = vmatprep.subr.mxu0 0.0
    %6368 = vmatpush1.xpose.msra.mxu0 0.0
    %6369 = vmatprep.subr.mxu0 0.0
    %6370 = vmatpush1.xpose.msra.mxu0 0.0
    %6371 = vmatprep.subr.mxu0 0.0
    %6372 = vmatpush1.xpose.msra.mxu0 0.0
    %6373 = vmatprep.subr.mxu0 0.0
    %6374 = vmatpush1.xpose.msra.mxu0 0.0
    %6375 = vmatprep.subr.mxu0 0.0
    %6376 = vmatpush1.xpose.msra.mxu0 0.0
    %6377 = vmatprep.subr.mxu0 0.0
    %6378 = vmatpush1.xpose.msra.mxu0 0.0
    %6379 = vmatprep.subr.mxu0 0.0
    %6380 = vmatpush1.xpose.msra.mxu0 0.0
    %6381 = vmatprep.subr.mxu0 0.0
    %6382 = vmatpush1.xpose.msra.mxu0 0.0
    %6383 = vmatprep.subr.mxu0 0.0
    %6384 = vmatpush1.xpose.msra.mxu0 0.0
    %6385 = vmatprep.subr.mxu0 0.0
    %6386 = vmatpush1.xpose.msra.mxu0 0.0
    %6387 = vmatprep.subr.mxu0 0.0
    %6388 = vmatpush1.xpose.msra.mxu0 0.0
    %6389 = vmatprep.subr.mxu0 0.0
    %6390 = vmatpush1.xpose.msra.mxu0 0.0
    %6391 = vmatprep.subr.mxu0 0.0
    %6392 = vmatpush1.xpose.msra.mxu0 0.0
    %6393 = vmatprep.subr.mxu0 0.0
    %6394 = vmatpush1.xpose.msra.mxu0 0.0
    %v6395 = vand.u32 %v3874, 4294901760
    %6396 = vmatprep.mubr.f32.mxu0 %v6395
    %v6397 = vand.u32 %v3873, 4294901760
    %6398 = vmatmul.mubr.f32.gmra.mrb[0].mxu0 %v6397
    %v6399 = vpop.f32.mrb[0].mxu0
    %v6400 = vadd.f32 %v6318, %v6399
    %v6401 = vpop.f32.mrb[0].mxu0
    %6402 = vdwg.mxu0
    %v6403 = vand.u32 %v3874, 4294901760
    %v6404 = vsub.f32 %v3874, %v6403
    %6405 = vmatprep.subr.mxu0 %v6404
    %v6406 = vand.u32 %v3873, 4294901760
    %v6407 = vsub.f32 %v3873, %v6406
    %6408 = vmatpush1.xpose.msra.mxu0 %v6407
    %6409 = vmatprep.subr.mxu0 0.0
    %6410 = vmatpush1.xpose.msra.mxu0 0.0
    %6411 = vmatprep.subr.mxu0 0.0
    %6412 = vmatpush1.xpose.msra.mxu0 0.0
    %6413 = vmatprep.subr.mxu0 0.0
    %6414 = vmatpush1.xpose.msra.mxu0 0.0
    %6415 = vmatprep.subr.mxu0 0.0
    %6416 = vmatpush1.xpose.msra.mxu0 0.0
    %6417 = vmatprep.subr.mxu0 0.0
    %6418 = vmatpush1.xpose.msra.mxu0 0.0
    %6419 = vmatprep.subr.mxu0 0.0
    %6420 = vmatpush1.xpose.msra.mxu0 0.0
    %6421 = vmatprep.subr.mxu0 0.0
    %6422 = vmatpush1.xpose.msra.mxu0 0.0
    %6423 = vmatprep.subr.mxu0 0.0
    %6424 = vmatpush1.xpose.msra.mxu0 0.0
    %6425 = vmatprep.subr.mxu0 0.0
    %6426 = vmatpush1.xpose.msra.mxu0 0.0
    %6427 = vmatprep.subr.mxu0 0.0
    %6428 = vmatpush1.xpose.msra.mxu0 0.0
    %6429 = vmatprep.subr.mxu0 0.0
    %6430 = vmatpush1.xpose.msra.mxu0 0.0
    %6431 = vmatprep.subr.mxu0 0.0
    %6432 = vmatpush1.xpose.msra.mxu0 0.0
    %6433 = vmatprep.subr.mxu0 0.0
    %6434 = vmatpush1.xpose.msra.mxu0 0.0
    %6435 = vmatprep.subr.mxu0 0.0
    %6436 = vmatpush1.xpose.msra.mxu0 0.0
    %6437 = vmatprep.subr.mxu0 0.0
    %6438 = vmatpush1.xpose.msra.mxu0 0.0
    %6439 = vmatprep.subr.mxu0 0.0
    %6440 = vmatpush1.xpose.msra.mxu0 0.0
    %6441 = vmatprep.subr.mxu0 0.0
    %6442 = vmatpush1.xpose.msra.mxu0 0.0
    %6443 = vmatprep.subr.mxu0 0.0
    %6444 = vmatpush1.xpose.msra.mxu0 0.0
    %6445 = vmatprep.subr.mxu0 0.0
    %6446 = vmatpush1.xpose.msra.mxu0 0.0
    %6447 = vmatprep.subr.mxu0 0.0
    %6448 = vmatpush1.xpose.msra.mxu0 0.0
    %6449 = vmatprep.subr.mxu0 0.0
    %6450 = vmatpush1.xpose.msra.mxu0 0.0
    %6451 = vmatprep.subr.mxu0 0.0
    %6452 = vmatpush1.xpose.msra.mxu0 0.0
    %6453 = vmatprep.subr.mxu0 0.0
    %6454 = vmatpush1.xpose.msra.mxu0 0.0
    %6455 = vmatprep.subr.mxu0 0.0
    %6456 = vmatpush1.xpose.msra.mxu0 0.0
    %6457 = vmatprep.subr.mxu0 0.0
    %6458 = vmatpush1.xpose.msra.mxu0 0.0
    %6459 = vmatprep.subr.mxu0 0.0
    %6460 = vmatpush1.xpose.msra.mxu0 0.0
    %6461 = vmatprep.subr.mxu0 0.0
    %6462 = vmatpush1.xpose.msra.mxu0 0.0
    %6463 = vmatprep.subr.mxu0 0.0
    %6464 = vmatpush1.xpose.msra.mxu0 0.0
    %6465 = vmatprep.subr.mxu0 0.0
    %6466 = vmatpush1.xpose.msra.mxu0 0.0
    %6467 = vmatprep.subr.mxu0 0.0
    %6468 = vmatpush1.xpose.msra.mxu0 0.0
    %6469 = vmatprep.subr.mxu0 0.0
    %6470 = vmatpush1.xpose.msra.mxu0 0.0
    %v6471 = vand.u32 %v3874, 4294901760
    %v6472 = vsub.f32 %v3874, %v6471
    %6473 = vmatprep.mubr.f32.mxu0 %v6472
    %v6474 = vand.u32 %v3873, 4294901760
    %v6475 = vsub.f32 %v3873, %v6474
    %6476 = vmatmul.mubr.f32.gmra.mrb[0].mxu0 %v6475
    %v6477 = vpop.f32.mrb[0].mxu0
    %v6478 = vadd.f32 %v6400, %v6477
    %v6479 = vpop.f32.mrb[0].mxu0
    %6480 = vdwg.mxu0
    %v6481 = vand.u32 %v3874, 4294901760
    %6482 = vmatprep.subr.mxu0 %v6481
    %v6483 = vand.u32 %v3873, 4294901760
    %6484 = vmatpush1.xpose.msra.mxu0 %v6483
    %6485 = vmatprep.subr.mxu0 0.0
    %6486 = vmatpush1.xpose.msra.mxu0 0.0
    %6487 = vmatprep.subr.mxu0 0.0
    %6488 = vmatpush1.xpose.msra.mxu0 0.0
    %6489 = vmatprep.subr.mxu0 0.0
    %6490 = vmatpush1.xpose.msra.mxu0 0.0
    %6491 = vmatprep.subr.mxu0 0.0
    %6492 = vmatpush1.xpose.msra.mxu0 0.0
    %6493 = vmatprep.subr.mxu0 0.0
    %6494 = vmatpush1.xpose.msra.mxu0 0.0
    %6495 = vmatprep.subr.mxu0 0.0
    %6496 = vmatpush1.xpose.msra.mxu0 0.0
    %6497 = vmatprep.subr.mxu0 0.0
    %6498 = vmatpush1.xpose.msra.mxu0 0.0
    %6499 = vmatprep.subr.mxu0 0.0
    %6500 = vmatpush1.xpose.msra.mxu0 0.0
    %6501 = vmatprep.subr.mxu0 0.0
    %6502 = vmatpush1.xpose.msra.mxu0 0.0
    %6503 = vmatprep.subr.mxu0 0.0
    %6504 = vmatpush1.xpose.msra.mxu0 0.0
    %6505 = vmatprep.subr.mxu0 0.0
    %6506 = vmatpush1.xpose.msra.mxu0 0.0
    %6507 = vmatprep.subr.mxu0 0.0
    %6508 = vmatpush1.xpose.msra.mxu0 0.0
    %6509 = vmatprep.subr.mxu0 0.0
    %6510 = vmatpush1.xpose.msra.mxu0 0.0
    %6511 = vmatprep.subr.mxu0 0.0
    %6512 = vmatpush1.xpose.msra.mxu0 0.0
    %6513 = vmatprep.subr.mxu0 0.0
    %6514 = vmatpush1.xpose.msra.mxu0 0.0
    %6515 = vmatprep.subr.mxu0 0.0
    %6516 = vmatpush1.xpose.msra.mxu0 0.0
    %6517 = vmatprep.subr.mxu0 0.0
    %6518 = vmatpush1.xpose.msra.mxu0 0.0
    %6519 = vmatprep.subr.mxu0 0.0
    %6520 = vmatpush1.xpose.msra.mxu0 0.0
    %6521 = vmatprep.subr.mxu0 0.0
    %6522 = vmatpush1.xpose.msra.mxu0 0.0
    %6523 = vmatprep.subr.mxu0 0.0
    %6524 = vmatpush1.xpose.msra.mxu0 0.0
    %6525 = vmatprep.subr.mxu0 0.0
    %6526 = vmatpush1.xpose.msra.mxu0 0.0
    %6527 = vmatprep.subr.mxu0 0.0
    %6528 = vmatpush1.xpose.msra.mxu0 0.0
    %6529 = vmatprep.subr.mxu0 0.0
    %6530 = vmatpush1.xpose.msra.mxu0 0.0
    %6531 = vmatprep.subr.mxu0 0.0
    %6532 = vmatpush1.xpose.msra.mxu0 0.0
    %6533 = vmatprep.subr.mxu0 0.0
    %6534 = vmatpush1.xpose.msra.mxu0 0.0
    %6535 = vmatprep.subr.mxu0 0.0
    %6536 = vmatpush1.xpose.msra.mxu0 0.0
    %6537 = vmatprep.subr.mxu0 0.0
    %6538 = vmatpush1.xpose.msra.mxu0 0.0
    %6539 = vmatprep.subr.mxu0 0.0
    %6540 = vmatpush1.xpose.msra.mxu0 0.0
    %6541 = vmatprep.subr.mxu0 0.0
    %6542 = vmatpush1.xpose.msra.mxu0 0.0
    %6543 = vmatprep.subr.mxu0 0.0
    %6544 = vmatpush1.xpose.msra.mxu0 0.0
    %6545 = vmatprep.subr.mxu0 0.0
    %6546 = vmatpush1.xpose.msra.mxu0 0.0
    %v6547 = vand.u32 %v3874, 4294901760
    %v6548 = vsub.f32 %v3874, %v6547
    %v6549 = vand.u32 %v6548, 4294901760
    %6550 = vmatprep.mubr.f32.mxu0 %v6549
    %v6551 = vand.u32 %v3873, 4294901760
    %v6552 = vsub.f32 %v3873, %v6551
    %v6553 = vand.u32 %v6552, 4294901760
    %6554 = vmatmul.mubr.f32.gmra.mrb[0].mxu0 %v6553
    %v6555 = vpop.f32.mrb[0].mxu0
    %v6556 = vadd.f32 %v6478, %v6555
    %v6557 = vpop.f32.mrb[0].mxu0
    %6558 = vdwg.mxu0
    %v6559 = vand.u32 %v3874, 4294901760
    %v6560 = vsub.f32 %v3874, %v6559
    %v6561 = vand.u32 %v6560, 4294901760
    %6562 = vmatprep.subr.mxu0 %v6561
    %v6563 = vand.u32 %v3873, 4294901760
    %v6564 = vsub.f32 %v3873, %v6563
    %v6565 = vand.u32 %v6564, 4294901760
    %6566 = vmatpush1.xpose.msra.mxu0 %v6565
    %6567 = vmatprep.subr.mxu0 0.0
    %6568 = vmatpush1.xpose.msra.mxu0 0.0
    %6569 = vmatprep.subr.mxu0 0.0
    %6570 = vmatpush1.xpose.msra.mxu0 0.0
    %6571 = vmatprep.subr.mxu0 0.0
    %6572 = vmatpush1.xpose.msra.mxu0 0.0
    %6573 = vmatprep.subr.mxu0 0.0
    %6574 = vmatpush1.xpose.msra.mxu0 0.0
    %6575 = vmatprep.subr.mxu0 0.0
    %6576 = vmatpush1.xpose.msra.mxu0 0.0
    %6577 = vmatprep.subr.mxu0 0.0
    %6578 = vmatpush1.xpose.msra.mxu0 0.0
    %6579 = vmatprep.subr.mxu0 0.0
    %6580 = vmatpush1.xpose.msra.mxu0 0.0
    %6581 = vmatprep.subr.mxu0 0.0
    %6582 = vmatpush1.xpose.msra.mxu0 0.0
    %6583 = vmatprep.subr.mxu0 0.0
    %6584 = vmatpush1.xpose.msra.mxu0 0.0
    %6585 = vmatprep.subr.mxu0 0.0
    %6586 = vmatpush1.xpose.msra.mxu0 0.0
    %6587 = vmatprep.subr.mxu0 0.0
    %6588 = vmatpush1.xpose.msra.mxu0 0.0
    %6589 = vmatprep.subr.mxu0 0.0
    %6590 = vmatpush1.xpose.msra.mxu0 0.0
    %6591 = vmatprep.subr.mxu0 0.0
    %6592 = vmatpush1.xpose.msra.mxu0 0.0
    %6593 = vmatprep.subr.mxu0 0.0
    %6594 = vmatpush1.xpose.msra.mxu0 0.0
    %6595 = vmatprep.subr.mxu0 0.0
    %6596 = vmatpush1.xpose.msra.mxu0 0.0
    %6597 = vmatprep.subr.mxu0 0.0
    %6598 = vmatpush1.xpose.msra.mxu0 0.0
    %6599 = vmatprep.subr.mxu0 0.0
    %6600 = vmatpush1.xpose.msra.mxu0 0.0
    %6601 = vmatprep.subr.mxu0 0.0
    %6602 = vmatpush1.xpose.msra.mxu0 0.0
    %6603 = vmatprep.subr.mxu0 0.0
    %6604 = vmatpush1.xpose.msra.mxu0 0.0
    %6605 = vmatprep.subr.mxu0 0.0
    %6606 = vmatpush1.xpose.msra.mxu0 0.0
    %6607 = vmatprep.subr.mxu0 0.0
    %6608 = vmatpush1.xpose.msra.mxu0 0.0
    %6609 = vmatprep.subr.mxu0 0.0
    %6610 = vmatpush1.xpose.msra.mxu0 0.0
    %6611 = vmatprep.subr.mxu0 0.0
    %6612 = vmatpush1.xpose.msra.mxu0 0.0
    %6613 = vmatprep.subr.mxu0 0.0
    %6614 = vmatpush1.xpose.msra.mxu0 0.0
    %6615 = vmatprep.subr.mxu0 0.0
    %6616 = vmatpush1.xpose.msra.mxu0 0.0
    %6617 = vmatprep.subr.mxu0 0.0
    %6618 = vmatpush1.xpose.msra.mxu0 0.0
    %6619 = vmatprep.subr.mxu0 0.0
    %6620 = vmatpush1.xpose.msra.mxu0 0.0
    %6621 = vmatprep.subr.mxu0 0.0
    %6622 = vmatpush1.xpose.msra.mxu0 0.0
    %6623 = vmatprep.subr.mxu0 0.0
    %6624 = vmatpush1.xpose.msra.mxu0 0.0
    %6625 = vmatprep.subr.mxu0 0.0
    %6626 = vmatpush1.xpose.msra.mxu0 0.0
    %6627 = vmatprep.subr.mxu0 0.0
    %6628 = vmatpush1.xpose.msra.mxu0 0.0
    %v6629 = vand.u32 %v3874, 4294901760
    %6630 = vmatprep.mubr.f32.mxu0 %v6629
    %v6631 = vand.u32 %v3873, 4294901760
    %6632 = vmatmul.mubr.f32.gmra.mrb[0].mxu0 %v6631
    %v6633 = vpop.f32.mrb[0].mxu0
    %v6634 = vadd.f32 %v6556, %v6633
    %v6635 = vpop.f32.mrb[0].mxu0
    %6636 = vdwg.mxu0
    %v6637 = vand.u32 %v3874, 4294901760
    %6638 = vmatprep.subr.mxu0 %v6637
    %v6639 = vand.u32 %v3873, 4294901760
    %6640 = vmatpush1.xpose.msra.mxu0 %v6639
    %6641 = vmatprep.subr.mxu0 0.0
    %6642 = vmatpush1.xpose.msra.mxu0 0.0
    %6643 = vmatprep.subr.mxu0 0.0
    %6644 = vmatpush1.xpose.msra.mxu0 0.0
    %6645 = vmatprep.subr.mxu0 0.0
    %6646 = vmatpush1.xpose.msra.mxu0 0.0
    %6647 = vmatprep.subr.mxu0 0.0
    %6648 = vmatpush1.xpose.msra.mxu0 0.0
    %6649 = vmatprep.subr.mxu0 0.0
    %6650 = vmatpush1.xpose.msra.mxu0 0.0
    %6651 = vmatprep.subr.mxu0 0.0
    %6652 = vmatpush1.xpose.msra.mxu0 0.0
    %6653 = vmatprep.subr.mxu0 0.0
    %6654 = vmatpush1.xpose.msra.mxu0 0.0
    %6655 = vmatprep.subr.mxu0 0.0
    %6656 = vmatpush1.xpose.msra.mxu0 0.0
    %6657 = vmatprep.subr.mxu0 0.0
    %6658 = vmatpush1.xpose.msra.mxu0 0.0
    %6659 = vmatprep.subr.mxu0 0.0
    %6660 = vmatpush1.xpose.msra.mxu0 0.0
    %6661 = vmatprep.subr.mxu0 0.0
    %6662 = vmatpush1.xpose.msra.mxu0 0.0
    %6663 = vmatprep.subr.mxu0 0.0
    %6664 = vmatpush1.xpose.msra.mxu0 0.0
    %6665 = vmatprep.subr.mxu0 0.0
    %6666 = vmatpush1.xpose.msra.mxu0 0.0
    %6667 = vmatprep.subr.mxu0 0.0
    %6668 = vmatpush1.xpose.msra.mxu0 0.0
    %6669 = vmatprep.subr.mxu0 0.0
    %6670 = vmatpush1.xpose.msra.mxu0 0.0
    %6671 = vmatprep.subr.mxu0 0.0
    %6672 = vmatpush1.xpose.msra.mxu0 0.0
    %6673 = vmatprep.subr.mxu0 0.0
    %6674 = vmatpush1.xpose.msra.mxu0 0.0
    %6675 = vmatprep.subr.mxu0 0.0
    %6676 = vmatpush1.xpose.msra.mxu0 0.0
    %6677 = vmatprep.subr.mxu0 0.0
    %6678 = vmatpush1.xpose.msra.mxu0 0.0
    %6679 = vmatprep.subr.mxu0 0.0
    %6680 = vmatpush1.xpose.msra.mxu0 0.0
    %6681 = vmatprep.subr.mxu0 0.0
    %6682 = vmatpush1.xpose.msra.mxu0 0.0
    %6683 = vmatprep.subr.mxu0 0.0
    %6684 = vmatpush1.xpose.msra.mxu0 0.0
    %6685 = vmatprep.subr.mxu0 0.0
    %6686 = vmatpush1.xpose.msra.mxu0 0.0
    %6687 = vmatprep.subr.mxu0 0.0
    %6688 = vmatpush1.xpose.msra.mxu0 0.0
    %6689 = vmatprep.subr.mxu0 0.0
    %6690 = vmatpush1.xpose.msra.mxu0 0.0
    %6691 = vmatprep.subr.mxu0 0.0
    %6692 = vmatpush1.xpose.msra.mxu0 0.0
    %6693 = vmatprep.subr.mxu0 0.0
    %6694 = vmatpush1.xpose.msra.mxu0 0.0
    %6695 = vmatprep.subr.mxu0 0.0
    %6696 = vmatpush1.xpose.msra.mxu0 0.0
    %6697 = vmatprep.subr.mxu0 0.0
    %6698 = vmatpush1.xpose.msra.mxu0 0.0
    %6699 = vmatprep.subr.mxu0 0.0
    %6700 = vmatpush1.xpose.msra.mxu0 0.0
    %6701 = vmatprep.subr.mxu0 0.0
    %6702 = vmatpush1.xpose.msra.mxu0 0.0
    %v6703 = vand.u32 %v3874, 4294901760
    %6704 = vmatprep.mubr.f32.mxu0 %v6703
    %v6705 = vand.u32 %v3873, 4294901760
    %6706 = vmatmul.mubr.f32.gmra.mrb[0].mxu0 %v6705
    %v6707 = vpop.f32.mrb[0].mxu0
    %v6708 = vadd.f32 %v6634, %v6707
    %v6709 = vpop.f32.mrb[0].mxu0
    %6710 = vdwg.mxu0
    %v6711 = vand.u32 %v3876, 4294901760
    %6712 = vmatprep.subr.mxu0 %v6711
    %v6713 = vand.u32 %v3875, 4294901760
    %6714 = vmatpush1.xpose.msra.mxu0 %v6713
    %6715 = vmatprep.subr.mxu0 0.0
    %6716 = vmatpush1.xpose.msra.mxu0 0.0
    %6717 = vmatprep.subr.mxu0 0.0
    %6718 = vmatpush1.xpose.msra.mxu0 0.0
    %6719 = vmatprep.subr.mxu0 0.0
    %6720 = vmatpush1.xpose.msra.mxu0 0.0
    %6721 = vmatprep.subr.mxu0 0.0
    %6722 = vmatpush1.xpose.msra.mxu0 0.0
    %6723 = vmatprep.subr.mxu0 0.0
    %6724 = vmatpush1.xpose.msra.mxu0 0.0
    %6725 = vmatprep.subr.mxu0 0.0
    %6726 = vmatpush1.xpose.msra.mxu0 0.0
    %6727 = vmatprep.subr.mxu0 0.0
    %6728 = vmatpush1.xpose.msra.mxu0 0.0
    %6729 = vmatprep.subr.mxu0 0.0
    %6730 = vmatpush1.xpose.msra.mxu0 0.0
    %6731 = vmatprep.subr.mxu0 0.0
    %6732 = vmatpush1.xpose.msra.mxu0 0.0
    %6733 = vmatprep.subr.mxu0 0.0
    %6734 = vmatpush1.xpose.msra.mxu0 0.0
    %6735 = vmatprep.subr.mxu0 0.0
    %6736 = vmatpush1.xpose.msra.mxu0 0.0
    %6737 = vmatprep.subr.mxu0 0.0
    %6738 = vmatpush1.xpose.msra.mxu0 0.0
    %6739 = vmatprep.subr.mxu0 0.0
    %6740 = vmatpush1.xpose.msra.mxu0 0.0
    %6741 = vmatprep.subr.mxu0 0.0
    %6742 = vmatpush1.xpose.msra.mxu0 0.0
    %6743 = vmatprep.subr.mxu0 0.0
    %6744 = vmatpush1.xpose.msra.mxu0 0.0
    %6745 = vmatprep.subr.mxu0 0.0
    %6746 = vmatpush1.xpose.msra.mxu0 0.0
    %6747 = vmatprep.subr.mxu0 0.0
    %6748 = vmatpush1.xpose.msra.mxu0 0.0
    %6749 = vmatprep.subr.mxu0 0.0
    %6750 = vmatpush1.xpose.msra.mxu0 0.0
    %6751 = vmatprep.subr.mxu0 0.0
    %6752 = vmatpush1.xpose.msra.mxu0 0.0
    %6753 = vmatprep.subr.mxu0 0.0
    %6754 = vmatpush1.xpose.msra.mxu0 0.0
    %6755 = vmatprep.subr.mxu0 0.0
    %6756 = vmatpush1.xpose.msra.mxu0 0.0
    %6757 = vmatprep.subr.mxu0 0.0
    %6758 = vmatpush1.xpose.msra.mxu0 0.0
    %6759 = vmatprep.subr.mxu0 0.0
    %6760 = vmatpush1.xpose.msra.mxu0 0.0
    %6761 = vmatprep.subr.mxu0 0.0
    %6762 = vmatpush1.xpose.msra.mxu0 0.0
    %6763 = vmatprep.subr.mxu0 0.0
    %6764 = vmatpush1.xpose.msra.mxu0 0.0
    %6765 = vmatprep.subr.mxu0 0.0
    %6766 = vmatpush1.xpose.msra.mxu0 0.0
    %6767 = vmatprep.subr.mxu0 0.0
    %6768 = vmatpush1.xpose.msra.mxu0 0.0
    %6769 = vmatprep.subr.mxu0 0.0
    %6770 = vmatpush1.xpose.msra.mxu0 0.0
    %6771 = vmatprep.subr.mxu0 0.0
    %6772 = vmatpush1.xpose.msra.mxu0 0.0
    %6773 = vmatprep.subr.mxu0 0.0
    %6774 = vmatpush1.xpose.msra.mxu0 0.0
    %6775 = vmatprep.subr.mxu0 0.0
    %6776 = vmatpush1.xpose.msra.mxu0 0.0
    %v6777 = vand.u32 %v3876, 4294901760
    %v6778 = vsub.f32 %v3876, %v6777
    %v6779 = vand.u32 %v6778, 4294901760
    %v6780 = vsub.f32 %v6778, %v6779
    %v6781 = vand.u32 %v6780, 4294901760
    %6782 = vmatprep.mubr.f32.mxu0 %v6781
    %v6783 = vand.u32 %v3875, 4294901760
    %v6784 = vsub.f32 %v3875, %v6783
    %v6785 = vand.u32 %v6784, 4294901760
    %v6786 = vsub.f32 %v6784, %v6785
    %v6787 = vand.u32 %v6786, 4294901760
    %6788 = vmatmul.mubr.f32.gmra.mrb[0].mxu0 %v6787
    %v6789 = vpop.f32.mrb[0].mxu0
    %v6790 = vadd.f32 %v6708, %v6789
    %v6791 = vpop.f32.mrb[0].mxu0
    %6792 = vdwg.mxu0
    %v6793 = vand.u32 %v3876, 4294901760
    %v6794 = vsub.f32 %v3876, %v6793
    %v6795 = vand.u32 %v6794, 4294901760
    %v6796 = vsub.f32 %v6794, %v6795
    %v6797 = vand.u32 %v6796, 4294901760
    %6798 = vmatprep.subr.mxu0 %v6797
    %v6799 = vand.u32 %v3875, 4294901760
    %v6800 = vsub.f32 %v3875, %v6799
    %v6801 = vand.u32 %v6800, 4294901760
    %v6802 = vsub.f32 %v6800, %v6801
    %v6803 = vand.u32 %v6802, 4294901760
    %6804 = vmatpush1.xpose.msra.mxu0 %v6803
    %6805 = vmatprep.subr.mxu0 0.0
    %6806 = vmatpush1.xpose.msra.mxu0 0.0
    %6807 = vmatprep.subr.mxu0 0.0
    %6808 = vmatpush1.xpose.msra.mxu0 0.0
    %6809 = vmatprep.subr.mxu0 0.0
    %6810 = vmatpush1.xpose.msra.mxu0 0.0
    %6811 = vmatprep.subr.mxu0 0.0
    %6812 = vmatpush1.xpose.msra.mxu0 0.0
    %6813 = vmatprep.subr.mxu0 0.0
    %6814 = vmatpush1.xpose.msra.mxu0 0.0
    %6815 = vmatprep.subr.mxu0 0.0
    %6816 = vmatpush1.xpose.msra.mxu0 0.0
    %6817 = vmatprep.subr.mxu0 0.0
    %6818 = vmatpush1.xpose.msra.mxu0 0.0
    %6819 = vmatprep.subr.mxu0 0.0
    %6820 = vmatpush1.xpose.msra.mxu0 0.0
    %6821 = vmatprep.subr.mxu0 0.0
    %6822 = vmatpush1.xpose.msra.mxu0 0.0
    %6823 = vmatprep.subr.mxu0 0.0
    %6824 = vmatpush1.xpose.msra.mxu0 0.0
    %6825 = vmatprep.subr.mxu0 0.0
    %6826 = vmatpush1.xpose.msra.mxu0 0.0
    %6827 = vmatprep.subr.mxu0 0.0
    %6828 = vmatpush1.xpose.msra.mxu0 0.0
    %6829 = vmatprep.subr.mxu0 0.0
    %6830 = vmatpush1.xpose.msra.mxu0 0.0
    %6831 = vmatprep.subr.mxu0 0.0
    %6832 = vmatpush1.xpose.msra.mxu0 0.0
    %6833 = vmatprep.subr.mxu0 0.0
    %6834 = vmatpush1.xpose.msra.mxu0 0.0
    %6835 = vmatprep.subr.mxu0 0.0
    %6836 = vmatpush1.xpose.msra.mxu0 0.0
    %6837 = vmatprep.subr.mxu0 0.0
    %6838 = vmatpush1.xpose.msra.mxu0 0.0
    %6839 = vmatprep.subr.mxu0 0.0
    %6840 = vmatpush1.xpose.msra.mxu0 0.0
    %6841 = vmatprep.subr.mxu0 0.0
    %6842 = vmatpush1.xpose.msra.mxu0 0.0
    %6843 = vmatprep.subr.mxu0 0.0
    %6844 = vmatpush1.xpose.msra.mxu0 0.0
    %6845 = vmatprep.subr.mxu0 0.0
    %6846 = vmatpush1.xpose.msra.mxu0 0.0
    %6847 = vmatprep.subr.mxu0 0.0
    %6848 = vmatpush1.xpose.msra.mxu0 0.0
    %6849 = vmatprep.subr.mxu0 0.0
    %6850 = vmatpush1.xpose.msra.mxu0 0.0
    %6851 = vmatprep.subr.mxu0 0.0
    %6852 = vmatpush1.xpose.msra.mxu0 0.0
    %6853 = vmatprep.subr.mxu0 0.0
    %6854 = vmatpush1.xpose.msra.mxu0 0.0
    %6855 = vmatprep.subr.mxu0 0.0
    %6856 = vmatpush1.xpose.msra.mxu0 0.0
    %6857 = vmatprep.subr.mxu0 0.0
    %6858 = vmatpush1.xpose.msra.mxu0 0.0
    %6859 = vmatprep.subr.mxu0 0.0
    %6860 = vmatpush1.xpose.msra.mxu0 0.0
    %6861 = vmatprep.subr.mxu0 0.0
    %6862 = vmatpush1.xpose.msra.mxu0 0.0
    %6863 = vmatprep.subr.mxu0 0.0
    %6864 = vmatpush1.xpose.msra.mxu0 0.0
    %6865 = vmatprep.subr.mxu0 0.0
    %6866 = vmatpush1.xpose.msra.mxu0 0.0
    %v6867 = vand.u32 %v3876, 4294901760
    %6868 = vmatprep.mubr.f32.mxu0 %v6867
    %v6869 = vand.u32 %v3875, 4294901760
    %6870 = vmatmul.mubr.f32.gmra.mrb[0].mxu0 %v6869
    %v6871 = vpop.f32.mrb[0].mxu0
    %v6872 = vadd.f32 %v6790, %v6871
    %v6873 = vpop.f32.mrb[0].mxu0
    %6874 = vdwg.mxu0
    %v6875 = vand.u32 %v3876, 4294901760
    %v6876 = vsub.f32 %v3876, %v6875
    %6877 = vmatprep.subr.mxu0 %v6876
    %v6878 = vand.u32 %v3875, 4294901760
    %v6879 = vsub.f32 %v3875, %v6878
    %6880 = vmatpush1.xpose.msra.mxu0 %v6879
    %6881 = vmatprep.subr.mxu0 0.0
    %6882 = vmatpush1.xpose.msra.mxu0 0.0
    %6883 = vmatprep.subr.mxu0 0.0
    %6884 = vmatpush1.xpose.msra.mxu0 0.0
    %6885 = vmatprep.subr.mxu0 0.0
    %6886 = vmatpush1.xpose.msra.mxu0 0.0
    %6887 = vmatprep.subr.mxu0 0.0
    %6888 = vmatpush1.xpose.msra.mxu0 0.0
    %6889 = vmatprep.subr.mxu0 0.0
    %6890 = vmatpush1.xpose.msra.mxu0 0.0
    %6891 = vmatprep.subr.mxu0 0.0
    %6892 = vmatpush1.xpose.msra.mxu0 0.0
    %6893 = vmatprep.subr.mxu0 0.0
    %6894 = vmatpush1.xpose.msra.mxu0 0.0
    %6895 = vmatprep.subr.mxu0 0.0
    %6896 = vmatpush1.xpose.msra.mxu0 0.0
    %6897 = vmatprep.subr.mxu0 0.0
    %6898 = vmatpush1.xpose.msra.mxu0 0.0
    %6899 = vmatprep.subr.mxu0 0.0
    %6900 = vmatpush1.xpose.msra.mxu0 0.0
    %6901 = vmatprep.subr.mxu0 0.0
    %6902 = vmatpush1.xpose.msra.mxu0 0.0
    %6903 = vmatprep.subr.mxu0 0.0
    %6904 = vmatpush1.xpose.msra.mxu0 0.0
    %6905 = vmatprep.subr.mxu0 0.0
    %6906 = vmatpush1.xpose.msra.mxu0 0.0
    %6907 = vmatprep.subr.mxu0 0.0
    %6908 = vmatpush1.xpose.msra.mxu0 0.0
    %6909 = vmatprep.subr.mxu0 0.0
    %6910 = vmatpush1.xpose.msra.mxu0 0.0
    %6911 = vmatprep.subr.mxu0 0.0
    %6912 = vmatpush1.xpose.msra.mxu0 0.0
    %6913 = vmatprep.subr.mxu0 0.0
    %6914 = vmatpush1.xpose.msra.mxu0 0.0
    %6915 = vmatprep.subr.mxu0 0.0
    %6916 = vmatpush1.xpose.msra.mxu0 0.0
    %6917 = vmatprep.subr.mxu0 0.0
    %6918 = vmatpush1.xpose.msra.mxu0 0.0
    %6919 = vmatprep.subr.mxu0 0.0
    %6920 = vmatpush1.xpose.msra.mxu0 0.0
    %6921 = vmatprep.subr.mxu0 0.0
    %6922 = vmatpush1.xpose.msra.mxu0 0.0
    %6923 = vmatprep.subr.mxu0 0.0
    %6924 = vmatpush1.xpose.msra.mxu0 0.0
    %6925 = vmatprep.subr.mxu0 0.0
    %6926 = vmatpush1.xpose.msra.mxu0 0.0
    %6927 = vmatprep.subr.mxu0 0.0
    %6928 = vmatpush1.xpose.msra.mxu0 0.0
    %6929 = vmatprep.subr.mxu0 0.0
    %6930 = vmatpush1.xpose.msra.mxu0 0.0
    %6931 = vmatprep.subr.mxu0 0.0
    %6932 = vmatpush1.xpose.msra.mxu0 0.0
    %6933 = vmatprep.subr.mxu0 0.0
    %6934 = vmatpush1.xpose.msra.mxu0 0.0
    %6935 = vmatprep.subr.mxu0 0.0
    %6936 = vmatpush1.xpose.msra.mxu0 0.0
    %6937 = vmatprep.subr.mxu0 0.0
    %6938 = vmatpush1.xpose.msra.mxu0 0.0
    %6939 = vmatprep.subr.mxu0 0.0
    %6940 = vmatpush1.xpose.msra.mxu0 0.0
    %6941 = vmatprep.subr.mxu0 0.0
    %6942 = vmatpush1.xpose.msra.mxu0 0.0
    %v6943 = vand.u32 %v3876, 4294901760
    %v6944 = vsub.f32 %v3876, %v6943
    %6945 = vmatprep.mubr.f32.mxu0 %v6944
    %v6946 = vand.u32 %v3875, 4294901760
    %v6947 = vsub.f32 %v3875, %v6946
    %6948 = vmatmul.mubr.f32.gmra.mrb[0].mxu0 %v6947
    %v6949 = vpop.f32.mrb[0].mxu0
    %v6950 = vadd.f32 %v6872, %v6949
    %v6951 = vpop.f32.mrb[0].mxu0
    %6952 = vdwg.mxu0
    %v6953 = vand.u32 %v3876, 4294901760
    %6954 = vmatprep.subr.mxu0 %v6953
    %v6955 = vand.u32 %v3875, 4294901760
    %6956 = vmatpush1.xpose.msra.mxu0 %v6955
    %6957 = vmatprep.subr.mxu0 0.0
    %6958 = vmatpush1.xpose.msra.mxu0 0.0
    %6959 = vmatprep.subr.mxu0 0.0
    %6960 = vmatpush1.xpose.msra.mxu0 0.0
    %6961 = vmatprep.subr.mxu0 0.0
    %6962 = vmatpush1.xpose.msra.mxu0 0.0
    %6963 = vmatprep.subr.mxu0 0.0
    %6964 = vmatpush1.xpose.msra.mxu0 0.0
    %6965 = vmatprep.subr.mxu0 0.0
    %6966 = vmatpush1.xpose.msra.mxu0 0.0
    %6967 = vmatprep.subr.mxu0 0.0
    %6968 = vmatpush1.xpose.msra.mxu0 0.0
    %6969 = vmatprep.subr.mxu0 0.0
    %6970 = vmatpush1.xpose.msra.mxu0 0.0
    %6971 = vmatprep.subr.mxu0 0.0
    %6972 = vmatpush1.xpose.msra.mxu0 0.0
    %6973 = vmatprep.subr.mxu0 0.0
    %6974 = vmatpush1.xpose.msra.mxu0 0.0
    %6975 = vmatprep.subr.mxu0 0.0
    %6976 = vmatpush1.xpose.msra.mxu0 0.0
    %6977 = vmatprep.subr.mxu0 0.0
    %6978 = vmatpush1.xpose.msra.mxu0 0.0
    %6979 = vmatprep.subr.mxu0 0.0
    %6980 = vmatpush1.xpose.msra.mxu0 0.0
    %6981 = vmatprep.subr.mxu0 0.0
    %6982 = vmatpush1.xpose.msra.mxu0 0.0
    %6983 = vmatprep.subr.mxu0 0.0
    %6984 = vmatpush1.xpose.msra.mxu0 0.0
    %6985 = vmatprep.subr.mxu0 0.0
    %6986 = vmatpush1.xpose.msra.mxu0 0.0
    %6987 = vmatprep.subr.mxu0 0.0
    %6988 = vmatpush1.xpose.msra.mxu0 0.0
    %6989 = vmatprep.subr.mxu0 0.0
    %6990 = vmatpush1.xpose.msra.mxu0 0.0
    %6991 = vmatprep.subr.mxu0 0.0
    %6992 = vmatpush1.xpose.msra.mxu0 0.0
    %6993 = vmatprep.subr.mxu0 0.0
    %6994 = vmatpush1.xpose.msra.mxu0 0.0
    %6995 = vmatprep.subr.mxu0 0.0
    %6996 = vmatpush1.xpose.msra.mxu0 0.0
    %6997 = vmatprep.subr.mxu0 0.0
    %6998 = vmatpush1.xpose.msra.mxu0 0.0
    %6999 = vmatprep.subr.mxu0 0.0
    %7000 = vmatpush1.xpose.msra.mxu0 0.0
    %7001 = vmatprep.subr.mxu0 0.0
    %7002 = vmatpush1.xpose.msra.mxu0 0.0
    %7003 = vmatprep.subr.mxu0 0.0
    %7004 = vmatpush1.xpose.msra.mxu0 0.0
    %7005 = vmatprep.subr.mxu0 0.0
    %7006 = vmatpush1.xpose.msra.mxu0 0.0
    %7007 = vmatprep.subr.mxu0 0.0
    %7008 = vmatpush1.xpose.msra.mxu0 0.0
    %7009 = vmatprep.subr.mxu0 0.0
    %7010 = vmatpush1.xpose.msra.mxu0 0.0
    %7011 = vmatprep.subr.mxu0 0.0
    %7012 = vmatpush1.xpose.msra.mxu0 0.0
    %7013 = vmatprep.subr.mxu0 0.0
    %7014 = vmatpush1.xpose.msra.mxu0 0.0
    %7015 = vmatprep.subr.mxu0 0.0
    %7016 = vmatpush1.xpose.msra.mxu0 0.0
    %7017 = vmatprep.subr.mxu0 0.0
    %7018 = vmatpush1.xpose.msra.mxu0 0.0
    %v7019 = vand.u32 %v3876, 4294901760
    %v7020 = vsub.f32 %v3876, %v7019
    %v7021 = vand.u32 %v7020, 4294901760
    %7022 = vmatprep.mubr.f32.mxu0 %v7021
    %v7023 = vand.u32 %v3875, 4294901760
    %v7024 = vsub.f32 %v3875, %v7023
    %v7025 = vand.u32 %v7024, 4294901760
    %7026 = vmatmul.mubr.f32.gmra.mrb[0].mxu0 %v7025
    %v7027 = vpop.f32.mrb[0].mxu0
    %v7028 = vadd.f32 %v6950, %v7027
    %v7029 = vpop.f32.mrb[0].mxu0
    %7030 = vdwg.mxu0
    %v7031 = vand.u32 %v3876, 4294901760
    %v7032 = vsub.f32 %v3876, %v7031
    %v7033 = vand.u32 %v7032, 4294901760
    %7034 = vmatprep.subr.mxu0 %v7033
    %v7035 = vand.u32 %v3875, 4294901760
    %v7036 = vsub.f32 %v3875, %v7035
    %v7037 = vand.u32 %v7036, 4294901760
    %7038 = vmatpush1.xpose.msra.mxu0 %v7037
    %7039 = vmatprep.subr.mxu0 0.0
    %7040 = vmatpush1.xpose.msra.mxu0 0.0
    %7041 = vmatprep.subr.mxu0 0.0
    %7042 = vmatpush1.xpose.msra.mxu0 0.0
    %7043 = vmatprep.subr.mxu0 0.0
    %7044 = vmatpush1.xpose.msra.mxu0 0.0
    %7045 = vmatprep.subr.mxu0 0.0
    %7046 = vmatpush1.xpose.msra.mxu0 0.0
    %7047 = vmatprep.subr.mxu0 0.0
    %7048 = vmatpush1.xpose.msra.mxu0 0.0
    %7049 = vmatprep.subr.mxu0 0.0
    %7050 = vmatpush1.xpose.msra.mxu0 0.0
    %7051 = vmatprep.subr.mxu0 0.0
    %7052 = vmatpush1.xpose.msra.mxu0 0.0
    %7053 = vmatprep.subr.mxu0 0.0
    %7054 = vmatpush1.xpose.msra.mxu0 0.0
    %7055 = vmatprep.subr.mxu0 0.0
    %7056 = vmatpush1.xpose.msra.mxu0 0.0
    %7057 = vmatprep.subr.mxu0 0.0
    %7058 = vmatpush1.xpose.msra.mxu0 0.0
    %7059 = vmatprep.subr.mxu0 0.0
    %7060 = vmatpush1.xpose.msra.mxu0 0.0
    %7061 = vmatprep.subr.mxu0 0.0
    %7062 = vmatpush1.xpose.msra.mxu0 0.0
    %7063 = vmatprep.subr.mxu0 0.0
    %7064 = vmatpush1.xpose.msra.mxu0 0.0
    %7065 = vmatprep.subr.mxu0 0.0
    %7066 = vmatpush1.xpose.msra.mxu0 0.0
    %7067 = vmatprep.subr.mxu0 0.0
    %7068 = vmatpush1.xpose.msra.mxu0 0.0
    %7069 = vmatprep.subr.mxu0 0.0
    %7070 = vmatpush1.xpose.msra.mxu0 0.0
    %7071 = vmatprep.subr.mxu0 0.0
    %7072 = vmatpush1.xpose.msra.mxu0 0.0
    %7073 = vmatprep.subr.mxu0 0.0
    %7074 = vmatpush1.xpose.msra.mxu0 0.0
    %7075 = vmatprep.subr.mxu0 0.0
    %7076 = vmatpush1.xpose.msra.mxu0 0.0
    %7077 = vmatprep.subr.mxu0 0.0
    %7078 = vmatpush1.xpose.msra.mxu0 0.0
    %7079 = vmatprep.subr.mxu0 0.0
    %7080 = vmatpush1.xpose.msra.mxu0 0.0
    %7081 = vmatprep.subr.mxu0 0.0
    %7082 = vmatpush1.xpose.msra.mxu0 0.0
    %7083 = vmatprep.subr.mxu0 0.0
    %7084 = vmatpush1.xpose.msra.mxu0 0.0
    %7085 = vmatprep.subr.mxu0 0.0
    %7086 = vmatpush1.xpose.msra.mxu0 0.0
    %7087 = vmatprep.subr.mxu0 0.0
    %7088 = vmatpush1.xpose.msra.mxu0 0.0
    %7089 = vmatprep.subr.mxu0 0.0
    %7090 = vmatpush1.xpose.msra.mxu0 0.0
    %7091 = vmatprep.subr.mxu0 0.0
    %7092 = vmatpush1.xpose.msra.mxu0 0.0
    %7093 = vmatprep.subr.mxu0 0.0
    %7094 = vmatpush1.xpose.msra.mxu0 0.0
    %7095 = vmatprep.subr.mxu0 0.0
    %7096 = vmatpush1.xpose.msra.mxu0 0.0
    %7097 = vmatprep.subr.mxu0 0.0
    %7098 = vmatpush1.xpose.msra.mxu0 0.0
    %7099 = vmatprep.subr.mxu0 0.0
    %7100 = vmatpush1.xpose.msra.mxu0 0.0
    %v7101 = vand.u32 %v3876, 4294901760
    %7102 = vmatprep.mubr.f32.mxu0 %v7101
    %v7103 = vand.u32 %v3875, 4294901760
    %7104 = vmatmul.mubr.f32.gmra.mrb[0].mxu0 %v7103
    %v7105 = vpop.f32.mrb[0].mxu0
    %v7106 = vadd.f32 %v7028, %v7105
    %v7107 = vpop.f32.mrb[0].mxu0
    %7108 = vdwg.mxu0
    %v7109 = vand.u32 %v3876, 4294901760
    %7110 = vmatprep.subr.mxu0 %v7109
    %v7111 = vand.u32 %v3875, 4294901760
    %7112 = vmatpush1.xpose.msra.mxu0 %v7111
    %7113 = vmatprep.subr.mxu0 0.0
    %7114 = vmatpush1.xpose.msra.mxu0 0.0
    %7115 = vmatprep.subr.mxu0 0.0
    %7116 = vmatpush1.xpose.msra.mxu0 0.0
    %7117 = vmatprep.subr.mxu0 0.0
    %7118 = vmatpush1.xpose.msra.mxu0 0.0
    %7119 = vmatprep.subr.mxu0 0.0
    %7120 = vmatpush1.xpose.msra.mxu0 0.0
    %7121 = vmatprep.subr.mxu0 0.0
    %7122 = vmatpush1.xpose.msra.mxu0 0.0
    %7123 = vmatprep.subr.mxu0 0.0
    %7124 = vmatpush1.xpose.msra.mxu0 0.0
    %7125 = vmatprep.subr.mxu0 0.0
    %7126 = vmatpush1.xpose.msra.mxu0 0.0
    %7127 = vmatprep.subr.mxu0 0.0
    %7128 = vmatpush1.xpose.msra.mxu0 0.0
    %7129 = vmatprep.subr.mxu0 0.0
    %7130 = vmatpush1.xpose.msra.mxu0 0.0
    %7131 = vmatprep.subr.mxu0 0.0
    %7132 = vmatpush1.xpose.msra.mxu0 0.0
    %7133 = vmatprep.subr.mxu0 0.0
    %7134 = vmatpush1.xpose.msra.mxu0 0.0
    %7135 = vmatprep.subr.mxu0 0.0
    %7136 = vmatpush1.xpose.msra.mxu0 0.0
    %7137 = vmatprep.subr.mxu0 0.0
    %7138 = vmatpush1.xpose.msra.mxu0 0.0
    %7139 = vmatprep.subr.mxu0 0.0
    %7140 = vmatpush1.xpose.msra.mxu0 0.0
    %7141 = vmatprep.subr.mxu0 0.0
    %7142 = vmatpush1.xpose.msra.mxu0 0.0
    %7143 = vmatprep.subr.mxu0 0.0
    %7144 = vmatpush1.xpose.msra.mxu0 0.0
    %7145 = vmatprep.subr.mxu0 0.0
    %7146 = vmatpush1.xpose.msra.mxu0 0.0
    %7147 = vmatprep.subr.mxu0 0.0
    %7148 = vmatpush1.xpose.msra.mxu0 0.0
    %7149 = vmatprep.subr.mxu0 0.0
    %7150 = vmatpush1.xpose.msra.mxu0 0.0
    %7151 = vmatprep.subr.mxu0 0.0
    %7152 = vmatpush1.xpose.msra.mxu0 0.0
    %7153 = vmatprep.subr.mxu0 0.0
    %7154 = vmatpush1.xpose.msra.mxu0 0.0
    %7155 = vmatprep.subr.mxu0 0.0
    %7156 = vmatpush1.xpose.msra.mxu0 0.0
    %7157 = vmatprep.subr.mxu0 0.0
    %7158 = vmatpush1.xpose.msra.mxu0 0.0
    %7159 = vmatprep.subr.mxu0 0.0
    %7160 = vmatpush1.xpose.msra.mxu0 0.0
    %7161 = vmatprep.subr.mxu0 0.0
    %7162 = vmatpush1.xpose.msra.mxu0 0.0
    %7163 = vmatprep.subr.mxu0 0.0
    %7164 = vmatpush1.xpose.msra.mxu0 0.0
    %7165 = vmatprep.subr.mxu0 0.0
    %7166 = vmatpush1.xpose.msra.mxu0 0.0
    %7167 = vmatprep.subr.mxu0 0.0
    %7168 = vmatpush1.xpose.msra.mxu0 0.0
    %7169 = vmatprep.subr.mxu0 0.0
    %7170 = vmatpush1.xpose.msra.mxu0 0.0
    %7171 = vmatprep.subr.mxu0 0.0
    %7172 = vmatpush1.xpose.msra.mxu0 0.0
    %7173 = vmatprep.subr.mxu0 0.0
    %7174 = vmatpush1.xpose.msra.mxu0 0.0
    %v7175 = vand.u32 %v3876, 4294901760
    %7176 = vmatprep.mubr.f32.mxu0 %v7175
    %v7177 = vand.u32 %v3875, 4294901760
    %7178 = vmatmul.mubr.f32.gmra.mrb[0].mxu0 %v7177
    %v7179 = vpop.f32.mrb[0].mxu0
    %v7180 = vadd.f32 %v7106, %v7179
    %v7181 = vpop.f32.mrb[0].mxu0
    %7182 = vdwg.mxu0
    %v7183 = vand.u32 %v3878, 4294901760
    %7184 = vmatprep.subr.mxu0 %v7183
    %v7185 = vand.u32 %v3877, 4294901760
    %7186 = vmatpush1.xpose.msra.mxu0 %v7185
    %7187 = vmatprep.subr.mxu0 0.0
    %7188 = vmatpush1.xpose.msra.mxu0 0.0
    %7189 = vmatprep.subr.mxu0 0.0
    %7190 = vmatpush1.xpose.msra.mxu0 0.0
    %7191 = vmatprep.subr.mxu0 0.0
    %7192 = vmatpush1.xpose.msra.mxu0 0.0
    %7193 = vmatprep.subr.mxu0 0.0
    %7194 = vmatpush1.xpose.msra.mxu0 0.0
    %7195 = vmatprep.subr.mxu0 0.0
    %7196 = vmatpush1.xpose.msra.mxu0 0.0
    %7197 = vmatprep.subr.mxu0 0.0
    %7198 = vmatpush1.xpose.msra.mxu0 0.0
    %7199 = vmatprep.subr.mxu0 0.0
    %7200 = vmatpush1.xpose.msra.mxu0 0.0
    %7201 = vmatprep.subr.mxu0 0.0
    %7202 = vmatpush1.xpose.msra.mxu0 0.0
    %7203 = vmatprep.subr.mxu0 0.0
    %7204 = vmatpush1.xpose.msra.mxu0 0.0
    %7205 = vmatprep.subr.mxu0 0.0
    %7206 = vmatpush1.xpose.msra.mxu0 0.0
    %7207 = vmatprep.subr.mxu0 0.0
    %7208 = vmatpush1.xpose.msra.mxu0 0.0
    %7209 = vmatprep.subr.mxu0 0.0
    %7210 = vmatpush1.xpose.msra.mxu0 0.0
    %7211 = vmatprep.subr.mxu0 0.0
    %7212 = vmatpush1.xpose.msra.mxu0 0.0
    %7213 = vmatprep.subr.mxu0 0.0
    %7214 = vmatpush1.xpose.msra.mxu0 0.0
    %7215 = vmatprep.subr.mxu0 0.0
    %7216 = vmatpush1.xpose.msra.mxu0 0.0
    %7217 = vmatprep.subr.mxu0 0.0
    %7218 = vmatpush1.xpose.msra.mxu0 0.0
    %7219 = vmatprep.subr.mxu0 0.0
    %7220 = vmatpush1.xpose.msra.mxu0 0.0
    %7221 = vmatprep.subr.mxu0 0.0
    %7222 = vmatpush1.xpose.msra.mxu0 0.0
    %7223 = vmatprep.subr.mxu0 0.0
    %7224 = vmatpush1.xpose.msra.mxu0 0.0
    %7225 = vmatprep.subr.mxu0 0.0
    %7226 = vmatpush1.xpose.msra.mxu0 0.0
    %7227 = vmatprep.subr.mxu0 0.0
    %7228 = vmatpush1.xpose.msra.mxu0 0.0
    %7229 = vmatprep.subr.mxu0 0.0
    %7230 = vmatpush1.xpose.msra.mxu0 0.0
    %7231 = vmatprep.subr.mxu0 0.0
    %7232 = vmatpush1.xpose.msra.mxu0 0.0
    %7233 = vmatprep.subr.mxu0 0.0
    %7234 = vmatpush1.xpose.msra.mxu0 0.0
    %7235 = vmatprep.subr.mxu0 0.0
    %7236 = vmatpush1.xpose.msra.mxu0 0.0
    %7237 = vmatprep.subr.mxu0 0.0
    %7238 = vmatpush1.xpose.msra.mxu0 0.0
    %7239 = vmatprep.subr.mxu0 0.0
    %7240 = vmatpush1.xpose.msra.mxu0 0.0
    %7241 = vmatprep.subr.mxu0 0.0
    %7242 = vmatpush1.xpose.msra.mxu0 0.0
    %7243 = vmatprep.subr.mxu0 0.0
    %7244 = vmatpush1.xpose.msra.mxu0 0.0
    %7245 = vmatprep.subr.mxu0 0.0
    %7246 = vmatpush1.xpose.msra.mxu0 0.0
    %7247 = vmatprep.subr.mxu0 0.0
    %7248 = vmatpush1.xpose.msra.mxu0 0.0
    %v7249 = vand.u32 %v3878, 4294901760
    %v7250 = vsub.f32 %v3878, %v7249
    %v7251 = vand.u32 %v7250, 4294901760
    %v7252 = vsub.f32 %v7250, %v7251
    %v7253 = vand.u32 %v7252, 4294901760
    %7254 = vmatprep.mubr.f32.mxu0 %v7253
    %v7255 = vand.u32 %v3877, 4294901760
    %v7256 = vsub.f32 %v3877, %v7255
    %v7257 = vand.u32 %v7256, 4294901760
    %v7258 = vsub.f32 %v7256, %v7257
    %v7259 = vand.u32 %v7258, 4294901760
    %7260 = vmatmul.mubr.f32.gmra.mrb[0].mxu0 %v7259
    %v7261 = vpop.f32.mrb[0].mxu0
    %v7262 = vadd.f32 %v7180, %v7261
    %v7263 = vpop.f32.mrb[0].mxu0
    %7264 = vdwg.mxu0
    %v7265 = vand.u32 %v3878, 4294901760
    %v7266 = vsub.f32 %v3878, %v7265
    %v7267 = vand.u32 %v7266, 4294901760
    %v7268 = vsub.f32 %v7266, %v7267
    %v7269 = vand.u32 %v7268, 4294901760
    %7270 = vmatprep.subr.mxu0 %v7269
    %v7271 = vand.u32 %v3877, 4294901760
    %v7272 = vsub.f32 %v3877, %v7271
    %v7273 = vand.u32 %v7272, 4294901760
    %v7274 = vsub.f32 %v7272, %v7273
    %v7275 = vand.u32 %v7274, 4294901760
    %7276 = vmatpush1.xpose.msra.mxu0 %v7275
    %7277 = vmatprep.subr.mxu0 0.0
    %7278 = vmatpush1.xpose.msra.mxu0 0.0
    %7279 = vmatprep.subr.mxu0 0.0
    %7280 = vmatpush1.xpose.msra.mxu0 0.0
    %7281 = vmatprep.subr.mxu0 0.0
    %7282 = vmatpush1.xpose.msra.mxu0 0.0
    %7283 = vmatprep.subr.mxu0 0.0
    %7284 = vmatpush1.xpose.msra.mxu0 0.0
    %7285 = vmatprep.subr.mxu0 0.0
    %7286 = vmatpush1.xpose.msra.mxu0 0.0
    %7287 = vmatprep.subr.mxu0 0.0
    %7288 = vmatpush1.xpose.msra.mxu0 0.0
    %7289 = vmatprep.subr.mxu0 0.0
    %7290 = vmatpush1.xpose.msra.mxu0 0.0
    %7291 = vmatprep.subr.mxu0 0.0
    %7292 = vmatpush1.xpose.msra.mxu0 0.0
    %7293 = vmatprep.subr.mxu0 0.0
    %7294 = vmatpush1.xpose.msra.mxu0 0.0
    %7295 = vmatprep.subr.mxu0 0.0
    %7296 = vmatpush1.xpose.msra.mxu0 0.0
    %7297 = vmatprep.subr.mxu0 0.0
    %7298 = vmatpush1.xpose.msra.mxu0 0.0
    %7299 = vmatprep.subr.mxu0 0.0
    %7300 = vmatpush1.xpose.msra.mxu0 0.0
    %7301 = vmatprep.subr.mxu0 0.0
    %7302 = vmatpush1.xpose.msra.mxu0 0.0
    %7303 = vmatprep.subr.mxu0 0.0
    %7304 = vmatpush1.xpose.msra.mxu0 0.0
    %7305 = vmatprep.subr.mxu0 0.0
    %7306 = vmatpush1.xpose.msra.mxu0 0.0
    %7307 = vmatprep.subr.mxu0 0.0
    %7308 = vmatpush1.xpose.msra.mxu0 0.0
    %7309 = vmatprep.subr.mxu0 0.0
    %7310 = vmatpush1.xpose.msra.mxu0 0.0
    %7311 = vmatprep.subr.mxu0 0.0
    %7312 = vmatpush1.xpose.msra.mxu0 0.0
    %7313 = vmatprep.subr.mxu0 0.0
    %7314 = vmatpush1.xpose.msra.mxu0 0.0
    %7315 = vmatprep.subr.mxu0 0.0
    %7316 = vmatpush1.xpose.msra.mxu0 0.0
    %7317 = vmatprep.subr.mxu0 0.0
    %7318 = vmatpush1.xpose.msra.mxu0 0.0
    %7319 = vmatprep.subr.mxu0 0.0
    %7320 = vmatpush1.xpose.msra.mxu0 0.0
    %7321 = vmatprep.subr.mxu0 0.0
    %7322 = vmatpush1.xpose.msra.mxu0 0.0
    %7323 = vmatprep.subr.mxu0 0.0
    %7324 = vmatpush1.xpose.msra.mxu0 0.0
    %7325 = vmatprep.subr.mxu0 0.0
    %7326 = vmatpush1.xpose.msra.mxu0 0.0
    %7327 = vmatprep.subr.mxu0 0.0
    %7328 = vmatpush1.xpose.msra.mxu0 0.0
    %7329 = vmatprep.subr.mxu0 0.0
    %7330 = vmatpush1.xpose.msra.mxu0 0.0
    %7331 = vmatprep.subr.mxu0 0.0
    %7332 = vmatpush1.xpose.msra.mxu0 0.0
    %7333 = vmatprep.subr.mxu0 0.0
    %7334 = vmatpush1.xpose.msra.mxu0 0.0
    %7335 = vmatprep.subr.mxu0 0.0
    %7336 = vmatpush1.xpose.msra.mxu0 0.0
    %7337 = vmatprep.subr.mxu0 0.0
    %7338 = vmatpush1.xpose.msra.mxu0 0.0
    %v7339 = vand.u32 %v3878, 4294901760
    %7340 = vmatprep.mubr.f32.mxu0 %v7339
    %v7341 = vand.u32 %v3877, 4294901760
    %7342 = vmatmul.mubr.f32.gmra.mrb[0].mxu0 %v7341
    %v7343 = vpop.f32.mrb[0].mxu0
    %v7344 = vadd.f32 %v7262, %v7343
    %v7345 = vpop.f32.mrb[0].mxu0
    %7346 = vdwg.mxu0
    %v7347 = vand.u32 %v3878, 4294901760
    %v7348 = vsub.f32 %v3878, %v7347
    %7349 = vmatprep.subr.mxu0 %v7348
    %v7350 = vand.u32 %v3877, 4294901760
    %v7351 = vsub.f32 %v3877, %v7350
    %7352 = vmatpush1.xpose.msra.mxu0 %v7351
    %7353 = vmatprep.subr.mxu0 0.0
    %7354 = vmatpush1.xpose.msra.mxu0 0.0
    %7355 = vmatprep.subr.mxu0 0.0
    %7356 = vmatpush1.xpose.msra.mxu0 0.0
    %7357 = vmatprep.subr.mxu0 0.0
    %7358 = vmatpush1.xpose.msra.mxu0 0.0
    %7359 = vmatprep.subr.mxu0 0.0
    %7360 = vmatpush1.xpose.msra.mxu0 0.0
    %7361 = vmatprep.subr.mxu0 0.0
    %7362 = vmatpush1.xpose.msra.mxu0 0.0
    %7363 = vmatprep.subr.mxu0 0.0
    %7364 = vmatpush1.xpose.msra.mxu0 0.0
    %7365 = vmatprep.subr.mxu0 0.0
    %7366 = vmatpush1.xpose.msra.mxu0 0.0
    %7367 = vmatprep.subr.mxu0 0.0
    %7368 = vmatpush1.xpose.msra.mxu0 0.0
    %7369 = vmatprep.subr.mxu0 0.0
    %7370 = vmatpush1.xpose.msra.mxu0 0.0
    %7371 = vmatprep.subr.mxu0 0.0
    %7372 = vmatpush1.xpose.msra.mxu0 0.0
    %7373 = vmatprep.subr.mxu0 0.0
    %7374 = vmatpush1.xpose.msra.mxu0 0.0
    %7375 = vmatprep.subr.mxu0 0.0
    %7376 = vmatpush1.xpose.msra.mxu0 0.0
    %7377 = vmatprep.subr.mxu0 0.0
    %7378 = vmatpush1.xpose.msra.mxu0 0.0
    %7379 = vmatprep.subr.mxu0 0.0
    %7380 = vmatpush1.xpose.msra.mxu0 0.0
    %7381 = vmatprep.subr.mxu0 0.0
    %7382 = vmatpush1.xpose.msra.mxu0 0.0
    %7383 = vmatprep.subr.mxu0 0.0
    %7384 = vmatpush1.xpose.msra.mxu0 0.0
    %7385 = vmatprep.subr.mxu0 0.0
    %7386 = vmatpush1.xpose.msra.mxu0 0.0
    %7387 = vmatprep.subr.mxu0 0.0
    %7388 = vmatpush1.xpose.msra.mxu0 0.0
    %7389 = vmatprep.subr.mxu0 0.0
    %7390 = vmatpush1.xpose.msra.mxu0 0.0
    %7391 = vmatprep.subr.mxu0 0.0
    %7392 = vmatpush1.xpose.msra.mxu0 0.0
    %7393 = vmatprep.subr.mxu0 0.0
    %7394 = vmatpush1.xpose.msra.mxu0 0.0
    %7395 = vmatprep.subr.mxu0 0.0
    %7396 = vmatpush1.xpose.msra.mxu0 0.0
    %7397 = vmatprep.subr.mxu0 0.0
    %7398 = vmatpush1.xpose.msra.mxu0 0.0
    %7399 = vmatprep.subr.mxu0 0.0
    %7400 = vmatpush1.xpose.msra.mxu0 0.0
    %7401 = vmatprep.subr.mxu0 0.0
    %7402 = vmatpush1.xpose.msra.mxu0 0.0
    %7403 = vmatprep.subr.mxu0 0.0
    %7404 = vmatpush1.xpose.msra.mxu0 0.0
    %7405 = vmatprep.subr.mxu0 0.0
    %7406 = vmatpush1.xpose.msra.mxu0 0.0
    %7407 = vmatprep.subr.mxu0 0.0
    %7408 = vmatpush1.xpose.msra.mxu0 0.0
    %7409 = vmatprep.subr.mxu0 0.0
    %7410 = vmatpush1.xpose.msra.mxu0 0.0
    %7411 = vmatprep.subr.mxu0 0.0
    %7412 = vmatpush1.xpose.msra.mxu0 0.0
    %7413 = vmatprep.subr.mxu0 0.0
    %7414 = vmatpush1.xpose.msra.mxu0 0.0
    %v7415 = vand.u32 %v3878, 4294901760
    %v7416 = vsub.f32 %v3878, %v7415
    %7417 = vmatprep.mubr.f32.mxu0 %v7416
    %v7418 = vand.u32 %v3877, 4294901760
    %v7419 = vsub.f32 %v3877, %v7418
    %7420 = vmatmul.mubr.f32.gmra.mrb[0].mxu0 %v7419
    %v7421 = vpop.f32.mrb[0].mxu0
    %v7422 = vadd.f32 %v7344, %v7421
    %v7423 = vpop.f32.mrb[0].mxu0
    %7424 = vdwg.mxu0
    %v7425 = vand.u32 %v3878, 4294901760
    %7426 = vmatprep.subr.mxu0 %v7425
    %v7427 = vand.u32 %v3877, 4294901760
    %7428 = vmatpush1.xpose.msra.mxu0 %v7427
    %7429 = vmatprep.subr.mxu0 0.0
    %7430 = vmatpush1.xpose.msra.mxu0 0.0
    %7431 = vmatprep.subr.mxu0 0.0
    %7432 = vmatpush1.xpose.msra.mxu0 0.0
    %7433 = vmatprep.subr.mxu0 0.0
    %7434 = vmatpush1.xpose.msra.mxu0 0.0
    %7435 = vmatprep.subr.mxu0 0.0
    %7436 = vmatpush1.xpose.msra.mxu0 0.0
    %7437 = vmatprep.subr.mxu0 0.0
    %7438 = vmatpush1.xpose.msra.mxu0 0.0
    %7439 = vmatprep.subr.mxu0 0.0
    %7440 = vmatpush1.xpose.msra.mxu0 0.0
    %7441 = vmatprep.subr.mxu0 0.0
    %7442 = vmatpush1.xpose.msra.mxu0 0.0
    %7443 = vmatprep.subr.mxu0 0.0
    %7444 = vmatpush1.xpose.msra.mxu0 0.0
    %7445 = vmatprep.subr.mxu0 0.0
    %7446 = vmatpush1.xpose.msra.mxu0 0.0
    %7447 = vmatprep.subr.mxu0 0.0
    %7448 = vmatpush1.xpose.msra.mxu0 0.0
    %7449 = vmatprep.subr.mxu0 0.0
    %7450 = vmatpush1.xpose.msra.mxu0 0.0
    %7451 = vmatprep.subr.mxu0 0.0
    %7452 = vmatpush1.xpose.msra.mxu0 0.0
    %7453 = vmatprep.subr.mxu0 0.0
    %7454 = vmatpush1.xpose.msra.mxu0 0.0
    %7455 = vmatprep.subr.mxu0 0.0
    %7456 = vmatpush1.xpose.msra.mxu0 0.0
    %7457 = vmatprep.subr.mxu0 0.0
    %7458 = vmatpush1.xpose.msra.mxu0 0.0
    %7459 = vmatprep.subr.mxu0 0.0
    %7460 = vmatpush1.xpose.msra.mxu0 0.0
    %7461 = vmatprep.subr.mxu0 0.0
    %7462 = vmatpush1.xpose.msra.mxu0 0.0
    %7463 = vmatprep.subr.mxu0 0.0
    %7464 = vmatpush1.xpose.msra.mxu0 0.0
    %7465 = vmatprep.subr.mxu0 0.0
    %7466 = vmatpush1.xpose.msra.mxu0 0.0
    %7467 = vmatprep.subr.mxu0 0.0
    %7468 = vmatpush1.xpose.msra.mxu0 0.0
    %7469 = vmatprep.subr.mxu0 0.0
    %7470 = vmatpush1.xpose.msra.mxu0 0.0
    %7471 = vmatprep.subr.mxu0 0.0
    %7472 = vmatpush1.xpose.msra.mxu0 0.0
    %7473 = vmatprep.subr.mxu0 0.0
    %7474 = vmatpush1.xpose.msra.mxu0 0.0
    %7475 = vmatprep.subr.mxu0 0.0
    %7476 = vmatpush1.xpose.msra.mxu0 0.0
    %7477 = vmatprep.subr.mxu0 0.0
    %7478 = vmatpush1.xpose.msra.mxu0 0.0
    %7479 = vmatprep.subr.mxu0 0.0
    %7480 = vmatpush1.xpose.msra.mxu0 0.0
    %7481 = vmatprep.subr.mxu0 0.0
    %7482 = vmatpush1.xpose.msra.mxu0 0.0
    %7483 = vmatprep.subr.mxu0 0.0
    %7484 = vmatpush1.xpose.msra.mxu0 0.0
    %7485 = vmatprep.subr.mxu0 0.0
    %7486 = vmatpush1.xpose.msra.mxu0 0.0
    %7487 = vmatprep.subr.mxu0 0.0
    %7488 = vmatpush1.xpose.msra.mxu0 0.0
    %7489 = vmatprep.subr.mxu0 0.0
    %7490 = vmatpush1.xpose.msra.mxu0 0.0
    %v7491 = vand.u32 %v3878, 4294901760
    %v7492 = vsub.f32 %v3878, %v7491
    %v7493 = vand.u32 %v7492, 4294901760
    %7494 = vmatprep.mubr.f32.mxu0 %v7493
    %v7495 = vand.u32 %v3877, 4294901760
    %v7496 = vsub.f32 %v3877, %v7495
    %v7497 = vand.u32 %v7496, 4294901760
    %7498 = vmatmul.mubr.f32.gmra.mrb[0].mxu0 %v7497
    %v7499 = vpop.f32.mrb[0].mxu0
    %v7500 = vadd.f32 %v7422, %v7499
    %v7501 = vpop.f32.mrb[0].mxu0
    %7502 = vdwg.mxu0
    %v7503 = vand.u32 %v3878, 4294901760
    %v7504 = vsub.f32 %v3878, %v7503
    %v7505 = vand.u32 %v7504, 4294901760
    %7506 = vmatprep.subr.mxu0 %v7505
    %v7507 = vand.u32 %v3877, 4294901760
    %v7508 = vsub.f32 %v3877, %v7507
    %v7509 = vand.u32 %v7508, 4294901760
    %7510 = vmatpush1.xpose.msra.mxu0 %v7509
    %7511 = vmatprep.subr.mxu0 0.0
    %7512 = vmatpush1.xpose.msra.mxu0 0.0
    %7513 = vmatprep.subr.mxu0 0.0
    %7514 = vmatpush1.xpose.msra.mxu0 0.0
    %7515 = vmatprep.subr.mxu0 0.0
    %7516 = vmatpush1.xpose.msra.mxu0 0.0
    %7517 = vmatprep.subr.mxu0 0.0
    %7518 = vmatpush1.xpose.msra.mxu0 0.0
    %7519 = vmatprep.subr.mxu0 0.0
    %7520 = vmatpush1.xpose.msra.mxu0 0.0
    %7521 = vmatprep.subr.mxu0 0.0
    %7522 = vmatpush1.xpose.msra.mxu0 0.0
    %7523 = vmatprep.subr.mxu0 0.0
    %7524 = vmatpush1.xpose.msra.mxu0 0.0
    %7525 = vmatprep.subr.mxu0 0.0
    %7526 = vmatpush1.xpose.msra.mxu0 0.0
    %7527 = vmatprep.subr.mxu0 0.0
    %7528 = vmatpush1.xpose.msra.mxu0 0.0
    %7529 = vmatprep.subr.mxu0 0.0
    %7530 = vmatpush1.xpose.msra.mxu0 0.0
    %7531 = vmatprep.subr.mxu0 0.0
    %7532 = vmatpush1.xpose.msra.mxu0 0.0
    %7533 = vmatprep.subr.mxu0 0.0
    %7534 = vmatpush1.xpose.msra.mxu0 0.0
    %7535 = vmatprep.subr.mxu0 0.0
    %7536 = vmatpush1.xpose.msra.mxu0 0.0
    %7537 = vmatprep.subr.mxu0 0.0
    %7538 = vmatpush1.xpose.msra.mxu0 0.0
    %7539 = vmatprep.subr.mxu0 0.0
    %7540 = vmatpush1.xpose.msra.mxu0 0.0
    %7541 = vmatprep.subr.mxu0 0.0
    %7542 = vmatpush1.xpose.msra.mxu0 0.0
    %7543 = vmatprep.subr.mxu0 0.0
    %7544 = vmatpush1.xpose.msra.mxu0 0.0
    %7545 = vmatprep.subr.mxu0 0.0
    %7546 = vmatpush1.xpose.msra.mxu0 0.0
    %7547 = vmatprep.subr.mxu0 0.0
    %7548 = vmatpush1.xpose.msra.mxu0 0.0
    %7549 = vmatprep.subr.mxu0 0.0
    %7550 = vmatpush1.xpose.msra.mxu0 0.0
    %7551 = vmatprep.subr.mxu0 0.0
    %7552 = vmatpush1.xpose.msra.mxu0 0.0
    %7553 = vmatprep.subr.mxu0 0.0
    %7554 = vmatpush1.xpose.msra.mxu0 0.0
    %7555 = vmatprep.subr.mxu0 0.0
    %7556 = vmatpush1.xpose.msra.mxu0 0.0
    %7557 = vmatprep.subr.mxu0 0.0
    %7558 = vmatpush1.xpose.msra.mxu0 0.0
    %7559 = vmatprep.subr.mxu0 0.0
    %7560 = vmatpush1.xpose.msra.mxu0 0.0
    %7561 = vmatprep.subr.mxu0 0.0
    %7562 = vmatpush1.xpose.msra.mxu0 0.0
    %7563 = vmatprep.subr.mxu0 0.0
    %7564 = vmatpush1.xpose.msra.mxu0 0.0
    %7565 = vmatprep.subr.mxu0 0.0
    %7566 = vmatpush1.xpose.msra.mxu0 0.0
    %7567 = vmatprep.subr.mxu0 0.0
    %7568 = vmatpush1.xpose.msra.mxu0 0.0
    %7569 = vmatprep.subr.mxu0 0.0
    %7570 = vmatpush1.xpose.msra.mxu0 0.0
    %7571 = vmatprep.subr.mxu0 0.0
    %7572 = vmatpush1.xpose.msra.mxu0 0.0
    %v7573 = vand.u32 %v3878, 4294901760
    %7574 = vmatprep.mubr.f32.mxu0 %v7573
    %v7575 = vand.u32 %v3877, 4294901760
    %7576 = vmatmul.mubr.f32.gmra.mrb[0].mxu0 %v7575
    %v7577 = vpop.f32.mrb[0].mxu0
    %v7578 = vadd.f32 %v7500, %v7577
    %v7579 = vpop.f32.mrb[0].mxu0
    %7580 = vdwg.mxu0
    %v7581 = vand.u32 %v3878, 4294901760
    %7582 = vmatprep.subr.mxu0 %v7581
    %v7583 = vand.u32 %v3877, 4294901760
    %7584 = vmatpush1.xpose.msra.mxu0 %v7583
    %7585 = vmatprep.subr.mxu0 0.0
    %7586 = vmatpush1.xpose.msra.mxu0 0.0
    %7587 = vmatprep.subr.mxu0 0.0
    %7588 = vmatpush1.xpose.msra.mxu0 0.0
    %7589 = vmatprep.subr.mxu0 0.0
    %7590 = vmatpush1.xpose.msra.mxu0 0.0
    %7591 = vmatprep.subr.mxu0 0.0
    %7592 = vmatpush1.xpose.msra.mxu0 0.0
    %7593 = vmatprep.subr.mxu0 0.0
    %7594 = vmatpush1.xpose.msra.mxu0 0.0
    %7595 = vmatprep.subr.mxu0 0.0
    %7596 = vmatpush1.xpose.msra.mxu0 0.0
    %7597 = vmatprep.subr.mxu0 0.0
    %7598 = vmatpush1.xpose.msra.mxu0 0.0
    %7599 = vmatprep.subr.mxu0 0.0
    %7600 = vmatpush1.xpose.msra.mxu0 0.0
    %7601 = vmatprep.subr.mxu0 0.0
    %7602 = vmatpush1.xpose.msra.mxu0 0.0
    %7603 = vmatprep.subr.mxu0 0.0
    %7604 = vmatpush1.xpose.msra.mxu0 0.0
    %7605 = vmatprep.subr.mxu0 0.0
    %7606 = vmatpush1.xpose.msra.mxu0 0.0
    %7607 = vmatprep.subr.mxu0 0.0
    %7608 = vmatpush1.xpose.msra.mxu0 0.0
    %7609 = vmatprep.subr.mxu0 0.0
    %7610 = vmatpush1.xpose.msra.mxu0 0.0
    %7611 = vmatprep.subr.mxu0 0.0
    %7612 = vmatpush1.xpose.msra.mxu0 0.0
    %7613 = vmatprep.subr.mxu0 0.0
    %7614 = vmatpush1.xpose.msra.mxu0 0.0
    %7615 = vmatprep.subr.mxu0 0.0
    %7616 = vmatpush1.xpose.msra.mxu0 0.0
    %7617 = vmatprep.subr.mxu0 0.0
    %7618 = vmatpush1.xpose.msra.mxu0 0.0
    %7619 = vmatprep.subr.mxu0 0.0
    %7620 = vmatpush1.xpose.msra.mxu0 0.0
    %7621 = vmatprep.subr.mxu0 0.0
    %7622 = vmatpush1.xpose.msra.mxu0 0.0
    %7623 = vmatprep.subr.mxu0 0.0
    %7624 = vmatpush1.xpose.msra.mxu0 0.0
    %7625 = vmatprep.subr.mxu0 0.0
    %7626 = vmatpush1.xpose.msra.mxu0 0.0
    %7627 = vmatprep.subr.mxu0 0.0
    %7628 = vmatpush1.xpose.msra.mxu0 0.0
    %7629 = vmatprep.subr.mxu0 0.0
    %7630 = vmatpush1.xpose.msra.mxu0 0.0
    %7631 = vmatprep.subr.mxu0 0.0
    %7632 = vmatpush1.xpose.msra.mxu0 0.0
    %7633 = vmatprep.subr.mxu0 0.0
    %7634 = vmatpush1.xpose.msra.mxu0 0.0
    %7635 = vmatprep.subr.mxu0 0.0
    %7636 = vmatpush1.xpose.msra.mxu0 0.0
    %7637 = vmatprep.subr.mxu0 0.0
    %7638 = vmatpush1.xpose.msra.mxu0 0.0
    %7639 = vmatprep.subr.mxu0 0.0
    %7640 = vmatpush1.xpose.msra.mxu0 0.0
    %7641 = vmatprep.subr.mxu0 0.0
    %7642 = vmatpush1.xpose.msra.mxu0 0.0
    %7643 = vmatprep.subr.mxu0 0.0
    %7644 = vmatpush1.xpose.msra.mxu0 0.0
    %7645 = vmatprep.subr.mxu0 0.0
    %7646 = vmatpush1.xpose.msra.mxu0 0.0
    %v7647 = vand.u32 %v3878, 4294901760
    %7648 = vmatprep.mubr.f32.mxu0 %v7647
    %v7649 = vand.u32 %v3877, 4294901760
    %7650 = vmatmul.mubr.f32.gmra.mrb[0].mxu0 %v7649
    %v7651 = vpop.f32.mrb[0].mxu0
    %v7652 = vadd.f32 %v7578, %v7651
    %v7653 = vpop.f32.mrb[0].mxu0
    %7654 = vdwg.mxu0
    %v7655 = vadd.f32 %v3862, %v7652
    %7656 = vst.msk [vmem:[#allocation8] sm:$0xff] %vm3860, %v7655
    // Predicated region
    $region22: #{tpu_custom_call.1} parent=1 // pred_check
      _
    $region23: #{tpu_custom_call.1} parent=1 // pred_check_branch
      %7658 = sbr.rel (0) target = $region25
    $region24: #{tpu_custom_call.1} parent=1 // pred_region
      %s7660 = ssub.s32 128, 128
      %7661 = vsyncadd [#allocation4], %s7660
      %s7663 = sshll.u32 [#allocation7], 4
      %s7664 = int_to_ptr.vmem [resolvable:$true] %s7663
      %7666 = dma.vmem_to_hbm [thread:$0]  %s7664, 128, %s2, [#allocation4]
    $region25: #{tpu_custom_call.1} parent=1 // pred_fallthru
      _
    // Predicated region
    $region26: #{tpu_custom_call.1} parent=1 // pred_check
      _
    $region27: #{tpu_custom_call.1} parent=1 // pred_check_branch
      %7668 = sbr.rel (0) target = $region29
    $region28: #{tpu_custom_call.1} parent=1 // pred_region
      %s7670 = ssub.s32 128, 128
      %7671 = vsyncadd [#allocation9], %s7670
      %s7673 = sshll.u32 [#allocation8], 4
      %s7674 = int_to_ptr.vmem [resolvable:$true] %s7673
      %7676 = dma.vmem_to_hbm [thread:$0]  %s7674, 128, %s3, [#allocation9]
    $region29: #{tpu_custom_call.1} parent=1 // pred_fallthru
      _
    // Predicated region
    $region30: #{tpu_custom_call.1} parent=1 // pred_check
      _
    $region31: #{tpu_custom_call.1} parent=1 // pred_check_branch
      %7678 = sbr.rel (0) target = $region33
    $region32: #{tpu_custom_call.1} parent=1 // pred_region
      %7679 = dma.done [#allocation4], 128
    $region33: #{tpu_custom_call.1} parent=1 // pred_fallthru
      _
    // Predicated region
    $region34: #{tpu_custom_call.1} parent=1 // pred_check
      _
    $region35: #{tpu_custom_call.1} parent=1 // pred_check_branch
      %7681 = sbr.rel (0) target = $region37
    $region36: #{tpu_custom_call.1} parent=1 // pred_region
      %7682 = dma.done [#allocation9], 128
    $region37: #{tpu_custom_call.1} parent=1 // pred_fallthru
      _
    %7683 = vsyncpa [#allocation3], 1
    %7684 = vsyncpa [#allocation6], 1
    %7685 = vsyncpa [#allocation4], 1
    %7686 = vsyncpa [#allocation9], 1

</llo_original>
